<compile_context>
chip_gen: v7x
topology: tpu7x:2x2x1
jax: 0.10.0
libtpu: 0.0.40
codegen_flags: <defaults>
</compile_context>

<pallas_src>
from functools import partial

import jax
import jax.numpy as jnp
from jax.experimental import pallas as pl
from jax.experimental.pallas import tpu as pltpu

KSIZE = 9
PAD = 4
EPS = 1e-5


# ---------------------------------------------------------------------------
# Fused kernel (one batch tile per grid step; weights VMEM-resident).
# ---------------------------------------------------------------------------
def _decoder_fused_kernel(x_ref, wconv_ref, cbias_ref, w1t_ref, w2f_ref,
                          fc1w_ref, fc1b_ref, fc2w_ref, fc2b_ref, o_ref):
    # x_ref    : (TILE_B, K*B)      f32   q rows (== q.view(batch,K,B) row-major flat)
    # wconv_ref: (K*B, C_out*B)     bf16  Toeplitz conv weight, BN scale + zero-pad folded in
    # cbias_ref: (1, C_out*B)       f32   folded conv-BN bias (per channel, repeated B)
    # w1t_ref  : (C_mid, C_out*B)   bf16  SE squeeze 1x1 conv with avg-pool folded, transposed
    # w2f_ref  : (C_mid, C_out*B)   bf16  SE excite 1x1 conv with channel-broadcast folded
    # fc1w_ref : (C_out*B, 512)     bf16  Linear1 weight, BN1 scale folded
    # fc1b_ref : (1, 512)           f32
    # fc2w_ref : (512, 512)         bf16  Linear2 weight, BN2 scale folded
    # fc2b_ref : (1, 512)           f32
    # o_ref    : (TILE_B, 512)      f32

    x = x_ref[...]

    # --- Conv1d + BatchNorm1d as one matmul (contraction = K*B = 256) + broadcast add ---
    h = jnp.dot(x.astype(jnp.bfloat16), wconv_ref[...],
                preferred_element_type=jnp.float32) + cbias_ref[...]     # (TILE_B, C_out*B)

    # --- SEBlock: pool + 1x1 conv + ReLU + 1x1 conv + sigmoid + scale ---
    # avg-pool / channel-broadcast are folded into w1t / w2f host-side.
    hb = h.astype(jnp.bfloat16)
    e1 = jax.lax.dot_general(hb, w1t_ref[...],
                             dimension_numbers=(((1,), (1,)), ((), ())),
                             preferred_element_type=jnp.float32)          # (TILE_B, C_mid)
    e1 = jnp.maximum(e1, 0.0)
    gate = jax.nn.sigmoid(
        jnp.dot(e1.astype(jnp.bfloat16), w2f_ref[...],
                preferred_element_type=jnp.float32))                      # (TILE_B, C_out*B)
    # SE scaling + se_expander's final ReLU; h is already the flattened (c*B + j) feature.
    h = jnp.maximum(h * gate, 0.0)

    # --- fc1 + BN1 + ReLU ---
    h = jnp.dot(h.astype(jnp.bfloat16), fc1w_ref[...],
                preferred_element_type=jnp.float32) + fc1b_ref[...]
    h = jnp.maximum(h, 0.0)

    # --- fc2 + BN2 + ReLU ---
    h = jnp.dot(h.astype(jnp.bfloat16), fc2w_ref[...],
                preferred_element_type=jnp.float32) + fc2b_ref[...]
    o_ref[...] = jnp.maximum(h, 0.0)


# ---------------------------------------------------------------------------
# Parameter construction (deterministic, synthetic, PyTorch layout)
# ---------------------------------------------------------------------------
def init_params(key, K, B):
    expand = 512 // B
    c_out = expand * K
    c_mid = c_out // K            # SEBlock reduction = K
    d_in = c_out * B
    ks = jax.random.split(key, 8)

    def nrm(k, shape, scale=0.02):
        return (scale * jax.random.normal(k, shape)).astype(jnp.float32)

    return {
        "conv_w": nrm(ks[0], (c_out, K, KSIZE)),          # Conv1d weight (Cout, Cin, k)
        "bn_gamma": jnp.ones((c_out,), jnp.float32),
        "bn_beta": jnp.zeros((c_out,), jnp.float32),
        "bn_mean": jnp.zeros((c_out,), jnp.float32),
        "bn_var": jnp.ones((c_out,), jnp.float32),
        "se_w1": nrm(ks[1], (c_mid, c_out)),              # 1x1 conv (Cmid, Cout), bias=False
        "se_w2": nrm(ks[2], (c_out, c_mid)),              # 1x1 conv (Cout, Cmid), bias=False
        "fc1_w": nrm(ks[3], (d_in, 512)),                 # stored as (in, out)
        "fc1_b": nrm(ks[4], (512,)),
        "bn1_gamma": jnp.ones((512,), jnp.float32),
        "bn1_beta": jnp.zeros((512,), jnp.float32),
        "bn1_mean": jnp.zeros((512,), jnp.float32),
        "bn1_var": jnp.ones((512,), jnp.float32),
        "fc2_w": nrm(ks[5], (512, 512)),
        "fc2_b": nrm(ks[6], (512,)),
        "bn2_gamma": jnp.ones((512,), jnp.float32),
        "bn2_beta": jnp.zeros((512,), jnp.float32),
        "bn2_mean": jnp.zeros((512,), jnp.float32),
        "bn2_var": jnp.ones((512,), jnp.float32),
    }


def _fold_bn(gamma, beta, mean, var):
    scale = gamma / jnp.sqrt(var + EPS)
    bias = beta - mean * scale
    return scale, bias


# ---------------------------------------------------------------------------
# One-time host precompute: BN folds, Toeplitz conv weight (pad folded), SE folds.
# ---------------------------------------------------------------------------
def prepare_params(params, K, B):
    expand = 512 // B
    c_out = expand * K

    # --- Conv + BN fold into a (K*B, C_out*B) Toeplitz weight; zero padding folded in ---
    bn_s, bn_b = _fold_bn(params["bn_gamma"], params["bn_beta"],
                          params["bn_mean"], params["bn_var"])
    i_idx = jnp.arange(B)                                   # input position
    j_idx = jnp.arange(B)                                   # output position
    t = i_idx[:, None] - j_idx[None, :] + PAD               # tap index = i - j + PAD
    valid = ((t >= 0) & (t < KSIZE)).astype(jnp.float32)
    t_clip = jnp.clip(t, 0, KSIZE - 1)
    w_scaled = params["conv_w"] * bn_s[:, None, None]       # (C_out, K, 9)
    taps = w_scaled[:, :, t_clip] * valid[None, None]       # (C_out, K, B_i, B_j)
    # Wbig[k*B + i, c*B + j] = conv_w[c, k, i-j+PAD] * bn_scale[c]   (0 outside tap range)
    w_conv_big = jnp.transpose(taps, (1, 2, 0, 3)).reshape(K * B, c_out * B)
    conv_bias = jnp.repeat(bn_b, B)[None, :]                # (1, C_out*B)

    # --- SE block: fold avg-pool / channel-broadcast; store squeeze weight transposed ---
    # w1t[m, c*B + j] = se_w1[m, c] / B      (avg-pool folded, lane-dense layout)
    # w2f[m, c*B + j] = se_w2[c, m]          (channel -> length broadcast folded)
    se_w1f_t = (jnp.repeat(params["se_w1"], B, axis=1) / B).astype(jnp.bfloat16)
    se_w2f = jnp.repeat(params["se_w2"].T, B, axis=1).astype(jnp.bfloat16)

    # --- fc BN folds ---
    s1, t1 = _fold_bn(params["bn1_gamma"], params["bn1_beta"],
                      params["bn1_mean"], params["bn1_var"])
    s2, t2 = _fold_bn(params["bn2_gamma"], params["bn2_beta"],
                      params["bn2_mean"], params["bn2_var"])
    fc1_w = (params["fc1_w"] * s1[None, :]).astype(jnp.bfloat16)
    fc1_b = (params["fc1_b"] * s1 + t1)[None, :]
    fc2_w = (params["fc2_w"] * s2[None, :]).astype(jnp.bfloat16)
    fc2_b = (params["fc2_b"] * s2 + t2)[None, :]

    return {
        "w_conv": w_conv_big.astype(jnp.bfloat16),
        "conv_bias": conv_bias,
        "se_w1f_t": se_w1f_t,
        "se_w2f": se_w2f,
        "fc1_w": fc1_w, "fc1_b": fc1_b,
        "fc2_w": fc2_w, "fc2_b": fc2_b,
    }


def _pick_batch_tile(batch):
    # Full-M MXU tile when the batch is large; otherwise the smallest legal sublane multiple.
    if batch >= 256:
        return 256
    return max(8, ((batch + 7) // 8) * 8)


# ---------------------------------------------------------------------------
# Wrapper: DecoderNet.forward (up to the beamformer input feature)
# ---------------------------------------------------------------------------
@partial(jax.jit, static_argnums=(2, 3))
def decoder_net_forward(q, prep, K, B):
    batch = q.shape[0]
    d_in = K * B                                  # conv contraction (= 256 for K=4, B=64)
    d_feat = prep["w_conv"].shape[1]              # C_out*B (= 2048)
    c_mid = prep["se_w1f_t"].shape[0]

    # q.view(batch, K, B) flattened row-major is just q -> feed it straight in (no pad).
    x = q.astype(jnp.float32)                     # (batch, K*B)

    tile_b = _pick_batch_tile(batch)
    grid = (pl.cdiv(batch, tile_b),)

    def batch_map(i):
        return (i, 0)

    def const_map(i):
        return (0, 0)

    in_specs = [
        pl.BlockSpec((tile_b, d_in), batch_map),
        pl.BlockSpec(prep["w_conv"].shape, const_map),
        pl.BlockSpec(prep["conv_bias"].shape, const_map),
        pl.BlockSpec(prep["se_w1f_t"].shape, const_map),
        pl.BlockSpec(prep["se_w2f"].shape, const_map),
        pl.BlockSpec(prep["fc1_w"].shape, const_map),
        pl.BlockSpec(prep["fc1_b"].shape, const_map),
        pl.BlockSpec(prep["fc2_w"].shape, const_map),
        pl.BlockSpec(prep["fc2_b"].shape, const_map),
    ]
    out_spec = pl.BlockSpec((tile_b, 512), batch_map)

    weight_bytes = sum(int(v.size) * v.dtype.itemsize for v in prep.values())
    flops = 2 * batch * (d_in * d_feat + 2 * d_feat * c_mid + d_feat * 512 + 512 * 512)
    cost = pl.CostEstimate(
        flops=flops,
        transcendentals=batch * d_feat,                       # sigmoid
        bytes_accessed=weight_bytes + batch * (d_in + 512) * 4,
    )

    feature = pl.pallas_call(
        _decoder_fused_kernel,
        out_shape=jax.ShapeDtypeStruct((batch, 512), jnp.float32),
        grid=grid,
        in_specs=in_specs,
        out_specs=out_spec,
        compiler_params=pltpu.CompilerParams(
            dimension_semantics=("parallel",),
            vmem_limit_bytes=32 * 1024 * 1024,
        ),
        cost_estimate=cost,
    )(x, prep["w_conv"], prep["conv_bias"], prep["se_w1f_t"], prep["se_w2f"],
      prep["fc1_w"], prep["fc1_b"], prep["fc2_w"], prep["fc2_b"])

    # TODO(synk): self.beamformer = SubArrayHybridBeamformingNet(M, K, P, feature_dim=512)
    #             was not provided in the source; returning its 512-d input feature.
    return feature


if __name__ == "__main__":
    # DecoderNet(M=16, K=4, P=2, B=64) -> expand = 512 // 64 = 8, C_out = 32,
    # conv contraction K*B = 256, flattened feature dim = 32 * 64 = 2048.
    M, K, P, B = 16, 4, 2, 64
    batch = 2

    key = jax.random.PRNGKey(0)
    k_param, k_in = jax.random.split(key)
    params = init_params(k_param, K, B)
    prep = prepare_params(params, K, B)
    prep = jax.tree_util.tree_map(jax.block_until_ready, prep)   # one-time precompute

    q = jax.random.normal(k_in, (batch, K * B), dtype=jnp.float32)

    out = decoder_net_forward(q, prep, K, B)
    out = jax.block_until_ready(out)
    assert out.shape == (batch, 512)
    assert bool(jnp.all(jnp.isfinite(out)))
    print("KERNEL_OK")
</pallas_src>

<mosaic_0001>
module attributes {stable_mosaic.version = 11 : i64} {
  func.func @_decoder_fused_kernel(%arg0: i32, %arg1: memref<8x256xf32, #tpu.memory_space<vmem>>, %arg2: memref<256x2048xbf16, #tpu.memory_space<vmem>>, %arg3: memref<1x2048xf32, #tpu.memory_space<vmem>>, %arg4: memref<8x2048xbf16, #tpu.memory_space<vmem>>, %arg5: memref<8x2048xbf16, #tpu.memory_space<vmem>>, %arg6: memref<2048x512xbf16, #tpu.memory_space<vmem>>, %arg7: memref<1x512xf32, #tpu.memory_space<vmem>>, %arg8: memref<512x512xbf16, #tpu.memory_space<vmem>>, %arg9: memref<1x512xf32, #tpu.memory_space<vmem>>, %arg10: memref<8x512xf32, #tpu.memory_space<vmem>>) attributes {dimension_semantics = [#tpu.dimension_semantics<parallel>], iteration_bounds = array<i64: 1>, scalar_prefetch = 0 : i64, scratch_operands = 0 : i64, tpu.core_type = #tpu.core_type<tc>, window_params = [{transform_indices = @transform_0, window_bounds = array<i64: 8, 256>}, {pipeline_mode = #tpu.pipeline_mode<synchronous>, transform_indices = @transform_1, window_bounds = array<i64: 256, 2048>}, {pipeline_mode = #tpu.pipeline_mode<synchronous>, transform_indices = @transform_2, window_bounds = array<i64: 1, 2048>}, {pipeline_mode = #tpu.pipeline_mode<synchronous>, transform_indices = @transform_3, window_bounds = array<i64: 8, 2048>}, {pipeline_mode = #tpu.pipeline_mode<synchronous>, transform_indices = @transform_4, window_bounds = array<i64: 8, 2048>}, {pipeline_mode = #tpu.pipeline_mode<synchronous>, transform_indices = @transform_5, window_bounds = array<i64: 2048, 512>}, {pipeline_mode = #tpu.pipeline_mode<synchronous>, transform_indices = @transform_6, window_bounds = array<i64: 1, 512>}, {pipeline_mode = #tpu.pipeline_mode<synchronous>, transform_indices = @transform_7, window_bounds = array<i64: 512, 512>}, {pipeline_mode = #tpu.pipeline_mode<synchronous>, transform_indices = @transform_8, window_bounds = array<i64: 1, 512>}, {transform_indices = @transform_9, window_bounds = array<i64: 8, 512>}]} {
    %c0 = arith.constant 0 : index
    %c0_0 = arith.constant 0 : index
    %0 = vector.load %arg1[%c0, %c0_0] : memref<8x256xf32, #tpu.memory_space<vmem>>, vector<8x256xf32>
    %1 = arith.truncf %0 : vector<8x256xf32> to vector<8x256xbf16>
    %c0_1 = arith.constant 0 : index
    %c0_2 = arith.constant 0 : index
    %2 = vector.load %arg2[%c0_1, %c0_2] : memref<256x2048xbf16, #tpu.memory_space<vmem>>, vector<256x2048xbf16>
    %cst = arith.constant dense<0.000000e+00> : vector<8x2048xf32>
    %3 = tpu.matmul %1, %2, %cst {dimension_numbers = #tpu.dot_dimension_numbers<[1], [0], [0], [1], [0, 0, 1, 1], [], []>} : vector<8x256xbf16>, vector<256x2048xbf16>, vector<8x2048xf32> -> vector<8x2048xf32>
    %c0_3 = arith.constant 0 : index
    %c0_4 = arith.constant 0 : index
    %4 = vector.load %arg3[%c0_3, %c0_4] : memref<1x2048xf32, #tpu.memory_space<vmem>>, vector<1x2048xf32>
    %5 = vector.broadcast %4 : vector<1x2048xf32> to vector<8x2048xf32>
    %6 = arith.addf %3, %5 : vector<8x2048xf32>
    %7 = arith.truncf %6 : vector<8x2048xf32> to vector<8x2048xbf16>
    %c0_5 = arith.constant 0 : index
    %c0_6 = arith.constant 0 : index
    %8 = vector.load %arg4[%c0_5, %c0_6] : memref<8x2048xbf16, #tpu.memory_space<vmem>>, vector<8x2048xbf16>
    %cst_7 = arith.constant dense<0.000000e+00> : vector<8x8xf32>
    %9 = tpu.matmul %7, %8, %cst_7 {dimension_numbers = #tpu.dot_dimension_numbers<[1], [1], [0], [0], [0, 0, 1, 0], [], []>} : vector<8x2048xbf16>, vector<8x2048xbf16>, vector<8x8xf32> -> vector<8x8xf32>
    %cst_8 = arith.constant 0.000000e+00 : f32
    %10 = vector.broadcast %cst_8 : f32 to vector<8x8xf32>
    %11 = arith.maximumf %9, %10 : vector<8x8xf32>
    %12 = arith.truncf %11 : vector<8x8xf32> to vector<8x8xbf16>
    %c0_9 = arith.constant 0 : index
    %c0_10 = arith.constant 0 : index
    %13 = vector.load %arg5[%c0_9, %c0_10] : memref<8x2048xbf16, #tpu.memory_space<vmem>>, vector<8x2048xbf16>
    %cst_11 = arith.constant dense<0.000000e+00> : vector<8x2048xf32>
    %14 = tpu.matmul %12, %13, %cst_11 {dimension_numbers = #tpu.dot_dimension_numbers<[1], [0], [0], [1], [0, 0, 1, 1], [], []>} : vector<8x8xbf16>, vector<8x2048xbf16>, vector<8x2048xf32> -> vector<8x2048xf32>
    %15 = arith.negf %14 : vector<8x2048xf32>
    %16 = math.exp %15 : vector<8x2048xf32>
    %cst_12 = arith.constant 1.000000e+00 : f32
    %17 = vector.broadcast %cst_12 : f32 to vector<8x2048xf32>
    %18 = arith.addf %17, %16 : vector<8x2048xf32>
    %19 = arith.divf %17, %18 : vector<8x2048xf32>
    %20 = arith.mulf %6, %19 : vector<8x2048xf32>
    %cst_13 = arith.constant 0.000000e+00 : f32
    %21 = vector.broadcast %cst_13 : f32 to vector<8x2048xf32>
    %22 = arith.maximumf %20, %21 : vector<8x2048xf32>
    %23 = arith.truncf %22 : vector<8x2048xf32> to vector<8x2048xbf16>
    %c0_14 = arith.constant 0 : index
    %c0_15 = arith.constant 0 : index
    %24 = vector.load %arg6[%c0_14, %c0_15] : memref<2048x512xbf16, #tpu.memory_space<vmem>>, vector<2048x512xbf16>
    %cst_16 = arith.constant dense<0.000000e+00> : vector<8x512xf32>
    %25 = tpu.matmul %23, %24, %cst_16 {dimension_numbers = #tpu.dot_dimension_numbers<[1], [0], [0], [1], [0, 0, 1, 1], [], []>} : vector<8x2048xbf16>, vector<2048x512xbf16>, vector<8x512xf32> -> vector<8x512xf32>
    %c0_17 = arith.constant 0 : index
    %c0_18 = arith.constant 0 : index
    %26 = vector.load %arg7[%c0_17, %c0_18] : memref<1x512xf32, #tpu.memory_space<vmem>>, vector<1x512xf32>
    %27 = vector.broadcast %26 : vector<1x512xf32> to vector<8x512xf32>
    %28 = arith.addf %25, %27 : vector<8x512xf32>
    %cst_19 = arith.constant 0.000000e+00 : f32
    %29 = vector.broadcast %cst_19 : f32 to vector<8x512xf32>
    %30 = arith.maximumf %28, %29 : vector<8x512xf32>
    %31 = arith.truncf %30 : vector<8x512xf32> to vector<8x512xbf16>
    %c0_20 = arith.constant 0 : index
    %c0_21 = arith.constant 0 : index
    %32 = vector.load %arg8[%c0_20, %c0_21] : memref<512x512xbf16, #tpu.memory_space<vmem>>, vector<512x512xbf16>
    %cst_22 = arith.constant dense<0.000000e+00> : vector<8x512xf32>
    %33 = tpu.matmul %31, %32, %cst_22 {dimension_numbers = #tpu.dot_dimension_numbers<[1], [0], [0], [1], [0, 0, 1, 1], [], []>} : vector<8x512xbf16>, vector<512x512xbf16>, vector<8x512xf32> -> vector<8x512xf32>
    %c0_23 = arith.constant 0 : index
    %c0_24 = arith.constant 0 : index
    %34 = vector.load %arg9[%c0_23, %c0_24] : memref<1x512xf32, #tpu.memory_space<vmem>>, vector<1x512xf32>
    %35 = vector.broadcast %34 : vector<1x512xf32> to vector<8x512xf32>
    %36 = arith.addf %33, %35 : vector<8x512xf32>
    %cst_25 = arith.constant 0.000000e+00 : f32
    %37 = vector.broadcast %cst_25 : f32 to vector<8x512xf32>
    %38 = arith.maximumf %36, %37 : vector<8x512xf32>
    %c0_26 = arith.constant 0 : index
    %c0_27 = arith.constant 0 : index
    %39 = vector.load %arg10[%c0_26, %c0_27] : memref<8x512xf32, #tpu.memory_space<vmem>>, vector<8x512xf32>
    tpu.vector_store %arg10[%c0_26, %c0_27], %38 {strides = array<i32>} : memref<8x512xf32, #tpu.memory_space<vmem>>, vector<8x512xf32>,
    return
  }
  func.func @transform_0(%arg0: i32) -> (i32, i32) {
    %c0_i32 = arith.constant 0 : i32
    %c0_i32_0 = arith.constant 0 : i32
    return %arg0, %c0_i32 : i32, i32
  }
  func.func @transform_1(%arg0: i32) -> (i32, i32) {
    %c0_i32 = arith.constant 0 : i32
    %c0_i32_0 = arith.constant 0 : i32
    %c0_i32_1 = arith.constant 0 : i32
    return %c0_i32, %c0_i32_0 : i32, i32
  }
  func.func @transform_2(%arg0: i32) -> (i32, i32) {
    %c0_i32 = arith.constant 0 : i32
    %c0_i32_0 = arith.constant 0 : i32
    %c0_i32_1 = arith.constant 0 : i32
    return %c0_i32, %c0_i32_0 : i32, i32
  }
  func.func @transform_3(%arg0: i32) -> (i32, i32) {
    %c0_i32 = arith.constant 0 : i32
    %c0_i32_0 = arith.constant 0 : i32
    %c0_i32_1 = arith.constant 0 : i32
    return %c0_i32, %c0_i32_0 : i32, i32
  }
  func.func @transform_4(%arg0: i32) -> (i32, i32) {
    %c0_i32 = arith.constant 0 : i32
    %c0_i32_0 = arith.constant 0 : i32
    %c0_i32_1 = arith.constant 0 : i32
    return %c0_i32, %c0_i32_0 : i32, i32
  }
  func.func @transform_5(%arg0: i32) -> (i32, i32) {
    %c0_i32 = arith.constant 0 : i32
    %c0_i32_0 = arith.constant 0 : i32
    %c0_i32_1 = arith.constant 0 : i32
    return %c0_i32, %c0_i32_0 : i32, i32
  }
  func.func @transform_6(%arg0: i32) -> (i32, i32) {
    %c0_i32 = arith.constant 0 : i32
    %c0_i32_0 = arith.constant 0 : i32
    %c0_i32_1 = arith.constant 0 : i32
    return %c0_i32, %c0_i32_0 : i32, i32
  }
  func.func @transform_7(%arg0: i32) -> (i32, i32) {
    %c0_i32 = arith.constant 0 : i32
    %c0_i32_0 = arith.constant 0 : i32
    %c0_i32_1 = arith.constant 0 : i32
    return %c0_i32, %c0_i32_0 : i32, i32
  }
  func.func @transform_8(%arg0: i32) -> (i32, i32) {
    %c0_i32 = arith.constant 0 : i32
    %c0_i32_0 = arith.constant 0 : i32
    %c0_i32_1 = arith.constant 0 : i32
    return %c0_i32, %c0_i32_0 : i32, i32
  }
  func.func @transform_9(%arg0: i32) -> (i32, i32) {
    %c0_i32 = arith.constant 0 : i32
    %c0_i32_0 = arith.constant 0 : i32
    return %arg0, %c0_i32 : i32, i32
  }
}

</mosaic_0001>

<llo_original>
// kernel: decoder_net_forward.1
$region0: #{decoder_net_forward.1}
  #allocation0 [shape = 'u32[]', space=smem, size = 0x4, offset = 0x4, fixed_abs, tag = 'smem constant byte address 0x4 - core index']
  #allocation1 [shape = 'u32[144,128]{1,0:T(1,128)}', space=vmem, size = 0x12000, scoped, tag = 'internal scratch']
  %s0 = inlined_call_operand.hbm [shape: f32[2,256], index: 0, kind: input, shape index: {}]
  %s1 = inlined_call_operand.hbm [shape: bf16[256,2048], index: 1, kind: input, shape index: {}]
  %s2 = inlined_call_operand.hbm [shape: f32[1,2048], index: 2, kind: input, shape index: {}]
  %s3 = inlined_call_operand.hbm [shape: bf16[8,2048], index: 3, kind: input, shape index: {}]
  %s4 = inlined_call_operand.hbm [shape: bf16[8,2048], index: 4, kind: input, shape index: {}]
  %s5 = inlined_call_operand.hbm [shape: bf16[2048,512], index: 5, kind: input, shape index: {}]
  %s6 = inlined_call_operand.hbm [shape: f32[1,512], index: 6, kind: input, shape index: {}]
  %s7 = inlined_call_operand.hbm [shape: bf16[512,512], index: 7, kind: input, shape index: {}]
  %s8 = inlined_call_operand.hbm [shape: f32[1,512], index: 8, kind: input, shape index: {}]
  %s9 = inlined_call_operand.hbm [shape: f32[2,512], index: 9, kind: output, shape index: {}]
  %s10 = sld [smem:[#allocation0]]
  $region82: #{decoder_net_forward.1} parent=0
    _
  %s12 = ssub.s32 1, %s10
  %s13 = scalar_select 0, %s12, %s10
  $region1: #{decoder_net_forward.1} parent=0
    #allocation2 [shape = 'u8[8192]{0}', space=vmem, size = 0x2000, scoped, tag = 'input window, operand 0, single buffered']
    #allocation3 [shape = 's32[1]{0}', space=sflag, size = 0x4, scoped, tag = 'scoped memory for decoder_net_forward.1']
    #allocation4 [shape = 's32[1]{0}', space=sflag, size = 0x4, scoped, tag = 'scoped memory for decoder_net_forward.1']
    #allocation5 [shape = 'u8[1048576]{0}', space=vmem, size = 0x100000, scoped, tag = 'input window, operand 1, single buffered']
    #allocation6 [shape = 's32[1]{0}', space=sflag, size = 0x4, scoped, tag = 'scoped memory for decoder_net_forward.1']
    #allocation7 [shape = 'u8[8192]{0}', space=vmem, size = 0x2000, scoped, tag = 'input window, operand 2, single buffered']
    #allocation8 [shape = 'u8[32768]{0}', space=vmem, size = 0x8000, scoped, tag = 'input window, operand 3, single buffered']
    #allocation9 [shape = 's32[1]{0}', space=sflag, size = 0x4, scoped, tag = 'scoped memory for decoder_net_forward.1']
    #allocation10 [shape = 'u8[32768]{0}', space=vmem, size = 0x8000, scoped, tag = 'input window, operand 4, single buffered']
    #allocation11 [shape = 'u8[2097152]{0}', space=vmem, size = 0x200000, scoped, tag = 'input window, operand 5, single buffered']
    #allocation12 [shape = 's32[1]{0}', space=sflag, size = 0x4, scoped, tag = 'scoped memory for decoder_net_forward.1']
    #allocation13 [shape = 'u8[2048]{0}', space=vmem, size = 0x800, scoped, tag = 'input window, operand 6, single buffered']
    #allocation14 [shape = 'u8[524288]{0}', space=vmem, size = 0x80000, scoped, tag = 'input window, operand 7, single buffered']
    #allocation15 [shape = 's32[1]{0}', space=sflag, size = 0x4, scoped, tag = 'scoped memory for decoder_net_forward.1']
    #allocation16 [shape = 'u8[2048]{0}', space=vmem, size = 0x800, scoped, tag = 'input window, operand 8, single buffered']
    #allocation17 [shape = 'u8[16384]{0}', space=vmem, size = 0x4000, scoped, tag = 'output window, operand 0, single buffered']
    %14 = vsyncpa [#allocation3], 0
    %15 = vsyncpa [#allocation6], 0
    %16 = vsyncpa [#allocation9], 0
    %17 = vsyncpa [#allocation12], 0
    %18 = vsyncpa [#allocation15], 0
    %19 = vsyncpa [#allocation4], 0
    // Predicated region
    $region2: #{decoder_net_forward.1} parent=1 // pred_check
      _
    $region3: #{decoder_net_forward.1} parent=1 // pred_check_branch
      %21 = sbr.rel (0) target = $region5
    $region4: #{decoder_net_forward.1} parent=1 // pred_region
      %s23 = ssub.s32 256, 64
      %24 = vsyncadd [#allocation3], %s23
      %s25 = sshll.u32 [#allocation2], 4
      %s26 = int_to_ptr.vmem [resolvable:$true] %s25
      %31 = dma.hbm_to_vmem [thread:$0]  %s0, 64, %s26, [#allocation3], 64, 64, 4
    $region5: #{decoder_net_forward.1} parent=1 // pred_fallthru
      _
    // Predicated region
    $region6: #{decoder_net_forward.1} parent=1 // pred_check
      _
    $region7: #{decoder_net_forward.1} parent=1 // pred_check_branch
      %33 = sbr.rel (0) target = $region9
    $region8: #{decoder_net_forward.1} parent=1 // pred_region
      %s35 = ssub.s32 32768, 32768
      %36 = vsyncadd [#allocation6], %s35
      %s37 = sshll.u32 [#allocation5], 4
      %s38 = int_to_ptr.vmem [resolvable:$true] %s37
      %43 = dma.hbm_to_vmem [thread:$0]  %s1, 32768, %s38, [#allocation6], 1024, 1024, 64
    $region9: #{decoder_net_forward.1} parent=1 // pred_fallthru
      _
    // Predicated region
    $region10: #{decoder_net_forward.1} parent=1 // pred_check
      _
    $region11: #{decoder_net_forward.1} parent=1 // pred_check_branch
      %45 = sbr.rel (0) target = $region13
    $region12: #{decoder_net_forward.1} parent=1 // pred_region
      %s47 = ssub.s32 256, 256
      %48 = vsyncadd [#allocation6], %s47
      %s50 = sshll.u32 [#allocation7], 4
      %s51 = int_to_ptr.vmem [resolvable:$true] %s50
      %53 = dma.hbm_to_vmem [thread:$0]  %s2, 256, %s51, [#allocation6]
    $region13: #{decoder_net_forward.1} parent=1 // pred_fallthru
      _
    // Predicated region
    $region14: #{decoder_net_forward.1} parent=1 // pred_check
      _
    $region15: #{decoder_net_forward.1} parent=1 // pred_check_branch
      %55 = sbr.rel (0) target = $region17
    $region16: #{decoder_net_forward.1} parent=1 // pred_region
      %s57 = ssub.s32 1024, 1024
      %58 = vsyncadd [#allocation9], %s57
      %s60 = sshll.u32 [#allocation8], 4
      %s61 = int_to_ptr.vmem [resolvable:$true] %s60
      %63 = dma.hbm_to_vmem [thread:$0]  %s3, 1024, %s61, [#allocation9]
    $region17: #{decoder_net_forward.1} parent=1 // pred_fallthru
      _
    // Predicated region
    $region18: #{decoder_net_forward.1} parent=1 // pred_check
      _
    $region19: #{decoder_net_forward.1} parent=1 // pred_check_branch
      %65 = sbr.rel (0) target = $region21
    $region20: #{decoder_net_forward.1} parent=1 // pred_region
      %s67 = ssub.s32 1024, 1024
      %68 = vsyncadd [#allocation9], %s67
      %s70 = sshll.u32 [#allocation10], 4
      %s71 = int_to_ptr.vmem [resolvable:$true] %s70
      %73 = dma.hbm_to_vmem [thread:$0]  %s4, 1024, %s71, [#allocation9]
    $region21: #{decoder_net_forward.1} parent=1 // pred_fallthru
      _
    // Predicated region
    $region22: #{decoder_net_forward.1} parent=1 // pred_check
      _
    $region23: #{decoder_net_forward.1} parent=1 // pred_check_branch
      %75 = sbr.rel (0) target = $region25
    $region24: #{decoder_net_forward.1} parent=1 // pred_region
      %s77 = ssub.s32 65536, 65536
      %78 = vsyncadd [#allocation12], %s77
      %s79 = sshll.u32 [#allocation11], 4
      %s80 = int_to_ptr.vmem [resolvable:$true] %s79
      %85 = dma.hbm_to_vmem [thread:$0]  %s5, 65536, %s80, [#allocation12], 256, 256, 16
    $region25: #{decoder_net_forward.1} parent=1 // pred_fallthru
      _
    // Predicated region
    $region26: #{decoder_net_forward.1} parent=1 // pred_check
      _
    $region27: #{decoder_net_forward.1} parent=1 // pred_check_branch
      %87 = sbr.rel (0) target = $region29
    $region28: #{decoder_net_forward.1} parent=1 // pred_region
      %s89 = ssub.s32 64, 64
      %90 = vsyncadd [#allocation12], %s89
      %s92 = sshll.u32 [#allocation13], 4
      %s93 = int_to_ptr.vmem [resolvable:$true] %s92
      %95 = dma.hbm_to_vmem [thread:$0]  %s6, 64, %s93, [#allocation12]
    $region29: #{decoder_net_forward.1} parent=1 // pred_fallthru
      _
    // Predicated region
    $region30: #{decoder_net_forward.1} parent=1 // pred_check
      _
    $region31: #{decoder_net_forward.1} parent=1 // pred_check_branch
      %97 = sbr.rel (0) target = $region33
    $region32: #{decoder_net_forward.1} parent=1 // pred_region
      %s99 = ssub.s32 16384, 16384
      %100 = vsyncadd [#allocation15], %s99
      %s101 = sshll.u32 [#allocation14], 4
      %s102 = int_to_ptr.vmem [resolvable:$true] %s101
      %107 = dma.hbm_to_vmem [thread:$0]  %s7, 16384, %s102, [#allocation15], 256, 256, 16
    $region33: #{decoder_net_forward.1} parent=1 // pred_fallthru
      _
    // Predicated region
    $region34: #{decoder_net_forward.1} parent=1 // pred_check
      _
    $region35: #{decoder_net_forward.1} parent=1 // pred_check_branch
      %109 = sbr.rel (0) target = $region37
    $region36: #{decoder_net_forward.1} parent=1 // pred_region
      %s111 = ssub.s32 64, 64
      %112 = vsyncadd [#allocation15], %s111
      %s114 = sshll.u32 [#allocation16], 4
      %s115 = int_to_ptr.vmem [resolvable:$true] %s114
      %117 = dma.hbm_to_vmem [thread:$0]  %s8, 64, %s115, [#allocation15]
    $region37: #{decoder_net_forward.1} parent=1 // pred_fallthru
      _
    // Predicated region
    $region38: #{decoder_net_forward.1} parent=1 // pred_check
      _
    $region39: #{decoder_net_forward.1} parent=1 // pred_check_branch
      %119 = sbr.rel (0) target = $region41
    $region40: #{decoder_net_forward.1} parent=1 // pred_region
      %120 = dma.done [#allocation3], 256
    $region41: #{decoder_net_forward.1} parent=1 // pred_fallthru
      _
    // Predicated region
    $region42: #{decoder_net_forward.1} parent=1 // pred_check
      _
    $region43: #{decoder_net_forward.1} parent=1 // pred_check_branch
      %122 = sbr.rel (0) target = $region45
    $region44: #{decoder_net_forward.1} parent=1 // pred_region
      %123 = dma.done [#allocation6], 32768
    $region45: #{decoder_net_forward.1} parent=1 // pred_fallthru
      _
    // Predicated region
    $region46: #{decoder_net_forward.1} parent=1 // pred_check
      _
    $region47: #{decoder_net_forward.1} parent=1 // pred_check_branch
      %125 = sbr.rel (0) target = $region49
    $region48: #{decoder_net_forward.1} parent=1 // pred_region
      %126 = dma.done [#allocation6], 256
    $region49: #{decoder_net_forward.1} parent=1 // pred_fallthru
      _
    // Predicated region
    $region50: #{decoder_net_forward.1} parent=1 // pred_check
      _
    $region51: #{decoder_net_forward.1} parent=1 // pred_check_branch
      %128 = sbr.rel (0) target = $region53
    $region52: #{decoder_net_forward.1} parent=1 // pred_region
      %129 = dma.done [#allocation9], 1024
    $region53: #{decoder_net_forward.1} parent=1 // pred_fallthru
      _
    // Predicated region
    $region54: #{decoder_net_forward.1} parent=1 // pred_check
      _
    $region55: #{decoder_net_forward.1} parent=1 // pred_check_branch
      %131 = sbr.rel (0) target = $region57
    $region56: #{decoder_net_forward.1} parent=1 // pred_region
      %132 = dma.done [#allocation9], 1024
    $region57: #{decoder_net_forward.1} parent=1 // pred_fallthru
      _
    // Predicated region
    $region58: #{decoder_net_forward.1} parent=1 // pred_check
      _
    $region59: #{decoder_net_forward.1} parent=1 // pred_check_branch
      %134 = sbr.rel (0) target = $region61
    $region60: #{decoder_net_forward.1} parent=1 // pred_region
      %135 = dma.done [#allocation12], 65536
    $region61: #{decoder_net_forward.1} parent=1 // pred_fallthru
      _
    // Predicated region
    $region62: #{decoder_net_forward.1} parent=1 // pred_check
      _
    $region63: #{decoder_net_forward.1} parent=1 // pred_check_branch
      %137 = sbr.rel (0) target = $region65
    $region64: #{decoder_net_forward.1} parent=1 // pred_region
      %138 = dma.done [#allocation12], 64
    $region65: #{decoder_net_forward.1} parent=1 // pred_fallthru
      _
    // Predicated region
    $region66: #{decoder_net_forward.1} parent=1 // pred_check
      _
    $region67: #{decoder_net_forward.1} parent=1 // pred_check_branch
      %140 = sbr.rel (0) target = $region69
    $region68: #{decoder_net_forward.1} parent=1 // pred_region
      %141 = dma.done [#allocation15], 16384
    $region69: #{decoder_net_forward.1} parent=1 // pred_fallthru
      _
    // Predicated region
    $region70: #{decoder_net_forward.1} parent=1 // pred_check
      _
    $region71: #{decoder_net_forward.1} parent=1 // pred_check_branch
      %143 = sbr.rel (0) target = $region73
    $region72: #{decoder_net_forward.1} parent=1 // pred_region
      %144 = dma.done [#allocation15], 64
    $region73: #{decoder_net_forward.1} parent=1 // pred_fallthru
      _
    %v146 = vld [vmem:[#allocation2] sm:$0xf]
    %v147 = vld [vmem:[#allocation2 + $0x4] sm:$0xf]
    %v148 = vld [vmem:[#allocation2 + $0x8] sm:$0xf]
    %v149 = vld [vmem:[#allocation2 + $0xc] sm:$0xf]
    %v154 = vcombine.low %v146, %v147
    %v155 = vcombine.low %v148, %v149
    %v157 = vunpack.c.l.s4 1983009808
    %v158 = vunpack.c.0.s8 %v157
    %v159 = vlaneseq
    %v160 = vshrl.u32 %v159, 7
    %v161 = vsub.s32 %v158, %v160
    %v162 = vrot.slane %v154, %v161
    %v164 = vunpack.c.l.s4 1983009808
    %v165 = vunpack.c.0.s8 %v164
    %v166 = vlaneseq
    %v167 = vshrl.u32 %v166, 7
    %v168 = vsub.s32 %v165, %v167
    %v169 = vrot.slane %v155, %v168
    %v170 = vcombine.low %v162, %v169
    %v171 = vcombine.high %v162, %v169
    %v174 = vpack.c.bf16 %v170, %v170
    %v175 = vpack.c.bf16 %v171, %v171
    %v176 = vld [vmem:[#allocation5] sm:$0xff]
    %v177 = vld [vmem:[#allocation5 + $0x8] sm:$0xff]
    %v178 = vld [vmem:[#allocation5 + $0x10] sm:$0xff]
    %v179 = vld [vmem:[#allocation5 + $0x18] sm:$0xff]
    %v180 = vld [vmem:[#allocation5 + $0x20] sm:$0xff]
    %v181 = vld [vmem:[#allocation5 + $0x28] sm:$0xff]
    %v182 = vld [vmem:[#allocation5 + $0x30] sm:$0xff]
    %v183 = vld [vmem:[#allocation5 + $0x38] sm:$0xff]
    %v184 = vld [vmem:[#allocation5 + $0x40] sm:$0xff]
    %v185 = vld [vmem:[#allocation5 + $0x48] sm:$0xff]
    %v186 = vld [vmem:[#allocation5 + $0x50] sm:$0xff]
    %v187 = vld [vmem:[#allocation5 + $0x58] sm:$0xff]
    %v188 = vld [vmem:[#allocation5 + $0x60] sm:$0xff]
    %v189 = vld [vmem:[#allocation5 + $0x68] sm:$0xff]
    %v190 = vld [vmem:[#allocation5 + $0x70] sm:$0xff]
    %v191 = vld [vmem:[#allocation5 + $0x78] sm:$0xff]
    %v192 = vld [vmem:[#allocation5 + $0x80] sm:$0xff]
    %v193 = vld [vmem:[#allocation5 + $0x88] sm:$0xff]
    %v194 = vld [vmem:[#allocation5 + $0x90] sm:$0xff]
    %v195 = vld [vmem:[#allocation5 + $0x98] sm:$0xff]
    %v196 = vld [vmem:[#allocation5 + $0xa0] sm:$0xff]
    %v197 = vld [vmem:[#allocation5 + $0xa8] sm:$0xff]
    %v198 = vld [vmem:[#allocation5 + $0xb0] sm:$0xff]
    %v199 = vld [vmem:[#allocation5 + $0xb8] sm:$0xff]
    %v200 = vld [vmem:[#allocation5 + $0xc0] sm:$0xff]
    %v201 = vld [vmem:[#allocation5 + $0xc8] sm:$0xff]
    %v202 = vld [vmem:[#allocation5 + $0xd0] sm:$0xff]
    %v203 = vld [vmem:[#allocation5 + $0xd8] sm:$0xff]
    %v204 = vld [vmem:[#allocation5 + $0xe0] sm:$0xff]
    %v205 = vld [vmem:[#allocation5 + $0xe8] sm:$0xff]
    %v206 = vld [vmem:[#allocation5 + $0xf0] sm:$0xff]
    %v207 = vld [vmem:[#allocation5 + $0xf8] sm:$0xff]
    %v208 = vld [vmem:[#allocation5 + $0x100] sm:$0xff]
    %v209 = vld [vmem:[#allocation5 + $0x108] sm:$0xff]
    %v210 = vld [vmem:[#allocation5 + $0x110] sm:$0xff]
    %v211 = vld [vmem:[#allocation5 + $0x118] sm:$0xff]
    %v212 = vld [vmem:[#allocation5 + $0x120] sm:$0xff]
    %v213 = vld [vmem:[#allocation5 + $0x128] sm:$0xff]
    %v214 = vld [vmem:[#allocation5 + $0x130] sm:$0xff]
    %v215 = vld [vmem:[#allocation5 + $0x138] sm:$0xff]
    %v216 = vld [vmem:[#allocation5 + $0x140] sm:$0xff]
    %v217 = vld [vmem:[#allocation5 + $0x148] sm:$0xff]
    %v218 = vld [vmem:[#allocation5 + $0x150] sm:$0xff]
    %v219 = vld [vmem:[#allocation5 + $0x158] sm:$0xff]
    %v220 = vld [vmem:[#allocation5 + $0x160] sm:$0xff]
    %v221 = vld [vmem:[#allocation5 + $0x168] sm:$0xff]
    %v222 = vld [vmem:[#allocation5 + $0x170] sm:$0xff]
    %v223 = vld [vmem:[#allocation5 + $0x178] sm:$0xff]
    %v224 = vld [vmem:[#allocation5 + $0x180] sm:$0xff]
    %v225 = vld [vmem:[#allocation5 + $0x188] sm:$0xff]
    %v226 = vld [vmem:[#allocation5 + $0x190] sm:$0xff]
    %v227 = vld [vmem:[#allocation5 + $0x198] sm:$0xff]
    %v228 = vld [vmem:[#allocation5 + $0x1a0] sm:$0xff]
    %v229 = vld [vmem:[#allocation5 + $0x1a8] sm:$0xff]
    %v230 = vld [vmem:[#allocation5 + $0x1b0] sm:$0xff]
    %v231 = vld [vmem:[#allocation5 + $0x1b8] sm:$0xff]
    %v232 = vld [vmem:[#allocation5 + $0x1c0] sm:$0xff]
    %v233 = vld [vmem:[#allocation5 + $0x1c8] sm:$0xff]
    %v234 = vld [vmem:[#allocation5 + $0x1d0] sm:$0xff]
    %v235 = vld [vmem:[#allocation5 + $0x1d8] sm:$0xff]
    %v236 = vld [vmem:[#allocation5 + $0x1e0] sm:$0xff]
    %v237 = vld [vmem:[#allocation5 + $0x1e8] sm:$0xff]
    %v238 = vld [vmem:[#allocation5 + $0x1f0] sm:$0xff]
    %v239 = vld [vmem:[#allocation5 + $0x1f8] sm:$0xff]
    %v240 = vld [vmem:[#allocation5 + $0x200] sm:$0xff]
    %v241 = vld [vmem:[#allocation5 + $0x208] sm:$0xff]
    %v242 = vld [vmem:[#allocation5 + $0x210] sm:$0xff]
    %v243 = vld [vmem:[#allocation5 + $0x218] sm:$0xff]
    %v244 = vld [vmem:[#allocation5 + $0x220] sm:$0xff]
    %v245 = vld [vmem:[#allocation5 + $0x228] sm:$0xff]
    %v246 = vld [vmem:[#allocation5 + $0x230] sm:$0xff]
    %v247 = vld [vmem:[#allocation5 + $0x238] sm:$0xff]
    %v248 = vld [vmem:[#allocation5 + $0x240] sm:$0xff]
    %v249 = vld [vmem:[#allocation5 + $0x248] sm:$0xff]
    %v250 = vld [vmem:[#allocation5 + $0x250] sm:$0xff]
    %v251 = vld [vmem:[#allocation5 + $0x258] sm:$0xff]
    %v252 = vld [vmem:[#allocation5 + $0x260] sm:$0xff]
    %v253 = vld [vmem:[#allocation5 + $0x268] sm:$0xff]
    %v254 = vld [vmem:[#allocation5 + $0x270] sm:$0xff]
    %v255 = vld [vmem:[#allocation5 + $0x278] sm:$0xff]
    %v256 = vld [vmem:[#allocation5 + $0x280] sm:$0xff]
    %v257 = vld [vmem:[#allocation5 + $0x288] sm:$0xff]
    %v258 = vld [vmem:[#allocation5 + $0x290] sm:$0xff]
    %v259 = vld [vmem:[#allocation5 + $0x298] sm:$0xff]
    %v260 = vld [vmem:[#allocation5 + $0x2a0] sm:$0xff]
    %v261 = vld [vmem:[#allocation5 + $0x2a8] sm:$0xff]
    %v262 = vld [vmem:[#allocation5 + $0x2b0] sm:$0xff]
    %v263 = vld [vmem:[#allocation5 + $0x2b8] sm:$0xff]
    %v264 = vld [vmem:[#allocation5 + $0x2c0] sm:$0xff]
    %v265 = vld [vmem:[#allocation5 + $0x2c8] sm:$0xff]
    %v266 = vld [vmem:[#allocation5 + $0x2d0] sm:$0xff]
    %v267 = vld [vmem:[#allocation5 + $0x2d8] sm:$0xff]
    %v268 = vld [vmem:[#allocation5 + $0x2e0] sm:$0xff]
    %v269 = vld [vmem:[#allocation5 + $0x2e8] sm:$0xff]
    %v270 = vld [vmem:[#allocation5 + $0x2f0] sm:$0xff]
    %v271 = vld [vmem:[#allocation5 + $0x2f8] sm:$0xff]
    %v272 = vld [vmem:[#allocation5 + $0x300] sm:$0xff]
    %v273 = vld [vmem:[#allocation5 + $0x308] sm:$0xff]
    %v274 = vld [vmem:[#allocation5 + $0x310] sm:$0xff]
    %v275 = vld [vmem:[#allocation5 + $0x318] sm:$0xff]
    %v276 = vld [vmem:[#allocation5 + $0x320] sm:$0xff]
    %v277 = vld [vmem:[#allocation5 + $0x328] sm:$0xff]
    %v278 = vld [vmem:[#allocation5 + $0x330] sm:$0xff]
    %v279 = vld [vmem:[#allocation5 + $0x338] sm:$0xff]
    %v280 = vld [vmem:[#allocation5 + $0x340] sm:$0xff]
    %v281 = vld [vmem:[#allocation5 + $0x348] sm:$0xff]
    %v282 = vld [vmem:[#allocation5 + $0x350] sm:$0xff]
    %v283 = vld [vmem:[#allocation5 + $0x358] sm:$0xff]
    %v284 = vld [vmem:[#allocation5 + $0x360] sm:$0xff]
    %v285 = vld [vmem:[#allocation5 + $0x368] sm:$0xff]
    %v286 = vld [vmem:[#allocation5 + $0x370] sm:$0xff]
    %v287 = vld [vmem:[#allocation5 + $0x378] sm:$0xff]
    %v288 = vld [vmem:[#allocation5 + $0x380] sm:$0xff]
    %v289 = vld [vmem:[#allocation5 + $0x388] sm:$0xff]
    %v290 = vld [vmem:[#allocation5 + $0x390] sm:$0xff]
    %v291 = vld [vmem:[#allocation5 + $0x398] sm:$0xff]
    %v292 = vld [vmem:[#allocation5 + $0x3a0] sm:$0xff]
    %v293 = vld [vmem:[#allocation5 + $0x3a8] sm:$0xff]
    %v294 = vld [vmem:[#allocation5 + $0x3b0] sm:$0xff]
    %v295 = vld [vmem:[#allocation5 + $0x3b8] sm:$0xff]
    %v296 = vld [vmem:[#allocation5 + $0x3c0] sm:$0xff]
    %v297 = vld [vmem:[#allocation5 + $0x3c8] sm:$0xff]
    %v298 = vld [vmem:[#allocation5 + $0x3d0] sm:$0xff]
    %v299 = vld [vmem:[#allocation5 + $0x3d8] sm:$0xff]
    %v300 = vld [vmem:[#allocation5 + $0x3e0] sm:$0xff]
    %v301 = vld [vmem:[#allocation5 + $0x3e8] sm:$0xff]
    %v302 = vld [vmem:[#allocation5 + $0x3f0] sm:$0xff]
    %v303 = vld [vmem:[#allocation5 + $0x3f8] sm:$0xff]
    %v304 = vld [vmem:[#allocation5 + $0x400] sm:$0xff]
    %v305 = vld [vmem:[#allocation5 + $0x408] sm:$0xff]
    %v306 = vld [vmem:[#allocation5 + $0x410] sm:$0xff]
    %v307 = vld [vmem:[#allocation5 + $0x418] sm:$0xff]
    %v308 = vld [vmem:[#allocation5 + $0x420] sm:$0xff]
    %v309 = vld [vmem:[#allocation5 + $0x428] sm:$0xff]
    %v310 = vld [vmem:[#allocation5 + $0x430] sm:$0xff]
    %v311 = vld [vmem:[#allocation5 + $0x438] sm:$0xff]
    %v312 = vld [vmem:[#allocation5 + $0x440] sm:$0xff]
    %v313 = vld [vmem:[#allocation5 + $0x448] sm:$0xff]
    %v314 = vld [vmem:[#allocation5 + $0x450] sm:$0xff]
    %v315 = vld [vmem:[#allocation5 + $0x458] sm:$0xff]
    %v316 = vld [vmem:[#allocation5 + $0x460] sm:$0xff]
    %v317 = vld [vmem:[#allocation5 + $0x468] sm:$0xff]
    %v318 = vld [vmem:[#allocation5 + $0x470] sm:$0xff]
    %v319 = vld [vmem:[#allocation5 + $0x478] sm:$0xff]
    %v320 = vld [vmem:[#allocation5 + $0x480] sm:$0xff]
    %v321 = vld [vmem:[#allocation5 + $0x488] sm:$0xff]
    %v322 = vld [vmem:[#allocation5 + $0x490] sm:$0xff]
    %v323 = vld [vmem:[#allocation5 + $0x498] sm:$0xff]
    %v324 = vld [vmem:[#allocation5 + $0x4a0] sm:$0xff]
    %v325 = vld [vmem:[#allocation5 + $0x4a8] sm:$0xff]
    %v326 = vld [vmem:[#allocation5 + $0x4b0] sm:$0xff]
    %v327 = vld [vmem:[#allocation5 + $0x4b8] sm:$0xff]
    %v328 = vld [vmem:[#allocation5 + $0x4c0] sm:$0xff]
    %v329 = vld [vmem:[#allocation5 + $0x4c8] sm:$0xff]
    %v330 = vld [vmem:[#allocation5 + $0x4d0] sm:$0xff]
    %v331 = vld [vmem:[#allocation5 + $0x4d8] sm:$0xff]
    %v332 = vld [vmem:[#allocation5 + $0x4e0] sm:$0xff]
    %v333 = vld [vmem:[#allocation5 + $0x4e8] sm:$0xff]
    %v334 = vld [vmem:[#allocation5 + $0x4f0] sm:$0xff]
    %v335 = vld [vmem:[#allocation5 + $0x4f8] sm:$0xff]
    %v336 = vld [vmem:[#allocation5 + $0x500] sm:$0xff]
    %v337 = vld [vmem:[#allocation5 + $0x508] sm:$0xff]
    %v338 = vld [vmem:[#allocation5 + $0x510] sm:$0xff]
    %v339 = vld [vmem:[#allocation5 + $0x518] sm:$0xff]
    %v340 = vld [vmem:[#allocation5 + $0x520] sm:$0xff]
    %v341 = vld [vmem:[#allocation5 + $0x528] sm:$0xff]
    %v342 = vld [vmem:[#allocation5 + $0x530] sm:$0xff]
    %v343 = vld [vmem:[#allocation5 + $0x538] sm:$0xff]
    %v344 = vld [vmem:[#allocation5 + $0x540] sm:$0xff]
    %v345 = vld [vmem:[#allocation5 + $0x548] sm:$0xff]
    %v346 = vld [vmem:[#allocation5 + $0x550] sm:$0xff]
    %v347 = vld [vmem:[#allocation5 + $0x558] sm:$0xff]
    %v348 = vld [vmem:[#allocation5 + $0x560] sm:$0xff]
    %v349 = vld [vmem:[#allocation5 + $0x568] sm:$0xff]
    %v350 = vld [vmem:[#allocation5 + $0x570] sm:$0xff]
    %v351 = vld [vmem:[#allocation5 + $0x578] sm:$0xff]
    %v352 = vld [vmem:[#allocation5 + $0x580] sm:$0xff]
    %v353 = vld [vmem:[#allocation5 + $0x588] sm:$0xff]
    %v354 = vld [vmem:[#allocation5 + $0x590] sm:$0xff]
    %v355 = vld [vmem:[#allocation5 + $0x598] sm:$0xff]
    %v356 = vld [vmem:[#allocation5 + $0x5a0] sm:$0xff]
    %v357 = vld [vmem:[#allocation5 + $0x5a8] sm:$0xff]
    %v358 = vld [vmem:[#allocation5 + $0x5b0] sm:$0xff]
    %v359 = vld [vmem:[#allocation5 + $0x5b8] sm:$0xff]
    %v360 = vld [vmem:[#allocation5 + $0x5c0] sm:$0xff]
    %v361 = vld [vmem:[#allocation5 + $0x5c8] sm:$0xff]
    %v362 = vld [vmem:[#allocation5 + $0x5d0] sm:$0xff]
    %v363 = vld [vmem:[#allocation5 + $0x5d8] sm:$0xff]
    %v364 = vld [vmem:[#allocation5 + $0x5e0] sm:$0xff]
    %v365 = vld [vmem:[#allocation5 + $0x5e8] sm:$0xff]
    %v366 = vld [vmem:[#allocation5 + $0x5f0] sm:$0xff]
    %v367 = vld [vmem:[#allocation5 + $0x5f8] sm:$0xff]
    %v368 = vld [vmem:[#allocation5 + $0x600] sm:$0xff]
    %v369 = vld [vmem:[#allocation5 + $0x608] sm:$0xff]
    %v370 = vld [vmem:[#allocation5 + $0x610] sm:$0xff]
    %v371 = vld [vmem:[#allocation5 + $0x618] sm:$0xff]
    %v372 = vld [vmem:[#allocation5 + $0x620] sm:$0xff]
    %v373 = vld [vmem:[#allocation5 + $0x628] sm:$0xff]
    %v374 = vld [vmem:[#allocation5 + $0x630] sm:$0xff]
    %v375 = vld [vmem:[#allocation5 + $0x638] sm:$0xff]
    %v376 = vld [vmem:[#allocation5 + $0x640] sm:$0xff]
    %v377 = vld [vmem:[#allocation5 + $0x648] sm:$0xff]
    %v378 = vld [vmem:[#allocation5 + $0x650] sm:$0xff]
    %v379 = vld [vmem:[#allocation5 + $0x658] sm:$0xff]
    %v380 = vld [vmem:[#allocation5 + $0x660] sm:$0xff]
    %v381 = vld [vmem:[#allocation5 + $0x668] sm:$0xff]
    %v382 = vld [vmem:[#allocation5 + $0x670] sm:$0xff]
    %v383 = vld [vmem:[#allocation5 + $0x678] sm:$0xff]
    %v384 = vld [vmem:[#allocation5 + $0x680] sm:$0xff]
    %v385 = vld [vmem:[#allocation5 + $0x688] sm:$0xff]
    %v386 = vld [vmem:[#allocation5 + $0x690] sm:$0xff]
    %v387 = vld [vmem:[#allocation5 + $0x698] sm:$0xff]
    %v388 = vld [vmem:[#allocation5 + $0x6a0] sm:$0xff]
    %v389 = vld [vmem:[#allocation5 + $0x6a8] sm:$0xff]
    %v390 = vld [vmem:[#allocation5 + $0x6b0] sm:$0xff]
    %v391 = vld [vmem:[#allocation5 + $0x6b8] sm:$0xff]
    %v392 = vld [vmem:[#allocation5 + $0x6c0] sm:$0xff]
    %v393 = vld [vmem:[#allocation5 + $0x6c8] sm:$0xff]
    %v394 = vld [vmem:[#allocation5 + $0x6d0] sm:$0xff]
    %v395 = vld [vmem:[#allocation5 + $0x6d8] sm:$0xff]
    %v396 = vld [vmem:[#allocation5 + $0x6e0] sm:$0xff]
    %v397 = vld [vmem:[#allocation5 + $0x6e8] sm:$0xff]
    %v398 = vld [vmem:[#allocation5 + $0x6f0] sm:$0xff]
    %v399 = vld [vmem:[#allocation5 + $0x6f8] sm:$0xff]
    %v400 = vld [vmem:[#allocation5 + $0x700] sm:$0xff]
    %v401 = vld [vmem:[#allocation5 + $0x708] sm:$0xff]
    %v402 = vld [vmem:[#allocation5 + $0x710] sm:$0xff]
    %v403 = vld [vmem:[#allocation5 + $0x718] sm:$0xff]
    %v404 = vld [vmem:[#allocation5 + $0x720] sm:$0xff]
    %v405 = vld [vmem:[#allocation5 + $0x728] sm:$0xff]
    %v406 = vld [vmem:[#allocation5 + $0x730] sm:$0xff]
    %v407 = vld [vmem:[#allocation5 + $0x738] sm:$0xff]
    %v408 = vld [vmem:[#allocation5 + $0x740] sm:$0xff]
    %v409 = vld [vmem:[#allocation5 + $0x748] sm:$0xff]
    %v410 = vld [vmem:[#allocation5 + $0x750] sm:$0xff]
    %v411 = vld [vmem:[#allocation5 + $0x758] sm:$0xff]
    %v412 = vld [vmem:[#allocation5 + $0x760] sm:$0xff]
    %v413 = vld [vmem:[#allocation5 + $0x768] sm:$0xff]
    %v414 = vld [vmem:[#allocation5 + $0x770] sm:$0xff]
    %v415 = vld [vmem:[#allocation5 + $0x778] sm:$0xff]
    %v416 = vld [vmem:[#allocation5 + $0x780] sm:$0xff]
    %v417 = vld [vmem:[#allocation5 + $0x788] sm:$0xff]
    %v418 = vld [vmem:[#allocation5 + $0x790] sm:$0xff]
    %v419 = vld [vmem:[#allocation5 + $0x798] sm:$0xff]
    %v420 = vld [vmem:[#allocation5 + $0x7a0] sm:$0xff]
    %v421 = vld [vmem:[#allocation5 + $0x7a8] sm:$0xff]
    %v422 = vld [vmem:[#allocation5 + $0x7b0] sm:$0xff]
    %v423 = vld [vmem:[#allocation5 + $0x7b8] sm:$0xff]
    %v424 = vld [vmem:[#allocation5 + $0x7c0] sm:$0xff]
    %v425 = vld [vmem:[#allocation5 + $0x7c8] sm:$0xff]
    %v426 = vld [vmem:[#allocation5 + $0x7d0] sm:$0xff]
    %v427 = vld [vmem:[#allocation5 + $0x7d8] sm:$0xff]
    %v428 = vld [vmem:[#allocation5 + $0x7e0] sm:$0xff]
    %v429 = vld [vmem:[#allocation5 + $0x7e8] sm:$0xff]
    %v430 = vld [vmem:[#allocation5 + $0x7f0] sm:$0xff]
    %v431 = vld [vmem:[#allocation5 + $0x7f8] sm:$0xff]
    %v432 = vld [vmem:[#allocation7] sm:$0xff]
    %v433 = vld [vmem:[#allocation7 + $0x8] sm:$0xff]
    %v436 = vlaneseq
    %v437 = vshrl.u32 %v436, 7
    %v438 = vsub.s32 0, %v437
    %v439 = vrot.slane %v432, %v438
    %v440 = vlaneseq
    %v441 = vshrl.u32 %v440, 7
    %v442 = vsub.s32 1, %v441
    %v443 = vrot.slane %v432, %v442
    %v444 = vlaneseq
    %v445 = vshrl.u32 %v444, 7
    %v446 = vsub.s32 2, %v445
    %v447 = vrot.slane %v432, %v446
    %v448 = vlaneseq
    %v449 = vshrl.u32 %v448, 7
    %v450 = vsub.s32 3, %v449
    %v451 = vrot.slane %v432, %v450
    %v452 = vlaneseq
    %v453 = vshrl.u32 %v452, 7
    %v454 = vsub.s32 4, %v453
    %v455 = vrot.slane %v432, %v454
    %v456 = vlaneseq
    %v457 = vshrl.u32 %v456, 7
    %v458 = vsub.s32 5, %v457
    %v459 = vrot.slane %v432, %v458
    %v460 = vlaneseq
    %v461 = vshrl.u32 %v460, 7
    %v462 = vsub.s32 6, %v461
    %v463 = vrot.slane %v432, %v462
    %v464 = vlaneseq
    %v465 = vshrl.u32 %v464, 7
    %v466 = vsub.s32 7, %v465
    %v467 = vrot.slane %v432, %v466
    %v468 = vlaneseq
    %v469 = vshrl.u32 %v468, 7
    %v470 = vsub.s32 0, %v469
    %v471 = vrot.slane %v433, %v470
    %v472 = vlaneseq
    %v473 = vshrl.u32 %v472, 7
    %v474 = vsub.s32 1, %v473
    %v475 = vrot.slane %v433, %v474
    %v476 = vlaneseq
    %v477 = vshrl.u32 %v476, 7
    %v478 = vsub.s32 2, %v477
    %v479 = vrot.slane %v433, %v478
    %v480 = vlaneseq
    %v481 = vshrl.u32 %v480, 7
    %v482 = vsub.s32 3, %v481
    %v483 = vrot.slane %v433, %v482
    %v484 = vlaneseq
    %v485 = vshrl.u32 %v484, 7
    %v486 = vsub.s32 4, %v485
    %v487 = vrot.slane %v433, %v486
    %v488 = vlaneseq
    %v489 = vshrl.u32 %v488, 7
    %v490 = vsub.s32 5, %v489
    %v491 = vrot.slane %v433, %v490
    %v492 = vlaneseq
    %v493 = vshrl.u32 %v492, 7
    %v494 = vsub.s32 6, %v493
    %v495 = vrot.slane %v433, %v494
    %v496 = vlaneseq
    %v497 = vshrl.u32 %v496, 7
    %v498 = vsub.s32 7, %v497
    %v499 = vrot.slane %v433, %v498
    %v772 = vunpack.c.l.b16 %v176
    %v773 = vunpack.c.h.b16 %v176
    %v774 = vunpack.c.l.b16 %v177
    %v775 = vunpack.c.h.b16 %v177
    %v776 = vunpack.c.l.b16 %v178
    %v777 = vunpack.c.h.b16 %v178
    %v778 = vunpack.c.l.b16 %v179
    %v779 = vunpack.c.h.b16 %v179
    %v780 = vunpack.c.l.b16 %v180
    %v781 = vunpack.c.h.b16 %v180
    %v782 = vunpack.c.l.b16 %v181
    %v783 = vunpack.c.h.b16 %v181
    %v784 = vunpack.c.l.b16 %v182
    %v785 = vunpack.c.h.b16 %v182
    %v786 = vunpack.c.l.b16 %v183
    %v787 = vunpack.c.h.b16 %v183
    %v788 = vunpack.c.l.b16 %v184
    %v789 = vunpack.c.h.b16 %v184
    %v790 = vunpack.c.l.b16 %v185
    %v791 = vunpack.c.h.b16 %v185
    %v792 = vunpack.c.l.b16 %v186
    %v793 = vunpack.c.h.b16 %v186
    %v794 = vunpack.c.l.b16 %v187
    %v795 = vunpack.c.h.b16 %v187
    %v796 = vunpack.c.l.b16 %v188
    %v797 = vunpack.c.h.b16 %v188
    %v798 = vunpack.c.l.b16 %v189
    %v799 = vunpack.c.h.b16 %v189
    %v800 = vunpack.c.l.b16 %v190
    %v801 = vunpack.c.h.b16 %v190
    %v802 = vunpack.c.l.b16 %v191
    %v803 = vunpack.c.h.b16 %v191
    %v804 = vunpack.c.l.b16 %v192
    %v805 = vunpack.c.h.b16 %v192
    %v806 = vunpack.c.l.b16 %v193
    %v807 = vunpack.c.h.b16 %v193
    %v808 = vunpack.c.l.b16 %v194
    %v809 = vunpack.c.h.b16 %v194
    %v810 = vunpack.c.l.b16 %v195
    %v811 = vunpack.c.h.b16 %v195
    %v812 = vunpack.c.l.b16 %v196
    %v813 = vunpack.c.h.b16 %v196
    %v814 = vunpack.c.l.b16 %v197
    %v815 = vunpack.c.h.b16 %v197
    %v816 = vunpack.c.l.b16 %v198
    %v817 = vunpack.c.h.b16 %v198
    %v818 = vunpack.c.l.b16 %v199
    %v819 = vunpack.c.h.b16 %v199
    %v820 = vunpack.c.l.b16 %v200
    %v821 = vunpack.c.h.b16 %v200
    %v822 = vunpack.c.l.b16 %v201
    %v823 = vunpack.c.h.b16 %v201
    %v824 = vunpack.c.l.b16 %v202
    %v825 = vunpack.c.h.b16 %v202
    %v826 = vunpack.c.l.b16 %v203
    %v827 = vunpack.c.h.b16 %v203
    %v828 = vunpack.c.l.b16 %v204
    %v829 = vunpack.c.h.b16 %v204
    %v830 = vunpack.c.l.b16 %v205
    %v831 = vunpack.c.h.b16 %v205
    %v832 = vunpack.c.l.b16 %v206
    %v833 = vunpack.c.h.b16 %v206
    %v834 = vunpack.c.l.b16 %v207
    %v835 = vunpack.c.h.b16 %v207
    %v836 = vunpack.c.l.b16 %v208
    %v837 = vunpack.c.h.b16 %v208
    %v838 = vunpack.c.l.b16 %v209
    %v839 = vunpack.c.h.b16 %v209
    %v840 = vunpack.c.l.b16 %v210
    %v841 = vunpack.c.h.b16 %v210
    %v842 = vunpack.c.l.b16 %v211
    %v843 = vunpack.c.h.b16 %v211
    %v844 = vunpack.c.l.b16 %v212
    %v845 = vunpack.c.h.b16 %v212
    %v846 = vunpack.c.l.b16 %v213
    %v847 = vunpack.c.h.b16 %v213
    %v848 = vunpack.c.l.b16 %v214
    %v849 = vunpack.c.h.b16 %v214
    %v850 = vunpack.c.l.b16 %v215
    %v851 = vunpack.c.h.b16 %v215
    %v852 = vunpack.c.l.b16 %v216
    %v853 = vunpack.c.h.b16 %v216
    %v854 = vunpack.c.l.b16 %v217
    %v855 = vunpack.c.h.b16 %v217
    %v856 = vunpack.c.l.b16 %v218
    %v857 = vunpack.c.h.b16 %v218
    %v858 = vunpack.c.l.b16 %v219
    %v859 = vunpack.c.h.b16 %v219
    %v860 = vunpack.c.l.b16 %v220
    %v861 = vunpack.c.h.b16 %v220
    %v862 = vunpack.c.l.b16 %v221
    %v863 = vunpack.c.h.b16 %v221
    %v864 = vunpack.c.l.b16 %v222
    %v865 = vunpack.c.h.b16 %v222
    %v866 = vunpack.c.l.b16 %v223
    %v867 = vunpack.c.h.b16 %v223
    %v868 = vunpack.c.l.b16 %v224
    %v869 = vunpack.c.h.b16 %v224
    %v870 = vunpack.c.l.b16 %v225
    %v871 = vunpack.c.h.b16 %v225
    %v872 = vunpack.c.l.b16 %v226
    %v873 = vunpack.c.h.b16 %v226
    %v874 = vunpack.c.l.b16 %v227
    %v875 = vunpack.c.h.b16 %v227
    %v876 = vunpack.c.l.b16 %v228
    %v877 = vunpack.c.h.b16 %v228
    %v878 = vunpack.c.l.b16 %v229
    %v879 = vunpack.c.h.b16 %v229
    %v880 = vunpack.c.l.b16 %v230
    %v881 = vunpack.c.h.b16 %v230
    %v882 = vunpack.c.l.b16 %v231
    %v883 = vunpack.c.h.b16 %v231
    %v884 = vunpack.c.l.b16 %v232
    %v885 = vunpack.c.h.b16 %v232
    %v886 = vunpack.c.l.b16 %v233
    %v887 = vunpack.c.h.b16 %v233
    %v888 = vunpack.c.l.b16 %v234
    %v889 = vunpack.c.h.b16 %v234
    %v890 = vunpack.c.l.b16 %v235
    %v891 = vunpack.c.h.b16 %v235
    %v892 = vunpack.c.l.b16 %v236
    %v893 = vunpack.c.h.b16 %v236
    %v894 = vunpack.c.l.b16 %v237
    %v895 = vunpack.c.h.b16 %v237
    %v896 = vunpack.c.l.b16 %v238
    %v897 = vunpack.c.h.b16 %v238
    %v898 = vunpack.c.l.b16 %v239
    %v899 = vunpack.c.h.b16 %v239
    %v900 = vunpack.c.l.b16 %v240
    %v901 = vunpack.c.h.b16 %v240
    %v902 = vunpack.c.l.b16 %v241
    %v903 = vunpack.c.h.b16 %v241
    %v904 = vunpack.c.l.b16 %v242
    %v905 = vunpack.c.h.b16 %v242
    %v906 = vunpack.c.l.b16 %v243
    %v907 = vunpack.c.h.b16 %v243
    %v908 = vunpack.c.l.b16 %v244
    %v909 = vunpack.c.h.b16 %v244
    %v910 = vunpack.c.l.b16 %v245
    %v911 = vunpack.c.h.b16 %v245
    %v912 = vunpack.c.l.b16 %v246
    %v913 = vunpack.c.h.b16 %v246
    %v914 = vunpack.c.l.b16 %v247
    %v915 = vunpack.c.h.b16 %v247
    %v916 = vunpack.c.l.b16 %v248
    %v917 = vunpack.c.h.b16 %v248
    %v918 = vunpack.c.l.b16 %v249
    %v919 = vunpack.c.h.b16 %v249
    %v920 = vunpack.c.l.b16 %v250
    %v921 = vunpack.c.h.b16 %v250
    %v922 = vunpack.c.l.b16 %v251
    %v923 = vunpack.c.h.b16 %v251
    %v924 = vunpack.c.l.b16 %v252
    %v925 = vunpack.c.h.b16 %v252
    %v926 = vunpack.c.l.b16 %v253
    %v927 = vunpack.c.h.b16 %v253
    %v928 = vunpack.c.l.b16 %v254
    %v929 = vunpack.c.h.b16 %v254
    %v930 = vunpack.c.l.b16 %v255
    %v931 = vunpack.c.h.b16 %v255
    %v932 = vunpack.c.l.b16 %v256
    %v933 = vunpack.c.h.b16 %v256
    %v934 = vunpack.c.l.b16 %v257
    %v935 = vunpack.c.h.b16 %v257
    %v936 = vunpack.c.l.b16 %v258
    %v937 = vunpack.c.h.b16 %v258
    %v938 = vunpack.c.l.b16 %v259
    %v939 = vunpack.c.h.b16 %v259
    %v940 = vunpack.c.l.b16 %v260
    %v941 = vunpack.c.h.b16 %v260
    %v942 = vunpack.c.l.b16 %v261
    %v943 = vunpack.c.h.b16 %v261
    %v944 = vunpack.c.l.b16 %v262
    %v945 = vunpack.c.h.b16 %v262
    %v946 = vunpack.c.l.b16 %v263
    %v947 = vunpack.c.h.b16 %v263
    %v948 = vunpack.c.l.b16 %v264
    %v949 = vunpack.c.h.b16 %v264
    %v950 = vunpack.c.l.b16 %v265
    %v951 = vunpack.c.h.b16 %v265
    %v952 = vunpack.c.l.b16 %v266
    %v953 = vunpack.c.h.b16 %v266
    %v954 = vunpack.c.l.b16 %v267
    %v955 = vunpack.c.h.b16 %v267
    %v956 = vunpack.c.l.b16 %v268
    %v957 = vunpack.c.h.b16 %v268
    %v958 = vunpack.c.l.b16 %v269
    %v959 = vunpack.c.h.b16 %v269
    %v960 = vunpack.c.l.b16 %v270
    %v961 = vunpack.c.h.b16 %v270
    %v962 = vunpack.c.l.b16 %v271
    %v963 = vunpack.c.h.b16 %v271
    %v964 = vunpack.c.l.b16 %v272
    %v965 = vunpack.c.h.b16 %v272
    %v966 = vunpack.c.l.b16 %v273
    %v967 = vunpack.c.h.b16 %v273
    %v968 = vunpack.c.l.b16 %v274
    %v969 = vunpack.c.h.b16 %v274
    %v970 = vunpack.c.l.b16 %v275
    %v971 = vunpack.c.h.b16 %v275
    %v972 = vunpack.c.l.b16 %v276
    %v973 = vunpack.c.h.b16 %v276
    %v974 = vunpack.c.l.b16 %v277
    %v975 = vunpack.c.h.b16 %v277
    %v976 = vunpack.c.l.b16 %v278
    %v977 = vunpack.c.h.b16 %v278
    %v978 = vunpack.c.l.b16 %v279
    %v979 = vunpack.c.h.b16 %v279
    %v980 = vunpack.c.l.b16 %v280
    %v981 = vunpack.c.h.b16 %v280
    %v982 = vunpack.c.l.b16 %v281
    %v983 = vunpack.c.h.b16 %v281
    %v984 = vunpack.c.l.b16 %v282
    %v985 = vunpack.c.h.b16 %v282
    %v986 = vunpack.c.l.b16 %v283
    %v987 = vunpack.c.h.b16 %v283
    %v988 = vunpack.c.l.b16 %v284
    %v989 = vunpack.c.h.b16 %v284
    %v990 = vunpack.c.l.b16 %v285
    %v991 = vunpack.c.h.b16 %v285
    %v992 = vunpack.c.l.b16 %v286
    %v993 = vunpack.c.h.b16 %v286
    %v994 = vunpack.c.l.b16 %v287
    %v995 = vunpack.c.h.b16 %v287
    %v996 = vunpack.c.l.b16 %v288
    %v997 = vunpack.c.h.b16 %v288
    %v998 = vunpack.c.l.b16 %v289
    %v999 = vunpack.c.h.b16 %v289
    %v1000 = vunpack.c.l.b16 %v290
    %v1001 = vunpack.c.h.b16 %v290
    %v1002 = vunpack.c.l.b16 %v291
    %v1003 = vunpack.c.h.b16 %v291
    %v1004 = vunpack.c.l.b16 %v292
    %v1005 = vunpack.c.h.b16 %v292
    %v1006 = vunpack.c.l.b16 %v293
    %v1007 = vunpack.c.h.b16 %v293
    %v1008 = vunpack.c.l.b16 %v294
    %v1009 = vunpack.c.h.b16 %v294
    %v1010 = vunpack.c.l.b16 %v295
    %v1011 = vunpack.c.h.b16 %v295
    %v1012 = vunpack.c.l.b16 %v296
    %v1013 = vunpack.c.h.b16 %v296
    %v1014 = vunpack.c.l.b16 %v297
    %v1015 = vunpack.c.h.b16 %v297
    %v1016 = vunpack.c.l.b16 %v298
    %v1017 = vunpack.c.h.b16 %v298
    %v1018 = vunpack.c.l.b16 %v299
    %v1019 = vunpack.c.h.b16 %v299
    %v1020 = vunpack.c.l.b16 %v300
    %v1021 = vunpack.c.h.b16 %v300
    %v1022 = vunpack.c.l.b16 %v301
    %v1023 = vunpack.c.h.b16 %v301
    %v1024 = vunpack.c.l.b16 %v302
    %v1025 = vunpack.c.h.b16 %v302
    %v1026 = vunpack.c.l.b16 %v303
    %v1027 = vunpack.c.h.b16 %v303
    %v1028 = vunpack.c.l.b16 %v304
    %v1029 = vunpack.c.h.b16 %v304
    %v1030 = vunpack.c.l.b16 %v305
    %v1031 = vunpack.c.h.b16 %v305
    %v1032 = vunpack.c.l.b16 %v306
    %v1033 = vunpack.c.h.b16 %v306
    %v1034 = vunpack.c.l.b16 %v307
    %v1035 = vunpack.c.h.b16 %v307
    %v1036 = vunpack.c.l.b16 %v308
    %v1037 = vunpack.c.h.b16 %v308
    %v1038 = vunpack.c.l.b16 %v309
    %v1039 = vunpack.c.h.b16 %v309
    %v1040 = vunpack.c.l.b16 %v310
    %v1041 = vunpack.c.h.b16 %v310
    %v1042 = vunpack.c.l.b16 %v311
    %v1043 = vunpack.c.h.b16 %v311
    %v1044 = vunpack.c.l.b16 %v312
    %v1045 = vunpack.c.h.b16 %v312
    %v1046 = vunpack.c.l.b16 %v313
    %v1047 = vunpack.c.h.b16 %v313
    %v1048 = vunpack.c.l.b16 %v314
    %v1049 = vunpack.c.h.b16 %v314
    %v1050 = vunpack.c.l.b16 %v315
    %v1051 = vunpack.c.h.b16 %v315
    %v1052 = vunpack.c.l.b16 %v316
    %v1053 = vunpack.c.h.b16 %v316
    %v1054 = vunpack.c.l.b16 %v317
    %v1055 = vunpack.c.h.b16 %v317
    %v1056 = vunpack.c.l.b16 %v318
    %v1057 = vunpack.c.h.b16 %v318
    %v1058 = vunpack.c.l.b16 %v319
    %v1059 = vunpack.c.h.b16 %v319
    %v1060 = vunpack.c.l.b16 %v320
    %v1061 = vunpack.c.h.b16 %v320
    %v1062 = vunpack.c.l.b16 %v321
    %v1063 = vunpack.c.h.b16 %v321
    %v1064 = vunpack.c.l.b16 %v322
    %v1065 = vunpack.c.h.b16 %v322
    %v1066 = vunpack.c.l.b16 %v323
    %v1067 = vunpack.c.h.b16 %v323
    %v1068 = vunpack.c.l.b16 %v324
    %v1069 = vunpack.c.h.b16 %v324
    %v1070 = vunpack.c.l.b16 %v325
    %v1071 = vunpack.c.h.b16 %v325
    %v1072 = vunpack.c.l.b16 %v326
    %v1073 = vunpack.c.h.b16 %v326
    %v1074 = vunpack.c.l.b16 %v327
    %v1075 = vunpack.c.h.b16 %v327
    %v1076 = vunpack.c.l.b16 %v328
    %v1077 = vunpack.c.h.b16 %v328
    %v1078 = vunpack.c.l.b16 %v329
    %v1079 = vunpack.c.h.b16 %v329
    %v1080 = vunpack.c.l.b16 %v330
    %v1081 = vunpack.c.h.b16 %v330
    %v1082 = vunpack.c.l.b16 %v331
    %v1083 = vunpack.c.h.b16 %v331
    %v1084 = vunpack.c.l.b16 %v332
    %v1085 = vunpack.c.h.b16 %v332
    %v1086 = vunpack.c.l.b16 %v333
    %v1087 = vunpack.c.h.b16 %v333
    %v1088 = vunpack.c.l.b16 %v334
    %v1089 = vunpack.c.h.b16 %v334
    %v1090 = vunpack.c.l.b16 %v335
    %v1091 = vunpack.c.h.b16 %v335
    %v1092 = vunpack.c.l.b16 %v336
    %v1093 = vunpack.c.h.b16 %v336
    %v1094 = vunpack.c.l.b16 %v337
    %v1095 = vunpack.c.h.b16 %v337
    %v1096 = vunpack.c.l.b16 %v338
    %v1097 = vunpack.c.h.b16 %v338
    %v1098 = vunpack.c.l.b16 %v339
    %v1099 = vunpack.c.h.b16 %v339
    %v1100 = vunpack.c.l.b16 %v340
    %v1101 = vunpack.c.h.b16 %v340
    %v1102 = vunpack.c.l.b16 %v341
    %v1103 = vunpack.c.h.b16 %v341
    %v1104 = vunpack.c.l.b16 %v342
    %v1105 = vunpack.c.h.b16 %v342
    %v1106 = vunpack.c.l.b16 %v343
    %v1107 = vunpack.c.h.b16 %v343
    %v1108 = vunpack.c.l.b16 %v344
    %v1109 = vunpack.c.h.b16 %v344
    %v1110 = vunpack.c.l.b16 %v345
    %v1111 = vunpack.c.h.b16 %v345
    %v1112 = vunpack.c.l.b16 %v346
    %v1113 = vunpack.c.h.b16 %v346
    %v1114 = vunpack.c.l.b16 %v347
    %v1115 = vunpack.c.h.b16 %v347
    %v1116 = vunpack.c.l.b16 %v348
    %v1117 = vunpack.c.h.b16 %v348
    %v1118 = vunpack.c.l.b16 %v349
    %v1119 = vunpack.c.h.b16 %v349
    %v1120 = vunpack.c.l.b16 %v350
    %v1121 = vunpack.c.h.b16 %v350
    %v1122 = vunpack.c.l.b16 %v351
    %v1123 = vunpack.c.h.b16 %v351
    %v1124 = vunpack.c.l.b16 %v352
    %v1125 = vunpack.c.h.b16 %v352
    %v1126 = vunpack.c.l.b16 %v353
    %v1127 = vunpack.c.h.b16 %v353
    %v1128 = vunpack.c.l.b16 %v354
    %v1129 = vunpack.c.h.b16 %v354
    %v1130 = vunpack.c.l.b16 %v355
    %v1131 = vunpack.c.h.b16 %v355
    %v1132 = vunpack.c.l.b16 %v356
    %v1133 = vunpack.c.h.b16 %v356
    %v1134 = vunpack.c.l.b16 %v357
    %v1135 = vunpack.c.h.b16 %v357
    %v1136 = vunpack.c.l.b16 %v358
    %v1137 = vunpack.c.h.b16 %v358
    %v1138 = vunpack.c.l.b16 %v359
    %v1139 = vunpack.c.h.b16 %v359
    %v1140 = vunpack.c.l.b16 %v360
    %v1141 = vunpack.c.h.b16 %v360
    %v1142 = vunpack.c.l.b16 %v361
    %v1143 = vunpack.c.h.b16 %v361
    %v1144 = vunpack.c.l.b16 %v362
    %v1145 = vunpack.c.h.b16 %v362
    %v1146 = vunpack.c.l.b16 %v363
    %v1147 = vunpack.c.h.b16 %v363
    %v1148 = vunpack.c.l.b16 %v364
    %v1149 = vunpack.c.h.b16 %v364
    %v1150 = vunpack.c.l.b16 %v365
    %v1151 = vunpack.c.h.b16 %v365
    %v1152 = vunpack.c.l.b16 %v366
    %v1153 = vunpack.c.h.b16 %v366
    %v1154 = vunpack.c.l.b16 %v367
    %v1155 = vunpack.c.h.b16 %v367
    %v1156 = vunpack.c.l.b16 %v368
    %v1157 = vunpack.c.h.b16 %v368
    %v1158 = vunpack.c.l.b16 %v369
    %v1159 = vunpack.c.h.b16 %v369
    %v1160 = vunpack.c.l.b16 %v370
    %v1161 = vunpack.c.h.b16 %v370
    %v1162 = vunpack.c.l.b16 %v371
    %v1163 = vunpack.c.h.b16 %v371
    %v1164 = vunpack.c.l.b16 %v372
    %v1165 = vunpack.c.h.b16 %v372
    %v1166 = vunpack.c.l.b16 %v373
    %v1167 = vunpack.c.h.b16 %v373
    %v1168 = vunpack.c.l.b16 %v374
    %v1169 = vunpack.c.h.b16 %v374
    %v1170 = vunpack.c.l.b16 %v375
    %v1171 = vunpack.c.h.b16 %v375
    %v1172 = vunpack.c.l.b16 %v376
    %v1173 = vunpack.c.h.b16 %v376
    %v1174 = vunpack.c.l.b16 %v377
    %v1175 = vunpack.c.h.b16 %v377
    %v1176 = vunpack.c.l.b16 %v378
    %v1177 = vunpack.c.h.b16 %v378
    %v1178 = vunpack.c.l.b16 %v379
    %v1179 = vunpack.c.h.b16 %v379
    %v1180 = vunpack.c.l.b16 %v380
    %v1181 = vunpack.c.h.b16 %v380
    %v1182 = vunpack.c.l.b16 %v381
    %v1183 = vunpack.c.h.b16 %v381
    %v1184 = vunpack.c.l.b16 %v382
    %v1185 = vunpack.c.h.b16 %v382
    %v1186 = vunpack.c.l.b16 %v383
    %v1187 = vunpack.c.h.b16 %v383
    %v1188 = vunpack.c.l.b16 %v384
    %v1189 = vunpack.c.h.b16 %v384
    %v1190 = vunpack.c.l.b16 %v385
    %v1191 = vunpack.c.h.b16 %v385
    %v1192 = vunpack.c.l.b16 %v386
    %v1193 = vunpack.c.h.b16 %v386
    %v1194 = vunpack.c.l.b16 %v387
    %v1195 = vunpack.c.h.b16 %v387
    %v1196 = vunpack.c.l.b16 %v388
    %v1197 = vunpack.c.h.b16 %v388
    %v1198 = vunpack.c.l.b16 %v389
    %v1199 = vunpack.c.h.b16 %v389
    %v1200 = vunpack.c.l.b16 %v390
    %v1201 = vunpack.c.h.b16 %v390
    %v1202 = vunpack.c.l.b16 %v391
    %v1203 = vunpack.c.h.b16 %v391
    %v1204 = vunpack.c.l.b16 %v392
    %v1205 = vunpack.c.h.b16 %v392
    %v1206 = vunpack.c.l.b16 %v393
    %v1207 = vunpack.c.h.b16 %v393
    %v1208 = vunpack.c.l.b16 %v394
    %v1209 = vunpack.c.h.b16 %v394
    %v1210 = vunpack.c.l.b16 %v395
    %v1211 = vunpack.c.h.b16 %v395
    %v1212 = vunpack.c.l.b16 %v396
    %v1213 = vunpack.c.h.b16 %v396
    %v1214 = vunpack.c.l.b16 %v397
    %v1215 = vunpack.c.h.b16 %v397
    %v1216 = vunpack.c.l.b16 %v398
    %v1217 = vunpack.c.h.b16 %v398
    %v1218 = vunpack.c.l.b16 %v399
    %v1219 = vunpack.c.h.b16 %v399
    %v1220 = vunpack.c.l.b16 %v400
    %v1221 = vunpack.c.h.b16 %v400
    %v1222 = vunpack.c.l.b16 %v401
    %v1223 = vunpack.c.h.b16 %v401
    %v1224 = vunpack.c.l.b16 %v402
    %v1225 = vunpack.c.h.b16 %v402
    %v1226 = vunpack.c.l.b16 %v403
    %v1227 = vunpack.c.h.b16 %v403
    %v1228 = vunpack.c.l.b16 %v404
    %v1229 = vunpack.c.h.b16 %v404
    %v1230 = vunpack.c.l.b16 %v405
    %v1231 = vunpack.c.h.b16 %v405
    %v1232 = vunpack.c.l.b16 %v406
    %v1233 = vunpack.c.h.b16 %v406
    %v1234 = vunpack.c.l.b16 %v407
    %v1235 = vunpack.c.h.b16 %v407
    %v1236 = vunpack.c.l.b16 %v408
    %v1237 = vunpack.c.h.b16 %v408
    %v1238 = vunpack.c.l.b16 %v409
    %v1239 = vunpack.c.h.b16 %v409
    %v1240 = vunpack.c.l.b16 %v410
    %v1241 = vunpack.c.h.b16 %v410
    %v1242 = vunpack.c.l.b16 %v411
    %v1243 = vunpack.c.h.b16 %v411
    %v1244 = vunpack.c.l.b16 %v412
    %v1245 = vunpack.c.h.b16 %v412
    %v1246 = vunpack.c.l.b16 %v413
    %v1247 = vunpack.c.h.b16 %v413
    %v1248 = vunpack.c.l.b16 %v414
    %v1249 = vunpack.c.h.b16 %v414
    %v1250 = vunpack.c.l.b16 %v415
    %v1251 = vunpack.c.h.b16 %v415
    %v1252 = vunpack.c.l.b16 %v416
    %v1253 = vunpack.c.h.b16 %v416
    %v1254 = vunpack.c.l.b16 %v417
    %v1255 = vunpack.c.h.b16 %v417
    %v1256 = vunpack.c.l.b16 %v418
    %v1257 = vunpack.c.h.b16 %v418
    %v1258 = vunpack.c.l.b16 %v419
    %v1259 = vunpack.c.h.b16 %v419
    %v1260 = vunpack.c.l.b16 %v420
    %v1261 = vunpack.c.h.b16 %v420
    %v1262 = vunpack.c.l.b16 %v421
    %v1263 = vunpack.c.h.b16 %v421
    %v1264 = vunpack.c.l.b16 %v422
    %v1265 = vunpack.c.h.b16 %v422
    %v1266 = vunpack.c.l.b16 %v423
    %v1267 = vunpack.c.h.b16 %v423
    %v1268 = vunpack.c.l.b16 %v424
    %v1269 = vunpack.c.h.b16 %v424
    %v1270 = vunpack.c.l.b16 %v425
    %v1271 = vunpack.c.h.b16 %v425
    %v1272 = vunpack.c.l.b16 %v426
    %v1273 = vunpack.c.h.b16 %v426
    %v1274 = vunpack.c.l.b16 %v427
    %v1275 = vunpack.c.h.b16 %v427
    %v1276 = vunpack.c.l.b16 %v428
    %v1277 = vunpack.c.h.b16 %v428
    %v1278 = vunpack.c.l.b16 %v429
    %v1279 = vunpack.c.h.b16 %v429
    %v1280 = vunpack.c.l.b16 %v430
    %v1281 = vunpack.c.h.b16 %v430
    %v1282 = vunpack.c.l.b16 %v431
    %v1283 = vunpack.c.h.b16 %v431
    %v1284 = vpack.c.b16 %v788, %v772
    %v1285 = vpack.c.b16 %v789, %v773
    %v1286 = vpack.c.b16 %v790, %v774
    %v1287 = vpack.c.b16 %v791, %v775
    %v1288 = vpack.c.b16 %v792, %v776
    %v1289 = vpack.c.b16 %v793, %v777
    %v1290 = vpack.c.b16 %v794, %v778
    %v1291 = vpack.c.b16 %v795, %v779
    %v1292 = vpack.c.b16 %v796, %v780
    %v1293 = vpack.c.b16 %v797, %v781
    %v1294 = vpack.c.b16 %v798, %v782
    %v1295 = vpack.c.b16 %v799, %v783
    %v1296 = vpack.c.b16 %v800, %v784
    %v1297 = vpack.c.b16 %v801, %v785
    %v1298 = vpack.c.b16 %v802, %v786
    %v1299 = vpack.c.b16 %v803, %v787
    %v1300 = vpack.c.b16 %v820, %v804
    %v1301 = vpack.c.b16 %v821, %v805
    %v1302 = vpack.c.b16 %v822, %v806
    %v1303 = vpack.c.b16 %v823, %v807
    %v1304 = vpack.c.b16 %v824, %v808
    %v1305 = vpack.c.b16 %v825, %v809
    %v1306 = vpack.c.b16 %v826, %v810
    %v1307 = vpack.c.b16 %v827, %v811
    %v1308 = vpack.c.b16 %v828, %v812
    %v1309 = vpack.c.b16 %v829, %v813
    %v1310 = vpack.c.b16 %v830, %v814
    %v1311 = vpack.c.b16 %v831, %v815
    %v1312 = vpack.c.b16 %v832, %v816
    %v1313 = vpack.c.b16 %v833, %v817
    %v1314 = vpack.c.b16 %v834, %v818
    %v1315 = vpack.c.b16 %v835, %v819
    %v1316 = vpack.c.b16 %v852, %v836
    %v1317 = vpack.c.b16 %v853, %v837
    %v1318 = vpack.c.b16 %v854, %v838
    %v1319 = vpack.c.b16 %v855, %v839
    %v1320 = vpack.c.b16 %v856, %v840
    %v1321 = vpack.c.b16 %v857, %v841
    %v1322 = vpack.c.b16 %v858, %v842
    %v1323 = vpack.c.b16 %v859, %v843
    %v1324 = vpack.c.b16 %v860, %v844
    %v1325 = vpack.c.b16 %v861, %v845
    %v1326 = vpack.c.b16 %v862, %v846
    %v1327 = vpack.c.b16 %v863, %v847
    %v1328 = vpack.c.b16 %v864, %v848
    %v1329 = vpack.c.b16 %v865, %v849
    %v1330 = vpack.c.b16 %v866, %v850
    %v1331 = vpack.c.b16 %v867, %v851
    %v1332 = vpack.c.b16 %v884, %v868
    %v1333 = vpack.c.b16 %v885, %v869
    %v1334 = vpack.c.b16 %v886, %v870
    %v1335 = vpack.c.b16 %v887, %v871
    %v1336 = vpack.c.b16 %v888, %v872
    %v1337 = vpack.c.b16 %v889, %v873
    %v1338 = vpack.c.b16 %v890, %v874
    %v1339 = vpack.c.b16 %v891, %v875
    %v1340 = vpack.c.b16 %v892, %v876
    %v1341 = vpack.c.b16 %v893, %v877
    %v1342 = vpack.c.b16 %v894, %v878
    %v1343 = vpack.c.b16 %v895, %v879
    %v1344 = vpack.c.b16 %v896, %v880
    %v1345 = vpack.c.b16 %v897, %v881
    %v1346 = vpack.c.b16 %v898, %v882
    %v1347 = vpack.c.b16 %v899, %v883
    %v1348 = vpack.c.b16 %v916, %v900
    %v1349 = vpack.c.b16 %v917, %v901
    %v1350 = vpack.c.b16 %v918, %v902
    %v1351 = vpack.c.b16 %v919, %v903
    %v1352 = vpack.c.b16 %v920, %v904
    %v1353 = vpack.c.b16 %v921, %v905
    %v1354 = vpack.c.b16 %v922, %v906
    %v1355 = vpack.c.b16 %v923, %v907
    %v1356 = vpack.c.b16 %v924, %v908
    %v1357 = vpack.c.b16 %v925, %v909
    %v1358 = vpack.c.b16 %v926, %v910
    %v1359 = vpack.c.b16 %v927, %v911
    %v1360 = vpack.c.b16 %v928, %v912
    %v1361 = vpack.c.b16 %v929, %v913
    %v1362 = vpack.c.b16 %v930, %v914
    %v1363 = vpack.c.b16 %v931, %v915
    %v1364 = vpack.c.b16 %v948, %v932
    %v1365 = vpack.c.b16 %v949, %v933
    %v1366 = vpack.c.b16 %v950, %v934
    %v1367 = vpack.c.b16 %v951, %v935
    %v1368 = vpack.c.b16 %v952, %v936
    %v1369 = vpack.c.b16 %v953, %v937
    %v1370 = vpack.c.b16 %v954, %v938
    %v1371 = vpack.c.b16 %v955, %v939
    %v1372 = vpack.c.b16 %v956, %v940
    %v1373 = vpack.c.b16 %v957, %v941
    %v1374 = vpack.c.b16 %v958, %v942
    %v1375 = vpack.c.b16 %v959, %v943
    %v1376 = vpack.c.b16 %v960, %v944
    %v1377 = vpack.c.b16 %v961, %v945
    %v1378 = vpack.c.b16 %v962, %v946
    %v1379 = vpack.c.b16 %v963, %v947
    %v1380 = vpack.c.b16 %v980, %v964
    %v1381 = vpack.c.b16 %v981, %v965
    %v1382 = vpack.c.b16 %v982, %v966
    %v1383 = vpack.c.b16 %v983, %v967
    %v1384 = vpack.c.b16 %v984, %v968
    %v1385 = vpack.c.b16 %v985, %v969
    %v1386 = vpack.c.b16 %v986, %v970
    %v1387 = vpack.c.b16 %v987, %v971
    %v1388 = vpack.c.b16 %v988, %v972
    %v1389 = vpack.c.b16 %v989, %v973
    %v1390 = vpack.c.b16 %v990, %v974
    %v1391 = vpack.c.b16 %v991, %v975
    %v1392 = vpack.c.b16 %v992, %v976
    %v1393 = vpack.c.b16 %v993, %v977
    %v1394 = vpack.c.b16 %v994, %v978
    %v1395 = vpack.c.b16 %v995, %v979
    %v1396 = vpack.c.b16 %v1012, %v996
    %v1397 = vpack.c.b16 %v1013, %v997
    %v1398 = vpack.c.b16 %v1014, %v998
    %v1399 = vpack.c.b16 %v1015, %v999
    %v1400 = vpack.c.b16 %v1016, %v1000
    %v1401 = vpack.c.b16 %v1017, %v1001
    %v1402 = vpack.c.b16 %v1018, %v1002
    %v1403 = vpack.c.b16 %v1019, %v1003
    %v1404 = vpack.c.b16 %v1020, %v1004
    %v1405 = vpack.c.b16 %v1021, %v1005
    %v1406 = vpack.c.b16 %v1022, %v1006
    %v1407 = vpack.c.b16 %v1023, %v1007
    %v1408 = vpack.c.b16 %v1024, %v1008
    %v1409 = vpack.c.b16 %v1025, %v1009
    %v1410 = vpack.c.b16 %v1026, %v1010
    %v1411 = vpack.c.b16 %v1027, %v1011
    %v1412 = vpack.c.b16 %v1044, %v1028
    %v1413 = vpack.c.b16 %v1045, %v1029
    %v1414 = vpack.c.b16 %v1046, %v1030
    %v1415 = vpack.c.b16 %v1047, %v1031
    %v1416 = vpack.c.b16 %v1048, %v1032
    %v1417 = vpack.c.b16 %v1049, %v1033
    %v1418 = vpack.c.b16 %v1050, %v1034
    %v1419 = vpack.c.b16 %v1051, %v1035
    %v1420 = vpack.c.b16 %v1052, %v1036
    %v1421 = vpack.c.b16 %v1053, %v1037
    %v1422 = vpack.c.b16 %v1054, %v1038
    %v1423 = vpack.c.b16 %v1055, %v1039
    %v1424 = vpack.c.b16 %v1056, %v1040
    %v1425 = vpack.c.b16 %v1057, %v1041
    %v1426 = vpack.c.b16 %v1058, %v1042
    %v1427 = vpack.c.b16 %v1059, %v1043
    %v1428 = vpack.c.b16 %v1076, %v1060
    %v1429 = vpack.c.b16 %v1077, %v1061
    %v1430 = vpack.c.b16 %v1078, %v1062
    %v1431 = vpack.c.b16 %v1079, %v1063
    %v1432 = vpack.c.b16 %v1080, %v1064
    %v1433 = vpack.c.b16 %v1081, %v1065
    %v1434 = vpack.c.b16 %v1082, %v1066
    %v1435 = vpack.c.b16 %v1083, %v1067
    %v1436 = vpack.c.b16 %v1084, %v1068
    %v1437 = vpack.c.b16 %v1085, %v1069
    %v1438 = vpack.c.b16 %v1086, %v1070
    %v1439 = vpack.c.b16 %v1087, %v1071
    %v1440 = vpack.c.b16 %v1088, %v1072
    %v1441 = vpack.c.b16 %v1089, %v1073
    %v1442 = vpack.c.b16 %v1090, %v1074
    %v1443 = vpack.c.b16 %v1091, %v1075
    %v1444 = vpack.c.b16 %v1108, %v1092
    %v1445 = vpack.c.b16 %v1109, %v1093
    %v1446 = vpack.c.b16 %v1110, %v1094
    %v1447 = vpack.c.b16 %v1111, %v1095
    %v1448 = vpack.c.b16 %v1112, %v1096
    %v1449 = vpack.c.b16 %v1113, %v1097
    %v1450 = vpack.c.b16 %v1114, %v1098
    %v1451 = vpack.c.b16 %v1115, %v1099
    %v1452 = vpack.c.b16 %v1116, %v1100
    %v1453 = vpack.c.b16 %v1117, %v1101
    %v1454 = vpack.c.b16 %v1118, %v1102
    %v1455 = vpack.c.b16 %v1119, %v1103
    %v1456 = vpack.c.b16 %v1120, %v1104
    %v1457 = vpack.c.b16 %v1121, %v1105
    %v1458 = vpack.c.b16 %v1122, %v1106
    %v1459 = vpack.c.b16 %v1123, %v1107
    %v1460 = vpack.c.b16 %v1140, %v1124
    %v1461 = vpack.c.b16 %v1141, %v1125
    %v1462 = vpack.c.b16 %v1142, %v1126
    %v1463 = vpack.c.b16 %v1143, %v1127
    %v1464 = vpack.c.b16 %v1144, %v1128
    %v1465 = vpack.c.b16 %v1145, %v1129
    %v1466 = vpack.c.b16 %v1146, %v1130
    %v1467 = vpack.c.b16 %v1147, %v1131
    %v1468 = vpack.c.b16 %v1148, %v1132
    %v1469 = vpack.c.b16 %v1149, %v1133
    %v1470 = vpack.c.b16 %v1150, %v1134
    %v1471 = vpack.c.b16 %v1151, %v1135
    %v1472 = vpack.c.b16 %v1152, %v1136
    %v1473 = vpack.c.b16 %v1153, %v1137
    %v1474 = vpack.c.b16 %v1154, %v1138
    %v1475 = vpack.c.b16 %v1155, %v1139
    %v1476 = vpack.c.b16 %v1172, %v1156
    %v1477 = vpack.c.b16 %v1173, %v1157
    %v1478 = vpack.c.b16 %v1174, %v1158
    %v1479 = vpack.c.b16 %v1175, %v1159
    %v1480 = vpack.c.b16 %v1176, %v1160
    %v1481 = vpack.c.b16 %v1177, %v1161
    %v1482 = vpack.c.b16 %v1178, %v1162
    %v1483 = vpack.c.b16 %v1179, %v1163
    %v1484 = vpack.c.b16 %v1180, %v1164
    %v1485 = vpack.c.b16 %v1181, %v1165
    %v1486 = vpack.c.b16 %v1182, %v1166
    %v1487 = vpack.c.b16 %v1183, %v1167
    %v1488 = vpack.c.b16 %v1184, %v1168
    %v1489 = vpack.c.b16 %v1185, %v1169
    %v1490 = vpack.c.b16 %v1186, %v1170
    %v1491 = vpack.c.b16 %v1187, %v1171
    %v1492 = vpack.c.b16 %v1204, %v1188
    %v1493 = vpack.c.b16 %v1205, %v1189
    %v1494 = vpack.c.b16 %v1206, %v1190
    %v1495 = vpack.c.b16 %v1207, %v1191
    %v1496 = vpack.c.b16 %v1208, %v1192
    %v1497 = vpack.c.b16 %v1209, %v1193
    %v1498 = vpack.c.b16 %v1210, %v1194
    %v1499 = vpack.c.b16 %v1211, %v1195
    %v1500 = vpack.c.b16 %v1212, %v1196
    %v1501 = vpack.c.b16 %v1213, %v1197
    %v1502 = vpack.c.b16 %v1214, %v1198
    %v1503 = vpack.c.b16 %v1215, %v1199
    %v1504 = vpack.c.b16 %v1216, %v1200
    %v1505 = vpack.c.b16 %v1217, %v1201
    %v1506 = vpack.c.b16 %v1218, %v1202
    %v1507 = vpack.c.b16 %v1219, %v1203
    %v1508 = vpack.c.b16 %v1236, %v1220
    %v1509 = vpack.c.b16 %v1237, %v1221
    %v1510 = vpack.c.b16 %v1238, %v1222
    %v1511 = vpack.c.b16 %v1239, %v1223
    %v1512 = vpack.c.b16 %v1240, %v1224
    %v1513 = vpack.c.b16 %v1241, %v1225
    %v1514 = vpack.c.b16 %v1242, %v1226
    %v1515 = vpack.c.b16 %v1243, %v1227
    %v1516 = vpack.c.b16 %v1244, %v1228
    %v1517 = vpack.c.b16 %v1245, %v1229
    %v1518 = vpack.c.b16 %v1246, %v1230
    %v1519 = vpack.c.b16 %v1247, %v1231
    %v1520 = vpack.c.b16 %v1248, %v1232
    %v1521 = vpack.c.b16 %v1249, %v1233
    %v1522 = vpack.c.b16 %v1250, %v1234
    %v1523 = vpack.c.b16 %v1251, %v1235
    %v1524 = vpack.c.b16 %v1268, %v1252
    %v1525 = vpack.c.b16 %v1269, %v1253
    %v1526 = vpack.c.b16 %v1270, %v1254
    %v1527 = vpack.c.b16 %v1271, %v1255
    %v1528 = vpack.c.b16 %v1272, %v1256
    %v1529 = vpack.c.b16 %v1273, %v1257
    %v1530 = vpack.c.b16 %v1274, %v1258
    %v1531 = vpack.c.b16 %v1275, %v1259
    %v1532 = vpack.c.b16 %v1276, %v1260
    %v1533 = vpack.c.b16 %v1277, %v1261
    %v1534 = vpack.c.b16 %v1278, %v1262
    %v1535 = vpack.c.b16 %v1279, %v1263
    %v1536 = vpack.c.b16 %v1280, %v1264
    %v1537 = vpack.c.b16 %v1281, %v1265
    %v1538 = vpack.c.b16 %v1282, %v1266
    %v1539 = vpack.c.b16 %v1283, %v1267
    %1796 = vmatprep.subr.bf16.mxu0 %v1285
    %1797 = vmatpush1.bf16.msra.mxu0 %v1284
    %1798 = vmatprep.subr.bf16.mxu0 %v1301
    %1799 = vmatpush1.bf16.msra.mxu0 %v1300
    %1800 = vmatprep.subr.bf16.mxu0 %v1317
    %1801 = vmatpush1.bf16.msra.mxu0 %v1316
    %1802 = vmatprep.subr.bf16.mxu0 %v1333
    %1803 = vmatpush1.bf16.msra.mxu0 %v1332
    %1804 = vmatprep.subr.bf16.mxu0 %v1349
    %1805 = vmatpush1.bf16.msra.mxu0 %v1348
    %1806 = vmatprep.subr.bf16.mxu0 %v1365
    %1807 = vmatpush1.bf16.msra.mxu0 %v1364
    %1808 = vmatprep.subr.bf16.mxu0 %v1381
    %1809 = vmatpush1.bf16.msra.mxu0 %v1380
    %1810 = vmatprep.subr.bf16.mxu0 %v1397
    %1811 = vmatpush1.bf16.msra.mxu0 %v1396
    %1812 = vmatprep.subr.bf16.mxu0 %v1413
    %1813 = vmatpush1.bf16.msra.mxu0 %v1412
    %1814 = vmatprep.subr.bf16.mxu0 %v1429
    %1815 = vmatpush1.bf16.msra.mxu0 %v1428
    %1816 = vmatprep.subr.bf16.mxu0 %v1445
    %1817 = vmatpush1.bf16.msra.mxu0 %v1444
    %1818 = vmatprep.subr.bf16.mxu0 %v1461
    %1819 = vmatpush1.bf16.msra.mxu0 %v1460
    %1820 = vmatprep.subr.bf16.mxu0 %v1477
    %1821 = vmatpush1.bf16.msra.mxu0 %v1476
    %1822 = vmatprep.subr.bf16.mxu0 %v1493
    %1823 = vmatpush1.bf16.msra.mxu0 %v1492
    %1824 = vmatprep.subr.bf16.mxu0 %v1509
    %1825 = vmatpush1.bf16.msra.mxu0 %v1508
    %1826 = vmatprep.subr.bf16.mxu0 %v1525
    %1827 = vmatpush1.bf16.msra.mxu0 %v1524
    %1828 = vmatprep.mubr.bf16.mxu0 %v175
    %1829 = vmatmul.mubr.bf16.gmra.mrb[0].mxu0 %v174
    %v1830 = vpop.f32.mrb[0].mxu0
    %v1831 = vadd.f32 %v439, %v1830
    %v1832 = vpop.f32.mrb[0].mxu0
    %v1833 = vadd.f32 %v443, %v1832
    %v1834 = vpop.f32.mrb[0].mxu0
    %v1835 = vpop.f32.mrb[0].mxu0
    %1836 = vdwg.mxu0
    %1837 = vmatprep.subr.bf16.mxu0 %v1287
    %1838 = vmatpush1.bf16.msra.mxu0 %v1286
    %1839 = vmatprep.subr.bf16.mxu0 %v1303
    %1840 = vmatpush1.bf16.msra.mxu0 %v1302
    %1841 = vmatprep.subr.bf16.mxu0 %v1319
    %1842 = vmatpush1.bf16.msra.mxu0 %v1318
    %1843 = vmatprep.subr.bf16.mxu0 %v1335
    %1844 = vmatpush1.bf16.msra.mxu0 %v1334
    %1845 = vmatprep.subr.bf16.mxu0 %v1351
    %1846 = vmatpush1.bf16.msra.mxu0 %v1350
    %1847 = vmatprep.subr.bf16.mxu0 %v1367
    %1848 = vmatpush1.bf16.msra.mxu0 %v1366
    %1849 = vmatprep.subr.bf16.mxu0 %v1383
    %1850 = vmatpush1.bf16.msra.mxu0 %v1382
    %1851 = vmatprep.subr.bf16.mxu0 %v1399
    %1852 = vmatpush1.bf16.msra.mxu0 %v1398
    %1853 = vmatprep.subr.bf16.mxu0 %v1415
    %1854 = vmatpush1.bf16.msra.mxu0 %v1414
    %1855 = vmatprep.subr.bf16.mxu0 %v1431
    %1856 = vmatpush1.bf16.msra.mxu0 %v1430
    %1857 = vmatprep.subr.bf16.mxu0 %v1447
    %1858 = vmatpush1.bf16.msra.mxu0 %v1446
    %1859 = vmatprep.subr.bf16.mxu0 %v1463
    %1860 = vmatpush1.bf16.msra.mxu0 %v1462
    %1861 = vmatprep.subr.bf16.mxu0 %v1479
    %1862 = vmatpush1.bf16.msra.mxu0 %v1478
    %1863 = vmatprep.subr.bf16.mxu0 %v1495
    %1864 = vmatpush1.bf16.msra.mxu0 %v1494
    %1865 = vmatprep.subr.bf16.mxu0 %v1511
    %1866 = vmatpush1.bf16.msra.mxu0 %v1510
    %1867 = vmatprep.subr.bf16.mxu0 %v1527
    %1868 = vmatpush1.bf16.msra.mxu0 %v1526
    %1869 = vmatprep.mubr.bf16.mxu0 %v175
    %1870 = vmatmul.mubr.bf16.gmra.mrb[0].mxu0 %v174
    %v1871 = vpop.f32.mrb[0].mxu0
    %v1872 = vadd.f32 %v447, %v1871
    %v1873 = vpop.f32.mrb[0].mxu0
    %v1874 = vadd.f32 %v451, %v1873
    %v1875 = vpop.f32.mrb[0].mxu0
    %v1876 = vpop.f32.mrb[0].mxu0
    %1877 = vdwg.mxu0
    %1878 = vmatprep.subr.bf16.mxu0 %v1289
    %1879 = vmatpush1.bf16.msra.mxu0 %v1288
    %1880 = vmatprep.subr.bf16.mxu0 %v1305
    %1881 = vmatpush1.bf16.msra.mxu0 %v1304
    %1882 = vmatprep.subr.bf16.mxu0 %v1321
    %1883 = vmatpush1.bf16.msra.mxu0 %v1320
    %1884 = vmatprep.subr.bf16.mxu0 %v1337
    %1885 = vmatpush1.bf16.msra.mxu0 %v1336
    %1886 = vmatprep.subr.bf16.mxu0 %v1353
    %1887 = vmatpush1.bf16.msra.mxu0 %v1352
    %1888 = vmatprep.subr.bf16.mxu0 %v1369
    %1889 = vmatpush1.bf16.msra.mxu0 %v1368
    %1890 = vmatprep.subr.bf16.mxu0 %v1385
    %1891 = vmatpush1.bf16.msra.mxu0 %v1384
    %1892 = vmatprep.subr.bf16.mxu0 %v1401
    %1893 = vmatpush1.bf16.msra.mxu0 %v1400
    %1894 = vmatprep.subr.bf16.mxu0 %v1417
    %1895 = vmatpush1.bf16.msra.mxu0 %v1416
    %1896 = vmatprep.subr.bf16.mxu0 %v1433
    %1897 = vmatpush1.bf16.msra.mxu0 %v1432
    %1898 = vmatprep.subr.bf16.mxu0 %v1449
    %1899 = vmatpush1.bf16.msra.mxu0 %v1448
    %1900 = vmatprep.subr.bf16.mxu0 %v1465
    %1901 = vmatpush1.bf16.msra.mxu0 %v1464
    %1902 = vmatprep.subr.bf16.mxu0 %v1481
    %1903 = vmatpush1.bf16.msra.mxu0 %v1480
    %1904 = vmatprep.subr.bf16.mxu0 %v1497
    %1905 = vmatpush1.bf16.msra.mxu0 %v1496
    %1906 = vmatprep.subr.bf16.mxu0 %v1513
    %1907 = vmatpush1.bf16.msra.mxu0 %v1512
    %1908 = vmatprep.subr.bf16.mxu0 %v1529
    %1909 = vmatpush1.bf16.msra.mxu0 %v1528
    %1910 = vmatprep.mubr.bf16.mxu0 %v175
    %1911 = vmatmul.mubr.bf16.gmra.mrb[0].mxu0 %v174
    %v1912 = vpop.f32.mrb[0].mxu0
    %v1913 = vadd.f32 %v455, %v1912
    %v1914 = vpop.f32.mrb[0].mxu0
    %v1915 = vadd.f32 %v459, %v1914
    %v1916 = vpop.f32.mrb[0].mxu0
    %v1917 = vpop.f32.mrb[0].mxu0
    %1918 = vdwg.mxu0
    %1919 = vmatprep.subr.bf16.mxu0 %v1291
    %1920 = vmatpush1.bf16.msra.mxu0 %v1290
    %1921 = vmatprep.subr.bf16.mxu0 %v1307
    %1922 = vmatpush1.bf16.msra.mxu0 %v1306
    %1923 = vmatprep.subr.bf16.mxu0 %v1323
    %1924 = vmatpush1.bf16.msra.mxu0 %v1322
    %1925 = vmatprep.subr.bf16.mxu0 %v1339
    %1926 = vmatpush1.bf16.msra.mxu0 %v1338
    %1927 = vmatprep.subr.bf16.mxu0 %v1355
    %1928 = vmatpush1.bf16.msra.mxu0 %v1354
    %1929 = vmatprep.subr.bf16.mxu0 %v1371
    %1930 = vmatpush1.bf16.msra.mxu0 %v1370
    %1931 = vmatprep.subr.bf16.mxu0 %v1387
    %1932 = vmatpush1.bf16.msra.mxu0 %v1386
    %1933 = vmatprep.subr.bf16.mxu0 %v1403
    %1934 = vmatpush1.bf16.msra.mxu0 %v1402
    %1935 = vmatprep.subr.bf16.mxu0 %v1419
    %1936 = vmatpush1.bf16.msra.mxu0 %v1418
    %1937 = vmatprep.subr.bf16.mxu0 %v1435
    %1938 = vmatpush1.bf16.msra.mxu0 %v1434
    %1939 = vmatprep.subr.bf16.mxu0 %v1451
    %1940 = vmatpush1.bf16.msra.mxu0 %v1450
    %1941 = vmatprep.subr.bf16.mxu0 %v1467
    %1942 = vmatpush1.bf16.msra.mxu0 %v1466
    %1943 = vmatprep.subr.bf16.mxu0 %v1483
    %1944 = vmatpush1.bf16.msra.mxu0 %v1482
    %1945 = vmatprep.subr.bf16.mxu0 %v1499
    %1946 = vmatpush1.bf16.msra.mxu0 %v1498
    %1947 = vmatprep.subr.bf16.mxu0 %v1515
    %1948 = vmatpush1.bf16.msra.mxu0 %v1514
    %1949 = vmatprep.subr.bf16.mxu0 %v1531
    %1950 = vmatpush1.bf16.msra.mxu0 %v1530
    %1951 = vmatprep.mubr.bf16.mxu0 %v175
    %1952 = vmatmul.mubr.bf16.gmra.mrb[0].mxu0 %v174
    %v1953 = vpop.f32.mrb[0].mxu0
    %v1954 = vadd.f32 %v463, %v1953
    %v1955 = vpop.f32.mrb[0].mxu0
    %v1956 = vadd.f32 %v467, %v1955
    %v1957 = vpop.f32.mrb[0].mxu0
    %v1958 = vpop.f32.mrb[0].mxu0
    %1959 = vdwg.mxu0
    %1960 = vmatprep.subr.bf16.mxu0 %v1293
    %1961 = vmatpush1.bf16.msra.mxu0 %v1292
    %1962 = vmatprep.subr.bf16.mxu0 %v1309
    %1963 = vmatpush1.bf16.msra.mxu0 %v1308
    %1964 = vmatprep.subr.bf16.mxu0 %v1325
    %1965 = vmatpush1.bf16.msra.mxu0 %v1324
    %1966 = vmatprep.subr.bf16.mxu0 %v1341
    %1967 = vmatpush1.bf16.msra.mxu0 %v1340
    %1968 = vmatprep.subr.bf16.mxu0 %v1357
    %1969 = vmatpush1.bf16.msra.mxu0 %v1356
    %1970 = vmatprep.subr.bf16.mxu0 %v1373
    %1971 = vmatpush1.bf16.msra.mxu0 %v1372
    %1972 = vmatprep.subr.bf16.mxu0 %v1389
    %1973 = vmatpush1.bf16.msra.mxu0 %v1388
    %1974 = vmatprep.subr.bf16.mxu0 %v1405
    %1975 = vmatpush1.bf16.msra.mxu0 %v1404
    %1976 = vmatprep.subr.bf16.mxu0 %v1421
    %1977 = vmatpush1.bf16.msra.mxu0 %v1420
    %1978 = vmatprep.subr.bf16.mxu0 %v1437
    %1979 = vmatpush1.bf16.msra.mxu0 %v1436
    %1980 = vmatprep.subr.bf16.mxu0 %v1453
    %1981 = vmatpush1.bf16.msra.mxu0 %v1452
    %1982 = vmatprep.subr.bf16.mxu0 %v1469
    %1983 = vmatpush1.bf16.msra.mxu0 %v1468
    %1984 = vmatprep.subr.bf16.mxu0 %v1485
    %1985 = vmatpush1.bf16.msra.mxu0 %v1484
    %1986 = vmatprep.subr.bf16.mxu0 %v1501
    %1987 = vmatpush1.bf16.msra.mxu0 %v1500
    %1988 = vmatprep.subr.bf16.mxu0 %v1517
    %1989 = vmatpush1.bf16.msra.mxu0 %v1516
    %1990 = vmatprep.subr.bf16.mxu0 %v1533
    %1991 = vmatpush1.bf16.msra.mxu0 %v1532
    %1992 = vmatprep.mubr.bf16.mxu0 %v175
    %1993 = vmatmul.mubr.bf16.gmra.mrb[0].mxu0 %v174
    %v1994 = vpop.f32.mrb[0].mxu0
    %v1995 = vadd.f32 %v471, %v1994
    %v1996 = vpop.f32.mrb[0].mxu0
    %v1997 = vadd.f32 %v475, %v1996
    %v1998 = vpop.f32.mrb[0].mxu0
    %v1999 = vpop.f32.mrb[0].mxu0
    %2000 = vdwg.mxu0
    %2001 = vmatprep.subr.bf16.mxu0 %v1295
    %2002 = vmatpush1.bf16.msra.mxu0 %v1294
    %2003 = vmatprep.subr.bf16.mxu0 %v1311
    %2004 = vmatpush1.bf16.msra.mxu0 %v1310
    %2005 = vmatprep.subr.bf16.mxu0 %v1327
    %2006 = vmatpush1.bf16.msra.mxu0 %v1326
    %2007 = vmatprep.subr.bf16.mxu0 %v1343
    %2008 = vmatpush1.bf16.msra.mxu0 %v1342
    %2009 = vmatprep.subr.bf16.mxu0 %v1359
    %2010 = vmatpush1.bf16.msra.mxu0 %v1358
    %2011 = vmatprep.subr.bf16.mxu0 %v1375
    %2012 = vmatpush1.bf16.msra.mxu0 %v1374
    %2013 = vmatprep.subr.bf16.mxu0 %v1391
    %2014 = vmatpush1.bf16.msra.mxu0 %v1390
    %2015 = vmatprep.subr.bf16.mxu0 %v1407
    %2016 = vmatpush1.bf16.msra.mxu0 %v1406
    %2017 = vmatprep.subr.bf16.mxu0 %v1423
    %2018 = vmatpush1.bf16.msra.mxu0 %v1422
    %2019 = vmatprep.subr.bf16.mxu0 %v1439
    %2020 = vmatpush1.bf16.msra.mxu0 %v1438
    %2021 = vmatprep.subr.bf16.mxu0 %v1455
    %2022 = vmatpush1.bf16.msra.mxu0 %v1454
    %2023 = vmatprep.subr.bf16.mxu0 %v1471
    %2024 = vmatpush1.bf16.msra.mxu0 %v1470
    %2025 = vmatprep.subr.bf16.mxu0 %v1487
    %2026 = vmatpush1.bf16.msra.mxu0 %v1486
    %2027 = vmatprep.subr.bf16.mxu0 %v1503
    %2028 = vmatpush1.bf16.msra.mxu0 %v1502
    %2029 = vmatprep.subr.bf16.mxu0 %v1519
    %2030 = vmatpush1.bf16.msra.mxu0 %v1518
    %2031 = vmatprep.subr.bf16.mxu0 %v1535
    %2032 = vmatpush1.bf16.msra.mxu0 %v1534
    %2033 = vmatprep.mubr.bf16.mxu0 %v175
    %2034 = vmatmul.mubr.bf16.gmra.mrb[0].mxu0 %v174
    %v2035 = vpop.f32.mrb[0].mxu0
    %v2036 = vadd.f32 %v479, %v2035
    %v2037 = vpop.f32.mrb[0].mxu0
    %v2038 = vadd.f32 %v483, %v2037
    %v2039 = vpop.f32.mrb[0].mxu0
    %v2040 = vpop.f32.mrb[0].mxu0
    %2041 = vdwg.mxu0
    %2042 = vmatprep.subr.bf16.mxu0 %v1297
    %2043 = vmatpush1.bf16.msra.mxu0 %v1296
    %2044 = vmatprep.subr.bf16.mxu0 %v1313
    %2045 = vmatpush1.bf16.msra.mxu0 %v1312
    %2046 = vmatprep.subr.bf16.mxu0 %v1329
    %2047 = vmatpush1.bf16.msra.mxu0 %v1328
    %2048 = vmatprep.subr.bf16.mxu0 %v1345
    %2049 = vmatpush1.bf16.msra.mxu0 %v1344
    %2050 = vmatprep.subr.bf16.mxu0 %v1361
    %2051 = vmatpush1.bf16.msra.mxu0 %v1360
    %2052 = vmatprep.subr.bf16.mxu0 %v1377
    %2053 = vmatpush1.bf16.msra.mxu0 %v1376
    %2054 = vmatprep.subr.bf16.mxu0 %v1393
    %2055 = vmatpush1.bf16.msra.mxu0 %v1392
    %2056 = vmatprep.subr.bf16.mxu0 %v1409
    %2057 = vmatpush1.bf16.msra.mxu0 %v1408
    %2058 = vmatprep.subr.bf16.mxu0 %v1425
    %2059 = vmatpush1.bf16.msra.mxu0 %v1424
    %2060 = vmatprep.subr.bf16.mxu0 %v1441
    %2061 = vmatpush1.bf16.msra.mxu0 %v1440
    %2062 = vmatprep.subr.bf16.mxu0 %v1457
    %2063 = vmatpush1.bf16.msra.mxu0 %v1456
    %2064 = vmatprep.subr.bf16.mxu0 %v1473
    %2065 = vmatpush1.bf16.msra.mxu0 %v1472
    %2066 = vmatprep.subr.bf16.mxu0 %v1489
    %2067 = vmatpush1.bf16.msra.mxu0 %v1488
    %2068 = vmatprep.subr.bf16.mxu0 %v1505
    %2069 = vmatpush1.bf16.msra.mxu0 %v1504
    %2070 = vmatprep.subr.bf16.mxu0 %v1521
    %2071 = vmatpush1.bf16.msra.mxu0 %v1520
    %2072 = vmatprep.subr.bf16.mxu0 %v1537
    %2073 = vmatpush1.bf16.msra.mxu0 %v1536
    %2074 = vmatprep.mubr.bf16.mxu0 %v175
    %2075 = vmatmul.mubr.bf16.gmra.mrb[0].mxu0 %v174
    %v2076 = vpop.f32.mrb[0].mxu0
    %v2077 = vadd.f32 %v487, %v2076
    %v2078 = vpop.f32.mrb[0].mxu0
    %v2079 = vadd.f32 %v491, %v2078
    %v2080 = vpop.f32.mrb[0].mxu0
    %v2081 = vpop.f32.mrb[0].mxu0
    %2082 = vdwg.mxu0
    %2083 = vmatprep.subr.bf16.mxu0 %v1299
    %2084 = vmatpush1.bf16.msra.mxu0 %v1298
    %2085 = vmatprep.subr.bf16.mxu0 %v1315
    %2086 = vmatpush1.bf16.msra.mxu0 %v1314
    %2087 = vmatprep.subr.bf16.mxu0 %v1331
    %2088 = vmatpush1.bf16.msra.mxu0 %v1330
    %2089 = vmatprep.subr.bf16.mxu0 %v1347
    %2090 = vmatpush1.bf16.msra.mxu0 %v1346
    %2091 = vmatprep.subr.bf16.mxu0 %v1363
    %2092 = vmatpush1.bf16.msra.mxu0 %v1362
    %2093 = vmatprep.subr.bf16.mxu0 %v1379
    %2094 = vmatpush1.bf16.msra.mxu0 %v1378
    %2095 = vmatprep.subr.bf16.mxu0 %v1395
    %2096 = vmatpush1.bf16.msra.mxu0 %v1394
    %2097 = vmatprep.subr.bf16.mxu0 %v1411
    %2098 = vmatpush1.bf16.msra.mxu0 %v1410
    %2099 = vmatprep.subr.bf16.mxu0 %v1427
    %2100 = vmatpush1.bf16.msra.mxu0 %v1426
    %2101 = vmatprep.subr.bf16.mxu0 %v1443
    %2102 = vmatpush1.bf16.msra.mxu0 %v1442
    %2103 = vmatprep.subr.bf16.mxu0 %v1459
    %2104 = vmatpush1.bf16.msra.mxu0 %v1458
    %2105 = vmatprep.subr.bf16.mxu0 %v1475
    %2106 = vmatpush1.bf16.msra.mxu0 %v1474
    %2107 = vmatprep.subr.bf16.mxu0 %v1491
    %2108 = vmatpush1.bf16.msra.mxu0 %v1490
    %2109 = vmatprep.subr.bf16.mxu0 %v1507
    %2110 = vmatpush1.bf16.msra.mxu0 %v1506
    %2111 = vmatprep.subr.bf16.mxu0 %v1523
    %2112 = vmatpush1.bf16.msra.mxu0 %v1522
    %2113 = vmatprep.subr.bf16.mxu0 %v1539
    %2114 = vmatpush1.bf16.msra.mxu0 %v1538
    %2115 = vmatprep.mubr.bf16.mxu0 %v175
    %2116 = vmatmul.mubr.bf16.gmra.mrb[0].mxu0 %v174
    %v2117 = vpop.f32.mrb[0].mxu0
    %v2118 = vadd.f32 %v495, %v2117
    %v2119 = vpop.f32.mrb[0].mxu0
    %v2120 = vadd.f32 %v499, %v2119
    %v2121 = vpop.f32.mrb[0].mxu0
    %v2122 = vpop.f32.mrb[0].mxu0
    %2123 = vdwg.mxu0
    %v2124 = vpack.c.bf16 %v1831, %v1831
    %v2125 = vpack.c.bf16 %v1833, %v1833
    %v2126 = vpack.c.bf16 %v1872, %v1872
    %v2127 = vpack.c.bf16 %v1874, %v1874
    %v2128 = vpack.c.bf16 %v1913, %v1913
    %v2129 = vpack.c.bf16 %v1915, %v1915
    %v2130 = vpack.c.bf16 %v1954, %v1954
    %v2131 = vpack.c.bf16 %v1956, %v1956
    %v2132 = vpack.c.bf16 %v1995, %v1995
    %v2133 = vpack.c.bf16 %v1997, %v1997
    %v2134 = vpack.c.bf16 %v2036, %v2036
    %v2135 = vpack.c.bf16 %v2038, %v2038
    %v2136 = vpack.c.bf16 %v2077, %v2077
    %v2137 = vpack.c.bf16 %v2079, %v2079
    %v2138 = vpack.c.bf16 %v2118, %v2118
    %v2139 = vpack.c.bf16 %v2120, %v2120
    %v2140 = vld [vmem:[#allocation8] sm:$0xff]
    %v2141 = vld [vmem:[#allocation8 + $0x8] sm:$0xff]
    %v2142 = vld [vmem:[#allocation8 + $0x10] sm:$0xff]
    %v2143 = vld [vmem:[#allocation8 + $0x18] sm:$0xff]
    %v2144 = vld [vmem:[#allocation8 + $0x20] sm:$0xff]
    %v2145 = vld [vmem:[#allocation8 + $0x28] sm:$0xff]
    %v2146 = vld [vmem:[#allocation8 + $0x30] sm:$0xff]
    %v2147 = vld [vmem:[#allocation8 + $0x38] sm:$0xff]
    %v2156 = vunpack.c.l.b16 %v2140
    %v2157 = vunpack.c.h.b16 %v2140
    %v2158 = vunpack.c.l.b16 %v2141
    %v2159 = vunpack.c.h.b16 %v2141
    %v2160 = vunpack.c.l.b16 %v2142
    %v2161 = vunpack.c.h.b16 %v2142
    %v2162 = vunpack.c.l.b16 %v2143
    %v2163 = vunpack.c.h.b16 %v2143
    %v2164 = vunpack.c.l.b16 %v2144
    %v2165 = vunpack.c.h.b16 %v2144
    %v2166 = vunpack.c.l.b16 %v2145
    %v2167 = vunpack.c.h.b16 %v2145
    %v2168 = vunpack.c.l.b16 %v2146
    %v2169 = vunpack.c.h.b16 %v2146
    %v2170 = vunpack.c.l.b16 %v2147
    %v2171 = vunpack.c.h.b16 %v2147
    %v2172 = vpack.c.b16 %v2156, %v2156
    %v2173 = vpack.c.b16 %v2157, %v2157
    %v2174 = vpack.c.b16 %v2158, %v2158
    %v2175 = vpack.c.b16 %v2159, %v2159
    %v2176 = vpack.c.b16 %v2160, %v2160
    %v2177 = vpack.c.b16 %v2161, %v2161
    %v2178 = vpack.c.b16 %v2162, %v2162
    %v2179 = vpack.c.b16 %v2163, %v2163
    %v2180 = vpack.c.b16 %v2164, %v2164
    %v2181 = vpack.c.b16 %v2165, %v2165
    %v2182 = vpack.c.b16 %v2166, %v2166
    %v2183 = vpack.c.b16 %v2167, %v2167
    %v2184 = vpack.c.b16 %v2168, %v2168
    %v2185 = vpack.c.b16 %v2169, %v2169
    %v2186 = vpack.c.b16 %v2170, %v2170
    %v2187 = vpack.c.b16 %v2171, %v2171
    %2204 = vmatprep.subr.bf16.mxu0 %v2173
    %2205 = vmatpush1.bf16.xpose.msra.mxu0 %v2172
    %2206 = vmatprep.subr.bf16.mxu0 0
    %2207 = vmatpush1.bf16.xpose.msra.mxu0 0
    %2208 = vmatprep.subr.bf16.mxu0 0
    %2209 = vmatpush1.bf16.xpose.msra.mxu0 0
    %2210 = vmatprep.subr.bf16.mxu0 0
    %2211 = vmatpush1.bf16.xpose.msra.mxu0 0
    %2212 = vmatprep.subr.bf16.mxu0 0
    %2213 = vmatpush1.bf16.xpose.msra.mxu0 0
    %2214 = vmatprep.subr.bf16.mxu0 0
    %2215 = vmatpush1.bf16.xpose.msra.mxu0 0
    %2216 = vmatprep.subr.bf16.mxu0 0
    %2217 = vmatpush1.bf16.xpose.msra.mxu0 0
    %2218 = vmatprep.subr.bf16.mxu0 0
    %2219 = vmatpush1.bf16.xpose.msra.mxu0 0
    %2220 = vmatprep.subr.bf16.mxu0 0
    %2221 = vmatpush1.bf16.xpose.msra.mxu0 0
    %2222 = vmatprep.subr.bf16.mxu0 0
    %2223 = vmatpush1.bf16.xpose.msra.mxu0 0
    %2224 = vmatprep.subr.bf16.mxu0 0
    %2225 = vmatpush1.bf16.xpose.msra.mxu0 0
    %2226 = vmatprep.subr.bf16.mxu0 0
    %2227 = vmatpush1.bf16.xpose.msra.mxu0 0
    %2228 = vmatprep.subr.bf16.mxu0 0
    %2229 = vmatpush1.bf16.xpose.msra.mxu0 0
    %2230 = vmatprep.subr.bf16.mxu0 0
    %2231 = vmatpush1.bf16.xpose.msra.mxu0 0
    %2232 = vmatprep.subr.bf16.mxu0 0
    %2233 = vmatpush1.bf16.xpose.msra.mxu0 0
    %2234 = vmatprep.subr.bf16.mxu0 0
    %2235 = vmatpush1.bf16.xpose.msra.mxu0 0
    %2236 = vmatprep.mubr.bf16.mxu0 %v2125
    %2237 = vmatmul.mubr.bf16.gmra.mrb[0].mxu0 %v2124
    %v2238 = vpop.f32.mrb[0].mxu0
    %v2239 = vadd.f32 0.0, %v2238
    %v2240 = vpop.f32.mrb[0].mxu0
    %v2241 = vpop.f32.mrb[0].mxu0
    %v2242 = vpop.f32.mrb[0].mxu0
    %2243 = vdwg.mxu0
    %2244 = vmatprep.subr.bf16.mxu0 %v2175
    %2245 = vmatpush1.bf16.xpose.msra.mxu0 %v2174
    %2246 = vmatprep.subr.bf16.mxu0 0
    %2247 = vmatpush1.bf16.xpose.msra.mxu0 0
    %2248 = vmatprep.subr.bf16.mxu0 0
    %2249 = vmatpush1.bf16.xpose.msra.mxu0 0
    %2250 = vmatprep.subr.bf16.mxu0 0
    %2251 = vmatpush1.bf16.xpose.msra.mxu0 0
    %2252 = vmatprep.subr.bf16.mxu0 0
    %2253 = vmatpush1.bf16.xpose.msra.mxu0 0
    %2254 = vmatprep.subr.bf16.mxu0 0
    %2255 = vmatpush1.bf16.xpose.msra.mxu0 0
    %2256 = vmatprep.subr.bf16.mxu0 0
    %2257 = vmatpush1.bf16.xpose.msra.mxu0 0
    %2258 = vmatprep.subr.bf16.mxu0 0
    %2259 = vmatpush1.bf16.xpose.msra.mxu0 0
    %2260 = vmatprep.subr.bf16.mxu0 0
    %2261 = vmatpush1.bf16.xpose.msra.mxu0 0
    %2262 = vmatprep.subr.bf16.mxu0 0
    %2263 = vmatpush1.bf16.xpose.msra.mxu0 0
    %2264 = vmatprep.subr.bf16.mxu0 0
    %2265 = vmatpush1.bf16.xpose.msra.mxu0 0
    %2266 = vmatprep.subr.bf16.mxu0 0
    %2267 = vmatpush1.bf16.xpose.msra.mxu0 0
    %2268 = vmatprep.subr.bf16.mxu0 0
    %2269 = vmatpush1.bf16.xpose.msra.mxu0 0
    %2270 = vmatprep.subr.bf16.mxu0 0
    %2271 = vmatpush1.bf16.xpose.msra.mxu0 0
    %2272 = vmatprep.subr.bf16.mxu0 0
    %2273 = vmatpush1.bf16.xpose.msra.mxu0 0
    %2274 = vmatprep.subr.bf16.mxu0 0
    %2275 = vmatpush1.bf16.xpose.msra.mxu0 0
    %2276 = vmatprep.mubr.bf16.mxu0 %v2127
    %2277 = vmatmul.mubr.bf16.gmra.mrb[0].mxu0 %v2126
    %v2278 = vpop.f32.mrb[0].mxu0
    %v2279 = vadd.f32 %v2239, %v2278
    %v2280 = vpop.f32.mrb[0].mxu0
    %v2281 = vpop.f32.mrb[0].mxu0
    %v2282 = vpop.f32.mrb[0].mxu0
    %2283 = vdwg.mxu0
    %2284 = vmatprep.subr.bf16.mxu0 %v2177
    %2285 = vmatpush1.bf16.xpose.msra.mxu0 %v2176
    %2286 = vmatprep.subr.bf16.mxu0 0
    %2287 = vmatpush1.bf16.xpose.msra.mxu0 0
    %2288 = vmatprep.subr.bf16.mxu0 0
    %2289 = vmatpush1.bf16.xpose.msra.mxu0 0
    %2290 = vmatprep.subr.bf16.mxu0 0
    %2291 = vmatpush1.bf16.xpose.msra.mxu0 0
    %2292 = vmatprep.subr.bf16.mxu0 0
    %2293 = vmatpush1.bf16.xpose.msra.mxu0 0
    %2294 = vmatprep.subr.bf16.mxu0 0
    %2295 = vmatpush1.bf16.xpose.msra.mxu0 0
    %2296 = vmatprep.subr.bf16.mxu0 0
    %2297 = vmatpush1.bf16.xpose.msra.mxu0 0
    %2298 = vmatprep.subr.bf16.mxu0 0
    %2299 = vmatpush1.bf16.xpose.msra.mxu0 0
    %2300 = vmatprep.subr.bf16.mxu0 0
    %2301 = vmatpush1.bf16.xpose.msra.mxu0 0
    %2302 = vmatprep.subr.bf16.mxu0 0
    %2303 = vmatpush1.bf16.xpose.msra.mxu0 0
    %2304 = vmatprep.subr.bf16.mxu0 0
    %2305 = vmatpush1.bf16.xpose.msra.mxu0 0
    %2306 = vmatprep.subr.bf16.mxu0 0
    %2307 = vmatpush1.bf16.xpose.msra.mxu0 0
    %2308 = vmatprep.subr.bf16.mxu0 0
    %2309 = vmatpush1.bf16.xpose.msra.mxu0 0
    %2310 = vmatprep.subr.bf16.mxu0 0
    %2311 = vmatpush1.bf16.xpose.msra.mxu0 0
    %2312 = vmatprep.subr.bf16.mxu0 0
    %2313 = vmatpush1.bf16.xpose.msra.mxu0 0
    %2314 = vmatprep.subr.bf16.mxu0 0
    %2315 = vmatpush1.bf16.xpose.msra.mxu0 0
    %2316 = vmatprep.mubr.bf16.mxu0 %v2129
    %2317 = vmatmul.mubr.bf16.gmra.mrb[0].mxu0 %v2128
    %v2318 = vpop.f32.mrb[0].mxu0
    %v2319 = vadd.f32 %v2279, %v2318
    %v2320 = vpop.f32.mrb[0].mxu0
    %v2321 = vpop.f32.mrb[0].mxu0
    %v2322 = vpop.f32.mrb[0].mxu0
    %2323 = vdwg.mxu0
    %2324 = vmatprep.subr.bf16.mxu0 %v2179
    %2325 = vmatpush1.bf16.xpose.msra.mxu0 %v2178
    %2326 = vmatprep.subr.bf16.mxu0 0
    %2327 = vmatpush1.bf16.xpose.msra.mxu0 0
    %2328 = vmatprep.subr.bf16.mxu0 0
    %2329 = vmatpush1.bf16.xpose.msra.mxu0 0
    %2330 = vmatprep.subr.bf16.mxu0 0
    %2331 = vmatpush1.bf16.xpose.msra.mxu0 0
    %2332 = vmatprep.subr.bf16.mxu0 0
    %2333 = vmatpush1.bf16.xpose.msra.mxu0 0
    %2334 = vmatprep.subr.bf16.mxu0 0
    %2335 = vmatpush1.bf16.xpose.msra.mxu0 0
    %2336 = vmatprep.subr.bf16.mxu0 0
    %2337 = vmatpush1.bf16.xpose.msra.mxu0 0
    %2338 = vmatprep.subr.bf16.mxu0 0
    %2339 = vmatpush1.bf16.xpose.msra.mxu0 0
    %2340 = vmatprep.subr.bf16.mxu0 0
    %2341 = vmatpush1.bf16.xpose.msra.mxu0 0
    %2342 = vmatprep.subr.bf16.mxu0 0
    %2343 = vmatpush1.bf16.xpose.msra.mxu0 0
    %2344 = vmatprep.subr.bf16.mxu0 0
    %2345 = vmatpush1.bf16.xpose.msra.mxu0 0
    %2346 = vmatprep.subr.bf16.mxu0 0
    %2347 = vmatpush1.bf16.xpose.msra.mxu0 0
    %2348 = vmatprep.subr.bf16.mxu0 0
    %2349 = vmatpush1.bf16.xpose.msra.mxu0 0
    %2350 = vmatprep.subr.bf16.mxu0 0
    %2351 = vmatpush1.bf16.xpose.msra.mxu0 0
    %2352 = vmatprep.subr.bf16.mxu0 0
    %2353 = vmatpush1.bf16.xpose.msra.mxu0 0
    %2354 = vmatprep.subr.bf16.mxu0 0
    %2355 = vmatpush1.bf16.xpose.msra.mxu0 0
    %2356 = vmatprep.mubr.bf16.mxu0 %v2131
    %2357 = vmatmul.mubr.bf16.gmra.mrb[0].mxu0 %v2130
    %v2358 = vpop.f32.mrb[0].mxu0
    %v2359 = vadd.f32 %v2319, %v2358
    %v2360 = vpop.f32.mrb[0].mxu0
    %v2361 = vpop.f32.mrb[0].mxu0
    %v2362 = vpop.f32.mrb[0].mxu0
    %2363 = vdwg.mxu0
    %2364 = vmatprep.subr.bf16.mxu0 %v2181
    %2365 = vmatpush1.bf16.xpose.msra.mxu0 %v2180
    %2366 = vmatprep.subr.bf16.mxu0 0
    %2367 = vmatpush1.bf16.xpose.msra.mxu0 0
    %2368 = vmatprep.subr.bf16.mxu0 0
    %2369 = vmatpush1.bf16.xpose.msra.mxu0 0
    %2370 = vmatprep.subr.bf16.mxu0 0
    %2371 = vmatpush1.bf16.xpose.msra.mxu0 0
    %2372 = vmatprep.subr.bf16.mxu0 0
    %2373 = vmatpush1.bf16.xpose.msra.mxu0 0
    %2374 = vmatprep.subr.bf16.mxu0 0
    %2375 = vmatpush1.bf16.xpose.msra.mxu0 0
    %2376 = vmatprep.subr.bf16.mxu0 0
    %2377 = vmatpush1.bf16.xpose.msra.mxu0 0
    %2378 = vmatprep.subr.bf16.mxu0 0
    %2379 = vmatpush1.bf16.xpose.msra.mxu0 0
    %2380 = vmatprep.subr.bf16.mxu0 0
    %2381 = vmatpush1.bf16.xpose.msra.mxu0 0
    %2382 = vmatprep.subr.bf16.mxu0 0
    %2383 = vmatpush1.bf16.xpose.msra.mxu0 0
    %2384 = vmatprep.subr.bf16.mxu0 0
    %2385 = vmatpush1.bf16.xpose.msra.mxu0 0
    %2386 = vmatprep.subr.bf16.mxu0 0
    %2387 = vmatpush1.bf16.xpose.msra.mxu0 0
    %2388 = vmatprep.subr.bf16.mxu0 0
    %2389 = vmatpush1.bf16.xpose.msra.mxu0 0
    %2390 = vmatprep.subr.bf16.mxu0 0
    %2391 = vmatpush1.bf16.xpose.msra.mxu0 0
    %2392 = vmatprep.subr.bf16.mxu0 0
    %2393 = vmatpush1.bf16.xpose.msra.mxu0 0
    %2394 = vmatprep.subr.bf16.mxu0 0
    %2395 = vmatpush1.bf16.xpose.msra.mxu0 0
    %2396 = vmatprep.mubr.bf16.mxu0 %v2133
    %2397 = vmatmul.mubr.bf16.gmra.mrb[0].mxu0 %v2132
    %v2398 = vpop.f32.mrb[0].mxu0
    %v2399 = vadd.f32 %v2359, %v2398
    %v2400 = vpop.f32.mrb[0].mxu0
    %v2401 = vpop.f32.mrb[0].mxu0
    %v2402 = vpop.f32.mrb[0].mxu0
    %2403 = vdwg.mxu0
    %2404 = vmatprep.subr.bf16.mxu0 %v2183
    %2405 = vmatpush1.bf16.xpose.msra.mxu0 %v2182
    %2406 = vmatprep.subr.bf16.mxu0 0
    %2407 = vmatpush1.bf16.xpose.msra.mxu0 0
    %2408 = vmatprep.subr.bf16.mxu0 0
    %2409 = vmatpush1.bf16.xpose.msra.mxu0 0
    %2410 = vmatprep.subr.bf16.mxu0 0
    %2411 = vmatpush1.bf16.xpose.msra.mxu0 0
    %2412 = vmatprep.subr.bf16.mxu0 0
    %2413 = vmatpush1.bf16.xpose.msra.mxu0 0
    %2414 = vmatprep.subr.bf16.mxu0 0
    %2415 = vmatpush1.bf16.xpose.msra.mxu0 0
    %2416 = vmatprep.subr.bf16.mxu0 0
    %2417 = vmatpush1.bf16.xpose.msra.mxu0 0
    %2418 = vmatprep.subr.bf16.mxu0 0
    %2419 = vmatpush1.bf16.xpose.msra.mxu0 0
    %2420 = vmatprep.subr.bf16.mxu0 0
    %2421 = vmatpush1.bf16.xpose.msra.mxu0 0
    %2422 = vmatprep.subr.bf16.mxu0 0
    %2423 = vmatpush1.bf16.xpose.msra.mxu0 0
    %2424 = vmatprep.subr.bf16.mxu0 0
    %2425 = vmatpush1.bf16.xpose.msra.mxu0 0
    %2426 = vmatprep.subr.bf16.mxu0 0
    %2427 = vmatpush1.bf16.xpose.msra.mxu0 0
    %2428 = vmatprep.subr.bf16.mxu0 0
    %2429 = vmatpush1.bf16.xpose.msra.mxu0 0
    %2430 = vmatprep.subr.bf16.mxu0 0
    %2431 = vmatpush1.bf16.xpose.msra.mxu0 0
    %2432 = vmatprep.subr.bf16.mxu0 0
    %2433 = vmatpush1.bf16.xpose.msra.mxu0 0
    %2434 = vmatprep.subr.bf16.mxu0 0
    %2435 = vmatpush1.bf16.xpose.msra.mxu0 0
    %2436 = vmatprep.mubr.bf16.mxu0 %v2135
    %2437 = vmatmul.mubr.bf16.gmra.mrb[0].mxu0 %v2134
    %v2438 = vpop.f32.mrb[0].mxu0
    %v2439 = vadd.f32 %v2399, %v2438
    %v2440 = vpop.f32.mrb[0].mxu0
    %v2441 = vpop.f32.mrb[0].mxu0
    %v2442 = vpop.f32.mrb[0].mxu0
    %2443 = vdwg.mxu0
    %2444 = vmatprep.subr.bf16.mxu0 %v2185
    %2445 = vmatpush1.bf16.xpose.msra.mxu0 %v2184
    %2446 = vmatprep.subr.bf16.mxu0 0
    %2447 = vmatpush1.bf16.xpose.msra.mxu0 0
    %2448 = vmatprep.subr.bf16.mxu0 0
    %2449 = vmatpush1.bf16.xpose.msra.mxu0 0
    %2450 = vmatprep.subr.bf16.mxu0 0
    %2451 = vmatpush1.bf16.xpose.msra.mxu0 0
    %2452 = vmatprep.subr.bf16.mxu0 0
    %2453 = vmatpush1.bf16.xpose.msra.mxu0 0
    %2454 = vmatprep.subr.bf16.mxu0 0
    %2455 = vmatpush1.bf16.xpose.msra.mxu0 0
    %2456 = vmatprep.subr.bf16.mxu0 0
    %2457 = vmatpush1.bf16.xpose.msra.mxu0 0
    %2458 = vmatprep.subr.bf16.mxu0 0
    %2459 = vmatpush1.bf16.xpose.msra.mxu0 0
    %2460 = vmatprep.subr.bf16.mxu0 0
    %2461 = vmatpush1.bf16.xpose.msra.mxu0 0
    %2462 = vmatprep.subr.bf16.mxu0 0
    %2463 = vmatpush1.bf16.xpose.msra.mxu0 0
    %2464 = vmatprep.subr.bf16.mxu0 0
    %2465 = vmatpush1.bf16.xpose.msra.mxu0 0
    %2466 = vmatprep.subr.bf16.mxu0 0
    %2467 = vmatpush1.bf16.xpose.msra.mxu0 0
    %2468 = vmatprep.subr.bf16.mxu0 0
    %2469 = vmatpush1.bf16.xpose.msra.mxu0 0
    %2470 = vmatprep.subr.bf16.mxu0 0
    %2471 = vmatpush1.bf16.xpose.msra.mxu0 0
    %2472 = vmatprep.subr.bf16.mxu0 0
    %2473 = vmatpush1.bf16.xpose.msra.mxu0 0
    %2474 = vmatprep.subr.bf16.mxu0 0
    %2475 = vmatpush1.bf16.xpose.msra.mxu0 0
    %2476 = vmatprep.mubr.bf16.mxu0 %v2137
    %2477 = vmatmul.mubr.bf16.gmra.mrb[0].mxu0 %v2136
    %v2478 = vpop.f32.mrb[0].mxu0
    %v2479 = vadd.f32 %v2439, %v2478
    %v2480 = vpop.f32.mrb[0].mxu0
    %v2481 = vpop.f32.mrb[0].mxu0
    %v2482 = vpop.f32.mrb[0].mxu0
    %2483 = vdwg.mxu0
    %2484 = vmatprep.subr.bf16.mxu0 %v2187
    %2485 = vmatpush1.bf16.xpose.msra.mxu0 %v2186
    %2486 = vmatprep.subr.bf16.mxu0 0
    %2487 = vmatpush1.bf16.xpose.msra.mxu0 0
    %2488 = vmatprep.subr.bf16.mxu0 0
    %2489 = vmatpush1.bf16.xpose.msra.mxu0 0
    %2490 = vmatprep.subr.bf16.mxu0 0
    %2491 = vmatpush1.bf16.xpose.msra.mxu0 0
    %2492 = vmatprep.subr.bf16.mxu0 0
    %2493 = vmatpush1.bf16.xpose.msra.mxu0 0
    %2494 = vmatprep.subr.bf16.mxu0 0
    %2495 = vmatpush1.bf16.xpose.msra.mxu0 0
    %2496 = vmatprep.subr.bf16.mxu0 0
    %2497 = vmatpush1.bf16.xpose.msra.mxu0 0
    %2498 = vmatprep.subr.bf16.mxu0 0
    %2499 = vmatpush1.bf16.xpose.msra.mxu0 0
    %2500 = vmatprep.subr.bf16.mxu0 0
    %2501 = vmatpush1.bf16.xpose.msra.mxu0 0
    %2502 = vmatprep.subr.bf16.mxu0 0
    %2503 = vmatpush1.bf16.xpose.msra.mxu0 0
    %2504 = vmatprep.subr.bf16.mxu0 0
    %2505 = vmatpush1.bf16.xpose.msra.mxu0 0
    %2506 = vmatprep.subr.bf16.mxu0 0
    %2507 = vmatpush1.bf16.xpose.msra.mxu0 0
    %2508 = vmatprep.subr.bf16.mxu0 0
    %2509 = vmatpush1.bf16.xpose.msra.mxu0 0
    %2510 = vmatprep.subr.bf16.mxu0 0
    %2511 = vmatpush1.bf16.xpose.msra.mxu0 0
    %2512 = vmatprep.subr.bf16.mxu0 0
    %2513 = vmatpush1.bf16.xpose.msra.mxu0 0
    %2514 = vmatprep.subr.bf16.mxu0 0
    %2515 = vmatpush1.bf16.xpose.msra.mxu0 0
    %2516 = vmatprep.mubr.bf16.mxu0 %v2139
    %2517 = vmatmul.mubr.bf16.gmra.mrb[0].mxu0 %v2138
    %v2518 = vpop.f32.mrb[0].mxu0
    %v2519 = vadd.f32 %v2479, %v2518
    %v2520 = vpop.f32.mrb[0].mxu0
    %v2521 = vpop.f32.mrb[0].mxu0
    %v2522 = vpop.f32.mrb[0].mxu0
    %2523 = vdwg.mxu0
    %v2524 = vmax.f32 %v2519, 0.0
    %v2525 = vpack.c.bf16 %v2524, %v2524
    %v2526 = vld [vmem:[#allocation10] sm:$0xff]
    %v2527 = vld [vmem:[#allocation10 + $0x8] sm:$0xff]
    %v2528 = vld [vmem:[#allocation10 + $0x10] sm:$0xff]
    %v2529 = vld [vmem:[#allocation10 + $0x18] sm:$0xff]
    %v2530 = vld [vmem:[#allocation10 + $0x20] sm:$0xff]
    %v2531 = vld [vmem:[#allocation10 + $0x28] sm:$0xff]
    %v2532 = vld [vmem:[#allocation10 + $0x30] sm:$0xff]
    %v2533 = vld [vmem:[#allocation10 + $0x38] sm:$0xff]
    %v2542 = vunpack.c.l.b16 %v2526
    %v2543 = vunpack.c.h.b16 %v2526
    %v2544 = vunpack.c.l.b16 %v2527
    %v2545 = vunpack.c.h.b16 %v2527
    %v2546 = vunpack.c.l.b16 %v2528
    %v2547 = vunpack.c.h.b16 %v2528
    %v2548 = vunpack.c.l.b16 %v2529
    %v2549 = vunpack.c.h.b16 %v2529
    %v2550 = vunpack.c.l.b16 %v2530
    %v2551 = vunpack.c.h.b16 %v2530
    %v2552 = vunpack.c.l.b16 %v2531
    %v2553 = vunpack.c.h.b16 %v2531
    %v2554 = vunpack.c.l.b16 %v2532
    %v2555 = vunpack.c.h.b16 %v2532
    %v2556 = vunpack.c.l.b16 %v2533
    %v2557 = vunpack.c.h.b16 %v2533
    %v2558 = vpack.c.b16 %v2542, %v2542
    %v2559 = vpack.c.b16 %v2543, %v2543
    %v2560 = vpack.c.b16 %v2544, %v2544
    %v2561 = vpack.c.b16 %v2545, %v2545
    %v2562 = vpack.c.b16 %v2546, %v2546
    %v2563 = vpack.c.b16 %v2547, %v2547
    %v2564 = vpack.c.b16 %v2548, %v2548
    %v2565 = vpack.c.b16 %v2549, %v2549
    %v2566 = vpack.c.b16 %v2550, %v2550
    %v2567 = vpack.c.b16 %v2551, %v2551
    %v2568 = vpack.c.b16 %v2552, %v2552
    %v2569 = vpack.c.b16 %v2553, %v2553
    %v2570 = vpack.c.b16 %v2554, %v2554
    %v2571 = vpack.c.b16 %v2555, %v2555
    %v2572 = vpack.c.b16 %v2556, %v2556
    %v2573 = vpack.c.b16 %v2557, %v2557
    %vm2574 = vcmask 64512
    %v2576 = vsel %vm2574, %v2525, 0
    %vm2578 = vcmask 1043456
    %v2580 = vsel %vm2578, %v2558, 0
    %v2583 = vsel %vm2578, %v2559, 0
    %v2586 = vsel %vm2578, %v2560, 0
    %v2589 = vsel %vm2578, %v2561, 0
    %v2592 = vsel %vm2578, %v2562, 0
    %v2595 = vsel %vm2578, %v2563, 0
    %v2598 = vsel %vm2578, %v2564, 0
    %v2601 = vsel %vm2578, %v2565, 0
    %v2604 = vsel %vm2578, %v2566, 0
    %v2607 = vsel %vm2578, %v2567, 0
    %v2610 = vsel %vm2578, %v2568, 0
    %v2613 = vsel %vm2578, %v2569, 0
    %v2616 = vsel %vm2578, %v2570, 0
    %v2619 = vsel %vm2578, %v2571, 0
    %v2622 = vsel %vm2578, %v2572, 0
    %v2625 = vsel %vm2578, %v2573, 0
    %2627 = vmatprep.subr.bf16.mxu0 %v2583
    %2628 = vmatpush1.bf16.msra.mxu0 %v2580
    %2629 = vmatprep.subr.bf16.mxu0 0
    %2630 = vmatpush1.bf16.msra.mxu0 0
    %2631 = vmatprep.subr.bf16.mxu0 0
    %2632 = vmatpush1.bf16.msra.mxu0 0
    %2633 = vmatprep.subr.bf16.mxu0 0
    %2634 = vmatpush1.bf16.msra.mxu0 0
    %2635 = vmatprep.subr.bf16.mxu0 0
    %2636 = vmatpush1.bf16.msra.mxu0 0
    %2637 = vmatprep.subr.bf16.mxu0 0
    %2638 = vmatpush1.bf16.msra.mxu0 0
    %2639 = vmatprep.subr.bf16.mxu0 0
    %2640 = vmatpush1.bf16.msra.mxu0 0
    %2641 = vmatprep.subr.bf16.mxu0 0
    %2642 = vmatpush1.bf16.msra.mxu0 0
    %2643 = vmatprep.subr.bf16.mxu0 0
    %2644 = vmatpush1.bf16.msra.mxu0 0
    %2645 = vmatprep.subr.bf16.mxu0 0
    %2646 = vmatpush1.bf16.msra.mxu0 0
    %2647 = vmatprep.subr.bf16.mxu0 0
    %2648 = vmatpush1.bf16.msra.mxu0 0
    %2649 = vmatprep.subr.bf16.mxu0 0
    %2650 = vmatpush1.bf16.msra.mxu0 0
    %2651 = vmatprep.subr.bf16.mxu0 0
    %2652 = vmatpush1.bf16.msra.mxu0 0
    %2653 = vmatprep.subr.bf16.mxu0 0
    %2654 = vmatpush1.bf16.msra.mxu0 0
    %2655 = vmatprep.subr.bf16.mxu0 0
    %2656 = vmatpush1.bf16.msra.mxu0 0
    %2657 = vmatprep.subr.bf16.mxu0 0
    %2658 = vmatpush1.bf16.msra.mxu0 0
    %2659 = vmatprep.mubr.bf16.mxu0 0
    %2660 = vmatmul.mubr.bf16.gmra.mrb[0].mxu0 %v2576
    %v2661 = vpop.f32.mrb[0].mxu0
    %v2662 = vadd.f32 0.0, %v2661
    %v2663 = vpop.f32.mrb[0].mxu0
    %v2664 = vadd.f32 0.0, %v2663
    %v2665 = vpop.f32.mrb[0].mxu0
    %v2666 = vpop.f32.mrb[0].mxu0
    %2667 = vdwg.mxu0
    %2668 = vmatprep.subr.bf16.mxu0 %v2589
    %2669 = vmatpush1.bf16.msra.mxu0 %v2586
    %2670 = vmatprep.subr.bf16.mxu0 0
    %2671 = vmatpush1.bf16.msra.mxu0 0
    %2672 = vmatprep.subr.bf16.mxu0 0
    %2673 = vmatpush1.bf16.msra.mxu0 0
    %2674 = vmatprep.subr.bf16.mxu0 0
    %2675 = vmatpush1.bf16.msra.mxu0 0
    %2676 = vmatprep.subr.bf16.mxu0 0
    %2677 = vmatpush1.bf16.msra.mxu0 0
    %2678 = vmatprep.subr.bf16.mxu0 0
    %2679 = vmatpush1.bf16.msra.mxu0 0
    %2680 = vmatprep.subr.bf16.mxu0 0
    %2681 = vmatpush1.bf16.msra.mxu0 0
    %2682 = vmatprep.subr.bf16.mxu0 0
    %2683 = vmatpush1.bf16.msra.mxu0 0
    %2684 = vmatprep.subr.bf16.mxu0 0
    %2685 = vmatpush1.bf16.msra.mxu0 0
    %2686 = vmatprep.subr.bf16.mxu0 0
    %2687 = vmatpush1.bf16.msra.mxu0 0
    %2688 = vmatprep.subr.bf16.mxu0 0
    %2689 = vmatpush1.bf16.msra.mxu0 0
    %2690 = vmatprep.subr.bf16.mxu0 0
    %2691 = vmatpush1.bf16.msra.mxu0 0
    %2692 = vmatprep.subr.bf16.mxu0 0
    %2693 = vmatpush1.bf16.msra.mxu0 0
    %2694 = vmatprep.subr.bf16.mxu0 0
    %2695 = vmatpush1.bf16.msra.mxu0 0
    %2696 = vmatprep.subr.bf16.mxu0 0
    %2697 = vmatpush1.bf16.msra.mxu0 0
    %2698 = vmatprep.subr.bf16.mxu0 0
    %2699 = vmatpush1.bf16.msra.mxu0 0
    %2700 = vmatprep.mubr.bf16.mxu0 0
    %2701 = vmatmul.mubr.bf16.gmra.mrb[0].mxu0 %v2576
    %v2702 = vpop.f32.mrb[0].mxu0
    %v2703 = vadd.f32 0.0, %v2702
    %v2704 = vpop.f32.mrb[0].mxu0
    %v2705 = vadd.f32 0.0, %v2704
    %v2706 = vpop.f32.mrb[0].mxu0
    %v2707 = vpop.f32.mrb[0].mxu0
    %2708 = vdwg.mxu0
    %2709 = vmatprep.subr.bf16.mxu0 %v2595
    %2710 = vmatpush1.bf16.msra.mxu0 %v2592
    %2711 = vmatprep.subr.bf16.mxu0 0
    %2712 = vmatpush1.bf16.msra.mxu0 0
    %2713 = vmatprep.subr.bf16.mxu0 0
    %2714 = vmatpush1.bf16.msra.mxu0 0
    %2715 = vmatprep.subr.bf16.mxu0 0
    %2716 = vmatpush1.bf16.msra.mxu0 0
    %2717 = vmatprep.subr.bf16.mxu0 0
    %2718 = vmatpush1.bf16.msra.mxu0 0
    %2719 = vmatprep.subr.bf16.mxu0 0
    %2720 = vmatpush1.bf16.msra.mxu0 0
    %2721 = vmatprep.subr.bf16.mxu0 0
    %2722 = vmatpush1.bf16.msra.mxu0 0
    %2723 = vmatprep.subr.bf16.mxu0 0
    %2724 = vmatpush1.bf16.msra.mxu0 0
    %2725 = vmatprep.subr.bf16.mxu0 0
    %2726 = vmatpush1.bf16.msra.mxu0 0
    %2727 = vmatprep.subr.bf16.mxu0 0
    %2728 = vmatpush1.bf16.msra.mxu0 0
    %2729 = vmatprep.subr.bf16.mxu0 0
    %2730 = vmatpush1.bf16.msra.mxu0 0
    %2731 = vmatprep.subr.bf16.mxu0 0
    %2732 = vmatpush1.bf16.msra.mxu0 0
    %2733 = vmatprep.subr.bf16.mxu0 0
    %2734 = vmatpush1.bf16.msra.mxu0 0
    %2735 = vmatprep.subr.bf16.mxu0 0
    %2736 = vmatpush1.bf16.msra.mxu0 0
    %2737 = vmatprep.subr.bf16.mxu0 0
    %2738 = vmatpush1.bf16.msra.mxu0 0
    %2739 = vmatprep.subr.bf16.mxu0 0
    %2740 = vmatpush1.bf16.msra.mxu0 0
    %2741 = vmatprep.mubr.bf16.mxu0 0
    %2742 = vmatmul.mubr.bf16.gmra.mrb[0].mxu0 %v2576
    %v2743 = vpop.f32.mrb[0].mxu0
    %v2744 = vadd.f32 0.0, %v2743
    %v2745 = vpop.f32.mrb[0].mxu0
    %v2746 = vadd.f32 0.0, %v2745
    %v2747 = vpop.f32.mrb[0].mxu0
    %v2748 = vpop.f32.mrb[0].mxu0
    %2749 = vdwg.mxu0
    %2750 = vmatprep.subr.bf16.mxu0 %v2601
    %2751 = vmatpush1.bf16.msra.mxu0 %v2598
    %2752 = vmatprep.subr.bf16.mxu0 0
    %2753 = vmatpush1.bf16.msra.mxu0 0
    %2754 = vmatprep.subr.bf16.mxu0 0
    %2755 = vmatpush1.bf16.msra.mxu0 0
    %2756 = vmatprep.subr.bf16.mxu0 0
    %2757 = vmatpush1.bf16.msra.mxu0 0
    %2758 = vmatprep.subr.bf16.mxu0 0
    %2759 = vmatpush1.bf16.msra.mxu0 0
    %2760 = vmatprep.subr.bf16.mxu0 0
    %2761 = vmatpush1.bf16.msra.mxu0 0
    %2762 = vmatprep.subr.bf16.mxu0 0
    %2763 = vmatpush1.bf16.msra.mxu0 0
    %2764 = vmatprep.subr.bf16.mxu0 0
    %2765 = vmatpush1.bf16.msra.mxu0 0
    %2766 = vmatprep.subr.bf16.mxu0 0
    %2767 = vmatpush1.bf16.msra.mxu0 0
    %2768 = vmatprep.subr.bf16.mxu0 0
    %2769 = vmatpush1.bf16.msra.mxu0 0
    %2770 = vmatprep.subr.bf16.mxu0 0
    %2771 = vmatpush1.bf16.msra.mxu0 0
    %2772 = vmatprep.subr.bf16.mxu0 0
    %2773 = vmatpush1.bf16.msra.mxu0 0
    %2774 = vmatprep.subr.bf16.mxu0 0
    %2775 = vmatpush1.bf16.msra.mxu0 0
    %2776 = vmatprep.subr.bf16.mxu0 0
    %2777 = vmatpush1.bf16.msra.mxu0 0
    %2778 = vmatprep.subr.bf16.mxu0 0
    %2779 = vmatpush1.bf16.msra.mxu0 0
    %2780 = vmatprep.subr.bf16.mxu0 0
    %2781 = vmatpush1.bf16.msra.mxu0 0
    %2782 = vmatprep.mubr.bf16.mxu0 0
    %2783 = vmatmul.mubr.bf16.gmra.mrb[0].mxu0 %v2576
    %v2784 = vpop.f32.mrb[0].mxu0
    %v2785 = vadd.f32 0.0, %v2784
    %v2786 = vpop.f32.mrb[0].mxu0
    %v2787 = vadd.f32 0.0, %v2786
    %v2788 = vpop.f32.mrb[0].mxu0
    %v2789 = vpop.f32.mrb[0].mxu0
    %2790 = vdwg.mxu0
    %2791 = vmatprep.subr.bf16.mxu0 %v2607
    %2792 = vmatpush1.bf16.msra.mxu0 %v2604
    %2793 = vmatprep.subr.bf16.mxu0 0
    %2794 = vmatpush1.bf16.msra.mxu0 0
    %2795 = vmatprep.subr.bf16.mxu0 0
    %2796 = vmatpush1.bf16.msra.mxu0 0
    %2797 = vmatprep.subr.bf16.mxu0 0
    %2798 = vmatpush1.bf16.msra.mxu0 0
    %2799 = vmatprep.subr.bf16.mxu0 0
    %2800 = vmatpush1.bf16.msra.mxu0 0
    %2801 = vmatprep.subr.bf16.mxu0 0
    %2802 = vmatpush1.bf16.msra.mxu0 0
    %2803 = vmatprep.subr.bf16.mxu0 0
    %2804 = vmatpush1.bf16.msra.mxu0 0
    %2805 = vmatprep.subr.bf16.mxu0 0
    %2806 = vmatpush1.bf16.msra.mxu0 0
    %2807 = vmatprep.subr.bf16.mxu0 0
    %2808 = vmatpush1.bf16.msra.mxu0 0
    %2809 = vmatprep.subr.bf16.mxu0 0
    %2810 = vmatpush1.bf16.msra.mxu0 0
    %2811 = vmatprep.subr.bf16.mxu0 0
    %2812 = vmatpush1.bf16.msra.mxu0 0
    %2813 = vmatprep.subr.bf16.mxu0 0
    %2814 = vmatpush1.bf16.msra.mxu0 0
    %2815 = vmatprep.subr.bf16.mxu0 0
    %2816 = vmatpush1.bf16.msra.mxu0 0
    %2817 = vmatprep.subr.bf16.mxu0 0
    %2818 = vmatpush1.bf16.msra.mxu0 0
    %2819 = vmatprep.subr.bf16.mxu0 0
    %2820 = vmatpush1.bf16.msra.mxu0 0
    %2821 = vmatprep.subr.bf16.mxu0 0
    %2822 = vmatpush1.bf16.msra.mxu0 0
    %2823 = vmatprep.mubr.bf16.mxu0 0
    %2824 = vmatmul.mubr.bf16.gmra.mrb[0].mxu0 %v2576
    %v2825 = vpop.f32.mrb[0].mxu0
    %v2826 = vadd.f32 0.0, %v2825
    %v2827 = vpop.f32.mrb[0].mxu0
    %v2828 = vadd.f32 0.0, %v2827
    %v2829 = vpop.f32.mrb[0].mxu0
    %v2830 = vpop.f32.mrb[0].mxu0
    %2831 = vdwg.mxu0
    %2832 = vmatprep.subr.bf16.mxu0 %v2613
    %2833 = vmatpush1.bf16.msra.mxu0 %v2610
    %2834 = vmatprep.subr.bf16.mxu0 0
    %2835 = vmatpush1.bf16.msra.mxu0 0
    %2836 = vmatprep.subr.bf16.mxu0 0
    %2837 = vmatpush1.bf16.msra.mxu0 0
    %2838 = vmatprep.subr.bf16.mxu0 0
    %2839 = vmatpush1.bf16.msra.mxu0 0
    %2840 = vmatprep.subr.bf16.mxu0 0
    %2841 = vmatpush1.bf16.msra.mxu0 0
    %2842 = vmatprep.subr.bf16.mxu0 0
    %2843 = vmatpush1.bf16.msra.mxu0 0
    %2844 = vmatprep.subr.bf16.mxu0 0
    %2845 = vmatpush1.bf16.msra.mxu0 0
    %2846 = vmatprep.subr.bf16.mxu0 0
    %2847 = vmatpush1.bf16.msra.mxu0 0
    %2848 = vmatprep.subr.bf16.mxu0 0
    %2849 = vmatpush1.bf16.msra.mxu0 0
    %2850 = vmatprep.subr.bf16.mxu0 0
    %2851 = vmatpush1.bf16.msra.mxu0 0
    %2852 = vmatprep.subr.bf16.mxu0 0
    %2853 = vmatpush1.bf16.msra.mxu0 0
    %2854 = vmatprep.subr.bf16.mxu0 0
    %2855 = vmatpush1.bf16.msra.mxu0 0
    %2856 = vmatprep.subr.bf16.mxu0 0
    %2857 = vmatpush1.bf16.msra.mxu0 0
    %2858 = vmatprep.subr.bf16.mxu0 0
    %2859 = vmatpush1.bf16.msra.mxu0 0
    %2860 = vmatprep.subr.bf16.mxu0 0
    %2861 = vmatpush1.bf16.msra.mxu0 0
    %2862 = vmatprep.subr.bf16.mxu0 0
    %2863 = vmatpush1.bf16.msra.mxu0 0
    %2864 = vmatprep.mubr.bf16.mxu0 0
    %2865 = vmatmul.mubr.bf16.gmra.mrb[0].mxu0 %v2576
    %v2866 = vpop.f32.mrb[0].mxu0
    %v2867 = vadd.f32 0.0, %v2866
    %v2868 = vpop.f32.mrb[0].mxu0
    %v2869 = vadd.f32 0.0, %v2868
    %v2870 = vpop.f32.mrb[0].mxu0
    %v2871 = vpop.f32.mrb[0].mxu0
    %2872 = vdwg.mxu0
    %2873 = vmatprep.subr.bf16.mxu0 %v2619
    %2874 = vmatpush1.bf16.msra.mxu0 %v2616
    %2875 = vmatprep.subr.bf16.mxu0 0
    %2876 = vmatpush1.bf16.msra.mxu0 0
    %2877 = vmatprep.subr.bf16.mxu0 0
    %2878 = vmatpush1.bf16.msra.mxu0 0
    %2879 = vmatprep.subr.bf16.mxu0 0
    %2880 = vmatpush1.bf16.msra.mxu0 0
    %2881 = vmatprep.subr.bf16.mxu0 0
    %2882 = vmatpush1.bf16.msra.mxu0 0
    %2883 = vmatprep.subr.bf16.mxu0 0
    %2884 = vmatpush1.bf16.msra.mxu0 0
    %2885 = vmatprep.subr.bf16.mxu0 0
    %2886 = vmatpush1.bf16.msra.mxu0 0
    %2887 = vmatprep.subr.bf16.mxu0 0
    %2888 = vmatpush1.bf16.msra.mxu0 0
    %2889 = vmatprep.subr.bf16.mxu0 0
    %2890 = vmatpush1.bf16.msra.mxu0 0
    %2891 = vmatprep.subr.bf16.mxu0 0
    %2892 = vmatpush1.bf16.msra.mxu0 0
    %2893 = vmatprep.subr.bf16.mxu0 0
    %2894 = vmatpush1.bf16.msra.mxu0 0
    %2895 = vmatprep.subr.bf16.mxu0 0
    %2896 = vmatpush1.bf16.msra.mxu0 0
    %2897 = vmatprep.subr.bf16.mxu0 0
    %2898 = vmatpush1.bf16.msra.mxu0 0
    %2899 = vmatprep.subr.bf16.mxu0 0
    %2900 = vmatpush1.bf16.msra.mxu0 0
    %2901 = vmatprep.subr.bf16.mxu0 0
    %2902 = vmatpush1.bf16.msra.mxu0 0
    %2903 = vmatprep.subr.bf16.mxu0 0
    %2904 = vmatpush1.bf16.msra.mxu0 0
    %2905 = vmatprep.mubr.bf16.mxu0 0
    %2906 = vmatmul.mubr.bf16.gmra.mrb[0].mxu0 %v2576
    %v2907 = vpop.f32.mrb[0].mxu0
    %v2908 = vadd.f32 0.0, %v2907
    %v2909 = vpop.f32.mrb[0].mxu0
    %v2910 = vadd.f32 0.0, %v2909
    %v2911 = vpop.f32.mrb[0].mxu0
    %v2912 = vpop.f32.mrb[0].mxu0
    %2913 = vdwg.mxu0
    %2914 = vmatprep.subr.bf16.mxu0 %v2625
    %2915 = vmatpush1.bf16.msra.mxu0 %v2622
    %2916 = vmatprep.subr.bf16.mxu0 0
    %2917 = vmatpush1.bf16.msra.mxu0 0
    %2918 = vmatprep.subr.bf16.mxu0 0
    %2919 = vmatpush1.bf16.msra.mxu0 0
    %2920 = vmatprep.subr.bf16.mxu0 0
    %2921 = vmatpush1.bf16.msra.mxu0 0
    %2922 = vmatprep.subr.bf16.mxu0 0
    %2923 = vmatpush1.bf16.msra.mxu0 0
    %2924 = vmatprep.subr.bf16.mxu0 0
    %2925 = vmatpush1.bf16.msra.mxu0 0
    %2926 = vmatprep.subr.bf16.mxu0 0
    %2927 = vmatpush1.bf16.msra.mxu0 0
    %2928 = vmatprep.subr.bf16.mxu0 0
    %2929 = vmatpush1.bf16.msra.mxu0 0
    %2930 = vmatprep.subr.bf16.mxu0 0
    %2931 = vmatpush1.bf16.msra.mxu0 0
    %2932 = vmatprep.subr.bf16.mxu0 0
    %2933 = vmatpush1.bf16.msra.mxu0 0
    %2934 = vmatprep.subr.bf16.mxu0 0
    %2935 = vmatpush1.bf16.msra.mxu0 0
    %2936 = vmatprep.subr.bf16.mxu0 0
    %2937 = vmatpush1.bf16.msra.mxu0 0
    %2938 = vmatprep.subr.bf16.mxu0 0
    %2939 = vmatpush1.bf16.msra.mxu0 0
    %2940 = vmatprep.subr.bf16.mxu0 0
    %2941 = vmatpush1.bf16.msra.mxu0 0
    %2942 = vmatprep.subr.bf16.mxu0 0
    %2943 = vmatpush1.bf16.msra.mxu0 0
    %2944 = vmatprep.subr.bf16.mxu0 0
    %2945 = vmatpush1.bf16.msra.mxu0 0
    %2946 = vmatprep.mubr.bf16.mxu0 0
    %2947 = vmatmul.mubr.bf16.gmra.mrb[0].mxu0 %v2576
    %v2948 = vpop.f32.mrb[0].mxu0
    %v2949 = vadd.f32 0.0, %v2948
    %v2950 = vpop.f32.mrb[0].mxu0
    %v2951 = vadd.f32 0.0, %v2950
    %v2952 = vpop.f32.mrb[0].mxu0
    %v2953 = vpop.f32.mrb[0].mxu0
    %2954 = vdwg.mxu0
    %v2955 = vxor.u32 %v2662, 2147483648
    %v2956 = vxor.u32 %v2664, 2147483648
    %v2957 = vxor.u32 %v2703, 2147483648
    %v2958 = vxor.u32 %v2705, 2147483648
    %v2959 = vxor.u32 %v2744, 2147483648
    %v2960 = vxor.u32 %v2746, 2147483648
    %v2961 = vxor.u32 %v2785, 2147483648
    %v2962 = vxor.u32 %v2787, 2147483648
    %v2963 = vxor.u32 %v2826, 2147483648
    %v2964 = vxor.u32 %v2828, 2147483648
    %v2965 = vxor.u32 %v2867, 2147483648
    %v2966 = vxor.u32 %v2869, 2147483648
    %v2967 = vxor.u32 %v2908, 2147483648
    %v2968 = vxor.u32 %v2910, 2147483648
    %v2969 = vxor.u32 %v2949, 2147483648
    %v2970 = vxor.u32 %v2951, 2147483648
    %v2971 = vmul.f32 %v2955, 1.442695
    %v2972 = vpow.pop %v2971
    %v2973 = vmul.f32 %v2956, 1.442695
    %v2974 = vpow.pop %v2973
    %v2975 = vmul.f32 %v2957, 1.442695
    %v2976 = vpow.pop %v2975
    %v2977 = vmul.f32 %v2958, 1.442695
    %v2978 = vpow.pop %v2977
    %v2979 = vmul.f32 %v2959, 1.442695
    %v2980 = vpow.pop %v2979
    %v2981 = vmul.f32 %v2960, 1.442695
    %v2982 = vpow.pop %v2981
    %v2983 = vmul.f32 %v2961, 1.442695
    %v2984 = vpow.pop %v2983
    %v2985 = vmul.f32 %v2962, 1.442695
    %v2986 = vpow.pop %v2985
    %v2987 = vmul.f32 %v2963, 1.442695
    %v2988 = vpow.pop %v2987
    %v2989 = vmul.f32 %v2964, 1.442695
    %v2990 = vpow.pop %v2989
    %v2991 = vmul.f32 %v2965, 1.442695
    %v2992 = vpow.pop %v2991
    %v2993 = vmul.f32 %v2966, 1.442695
    %v2994 = vpow.pop %v2993
    %v2995 = vmul.f32 %v2967, 1.442695
    %v2996 = vpow.pop %v2995
    %v2997 = vmul.f32 %v2968, 1.442695
    %v2998 = vpow.pop %v2997
    %v2999 = vmul.f32 %v2969, 1.442695
    %v3000 = vpow.pop %v2999
    %v3001 = vmul.f32 %v2970, 1.442695
    %v3002 = vpow.pop %v3001
    %v3003 = vadd.f32 %v2972, 1.0
    %v3004 = vadd.f32 %v2974, 1.0
    %v3005 = vadd.f32 %v2976, 1.0
    %v3006 = vadd.f32 %v2978, 1.0
    %v3007 = vadd.f32 %v2980, 1.0
    %v3008 = vadd.f32 %v2982, 1.0
    %v3009 = vadd.f32 %v2984, 1.0
    %v3010 = vadd.f32 %v2986, 1.0
    %v3011 = vadd.f32 %v2988, 1.0
    %v3012 = vadd.f32 %v2990, 1.0
    %v3013 = vadd.f32 %v2992, 1.0
    %v3014 = vadd.f32 %v2994, 1.0
    %v3015 = vadd.f32 %v2996, 1.0
    %v3016 = vadd.f32 %v2998, 1.0
    %v3017 = vadd.f32 %v3000, 1.0
    %v3018 = vadd.f32 %v3002, 1.0
    %v3019 = vrcp.pop %v3003
    %v3020 = vmul.f32 1.0, %v3019
    %v3021 = vrcp.pop %v3004
    %v3022 = vmul.f32 1.0, %v3021
    %v3023 = vrcp.pop %v3005
    %v3024 = vmul.f32 1.0, %v3023
    %v3025 = vrcp.pop %v3006
    %v3026 = vmul.f32 1.0, %v3025
    %v3027 = vrcp.pop %v3007
    %v3028 = vmul.f32 1.0, %v3027
    %v3029 = vrcp.pop %v3008
    %v3030 = vmul.f32 1.0, %v3029
    %v3031 = vrcp.pop %v3009
    %v3032 = vmul.f32 1.0, %v3031
    %v3033 = vrcp.pop %v3010
    %v3034 = vmul.f32 1.0, %v3033
    %v3035 = vrcp.pop %v3011
    %v3036 = vmul.f32 1.0, %v3035
    %v3037 = vrcp.pop %v3012
    %v3038 = vmul.f32 1.0, %v3037
    %v3039 = vrcp.pop %v3013
    %v3040 = vmul.f32 1.0, %v3039
    %v3041 = vrcp.pop %v3014
    %v3042 = vmul.f32 1.0, %v3041
    %v3043 = vrcp.pop %v3015
    %v3044 = vmul.f32 1.0, %v3043
    %v3045 = vrcp.pop %v3016
    %v3046 = vmul.f32 1.0, %v3045
    %v3047 = vrcp.pop %v3017
    %v3048 = vmul.f32 1.0, %v3047
    %v3049 = vrcp.pop %v3018
    %v3050 = vmul.f32 1.0, %v3049
    %v3051 = vmul.f32 %v1831, %v3020
    %v3052 = vmul.f32 %v1833, %v3022
    %v3053 = vmul.f32 %v1872, %v3024
    %v3054 = vmul.f32 %v1874, %v3026
    %v3055 = vmul.f32 %v1913, %v3028
    %v3056 = vmul.f32 %v1915, %v3030
    %v3057 = vmul.f32 %v1954, %v3032
    %v3058 = vmul.f32 %v1956, %v3034
    %v3059 = vmul.f32 %v1995, %v3036
    %v3060 = vmul.f32 %v1997, %v3038
    %v3061 = vmul.f32 %v2036, %v3040
    %v3062 = vmul.f32 %v2038, %v3042
    %v3063 = vmul.f32 %v2077, %v3044
    %v3064 = vmul.f32 %v2079, %v3046
    %v3065 = vmul.f32 %v2118, %v3048
    %v3066 = vmul.f32 %v2120, %v3050
    %v3067 = vmax.f32 %v3051, 0.0
    %v3068 = vmax.f32 %v3052, 0.0
    %v3069 = vmax.f32 %v3053, 0.0
    %v3070 = vmax.f32 %v3054, 0.0
    %v3071 = vmax.f32 %v3055, 0.0
    %v3072 = vmax.f32 %v3056, 0.0
    %v3073 = vmax.f32 %v3057, 0.0
    %v3074 = vmax.f32 %v3058, 0.0
    %v3075 = vmax.f32 %v3059, 0.0
    %v3076 = vmax.f32 %v3060, 0.0
    %v3077 = vmax.f32 %v3061, 0.0
    %v3078 = vmax.f32 %v3062, 0.0
    %v3079 = vmax.f32 %v3063, 0.0
    %v3080 = vmax.f32 %v3064, 0.0
    %v3081 = vmax.f32 %v3065, 0.0
    %v3082 = vmax.f32 %v3066, 0.0
    %v3083 = vpack.c.bf16 %v3067, %v3067
    %v3084 = vpack.c.bf16 %v3068, %v3068
    %v3085 = vpack.c.bf16 %v3069, %v3069
    %v3086 = vpack.c.bf16 %v3070, %v3070
    %v3087 = vpack.c.bf16 %v3071, %v3071
    %v3088 = vpack.c.bf16 %v3072, %v3072
    %v3089 = vpack.c.bf16 %v3073, %v3073
    %v3090 = vpack.c.bf16 %v3074, %v3074
    %v3091 = vpack.c.bf16 %v3075, %v3075
    %v3092 = vpack.c.bf16 %v3076, %v3076
    %v3093 = vpack.c.bf16 %v3077, %v3077
    %v3094 = vpack.c.bf16 %v3078, %v3078
    %v3095 = vpack.c.bf16 %v3079, %v3079
    %v3096 = vpack.c.bf16 %v3080, %v3080
    %v3097 = vpack.c.bf16 %v3081, %v3081
    %v3098 = vpack.c.bf16 %v3082, %v3082
    %v3099 = vld [vmem:[#allocation11] sm:$0xff]
    %v3100 = vld [vmem:[#allocation11 + $0x8] sm:$0xff]
    %v3101 = vld [vmem:[#allocation11 + $0x10] sm:$0xff]
    %v3102 = vld [vmem:[#allocation11 + $0x18] sm:$0xff]
    %v3103 = vld [vmem:[#allocation11 + $0x20] sm:$0xff]
    %v3104 = vld [vmem:[#allocation11 + $0x28] sm:$0xff]
    %v3105 = vld [vmem:[#allocation11 + $0x30] sm:$0xff]
    %v3106 = vld [vmem:[#allocation11 + $0x38] sm:$0xff]
    %v3107 = vld [vmem:[#allocation11 + $0x40] sm:$0xff]
    %v3108 = vld [vmem:[#allocation11 + $0x48] sm:$0xff]
    %v3109 = vld [vmem:[#allocation11 + $0x50] sm:$0xff]
    %v3110 = vld [vmem:[#allocation11 + $0x58] sm:$0xff]
    %v3111 = vld [vmem:[#allocation11 + $0x60] sm:$0xff]
    %v3112 = vld [vmem:[#allocation11 + $0x68] sm:$0xff]
    %v3113 = vld [vmem:[#allocation11 + $0x70] sm:$0xff]
    %v3114 = vld [vmem:[#allocation11 + $0x78] sm:$0xff]
    %v3115 = vld [vmem:[#allocation11 + $0x80] sm:$0xff]
    %v3116 = vld [vmem:[#allocation11 + $0x88] sm:$0xff]
    %v3117 = vld [vmem:[#allocation11 + $0x90] sm:$0xff]
    %v3118 = vld [vmem:[#allocation11 + $0x98] sm:$0xff]
    %v3119 = vld [vmem:[#allocation11 + $0xa0] sm:$0xff]
    %v3120 = vld [vmem:[#allocation11 + $0xa8] sm:$0xff]
    %v3121 = vld [vmem:[#allocation11 + $0xb0] sm:$0xff]
    %v3122 = vld [vmem:[#allocation11 + $0xb8] sm:$0xff]
    %v3123 = vld [vmem:[#allocation11 + $0xc0] sm:$0xff]
    %v3124 = vld [vmem:[#allocation11 + $0xc8] sm:$0xff]
    %v3125 = vld [vmem:[#allocation11 + $0xd0] sm:$0xff]
    %v3126 = vld [vmem:[#allocation11 + $0xd8] sm:$0xff]
    %v3127 = vld [vmem:[#allocation11 + $0xe0] sm:$0xff]
    %v3128 = vld [vmem:[#allocation11 + $0xe8] sm:$0xff]
    %v3129 = vld [vmem:[#allocation11 + $0xf0] sm:$0xff]
    %v3130 = vld [vmem:[#allocation11 + $0xf8] sm:$0xff]
    %v3131 = vld [vmem:[#allocation11 + $0x100] sm:$0xff]
    %v3132 = vld [vmem:[#allocation11 + $0x108] sm:$0xff]
    %v3133 = vld [vmem:[#allocation11 + $0x110] sm:$0xff]
    %v3134 = vld [vmem:[#allocation11 + $0x118] sm:$0xff]
    %v3135 = vld [vmem:[#allocation11 + $0x120] sm:$0xff]
    %v3136 = vld [vmem:[#allocation11 + $0x128] sm:$0xff]
    %v3137 = vld [vmem:[#allocation11 + $0x130] sm:$0xff]
    %v3138 = vld [vmem:[#allocation11 + $0x138] sm:$0xff]
    %v3139 = vld [vmem:[#allocation11 + $0x140] sm:$0xff]
    %v3140 = vld [vmem:[#allocation11 + $0x148] sm:$0xff]
    %v3141 = vld [vmem:[#allocation11 + $0x150] sm:$0xff]
    %v3142 = vld [vmem:[#allocation11 + $0x158] sm:$0xff]
    %v3143 = vld [vmem:[#allocation11 + $0x160] sm:$0xff]
    %v3144 = vld [vmem:[#allocation11 + $0x168] sm:$0xff]
    %v3145 = vld [vmem:[#allocation11 + $0x170] sm:$0xff]
    %v3146 = vld [vmem:[#allocation11 + $0x178] sm:$0xff]
    %v3147 = vld [vmem:[#allocation11 + $0x180] sm:$0xff]
    %v3148 = vld [vmem:[#allocation11 + $0x188] sm:$0xff]
    %v3149 = vld [vmem:[#allocation11 + $0x190] sm:$0xff]
    %v3150 = vld [vmem:[#allocation11 + $0x198] sm:$0xff]
    %v3151 = vld [vmem:[#allocation11 + $0x1a0] sm:$0xff]
    %v3152 = vld [vmem:[#allocation11 + $0x1a8] sm:$0xff]
    %v3153 = vld [vmem:[#allocation11 + $0x1b0] sm:$0xff]
    %v3154 = vld [vmem:[#allocation11 + $0x1b8] sm:$0xff]
    %v3155 = vld [vmem:[#allocation11 + $0x1c0] sm:$0xff]
    %v3156 = vld [vmem:[#allocation11 + $0x1c8] sm:$0xff]
    %v3157 = vld [vmem:[#allocation11 + $0x1d0] sm:$0xff]
    %v3158 = vld [vmem:[#allocation11 + $0x1d8] sm:$0xff]
    %v3159 = vld [vmem:[#allocation11 + $0x1e0] sm:$0xff]
    %v3160 = vld [vmem:[#allocation11 + $0x1e8] sm:$0xff]
    %v3161 = vld [vmem:[#allocation11 + $0x1f0] sm:$0xff]
    %v3162 = vld [vmem:[#allocation11 + $0x1f8] sm:$0xff]
    %v3163 = vld [vmem:[#allocation11 + $0x200] sm:$0xff]
    %v3164 = vld [vmem:[#allocation11 + $0x208] sm:$0xff]
    %v3165 = vld [vmem:[#allocation11 + $0x210] sm:$0xff]
    %v3166 = vld [vmem:[#allocation11 + $0x218] sm:$0xff]
    %v3167 = vld [vmem:[#allocation11 + $0x220] sm:$0xff]
    %v3168 = vld [vmem:[#allocation11 + $0x228] sm:$0xff]
    %v3169 = vld [vmem:[#allocation11 + $0x230] sm:$0xff]
    %v3170 = vld [vmem:[#allocation11 + $0x238] sm:$0xff]
    %v3171 = vld [vmem:[#allocation11 + $0x240] sm:$0xff]
    %v3172 = vld [vmem:[#allocation11 + $0x248] sm:$0xff]
    %v3173 = vld [vmem:[#allocation11 + $0x250] sm:$0xff]
    %v3174 = vld [vmem:[#allocation11 + $0x258] sm:$0xff]
    %v3175 = vld [vmem:[#allocation11 + $0x260] sm:$0xff]
    %v3176 = vld [vmem:[#allocation11 + $0x268] sm:$0xff]
    %v3177 = vld [vmem:[#allocation11 + $0x270] sm:$0xff]
    %v3178 = vld [vmem:[#allocation11 + $0x278] sm:$0xff]
    %v3179 = vld [vmem:[#allocation11 + $0x280] sm:$0xff]
    %v3180 = vld [vmem:[#allocation11 + $0x288] sm:$0xff]
    %v3181 = vld [vmem:[#allocation11 + $0x290] sm:$0xff]
    %v3182 = vld [vmem:[#allocation11 + $0x298] sm:$0xff]
    %v3183 = vld [vmem:[#allocation11 + $0x2a0] sm:$0xff]
    %v3184 = vld [vmem:[#allocation11 + $0x2a8] sm:$0xff]
    %v3185 = vld [vmem:[#allocation11 + $0x2b0] sm:$0xff]
    %v3186 = vld [vmem:[#allocation11 + $0x2b8] sm:$0xff]
    %v3187 = vld [vmem:[#allocation11 + $0x2c0] sm:$0xff]
    %v3188 = vld [vmem:[#allocation11 + $0x2c8] sm:$0xff]
    %v3189 = vld [vmem:[#allocation11 + $0x2d0] sm:$0xff]
    %v3190 = vld [vmem:[#allocation11 + $0x2d8] sm:$0xff]
    %v3191 = vld [vmem:[#allocation11 + $0x2e0] sm:$0xff]
    %v3192 = vld [vmem:[#allocation11 + $0x2e8] sm:$0xff]
    %v3193 = vld [vmem:[#allocation11 + $0x2f0] sm:$0xff]
    %v3194 = vld [vmem:[#allocation11 + $0x2f8] sm:$0xff]
    %v3195 = vld [vmem:[#allocation11 + $0x300] sm:$0xff]
    %v3196 = vld [vmem:[#allocation11 + $0x308] sm:$0xff]
    %v3197 = vld [vmem:[#allocation11 + $0x310] sm:$0xff]
    %v3198 = vld [vmem:[#allocation11 + $0x318] sm:$0xff]
    %v3199 = vld [vmem:[#allocation11 + $0x320] sm:$0xff]
    %v3200 = vld [vmem:[#allocation11 + $0x328] sm:$0xff]
    %v3201 = vld [vmem:[#allocation11 + $0x330] sm:$0xff]
    %v3202 = vld [vmem:[#allocation11 + $0x338] sm:$0xff]
    %v3203 = vld [vmem:[#allocation11 + $0x340] sm:$0xff]
    %v3204 = vld [vmem:[#allocation11 + $0x348] sm:$0xff]
    %v3205 = vld [vmem:[#allocation11 + $0x350] sm:$0xff]
    %v3206 = vld [vmem:[#allocation11 + $0x358] sm:$0xff]
    %v3207 = vld [vmem:[#allocation11 + $0x360] sm:$0xff]
    %v3208 = vld [vmem:[#allocation11 + $0x368] sm:$0xff]
    %v3209 = vld [vmem:[#allocation11 + $0x370] sm:$0xff]
    %v3210 = vld [vmem:[#allocation11 + $0x378] sm:$0xff]
    %v3211 = vld [vmem:[#allocation11 + $0x380] sm:$0xff]
    %v3212 = vld [vmem:[#allocation11 + $0x388] sm:$0xff]
    %v3213 = vld [vmem:[#allocation11 + $0x390] sm:$0xff]
    %v3214 = vld [vmem:[#allocation11 + $0x398] sm:$0xff]
    %v3215 = vld [vmem:[#allocation11 + $0x3a0] sm:$0xff]
    %v3216 = vld [vmem:[#allocation11 + $0x3a8] sm:$0xff]
    %v3217 = vld [vmem:[#allocation11 + $0x3b0] sm:$0xff]
    %v3218 = vld [vmem:[#allocation11 + $0x3b8] sm:$0xff]
    %v3219 = vld [vmem:[#allocation11 + $0x3c0] sm:$0xff]
    %v3220 = vld [vmem:[#allocation11 + $0x3c8] sm:$0xff]
    %v3221 = vld [vmem:[#allocation11 + $0x3d0] sm:$0xff]
    %v3222 = vld [vmem:[#allocation11 + $0x3d8] sm:$0xff]
    %v3223 = vld [vmem:[#allocation11 + $0x3e0] sm:$0xff]
    %v3224 = vld [vmem:[#allocation11 + $0x3e8] sm:$0xff]
    %v3225 = vld [vmem:[#allocation11 + $0x3f0] sm:$0xff]
    %v3226 = vld [vmem:[#allocation11 + $0x3f8] sm:$0xff]
    %v3227 = vld [vmem:[#allocation11 + $0x400] sm:$0xff]
    %v3228 = vld [vmem:[#allocation11 + $0x408] sm:$0xff]
    %v3229 = vld [vmem:[#allocation11 + $0x410] sm:$0xff]
    %v3230 = vld [vmem:[#allocation11 + $0x418] sm:$0xff]
    %v3231 = vld [vmem:[#allocation11 + $0x420] sm:$0xff]
    %v3232 = vld [vmem:[#allocation11 + $0x428] sm:$0xff]
    %v3233 = vld [vmem:[#allocation11 + $0x430] sm:$0xff]
    %v3234 = vld [vmem:[#allocation11 + $0x438] sm:$0xff]
    %v3235 = vld [vmem:[#allocation11 + $0x440] sm:$0xff]
    %v3236 = vld [vmem:[#allocation11 + $0x448] sm:$0xff]
    %v3237 = vld [vmem:[#allocation11 + $0x450] sm:$0xff]
    %v3238 = vld [vmem:[#allocation11 + $0x458] sm:$0xff]
    %v3239 = vld [vmem:[#allocation11 + $0x460] sm:$0xff]
    %v3240 = vld [vmem:[#allocation11 + $0x468] sm:$0xff]
    %v3241 = vld [vmem:[#allocation11 + $0x470] sm:$0xff]
    %v3242 = vld [vmem:[#allocation11 + $0x478] sm:$0xff]
    %v3243 = vld [vmem:[#allocation11 + $0x480] sm:$0xff]
    %v3244 = vld [vmem:[#allocation11 + $0x488] sm:$0xff]
    %v3245 = vld [vmem:[#allocation11 + $0x490] sm:$0xff]
    %v3246 = vld [vmem:[#allocation11 + $0x498] sm:$0xff]
    %v3247 = vld [vmem:[#allocation11 + $0x4a0] sm:$0xff]
    %v3248 = vld [vmem:[#allocation11 + $0x4a8] sm:$0xff]
    %v3249 = vld [vmem:[#allocation11 + $0x4b0] sm:$0xff]
    %v3250 = vld [vmem:[#allocation11 + $0x4b8] sm:$0xff]
    %v3251 = vld [vmem:[#allocation11 + $0x4c0] sm:$0xff]
    %v3252 = vld [vmem:[#allocation11 + $0x4c8] sm:$0xff]
    %v3253 = vld [vmem:[#allocation11 + $0x4d0] sm:$0xff]
    %v3254 = vld [vmem:[#allocation11 + $0x4d8] sm:$0xff]
    %v3255 = vld [vmem:[#allocation11 + $0x4e0] sm:$0xff]
    %v3256 = vld [vmem:[#allocation11 + $0x4e8] sm:$0xff]
    %v3257 = vld [vmem:[#allocation11 + $0x4f0] sm:$0xff]
    %v3258 = vld [vmem:[#allocation11 + $0x4f8] sm:$0xff]
    %v3259 = vld [vmem:[#allocation11 + $0x500] sm:$0xff]
    %v3260 = vld [vmem:[#allocation11 + $0x508] sm:$0xff]
    %v3261 = vld [vmem:[#allocation11 + $0x510] sm:$0xff]
    %v3262 = vld [vmem:[#allocation11 + $0x518] sm:$0xff]
    %v3263 = vld [vmem:[#allocation11 + $0x520] sm:$0xff]
    %v3264 = vld [vmem:[#allocation11 + $0x528] sm:$0xff]
    %v3265 = vld [vmem:[#allocation11 + $0x530] sm:$0xff]
    %v3266 = vld [vmem:[#allocation11 + $0x538] sm:$0xff]
    %v3267 = vld [vmem:[#allocation11 + $0x540] sm:$0xff]
    %v3268 = vld [vmem:[#allocation11 + $0x548] sm:$0xff]
    %v3269 = vld [vmem:[#allocation11 + $0x550] sm:$0xff]
    %v3270 = vld [vmem:[#allocation11 + $0x558] sm:$0xff]
    %v3271 = vld [vmem:[#allocation11 + $0x560] sm:$0xff]
    %v3272 = vld [vmem:[#allocation11 + $0x568] sm:$0xff]
    %v3273 = vld [vmem:[#allocation11 + $0x570] sm:$0xff]
    %v3274 = vld [vmem:[#allocation11 + $0x578] sm:$0xff]
    %v3275 = vld [vmem:[#allocation11 + $0x580] sm:$0xff]
    %v3276 = vld [vmem:[#allocation11 + $0x588] sm:$0xff]
    %v3277 = vld [vmem:[#allocation11 + $0x590] sm:$0xff]
    %v3278 = vld [vmem:[#allocation11 + $0x598] sm:$0xff]
    %v3279 = vld [vmem:[#allocation11 + $0x5a0] sm:$0xff]
    %v3280 = vld [vmem:[#allocation11 + $0x5a8] sm:$0xff]
    %v3281 = vld [vmem:[#allocation11 + $0x5b0] sm:$0xff]
    %v3282 = vld [vmem:[#allocation11 + $0x5b8] sm:$0xff]
    %v3283 = vld [vmem:[#allocation11 + $0x5c0] sm:$0xff]
    %v3284 = vld [vmem:[#allocation11 + $0x5c8] sm:$0xff]
    %v3285 = vld [vmem:[#allocation11 + $0x5d0] sm:$0xff]
    %v3286 = vld [vmem:[#allocation11 + $0x5d8] sm:$0xff]
    %v3287 = vld [vmem:[#allocation11 + $0x5e0] sm:$0xff]
    %v3288 = vld [vmem:[#allocation11 + $0x5e8] sm:$0xff]
    %v3289 = vld [vmem:[#allocation11 + $0x5f0] sm:$0xff]
    %v3290 = vld [vmem:[#allocation11 + $0x5f8] sm:$0xff]
    %v3291 = vld [vmem:[#allocation11 + $0x600] sm:$0xff]
    %v3292 = vld [vmem:[#allocation11 + $0x608] sm:$0xff]
    %v3293 = vld [vmem:[#allocation11 + $0x610] sm:$0xff]
    %v3294 = vld [vmem:[#allocation11 + $0x618] sm:$0xff]
    %v3295 = vld [vmem:[#allocation11 + $0x620] sm:$0xff]
    %v3296 = vld [vmem:[#allocation11 + $0x628] sm:$0xff]
    %v3297 = vld [vmem:[#allocation11 + $0x630] sm:$0xff]
    %v3298 = vld [vmem:[#allocation11 + $0x638] sm:$0xff]
    %v3299 = vld [vmem:[#allocation11 + $0x640] sm:$0xff]
    %v3300 = vld [vmem:[#allocation11 + $0x648] sm:$0xff]
    %v3301 = vld [vmem:[#allocation11 + $0x650] sm:$0xff]
    %v3302 = vld [vmem:[#allocation11 + $0x658] sm:$0xff]
    %v3303 = vld [vmem:[#allocation11 + $0x660] sm:$0xff]
    %v3304 = vld [vmem:[#allocation11 + $0x668] sm:$0xff]
    %v3305 = vld [vmem:[#allocation11 + $0x670] sm:$0xff]
    %v3306 = vld [vmem:[#allocation11 + $0x678] sm:$0xff]
    %v3307 = vld [vmem:[#allocation11 + $0x680] sm:$0xff]
    %v3308 = vld [vmem:[#allocation11 + $0x688] sm:$0xff]
    %v3309 = vld [vmem:[#allocation11 + $0x690] sm:$0xff]
    %v3310 = vld [vmem:[#allocation11 + $0x698] sm:$0xff]
    %v3311 = vld [vmem:[#allocation11 + $0x6a0] sm:$0xff]
    %v3312 = vld [vmem:[#allocation11 + $0x6a8] sm:$0xff]
    %v3313 = vld [vmem:[#allocation11 + $0x6b0] sm:$0xff]
    %v3314 = vld [vmem:[#allocation11 + $0x6b8] sm:$0xff]
    %v3315 = vld [vmem:[#allocation11 + $0x6c0] sm:$0xff]
    %v3316 = vld [vmem:[#allocation11 + $0x6c8] sm:$0xff]
    %v3317 = vld [vmem:[#allocation11 + $0x6d0] sm:$0xff]
    %v3318 = vld [vmem:[#allocation11 + $0x6d8] sm:$0xff]
    %v3319 = vld [vmem:[#allocation11 + $0x6e0] sm:$0xff]
    %v3320 = vld [vmem:[#allocation11 + $0x6e8] sm:$0xff]
    %v3321 = vld [vmem:[#allocation11 + $0x6f0] sm:$0xff]
    %v3322 = vld [vmem:[#allocation11 + $0x6f8] sm:$0xff]
    %v3323 = vld [vmem:[#allocation11 + $0x700] sm:$0xff]
    %v3324 = vld [vmem:[#allocation11 + $0x708] sm:$0xff]
    %v3325 = vld [vmem:[#allocation11 + $0x710] sm:$0xff]
    %v3326 = vld [vmem:[#allocation11 + $0x718] sm:$0xff]
    %v3327 = vld [vmem:[#allocation11 + $0x720] sm:$0xff]
    %v3328 = vld [vmem:[#allocation11 + $0x728] sm:$0xff]
    %v3329 = vld [vmem:[#allocation11 + $0x730] sm:$0xff]
    %v3330 = vld [vmem:[#allocation11 + $0x738] sm:$0xff]
    %v3331 = vld [vmem:[#allocation11 + $0x740] sm:$0xff]
    %v3332 = vld [vmem:[#allocation11 + $0x748] sm:$0xff]
    %v3333 = vld [vmem:[#allocation11 + $0x750] sm:$0xff]
    %v3334 = vld [vmem:[#allocation11 + $0x758] sm:$0xff]
    %v3335 = vld [vmem:[#allocation11 + $0x760] sm:$0xff]
    %v3336 = vld [vmem:[#allocation11 + $0x768] sm:$0xff]
    %v3337 = vld [vmem:[#allocation11 + $0x770] sm:$0xff]
    %v3338 = vld [vmem:[#allocation11 + $0x778] sm:$0xff]
    %v3339 = vld [vmem:[#allocation11 + $0x780] sm:$0xff]
    %v3340 = vld [vmem:[#allocation11 + $0x788] sm:$0xff]
    %v3341 = vld [vmem:[#allocation11 + $0x790] sm:$0xff]
    %v3342 = vld [vmem:[#allocation11 + $0x798] sm:$0xff]
    %v3343 = vld [vmem:[#allocation11 + $0x7a0] sm:$0xff]
    %v3344 = vld [vmem:[#allocation11 + $0x7a8] sm:$0xff]
    %v3345 = vld [vmem:[#allocation11 + $0x7b0] sm:$0xff]
    %v3346 = vld [vmem:[#allocation11 + $0x7b8] sm:$0xff]
    %v3347 = vld [vmem:[#allocation11 + $0x7c0] sm:$0xff]
    %v3348 = vld [vmem:[#allocation11 + $0x7c8] sm:$0xff]
    %v3349 = vld [vmem:[#allocation11 + $0x7d0] sm:$0xff]
    %v3350 = vld [vmem:[#allocation11 + $0x7d8] sm:$0xff]
    %v3351 = vld [vmem:[#allocation11 + $0x7e0] sm:$0xff]
    %v3352 = vld [vmem:[#allocation11 + $0x7e8] sm:$0xff]
    %v3353 = vld [vmem:[#allocation11 + $0x7f0] sm:$0xff]
    %v3354 = vld [vmem:[#allocation11 + $0x7f8] sm:$0xff]
    %v3355 = vld [vmem:[#allocation11 + $0x800] sm:$0xff]
    %v3356 = vld [vmem:[#allocation11 + $0x808] sm:$0xff]
    %v3357 = vld [vmem:[#allocation11 + $0x810] sm:$0xff]
    %v3358 = vld [vmem:[#allocation11 + $0x818] sm:$0xff]
    %v3359 = vld [vmem:[#allocation11 + $0x820] sm:$0xff]
    %v3360 = vld [vmem:[#allocation11 + $0x828] sm:$0xff]
    %v3361 = vld [vmem:[#allocation11 + $0x830] sm:$0xff]
    %v3362 = vld [vmem:[#allocation11 + $0x838] sm:$0xff]
    %v3363 = vld [vmem:[#allocation11 + $0x840] sm:$0xff]
    %v3364 = vld [vmem:[#allocation11 + $0x848] sm:$0xff]
    %v3365 = vld [vmem:[#allocation11 + $0x850] sm:$0xff]
    %v3366 = vld [vmem:[#allocation11 + $0x858] sm:$0xff]
    %v3367 = vld [vmem:[#allocation11 + $0x860] sm:$0xff]
    %v3368 = vld [vmem:[#allocation11 + $0x868] sm:$0xff]
    %v3369 = vld [vmem:[#allocation11 + $0x870] sm:$0xff]
    %v3370 = vld [vmem:[#allocation11 + $0x878] sm:$0xff]
    %v3371 = vld [vmem:[#allocation11 + $0x880] sm:$0xff]
    %v3372 = vld [vmem:[#allocation11 + $0x888] sm:$0xff]
    %v3373 = vld [vmem:[#allocation11 + $0x890] sm:$0xff]
    %v3374 = vld [vmem:[#allocation11 + $0x898] sm:$0xff]
    %v3375 = vld [vmem:[#allocation11 + $0x8a0] sm:$0xff]
    %v3376 = vld [vmem:[#allocation11 + $0x8a8] sm:$0xff]
    %v3377 = vld [vmem:[#allocation11 + $0x8b0] sm:$0xff]
    %v3378 = vld [vmem:[#allocation11 + $0x8b8] sm:$0xff]
    %v3379 = vld [vmem:[#allocation11 + $0x8c0] sm:$0xff]
    %v3380 = vld [vmem:[#allocation11 + $0x8c8] sm:$0xff]
    %v3381 = vld [vmem:[#allocation11 + $0x8d0] sm:$0xff]
    %v3382 = vld [vmem:[#allocation11 + $0x8d8] sm:$0xff]
    %v3383 = vld [vmem:[#allocation11 + $0x8e0] sm:$0xff]
    %v3384 = vld [vmem:[#allocation11 + $0x8e8] sm:$0xff]
    %v3385 = vld [vmem:[#allocation11 + $0x8f0] sm:$0xff]
    %v3386 = vld [vmem:[#allocation11 + $0x8f8] sm:$0xff]
    %v3387 = vld [vmem:[#allocation11 + $0x900] sm:$0xff]
    %v3388 = vld [vmem:[#allocation11 + $0x908] sm:$0xff]
    %v3389 = vld [vmem:[#allocation11 + $0x910] sm:$0xff]
    %v3390 = vld [vmem:[#allocation11 + $0x918] sm:$0xff]
    %v3391 = vld [vmem:[#allocation11 + $0x920] sm:$0xff]
    %v3392 = vld [vmem:[#allocation11 + $0x928] sm:$0xff]
    %v3393 = vld [vmem:[#allocation11 + $0x930] sm:$0xff]
    %v3394 = vld [vmem:[#allocation11 + $0x938] sm:$0xff]
    %v3395 = vld [vmem:[#allocation11 + $0x940] sm:$0xff]
    %v3396 = vld [vmem:[#allocation11 + $0x948] sm:$0xff]
    %v3397 = vld [vmem:[#allocation11 + $0x950] sm:$0xff]
    %v3398 = vld [vmem:[#allocation11 + $0x958] sm:$0xff]
    %v3399 = vld [vmem:[#allocation11 + $0x960] sm:$0xff]
    %v3400 = vld [vmem:[#allocation11 + $0x968] sm:$0xff]
    %v3401 = vld [vmem:[#allocation11 + $0x970] sm:$0xff]
    %v3402 = vld [vmem:[#allocation11 + $0x978] sm:$0xff]
    %v3403 = vld [vmem:[#allocation11 + $0x980] sm:$0xff]
    %v3404 = vld [vmem:[#allocation11 + $0x988] sm:$0xff]
    %v3405 = vld [vmem:[#allocation11 + $0x990] sm:$0xff]
    %v3406 = vld [vmem:[#allocation11 + $0x998] sm:$0xff]
    %v3407 = vld [vmem:[#allocation11 + $0x9a0] sm:$0xff]
    %v3408 = vld [vmem:[#allocation11 + $0x9a8] sm:$0xff]
    %v3409 = vld [vmem:[#allocation11 + $0x9b0] sm:$0xff]
    %v3410 = vld [vmem:[#allocation11 + $0x9b8] sm:$0xff]
    %v3411 = vld [vmem:[#allocation11 + $0x9c0] sm:$0xff]
    %v3412 = vld [vmem:[#allocation11 + $0x9c8] sm:$0xff]
    %v3413 = vld [vmem:[#allocation11 + $0x9d0] sm:$0xff]
    %v3414 = vld [vmem:[#allocation11 + $0x9d8] sm:$0xff]
    %v3415 = vld [vmem:[#allocation11 + $0x9e0] sm:$0xff]
    %v3416 = vld [vmem:[#allocation11 + $0x9e8] sm:$0xff]
    %v3417 = vld [vmem:[#allocation11 + $0x9f0] sm:$0xff]
    %v3418 = vld [vmem:[#allocation11 + $0x9f8] sm:$0xff]
    %v3419 = vld [vmem:[#allocation11 + $0xa00] sm:$0xff]
    %v3420 = vld [vmem:[#allocation11 + $0xa08] sm:$0xff]
    %v3421 = vld [vmem:[#allocation11 + $0xa10] sm:$0xff]
    %v3422 = vld [vmem:[#allocation11 + $0xa18] sm:$0xff]
    %v3423 = vld [vmem:[#allocation11 + $0xa20] sm:$0xff]
    %v3424 = vld [vmem:[#allocation11 + $0xa28] sm:$0xff]
    %v3425 = vld [vmem:[#allocation11 + $0xa30] sm:$0xff]
    %v3426 = vld [vmem:[#allocation11 + $0xa38] sm:$0xff]
    %v3427 = vld [vmem:[#allocation11 + $0xa40] sm:$0xff]
    %v3428 = vld [vmem:[#allocation11 + $0xa48] sm:$0xff]
    %v3429 = vld [vmem:[#allocation11 + $0xa50] sm:$0xff]
    %v3430 = vld [vmem:[#allocation11 + $0xa58] sm:$0xff]
    %v3431 = vld [vmem:[#allocation11 + $0xa60] sm:$0xff]
    %v3432 = vld [vmem:[#allocation11 + $0xa68] sm:$0xff]
    %v3433 = vld [vmem:[#allocation11 + $0xa70] sm:$0xff]
    %v3434 = vld [vmem:[#allocation11 + $0xa78] sm:$0xff]
    %v3435 = vld [vmem:[#allocation11 + $0xa80] sm:$0xff]
    %v3436 = vld [vmem:[#allocation11 + $0xa88] sm:$0xff]
    %v3437 = vld [vmem:[#allocation11 + $0xa90] sm:$0xff]
    %v3438 = vld [vmem:[#allocation11 + $0xa98] sm:$0xff]
    %v3439 = vld [vmem:[#allocation11 + $0xaa0] sm:$0xff]
    %v3440 = vld [vmem:[#allocation11 + $0xaa8] sm:$0xff]
    %v3441 = vld [vmem:[#allocation11 + $0xab0] sm:$0xff]
    %v3442 = vld [vmem:[#allocation11 + $0xab8] sm:$0xff]
    %v3443 = vld [vmem:[#allocation11 + $0xac0] sm:$0xff]
    %v3444 = vld [vmem:[#allocation11 + $0xac8] sm:$0xff]
    %v3445 = vld [vmem:[#allocation11 + $0xad0] sm:$0xff]
    %v3446 = vld [vmem:[#allocation11 + $0xad8] sm:$0xff]
    %v3447 = vld [vmem:[#allocation11 + $0xae0] sm:$0xff]
    %v3448 = vld [vmem:[#allocation11 + $0xae8] sm:$0xff]
    %v3449 = vld [vmem:[#allocation11 + $0xaf0] sm:$0xff]
    %v3450 = vld [vmem:[#allocation11 + $0xaf8] sm:$0xff]
    %v3451 = vld [vmem:[#allocation11 + $0xb00] sm:$0xff]
    %v3452 = vld [vmem:[#allocation11 + $0xb08] sm:$0xff]
    %v3453 = vld [vmem:[#allocation11 + $0xb10] sm:$0xff]
    %v3454 = vld [vmem:[#allocation11 + $0xb18] sm:$0xff]
    %v3455 = vld [vmem:[#allocation11 + $0xb20] sm:$0xff]
    %v3456 = vld [vmem:[#allocation11 + $0xb28] sm:$0xff]
    %v3457 = vld [vmem:[#allocation11 + $0xb30] sm:$0xff]
    %v3458 = vld [vmem:[#allocation11 + $0xb38] sm:$0xff]
    %v3459 = vld [vmem:[#allocation11 + $0xb40] sm:$0xff]
    %v3460 = vld [vmem:[#allocation11 + $0xb48] sm:$0xff]
    %v3461 = vld [vmem:[#allocation11 + $0xb50] sm:$0xff]
    %v3462 = vld [vmem:[#allocation11 + $0xb58] sm:$0xff]
    %v3463 = vld [vmem:[#allocation11 + $0xb60] sm:$0xff]
    %v3464 = vld [vmem:[#allocation11 + $0xb68] sm:$0xff]
    %v3465 = vld [vmem:[#allocation11 + $0xb70] sm:$0xff]
    %v3466 = vld [vmem:[#allocation11 + $0xb78] sm:$0xff]
    %v3467 = vld [vmem:[#allocation11 + $0xb80] sm:$0xff]
    %v3468 = vld [vmem:[#allocation11 + $0xb88] sm:$0xff]
    %v3469 = vld [vmem:[#allocation11 + $0xb90] sm:$0xff]
    %v3470 = vld [vmem:[#allocation11 + $0xb98] sm:$0xff]
    %v3471 = vld [vmem:[#allocation11 + $0xba0] sm:$0xff]
    %v3472 = vld [vmem:[#allocation11 + $0xba8] sm:$0xff]
    %v3473 = vld [vmem:[#allocation11 + $0xbb0] sm:$0xff]
    %v3474 = vld [vmem:[#allocation11 + $0xbb8] sm:$0xff]
    %v3475 = vld [vmem:[#allocation11 + $0xbc0] sm:$0xff]
    %v3476 = vld [vmem:[#allocation11 + $0xbc8] sm:$0xff]
    %v3477 = vld [vmem:[#allocation11 + $0xbd0] sm:$0xff]
    %v3478 = vld [vmem:[#allocation11 + $0xbd8] sm:$0xff]
    %v3479 = vld [vmem:[#allocation11 + $0xbe0] sm:$0xff]
    %v3480 = vld [vmem:[#allocation11 + $0xbe8] sm:$0xff]
    %v3481 = vld [vmem:[#allocation11 + $0xbf0] sm:$0xff]
    %v3482 = vld [vmem:[#allocation11 + $0xbf8] sm:$0xff]
    %v3483 = vld [vmem:[#allocation11 + $0xc00] sm:$0xff]
    %v3484 = vld [vmem:[#allocation11 + $0xc08] sm:$0xff]
    %v3485 = vld [vmem:[#allocation11 + $0xc10] sm:$0xff]
    %v3486 = vld [vmem:[#allocation11 + $0xc18] sm:$0xff]
    %v3487 = vld [vmem:[#allocation11 + $0xc20] sm:$0xff]
    %v3488 = vld [vmem:[#allocation11 + $0xc28] sm:$0xff]
    %v3489 = vld [vmem:[#allocation11 + $0xc30] sm:$0xff]
    %v3490 = vld [vmem:[#allocation11 + $0xc38] sm:$0xff]
    %v3491 = vld [vmem:[#allocation11 + $0xc40] sm:$0xff]
    %v3492 = vld [vmem:[#allocation11 + $0xc48] sm:$0xff]
    %v3493 = vld [vmem:[#allocation11 + $0xc50] sm:$0xff]
    %v3494 = vld [vmem:[#allocation11 + $0xc58] sm:$0xff]
    %v3495 = vld [vmem:[#allocation11 + $0xc60] sm:$0xff]
    %v3496 = vld [vmem:[#allocation11 + $0xc68] sm:$0xff]
    %v3497 = vld [vmem:[#allocation11 + $0xc70] sm:$0xff]
    %v3498 = vld [vmem:[#allocation11 + $0xc78] sm:$0xff]
    %v3499 = vld [vmem:[#allocation11 + $0xc80] sm:$0xff]
    %v3500 = vld [vmem:[#allocation11 + $0xc88] sm:$0xff]
    %v3501 = vld [vmem:[#allocation11 + $0xc90] sm:$0xff]
    %v3502 = vld [vmem:[#allocation11 + $0xc98] sm:$0xff]
    %v3503 = vld [vmem:[#allocation11 + $0xca0] sm:$0xff]
    %v3504 = vld [vmem:[#allocation11 + $0xca8] sm:$0xff]
    %v3505 = vld [vmem:[#allocation11 + $0xcb0] sm:$0xff]
    %v3506 = vld [vmem:[#allocation11 + $0xcb8] sm:$0xff]
    %v3507 = vld [vmem:[#allocation11 + $0xcc0] sm:$0xff]
    %v3508 = vld [vmem:[#allocation11 + $0xcc8] sm:$0xff]
    %v3509 = vld [vmem:[#allocation11 + $0xcd0] sm:$0xff]
    %v3510 = vld [vmem:[#allocation11 + $0xcd8] sm:$0xff]
    %v3511 = vld [vmem:[#allocation11 + $0xce0] sm:$0xff]
    %v3512 = vld [vmem:[#allocation11 + $0xce8] sm:$0xff]
    %v3513 = vld [vmem:[#allocation11 + $0xcf0] sm:$0xff]
    %v3514 = vld [vmem:[#allocation11 + $0xcf8] sm:$0xff]
    %v3515 = vld [vmem:[#allocation11 + $0xd00] sm:$0xff]
    %v3516 = vld [vmem:[#allocation11 + $0xd08] sm:$0xff]
    %v3517 = vld [vmem:[#allocation11 + $0xd10] sm:$0xff]
    %v3518 = vld [vmem:[#allocation11 + $0xd18] sm:$0xff]
    %v3519 = vld [vmem:[#allocation11 + $0xd20] sm:$0xff]
    %v3520 = vld [vmem:[#allocation11 + $0xd28] sm:$0xff]
    %v3521 = vld [vmem:[#allocation11 + $0xd30] sm:$0xff]
    %v3522 = vld [vmem:[#allocation11 + $0xd38] sm:$0xff]
    %v3523 = vld [vmem:[#allocation11 + $0xd40] sm:$0xff]
    %v3524 = vld [vmem:[#allocation11 + $0xd48] sm:$0xff]
    %v3525 = vld [vmem:[#allocation11 + $0xd50] sm:$0xff]
    %v3526 = vld [vmem:[#allocation11 + $0xd58] sm:$0xff]
    %v3527 = vld [vmem:[#allocation11 + $0xd60] sm:$0xff]
    %v3528 = vld [vmem:[#allocation11 + $0xd68] sm:$0xff]
    %v3529 = vld [vmem:[#allocation11 + $0xd70] sm:$0xff]
    %v3530 = vld [vmem:[#allocation11 + $0xd78] sm:$0xff]
    %v3531 = vld [vmem:[#allocation11 + $0xd80] sm:$0xff]
    %v3532 = vld [vmem:[#allocation11 + $0xd88] sm:$0xff]
    %v3533 = vld [vmem:[#allocation11 + $0xd90] sm:$0xff]
    %v3534 = vld [vmem:[#allocation11 + $0xd98] sm:$0xff]
    %v3535 = vld [vmem:[#allocation11 + $0xda0] sm:$0xff]
    %v3536 = vld [vmem:[#allocation11 + $0xda8] sm:$0xff]
    %v3537 = vld [vmem:[#allocation11 + $0xdb0] sm:$0xff]
    %v3538 = vld [vmem:[#allocation11 + $0xdb8] sm:$0xff]
    %v3539 = vld [vmem:[#allocation11 + $0xdc0] sm:$0xff]
    %v3540 = vld [vmem:[#allocation11 + $0xdc8] sm:$0xff]
    %v3541 = vld [vmem:[#allocation11 + $0xdd0] sm:$0xff]
    %v3542 = vld [vmem:[#allocation11 + $0xdd8] sm:$0xff]
    %v3543 = vld [vmem:[#allocation11 + $0xde0] sm:$0xff]
    %v3544 = vld [vmem:[#allocation11 + $0xde8] sm:$0xff]
    %v3545 = vld [vmem:[#allocation11 + $0xdf0] sm:$0xff]
    %v3546 = vld [vmem:[#allocation11 + $0xdf8] sm:$0xff]
    %v3547 = vld [vmem:[#allocation11 + $0xe00] sm:$0xff]
    %v3548 = vld [vmem:[#allocation11 + $0xe08] sm:$0xff]
    %v3549 = vld [vmem:[#allocation11 + $0xe10] sm:$0xff]
    %v3550 = vld [vmem:[#allocation11 + $0xe18] sm:$0xff]
    %v3551 = vld [vmem:[#allocation11 + $0xe20] sm:$0xff]
    %v3552 = vld [vmem:[#allocation11 + $0xe28] sm:$0xff]
    %v3553 = vld [vmem:[#allocation11 + $0xe30] sm:$0xff]
    %v3554 = vld [vmem:[#allocation11 + $0xe38] sm:$0xff]
    %v3555 = vld [vmem:[#allocation11 + $0xe40] sm:$0xff]
    %v3556 = vld [vmem:[#allocation11 + $0xe48] sm:$0xff]
    %v3557 = vld [vmem:[#allocation11 + $0xe50] sm:$0xff]
    %v3558 = vld [vmem:[#allocation11 + $0xe58] sm:$0xff]
    %v3559 = vld [vmem:[#allocation11 + $0xe60] sm:$0xff]
    %v3560 = vld [vmem:[#allocation11 + $0xe68] sm:$0xff]
    %v3561 = vld [vmem:[#allocation11 + $0xe70] sm:$0xff]
    %v3562 = vld [vmem:[#allocation11 + $0xe78] sm:$0xff]
    %v3563 = vld [vmem:[#allocation11 + $0xe80] sm:$0xff]
    %v3564 = vld [vmem:[#allocation11 + $0xe88] sm:$0xff]
    %v3565 = vld [vmem:[#allocation11 + $0xe90] sm:$0xff]
    %v3566 = vld [vmem:[#allocation11 + $0xe98] sm:$0xff]
    %v3567 = vld [vmem:[#allocation11 + $0xea0] sm:$0xff]
    %v3568 = vld [vmem:[#allocation11 + $0xea8] sm:$0xff]
    %v3569 = vld [vmem:[#allocation11 + $0xeb0] sm:$0xff]
    %v3570 = vld [vmem:[#allocation11 + $0xeb8] sm:$0xff]
    %v3571 = vld [vmem:[#allocation11 + $0xec0] sm:$0xff]
    %v3572 = vld [vmem:[#allocation11 + $0xec8] sm:$0xff]
    %v3573 = vld [vmem:[#allocation11 + $0xed0] sm:$0xff]
    %v3574 = vld [vmem:[#allocation11 + $0xed8] sm:$0xff]
    %v3575 = vld [vmem:[#allocation11 + $0xee0] sm:$0xff]
    %v3576 = vld [vmem:[#allocation11 + $0xee8] sm:$0xff]
    %v3577 = vld [vmem:[#allocation11 + $0xef0] sm:$0xff]
    %v3578 = vld [vmem:[#allocation11 + $0xef8] sm:$0xff]
    %v3579 = vld [vmem:[#allocation11 + $0xf00] sm:$0xff]
    %v3580 = vld [vmem:[#allocation11 + $0xf08] sm:$0xff]
    %v3581 = vld [vmem:[#allocation11 + $0xf10] sm:$0xff]
    %v3582 = vld [vmem:[#allocation11 + $0xf18] sm:$0xff]
    %v3583 = vld [vmem:[#allocation11 + $0xf20] sm:$0xff]
    %v3584 = vld [vmem:[#allocation11 + $0xf28] sm:$0xff]
    %v3585 = vld [vmem:[#allocation11 + $0xf30] sm:$0xff]
    %v3586 = vld [vmem:[#allocation11 + $0xf38] sm:$0xff]
    %v3587 = vld [vmem:[#allocation11 + $0xf40] sm:$0xff]
    %v3588 = vld [vmem:[#allocation11 + $0xf48] sm:$0xff]
    %v3589 = vld [vmem:[#allocation11 + $0xf50] sm:$0xff]
    %v3590 = vld [vmem:[#allocation11 + $0xf58] sm:$0xff]
    %v3591 = vld [vmem:[#allocation11 + $0xf60] sm:$0xff]
    %v3592 = vld [vmem:[#allocation11 + $0xf68] sm:$0xff]
    %v3593 = vld [vmem:[#allocation11 + $0xf70] sm:$0xff]
    %v3594 = vld [vmem:[#allocation11 + $0xf78] sm:$0xff]
    %v3595 = vld [vmem:[#allocation11 + $0xf80] sm:$0xff]
    %v3596 = vld [vmem:[#allocation11 + $0xf88] sm:$0xff]
    %v3597 = vld [vmem:[#allocation11 + $0xf90] sm:$0xff]
    %v3598 = vld [vmem:[#allocation11 + $0xf98] sm:$0xff]
    %v3599 = vld [vmem:[#allocation11 + $0xfa0] sm:$0xff]
    %v3600 = vld [vmem:[#allocation11 + $0xfa8] sm:$0xff]
    %v3601 = vld [vmem:[#allocation11 + $0xfb0] sm:$0xff]
    %v3602 = vld [vmem:[#allocation11 + $0xfb8] sm:$0xff]
    %v3603 = vld [vmem:[#allocation11 + $0xfc0] sm:$0xff]
    %v3604 = vld [vmem:[#allocation11 + $0xfc8] sm:$0xff]
    %v3605 = vld [vmem:[#allocation11 + $0xfd0] sm:$0xff]
    %v3606 = vld [vmem:[#allocation11 + $0xfd8] sm:$0xff]
    %v3607 = vld [vmem:[#allocation11 + $0xfe0] sm:$0xff]
    %v3608 = vld [vmem:[#allocation11 + $0xfe8] sm:$0xff]
    %v3609 = vld [vmem:[#allocation11 + $0xff0] sm:$0xff]
    %v3610 = vld [vmem:[#allocation11 + $0xff8] sm:$0xff]
    %v3611 = vld [vmem:[#allocation13] sm:$0xf]
    %v3613 = vlaneseq
    %v3614 = vshrl.u32 %v3613, 7
    %v3615 = vsub.s32 0, %v3614
    %v3616 = vrot.slane %v3611, %v3615
    %v3617 = vlaneseq
    %v3618 = vshrl.u32 %v3617, 7
    %v3619 = vsub.s32 1, %v3618
    %v3620 = vrot.slane %v3611, %v3619
    %v3621 = vlaneseq
    %v3622 = vshrl.u32 %v3621, 7
    %v3623 = vsub.s32 2, %v3622
    %v3624 = vrot.slane %v3611, %v3623
    %v3625 = vlaneseq
    %v3626 = vshrl.u32 %v3625, 7
    %v3627 = vsub.s32 3, %v3626
    %v3628 = vrot.slane %v3611, %v3627
    %v4145 = vunpack.c.l.b16 %v3099
    %v4146 = vunpack.c.h.b16 %v3099
    %v4147 = vunpack.c.l.b16 %v3100
    %v4148 = vunpack.c.h.b16 %v3100
    %v4149 = vunpack.c.l.b16 %v3101
    %v4150 = vunpack.c.h.b16 %v3101
    %v4151 = vunpack.c.l.b16 %v3102
    %v4152 = vunpack.c.h.b16 %v3102
    %v4153 = vunpack.c.l.b16 %v3103
    %v4154 = vunpack.c.h.b16 %v3103
    %v4155 = vunpack.c.l.b16 %v3104
    %v4156 = vunpack.c.h.b16 %v3104
    %v4157 = vunpack.c.l.b16 %v3105
    %v4158 = vunpack.c.h.b16 %v3105
    %v4159 = vunpack.c.l.b16 %v3106
    %v4160 = vunpack.c.h.b16 %v3106
    %v4161 = vunpack.c.l.b16 %v3107
    %v4162 = vunpack.c.h.b16 %v3107
    %v4163 = vunpack.c.l.b16 %v3108
    %v4164 = vunpack.c.h.b16 %v3108
    %v4165 = vunpack.c.l.b16 %v3109
    %v4166 = vunpack.c.h.b16 %v3109
    %v4167 = vunpack.c.l.b16 %v3110
    %v4168 = vunpack.c.h.b16 %v3110
    %v4169 = vunpack.c.l.b16 %v3111
    %v4170 = vunpack.c.h.b16 %v3111
    %v4171 = vunpack.c.l.b16 %v3112
    %v4172 = vunpack.c.h.b16 %v3112
    %v4173 = vunpack.c.l.b16 %v3113
    %v4174 = vunpack.c.h.b16 %v3113
    %v4175 = vunpack.c.l.b16 %v3114
    %v4176 = vunpack.c.h.b16 %v3114
    %v4177 = vunpack.c.l.b16 %v3115
    %v4178 = vunpack.c.h.b16 %v3115
    %v4179 = vunpack.c.l.b16 %v3116
    %v4180 = vunpack.c.h.b16 %v3116
    %v4181 = vunpack.c.l.b16 %v3117
    %v4182 = vunpack.c.h.b16 %v3117
    %v4183 = vunpack.c.l.b16 %v3118
    %v4184 = vunpack.c.h.b16 %v3118
    %v4185 = vunpack.c.l.b16 %v3119
    %v4186 = vunpack.c.h.b16 %v3119
    %v4187 = vunpack.c.l.b16 %v3120
    %v4188 = vunpack.c.h.b16 %v3120
    %v4189 = vunpack.c.l.b16 %v3121
    %v4190 = vunpack.c.h.b16 %v3121
    %v4191 = vunpack.c.l.b16 %v3122
    %v4192 = vunpack.c.h.b16 %v3122
    %v4193 = vunpack.c.l.b16 %v3123
    %v4194 = vunpack.c.h.b16 %v3123
    %v4195 = vunpack.c.l.b16 %v3124
    %v4196 = vunpack.c.h.b16 %v3124
    %v4197 = vunpack.c.l.b16 %v3125
    %v4198 = vunpack.c.h.b16 %v3125
    %v4199 = vunpack.c.l.b16 %v3126
    %v4200 = vunpack.c.h.b16 %v3126
    %v4201 = vunpack.c.l.b16 %v3127
    %v4202 = vunpack.c.h.b16 %v3127
    %v4203 = vunpack.c.l.b16 %v3128
    %v4204 = vunpack.c.h.b16 %v3128
    %v4205 = vunpack.c.l.b16 %v3129
    %v4206 = vunpack.c.h.b16 %v3129
    %v4207 = vunpack.c.l.b16 %v3130
    %v4208 = vunpack.c.h.b16 %v3130
    %v4209 = vunpack.c.l.b16 %v3131
    %v4210 = vunpack.c.h.b16 %v3131
    %v4211 = vunpack.c.l.b16 %v3132
    %v4212 = vunpack.c.h.b16 %v3132
    %v4213 = vunpack.c.l.b16 %v3133
    %v4214 = vunpack.c.h.b16 %v3133
    %v4215 = vunpack.c.l.b16 %v3134
    %v4216 = vunpack.c.h.b16 %v3134
    %v4217 = vunpack.c.l.b16 %v3135
    %v4218 = vunpack.c.h.b16 %v3135
    %v4219 = vunpack.c.l.b16 %v3136
    %v4220 = vunpack.c.h.b16 %v3136
    %v4221 = vunpack.c.l.b16 %v3137
    %v4222 = vunpack.c.h.b16 %v3137
    %v4223 = vunpack.c.l.b16 %v3138
    %v4224 = vunpack.c.h.b16 %v3138
    %v4225 = vunpack.c.l.b16 %v3139
    %v4226 = vunpack.c.h.b16 %v3139
    %v4227 = vunpack.c.l.b16 %v3140
    %v4228 = vunpack.c.h.b16 %v3140
    %v4229 = vunpack.c.l.b16 %v3141
    %v4230 = vunpack.c.h.b16 %v3141
    %v4231 = vunpack.c.l.b16 %v3142
    %v4232 = vunpack.c.h.b16 %v3142
    %v4233 = vunpack.c.l.b16 %v3143
    %v4234 = vunpack.c.h.b16 %v3143
    %v4235 = vunpack.c.l.b16 %v3144
    %v4236 = vunpack.c.h.b16 %v3144
    %v4237 = vunpack.c.l.b16 %v3145
    %v4238 = vunpack.c.h.b16 %v3145
    %v4239 = vunpack.c.l.b16 %v3146
    %v4240 = vunpack.c.h.b16 %v3146
    %v4241 = vunpack.c.l.b16 %v3147
    %v4242 = vunpack.c.h.b16 %v3147
    %v4243 = vunpack.c.l.b16 %v3148
    %v4244 = vunpack.c.h.b16 %v3148
    %v4245 = vunpack.c.l.b16 %v3149
    %v4246 = vunpack.c.h.b16 %v3149
    %v4247 = vunpack.c.l.b16 %v3150
    %v4248 = vunpack.c.h.b16 %v3150
    %v4249 = vunpack.c.l.b16 %v3151
    %v4250 = vunpack.c.h.b16 %v3151
    %v4251 = vunpack.c.l.b16 %v3152
    %v4252 = vunpack.c.h.b16 %v3152
    %v4253 = vunpack.c.l.b16 %v3153
    %v4254 = vunpack.c.h.b16 %v3153
    %v4255 = vunpack.c.l.b16 %v3154
    %v4256 = vunpack.c.h.b16 %v3154
    %v4257 = vunpack.c.l.b16 %v3155
    %v4258 = vunpack.c.h.b16 %v3155
    %v4259 = vunpack.c.l.b16 %v3156
    %v4260 = vunpack.c.h.b16 %v3156
    %v4261 = vunpack.c.l.b16 %v3157
    %v4262 = vunpack.c.h.b16 %v3157
    %v4263 = vunpack.c.l.b16 %v3158
    %v4264 = vunpack.c.h.b16 %v3158
    %v4265 = vunpack.c.l.b16 %v3159
    %v4266 = vunpack.c.h.b16 %v3159
    %v4267 = vunpack.c.l.b16 %v3160
    %v4268 = vunpack.c.h.b16 %v3160
    %v4269 = vunpack.c.l.b16 %v3161
    %v4270 = vunpack.c.h.b16 %v3161
    %v4271 = vunpack.c.l.b16 %v3162
    %v4272 = vunpack.c.h.b16 %v3162
    %v4273 = vunpack.c.l.b16 %v3163
    %v4274 = vunpack.c.h.b16 %v3163
    %v4275 = vunpack.c.l.b16 %v3164
    %v4276 = vunpack.c.h.b16 %v3164
    %v4277 = vunpack.c.l.b16 %v3165
    %v4278 = vunpack.c.h.b16 %v3165
    %v4279 = vunpack.c.l.b16 %v3166
    %v4280 = vunpack.c.h.b16 %v3166
    %v4281 = vunpack.c.l.b16 %v3167
    %v4282 = vunpack.c.h.b16 %v3167
    %v4283 = vunpack.c.l.b16 %v3168
    %v4284 = vunpack.c.h.b16 %v3168
    %v4285 = vunpack.c.l.b16 %v3169
    %v4286 = vunpack.c.h.b16 %v3169
    %v4287 = vunpack.c.l.b16 %v3170
    %v4288 = vunpack.c.h.b16 %v3170
    %v4289 = vunpack.c.l.b16 %v3171
    %v4290 = vunpack.c.h.b16 %v3171
    %v4291 = vunpack.c.l.b16 %v3172
    %v4292 = vunpack.c.h.b16 %v3172
    %v4293 = vunpack.c.l.b16 %v3173
    %v4294 = vunpack.c.h.b16 %v3173
    %v4295 = vunpack.c.l.b16 %v3174
    %v4296 = vunpack.c.h.b16 %v3174
    %v4297 = vunpack.c.l.b16 %v3175
    %v4298 = vunpack.c.h.b16 %v3175
    %v4299 = vunpack.c.l.b16 %v3176
    %v4300 = vunpack.c.h.b16 %v3176
    %v4301 = vunpack.c.l.b16 %v3177
    %v4302 = vunpack.c.h.b16 %v3177
    %v4303 = vunpack.c.l.b16 %v3178
    %v4304 = vunpack.c.h.b16 %v3178
    %v4305 = vunpack.c.l.b16 %v3179
    %v4306 = vunpack.c.h.b16 %v3179
    %v4307 = vunpack.c.l.b16 %v3180
    %v4308 = vunpack.c.h.b16 %v3180
    %v4309 = vunpack.c.l.b16 %v3181
    %v4310 = vunpack.c.h.b16 %v3181
    %v4311 = vunpack.c.l.b16 %v3182
    %v4312 = vunpack.c.h.b16 %v3182
    %v4313 = vunpack.c.l.b16 %v3183
    %v4314 = vunpack.c.h.b16 %v3183
    %v4315 = vunpack.c.l.b16 %v3184
    %v4316 = vunpack.c.h.b16 %v3184
    %v4317 = vunpack.c.l.b16 %v3185
    %v4318 = vunpack.c.h.b16 %v3185
    %v4319 = vunpack.c.l.b16 %v3186
    %v4320 = vunpack.c.h.b16 %v3186
    %v4321 = vunpack.c.l.b16 %v3187
    %v4322 = vunpack.c.h.b16 %v3187
    %v4323 = vunpack.c.l.b16 %v3188
    %v4324 = vunpack.c.h.b16 %v3188
    %v4325 = vunpack.c.l.b16 %v3189
    %v4326 = vunpack.c.h.b16 %v3189
    %v4327 = vunpack.c.l.b16 %v3190
    %v4328 = vunpack.c.h.b16 %v3190
    %v4329 = vunpack.c.l.b16 %v3191
    %v4330 = vunpack.c.h.b16 %v3191
    %v4331 = vunpack.c.l.b16 %v3192
    %v4332 = vunpack.c.h.b16 %v3192
    %v4333 = vunpack.c.l.b16 %v3193
    %v4334 = vunpack.c.h.b16 %v3193
    %v4335 = vunpack.c.l.b16 %v3194
    %v4336 = vunpack.c.h.b16 %v3194
    %v4337 = vunpack.c.l.b16 %v3195
    %v4338 = vunpack.c.h.b16 %v3195
    %v4339 = vunpack.c.l.b16 %v3196
    %v4340 = vunpack.c.h.b16 %v3196
    %v4341 = vunpack.c.l.b16 %v3197
    %v4342 = vunpack.c.h.b16 %v3197
    %v4343 = vunpack.c.l.b16 %v3198
    %v4344 = vunpack.c.h.b16 %v3198
    %v4345 = vunpack.c.l.b16 %v3199
    %v4346 = vunpack.c.h.b16 %v3199
    %v4347 = vunpack.c.l.b16 %v3200
    %v4348 = vunpack.c.h.b16 %v3200
    %v4349 = vunpack.c.l.b16 %v3201
    %v4350 = vunpack.c.h.b16 %v3201
    %v4351 = vunpack.c.l.b16 %v3202
    %v4352 = vunpack.c.h.b16 %v3202
    %v4353 = vunpack.c.l.b16 %v3203
    %v4354 = vunpack.c.h.b16 %v3203
    %v4355 = vunpack.c.l.b16 %v3204
    %v4356 = vunpack.c.h.b16 %v3204
    %v4357 = vunpack.c.l.b16 %v3205
    %v4358 = vunpack.c.h.b16 %v3205
    %v4359 = vunpack.c.l.b16 %v3206
    %v4360 = vunpack.c.h.b16 %v3206
    %v4361 = vunpack.c.l.b16 %v3207
    %v4362 = vunpack.c.h.b16 %v3207
    %v4363 = vunpack.c.l.b16 %v3208
    %v4364 = vunpack.c.h.b16 %v3208
    %v4365 = vunpack.c.l.b16 %v3209
    %v4366 = vunpack.c.h.b16 %v3209
    %v4367 = vunpack.c.l.b16 %v3210
    %v4368 = vunpack.c.h.b16 %v3210
    %v4369 = vunpack.c.l.b16 %v3211
    %v4370 = vunpack.c.h.b16 %v3211
    %v4371 = vunpack.c.l.b16 %v3212
    %v4372 = vunpack.c.h.b16 %v3212
    %v4373 = vunpack.c.l.b16 %v3213
    %v4374 = vunpack.c.h.b16 %v3213
    %v4375 = vunpack.c.l.b16 %v3214
    %v4376 = vunpack.c.h.b16 %v3214
    %v4377 = vunpack.c.l.b16 %v3215
    %v4378 = vunpack.c.h.b16 %v3215
    %v4379 = vunpack.c.l.b16 %v3216
    %v4380 = vunpack.c.h.b16 %v3216
    %v4381 = vunpack.c.l.b16 %v3217
    %v4382 = vunpack.c.h.b16 %v3217
    %v4383 = vunpack.c.l.b16 %v3218
    %v4384 = vunpack.c.h.b16 %v3218
    %v4385 = vunpack.c.l.b16 %v3219
    %v4386 = vunpack.c.h.b16 %v3219
    %v4387 = vunpack.c.l.b16 %v3220
    %v4388 = vunpack.c.h.b16 %v3220
    %v4389 = vunpack.c.l.b16 %v3221
    %v4390 = vunpack.c.h.b16 %v3221
    %v4391 = vunpack.c.l.b16 %v3222
    %v4392 = vunpack.c.h.b16 %v3222
    %v4393 = vunpack.c.l.b16 %v3223
    %v4394 = vunpack.c.h.b16 %v3223
    %v4395 = vunpack.c.l.b16 %v3224
    %v4396 = vunpack.c.h.b16 %v3224
    %v4397 = vunpack.c.l.b16 %v3225
    %v4398 = vunpack.c.h.b16 %v3225
    %v4399 = vunpack.c.l.b16 %v3226
    %v4400 = vunpack.c.h.b16 %v3226
    %v4401 = vunpack.c.l.b16 %v3227
    %v4402 = vunpack.c.h.b16 %v3227
    %v4403 = vunpack.c.l.b16 %v3228
    %v4404 = vunpack.c.h.b16 %v3228
    %v4405 = vunpack.c.l.b16 %v3229
    %v4406 = vunpack.c.h.b16 %v3229
    %v4407 = vunpack.c.l.b16 %v3230
    %v4408 = vunpack.c.h.b16 %v3230
    %v4409 = vunpack.c.l.b16 %v3231
    %v4410 = vunpack.c.h.b16 %v3231
    %v4411 = vunpack.c.l.b16 %v3232
    %v4412 = vunpack.c.h.b16 %v3232
    %v4413 = vunpack.c.l.b16 %v3233
    %v4414 = vunpack.c.h.b16 %v3233
    %v4415 = vunpack.c.l.b16 %v3234
    %v4416 = vunpack.c.h.b16 %v3234
    %v4417 = vunpack.c.l.b16 %v3235
    %v4418 = vunpack.c.h.b16 %v3235
    %v4419 = vunpack.c.l.b16 %v3236
    %v4420 = vunpack.c.h.b16 %v3236
    %v4421 = vunpack.c.l.b16 %v3237
    %v4422 = vunpack.c.h.b16 %v3237
    %v4423 = vunpack.c.l.b16 %v3238
    %v4424 = vunpack.c.h.b16 %v3238
    %v4425 = vunpack.c.l.b16 %v3239
    %v4426 = vunpack.c.h.b16 %v3239
    %v4427 = vunpack.c.l.b16 %v3240
    %v4428 = vunpack.c.h.b16 %v3240
    %v4429 = vunpack.c.l.b16 %v3241
    %v4430 = vunpack.c.h.b16 %v3241
    %v4431 = vunpack.c.l.b16 %v3242
    %v4432 = vunpack.c.h.b16 %v3242
    %v4433 = vunpack.c.l.b16 %v3243
    %v4434 = vunpack.c.h.b16 %v3243
    %v4435 = vunpack.c.l.b16 %v3244
    %v4436 = vunpack.c.h.b16 %v3244
    %v4437 = vunpack.c.l.b16 %v3245
    %v4438 = vunpack.c.h.b16 %v3245
    %v4439 = vunpack.c.l.b16 %v3246
    %v4440 = vunpack.c.h.b16 %v3246
    %v4441 = vunpack.c.l.b16 %v3247
    %v4442 = vunpack.c.h.b16 %v3247
    %v4443 = vunpack.c.l.b16 %v3248
    %v4444 = vunpack.c.h.b16 %v3248
    %v4445 = vunpack.c.l.b16 %v3249
    %v4446 = vunpack.c.h.b16 %v3249
    %v4447 = vunpack.c.l.b16 %v3250
    %v4448 = vunpack.c.h.b16 %v3250
    %v4449 = vunpack.c.l.b16 %v3251
    %v4450 = vunpack.c.h.b16 %v3251
    %v4451 = vunpack.c.l.b16 %v3252
    %v4452 = vunpack.c.h.b16 %v3252
    %v4453 = vunpack.c.l.b16 %v3253
    %v4454 = vunpack.c.h.b16 %v3253
    %v4455 = vunpack.c.l.b16 %v3254
    %v4456 = vunpack.c.h.b16 %v3254
    %v4457 = vunpack.c.l.b16 %v3255
    %v4458 = vunpack.c.h.b16 %v3255
    %v4459 = vunpack.c.l.b16 %v3256
    %v4460 = vunpack.c.h.b16 %v3256
    %v4461 = vunpack.c.l.b16 %v3257
    %v4462 = vunpack.c.h.b16 %v3257
    %v4463 = vunpack.c.l.b16 %v3258
    %v4464 = vunpack.c.h.b16 %v3258
    %v4465 = vunpack.c.l.b16 %v3259
    %v4466 = vunpack.c.h.b16 %v3259
    %v4467 = vunpack.c.l.b16 %v3260
    %v4468 = vunpack.c.h.b16 %v3260
    %v4469 = vunpack.c.l.b16 %v3261
    %v4470 = vunpack.c.h.b16 %v3261
    %v4471 = vunpack.c.l.b16 %v3262
    %v4472 = vunpack.c.h.b16 %v3262
    %v4473 = vunpack.c.l.b16 %v3263
    %v4474 = vunpack.c.h.b16 %v3263
    %v4475 = vunpack.c.l.b16 %v3264
    %v4476 = vunpack.c.h.b16 %v3264
    %v4477 = vunpack.c.l.b16 %v3265
    %v4478 = vunpack.c.h.b16 %v3265
    %v4479 = vunpack.c.l.b16 %v3266
    %v4480 = vunpack.c.h.b16 %v3266
    %v4481 = vunpack.c.l.b16 %v3267
    %v4482 = vunpack.c.h.b16 %v3267
    %v4483 = vunpack.c.l.b16 %v3268
    %v4484 = vunpack.c.h.b16 %v3268
    %v4485 = vunpack.c.l.b16 %v3269
    %v4486 = vunpack.c.h.b16 %v3269
    %v4487 = vunpack.c.l.b16 %v3270
    %v4488 = vunpack.c.h.b16 %v3270
    %v4489 = vunpack.c.l.b16 %v3271
    %v4490 = vunpack.c.h.b16 %v3271
    %v4491 = vunpack.c.l.b16 %v3272
    %v4492 = vunpack.c.h.b16 %v3272
    %v4493 = vunpack.c.l.b16 %v3273
    %v4494 = vunpack.c.h.b16 %v3273
    %v4495 = vunpack.c.l.b16 %v3274
    %v4496 = vunpack.c.h.b16 %v3274
    %v4497 = vunpack.c.l.b16 %v3275
    %v4498 = vunpack.c.h.b16 %v3275
    %v4499 = vunpack.c.l.b16 %v3276
    %v4500 = vunpack.c.h.b16 %v3276
    %v4501 = vunpack.c.l.b16 %v3277
    %v4502 = vunpack.c.h.b16 %v3277
    %v4503 = vunpack.c.l.b16 %v3278
    %v4504 = vunpack.c.h.b16 %v3278
    %v4505 = vunpack.c.l.b16 %v3279
    %v4506 = vunpack.c.h.b16 %v3279
    %v4507 = vunpack.c.l.b16 %v3280
    %v4508 = vunpack.c.h.b16 %v3280
    %v4509 = vunpack.c.l.b16 %v3281
    %v4510 = vunpack.c.h.b16 %v3281
    %v4511 = vunpack.c.l.b16 %v3282
    %v4512 = vunpack.c.h.b16 %v3282
    %v4513 = vunpack.c.l.b16 %v3283
    %v4514 = vunpack.c.h.b16 %v3283
    %v4515 = vunpack.c.l.b16 %v3284
    %v4516 = vunpack.c.h.b16 %v3284
    %v4517 = vunpack.c.l.b16 %v3285
    %v4518 = vunpack.c.h.b16 %v3285
    %v4519 = vunpack.c.l.b16 %v3286
    %v4520 = vunpack.c.h.b16 %v3286
    %v4521 = vunpack.c.l.b16 %v3287
    %v4522 = vunpack.c.h.b16 %v3287
    %v4523 = vunpack.c.l.b16 %v3288
    %v4524 = vunpack.c.h.b16 %v3288
    %v4525 = vunpack.c.l.b16 %v3289
    %v4526 = vunpack.c.h.b16 %v3289
    %v4527 = vunpack.c.l.b16 %v3290
    %v4528 = vunpack.c.h.b16 %v3290
    %v4529 = vunpack.c.l.b16 %v3291
    %v4530 = vunpack.c.h.b16 %v3291
    %v4531 = vunpack.c.l.b16 %v3292
    %v4532 = vunpack.c.h.b16 %v3292
    %v4533 = vunpack.c.l.b16 %v3293
    %v4534 = vunpack.c.h.b16 %v3293
    %v4535 = vunpack.c.l.b16 %v3294
    %v4536 = vunpack.c.h.b16 %v3294
    %v4537 = vunpack.c.l.b16 %v3295
    %v4538 = vunpack.c.h.b16 %v3295
    %v4539 = vunpack.c.l.b16 %v3296
    %v4540 = vunpack.c.h.b16 %v3296
    %v4541 = vunpack.c.l.b16 %v3297
    %v4542 = vunpack.c.h.b16 %v3297
    %v4543 = vunpack.c.l.b16 %v3298
    %v4544 = vunpack.c.h.b16 %v3298
    %v4545 = vunpack.c.l.b16 %v3299
    %v4546 = vunpack.c.h.b16 %v3299
    %v4547 = vunpack.c.l.b16 %v3300
    %v4548 = vunpack.c.h.b16 %v3300
    %v4549 = vunpack.c.l.b16 %v3301
    %v4550 = vunpack.c.h.b16 %v3301
    %v4551 = vunpack.c.l.b16 %v3302
    %v4552 = vunpack.c.h.b16 %v3302
    %v4553 = vunpack.c.l.b16 %v3303
    %v4554 = vunpack.c.h.b16 %v3303
    %v4555 = vunpack.c.l.b16 %v3304
    %v4556 = vunpack.c.h.b16 %v3304
    %v4557 = vunpack.c.l.b16 %v3305
    %v4558 = vunpack.c.h.b16 %v3305
    %v4559 = vunpack.c.l.b16 %v3306
    %v4560 = vunpack.c.h.b16 %v3306
    %v4561 = vunpack.c.l.b16 %v3307
    %v4562 = vunpack.c.h.b16 %v3307
    %v4563 = vunpack.c.l.b16 %v3308
    %v4564 = vunpack.c.h.b16 %v3308
    %v4565 = vunpack.c.l.b16 %v3309
    %v4566 = vunpack.c.h.b16 %v3309
    %v4567 = vunpack.c.l.b16 %v3310
    %v4568 = vunpack.c.h.b16 %v3310
    %v4569 = vunpack.c.l.b16 %v3311
    %v4570 = vunpack.c.h.b16 %v3311
    %v4571 = vunpack.c.l.b16 %v3312
    %v4572 = vunpack.c.h.b16 %v3312
    %v4573 = vunpack.c.l.b16 %v3313
    %v4574 = vunpack.c.h.b16 %v3313
    %v4575 = vunpack.c.l.b16 %v3314
    %v4576 = vunpack.c.h.b16 %v3314
    %v4577 = vunpack.c.l.b16 %v3315
    %v4578 = vunpack.c.h.b16 %v3315
    %v4579 = vunpack.c.l.b16 %v3316
    %v4580 = vunpack.c.h.b16 %v3316
    %v4581 = vunpack.c.l.b16 %v3317
    %v4582 = vunpack.c.h.b16 %v3317
    %v4583 = vunpack.c.l.b16 %v3318
    %v4584 = vunpack.c.h.b16 %v3318
    %v4585 = vunpack.c.l.b16 %v3319
    %v4586 = vunpack.c.h.b16 %v3319
    %v4587 = vunpack.c.l.b16 %v3320
    %v4588 = vunpack.c.h.b16 %v3320
    %v4589 = vunpack.c.l.b16 %v3321
    %v4590 = vunpack.c.h.b16 %v3321
    %v4591 = vunpack.c.l.b16 %v3322
    %v4592 = vunpack.c.h.b16 %v3322
    %v4593 = vunpack.c.l.b16 %v3323
    %v4594 = vunpack.c.h.b16 %v3323
    %v4595 = vunpack.c.l.b16 %v3324
    %v4596 = vunpack.c.h.b16 %v3324
    %v4597 = vunpack.c.l.b16 %v3325
    %v4598 = vunpack.c.h.b16 %v3325
    %v4599 = vunpack.c.l.b16 %v3326
    %v4600 = vunpack.c.h.b16 %v3326
    %v4601 = vunpack.c.l.b16 %v3327
    %v4602 = vunpack.c.h.b16 %v3327
    %v4603 = vunpack.c.l.b16 %v3328
    %v4604 = vunpack.c.h.b16 %v3328
    %v4605 = vunpack.c.l.b16 %v3329
    %v4606 = vunpack.c.h.b16 %v3329
    %v4607 = vunpack.c.l.b16 %v3330
    %v4608 = vunpack.c.h.b16 %v3330
    %v4609 = vunpack.c.l.b16 %v3331
    %v4610 = vunpack.c.h.b16 %v3331
    %v4611 = vunpack.c.l.b16 %v3332
    %v4612 = vunpack.c.h.b16 %v3332
    %v4613 = vunpack.c.l.b16 %v3333
    %v4614 = vunpack.c.h.b16 %v3333
    %v4615 = vunpack.c.l.b16 %v3334
    %v4616 = vunpack.c.h.b16 %v3334
    %v4617 = vunpack.c.l.b16 %v3335
    %v4618 = vunpack.c.h.b16 %v3335
    %v4619 = vunpack.c.l.b16 %v3336
    %v4620 = vunpack.c.h.b16 %v3336
    %v4621 = vunpack.c.l.b16 %v3337
    %v4622 = vunpack.c.h.b16 %v3337
    %v4623 = vunpack.c.l.b16 %v3338
    %v4624 = vunpack.c.h.b16 %v3338
    %v4625 = vunpack.c.l.b16 %v3339
    %v4626 = vunpack.c.h.b16 %v3339
    %v4627 = vunpack.c.l.b16 %v3340
    %v4628 = vunpack.c.h.b16 %v3340
    %v4629 = vunpack.c.l.b16 %v3341
    %v4630 = vunpack.c.h.b16 %v3341
    %v4631 = vunpack.c.l.b16 %v3342
    %v4632 = vunpack.c.h.b16 %v3342
    %v4633 = vunpack.c.l.b16 %v3343
    %v4634 = vunpack.c.h.b16 %v3343
    %v4635 = vunpack.c.l.b16 %v3344
    %v4636 = vunpack.c.h.b16 %v3344
    %v4637 = vunpack.c.l.b16 %v3345
    %v4638 = vunpack.c.h.b16 %v3345
    %v4639 = vunpack.c.l.b16 %v3346
    %v4640 = vunpack.c.h.b16 %v3346
    %v4641 = vunpack.c.l.b16 %v3347
    %v4642 = vunpack.c.h.b16 %v3347
    %v4643 = vunpack.c.l.b16 %v3348
    %v4644 = vunpack.c.h.b16 %v3348
    %v4645 = vunpack.c.l.b16 %v3349
    %v4646 = vunpack.c.h.b16 %v3349
    %v4647 = vunpack.c.l.b16 %v3350
    %v4648 = vunpack.c.h.b16 %v3350
    %v4649 = vunpack.c.l.b16 %v3351
    %v4650 = vunpack.c.h.b16 %v3351
    %v4651 = vunpack.c.l.b16 %v3352
    %v4652 = vunpack.c.h.b16 %v3352
    %v4653 = vunpack.c.l.b16 %v3353
    %v4654 = vunpack.c.h.b16 %v3353
    %v4655 = vunpack.c.l.b16 %v3354
    %v4656 = vunpack.c.h.b16 %v3354
    %v4657 = vunpack.c.l.b16 %v3355
    %v4658 = vunpack.c.h.b16 %v3355
    %v4659 = vunpack.c.l.b16 %v3356
    %v4660 = vunpack.c.h.b16 %v3356
    %v4661 = vunpack.c.l.b16 %v3357
    %v4662 = vunpack.c.h.b16 %v3357
    %v4663 = vunpack.c.l.b16 %v3358
    %v4664 = vunpack.c.h.b16 %v3358
    %v4665 = vunpack.c.l.b16 %v3359
    %v4666 = vunpack.c.h.b16 %v3359
    %v4667 = vunpack.c.l.b16 %v3360
    %v4668 = vunpack.c.h.b16 %v3360
    %v4669 = vunpack.c.l.b16 %v3361
    %v4670 = vunpack.c.h.b16 %v3361
    %v4671 = vunpack.c.l.b16 %v3362
    %v4672 = vunpack.c.h.b16 %v3362
    %v4673 = vunpack.c.l.b16 %v3363
    %v4674 = vunpack.c.h.b16 %v3363
    %v4675 = vunpack.c.l.b16 %v3364
    %v4676 = vunpack.c.h.b16 %v3364
    %v4677 = vunpack.c.l.b16 %v3365
    %v4678 = vunpack.c.h.b16 %v3365
    %v4679 = vunpack.c.l.b16 %v3366
    %v4680 = vunpack.c.h.b16 %v3366
    %v4681 = vunpack.c.l.b16 %v3367
    %v4682 = vunpack.c.h.b16 %v3367
    %v4683 = vunpack.c.l.b16 %v3368
    %v4684 = vunpack.c.h.b16 %v3368
    %v4685 = vunpack.c.l.b16 %v3369
    %v4686 = vunpack.c.h.b16 %v3369
    %v4687 = vunpack.c.l.b16 %v3370
    %v4688 = vunpack.c.h.b16 %v3370
    %v4689 = vunpack.c.l.b16 %v3371
    %v4690 = vunpack.c.h.b16 %v3371
    %v4691 = vunpack.c.l.b16 %v3372
    %v4692 = vunpack.c.h.b16 %v3372
    %v4693 = vunpack.c.l.b16 %v3373
    %v4694 = vunpack.c.h.b16 %v3373
    %v4695 = vunpack.c.l.b16 %v3374
    %v4696 = vunpack.c.h.b16 %v3374
    %v4697 = vunpack.c.l.b16 %v3375
    %v4698 = vunpack.c.h.b16 %v3375
    %v4699 = vunpack.c.l.b16 %v3376
    %v4700 = vunpack.c.h.b16 %v3376
    %v4701 = vunpack.c.l.b16 %v3377
    %v4702 = vunpack.c.h.b16 %v3377
    %v4703 = vunpack.c.l.b16 %v3378
    %v4704 = vunpack.c.h.b16 %v3378
    %v4705 = vunpack.c.l.b16 %v3379
    %v4706 = vunpack.c.h.b16 %v3379
    %v4707 = vunpack.c.l.b16 %v3380
    %v4708 = vunpack.c.h.b16 %v3380
    %v4709 = vunpack.c.l.b16 %v3381
    %v4710 = vunpack.c.h.b16 %v3381
    %v4711 = vunpack.c.l.b16 %v3382
    %v4712 = vunpack.c.h.b16 %v3382
    %v4713 = vunpack.c.l.b16 %v3383
    %v4714 = vunpack.c.h.b16 %v3383
    %v4715 = vunpack.c.l.b16 %v3384
    %v4716 = vunpack.c.h.b16 %v3384
    %v4717 = vunpack.c.l.b16 %v3385
    %v4718 = vunpack.c.h.b16 %v3385
    %v4719 = vunpack.c.l.b16 %v3386
    %v4720 = vunpack.c.h.b16 %v3386
    %v4721 = vunpack.c.l.b16 %v3387
    %v4722 = vunpack.c.h.b16 %v3387
    %v4723 = vunpack.c.l.b16 %v3388
    %v4724 = vunpack.c.h.b16 %v3388
    %v4725 = vunpack.c.l.b16 %v3389
    %v4726 = vunpack.c.h.b16 %v3389
    %v4727 = vunpack.c.l.b16 %v3390
    %v4728 = vunpack.c.h.b16 %v3390
    %v4729 = vunpack.c.l.b16 %v3391
    %v4730 = vunpack.c.h.b16 %v3391
    %v4731 = vunpack.c.l.b16 %v3392
    %v4732 = vunpack.c.h.b16 %v3392
    %v4733 = vunpack.c.l.b16 %v3393
    %v4734 = vunpack.c.h.b16 %v3393
    %v4735 = vunpack.c.l.b16 %v3394
    %v4736 = vunpack.c.h.b16 %v3394
    %v4737 = vunpack.c.l.b16 %v3395
    %v4738 = vunpack.c.h.b16 %v3395
    %v4739 = vunpack.c.l.b16 %v3396
    %v4740 = vunpack.c.h.b16 %v3396
    %v4741 = vunpack.c.l.b16 %v3397
    %v4742 = vunpack.c.h.b16 %v3397
    %v4743 = vunpack.c.l.b16 %v3398
    %v4744 = vunpack.c.h.b16 %v3398
    %v4745 = vunpack.c.l.b16 %v3399
    %v4746 = vunpack.c.h.b16 %v3399
    %v4747 = vunpack.c.l.b16 %v3400
    %v4748 = vunpack.c.h.b16 %v3400
    %v4749 = vunpack.c.l.b16 %v3401
    %v4750 = vunpack.c.h.b16 %v3401
    %v4751 = vunpack.c.l.b16 %v3402
    %v4752 = vunpack.c.h.b16 %v3402
    %v4753 = vunpack.c.l.b16 %v3403
    %v4754 = vunpack.c.h.b16 %v3403
    %v4755 = vunpack.c.l.b16 %v3404
    %v4756 = vunpack.c.h.b16 %v3404
    %v4757 = vunpack.c.l.b16 %v3405
    %v4758 = vunpack.c.h.b16 %v3405
    %v4759 = vunpack.c.l.b16 %v3406
    %v4760 = vunpack.c.h.b16 %v3406
    %v4761 = vunpack.c.l.b16 %v3407
    %v4762 = vunpack.c.h.b16 %v3407
    %v4763 = vunpack.c.l.b16 %v3408
    %v4764 = vunpack.c.h.b16 %v3408
    %v4765 = vunpack.c.l.b16 %v3409
    %v4766 = vunpack.c.h.b16 %v3409
    %v4767 = vunpack.c.l.b16 %v3410
    %v4768 = vunpack.c.h.b16 %v3410
    %v4769 = vunpack.c.l.b16 %v3411
    %v4770 = vunpack.c.h.b16 %v3411
    %v4771 = vunpack.c.l.b16 %v3412
    %v4772 = vunpack.c.h.b16 %v3412
    %v4773 = vunpack.c.l.b16 %v3413
    %v4774 = vunpack.c.h.b16 %v3413
    %v4775 = vunpack.c.l.b16 %v3414
    %v4776 = vunpack.c.h.b16 %v3414
    %v4777 = vunpack.c.l.b16 %v3415
    %v4778 = vunpack.c.h.b16 %v3415
    %v4779 = vunpack.c.l.b16 %v3416
    %v4780 = vunpack.c.h.b16 %v3416
    %v4781 = vunpack.c.l.b16 %v3417
    %v4782 = vunpack.c.h.b16 %v3417
    %v4783 = vunpack.c.l.b16 %v3418
    %v4784 = vunpack.c.h.b16 %v3418
    %v4785 = vunpack.c.l.b16 %v3419
    %v4786 = vunpack.c.h.b16 %v3419
    %v4787 = vunpack.c.l.b16 %v3420
    %v4788 = vunpack.c.h.b16 %v3420
    %v4789 = vunpack.c.l.b16 %v3421
    %v4790 = vunpack.c.h.b16 %v3421
    %v4791 = vunpack.c.l.b16 %v3422
    %v4792 = vunpack.c.h.b16 %v3422
    %v4793 = vunpack.c.l.b16 %v3423
    %v4794 = vunpack.c.h.b16 %v3423
    %v4795 = vunpack.c.l.b16 %v3424
    %v4796 = vunpack.c.h.b16 %v3424
    %v4797 = vunpack.c.l.b16 %v3425
    %v4798 = vunpack.c.h.b16 %v3425
    %v4799 = vunpack.c.l.b16 %v3426
    %v4800 = vunpack.c.h.b16 %v3426
    %v4801 = vunpack.c.l.b16 %v3427
    %v4802 = vunpack.c.h.b16 %v3427
    %v4803 = vunpack.c.l.b16 %v3428
    %v4804 = vunpack.c.h.b16 %v3428
    %v4805 = vunpack.c.l.b16 %v3429
    %v4806 = vunpack.c.h.b16 %v3429
    %v4807 = vunpack.c.l.b16 %v3430
    %v4808 = vunpack.c.h.b16 %v3430
    %v4809 = vunpack.c.l.b16 %v3431
    %v4810 = vunpack.c.h.b16 %v3431
    %v4811 = vunpack.c.l.b16 %v3432
    %v4812 = vunpack.c.h.b16 %v3432
    %v4813 = vunpack.c.l.b16 %v3433
    %v4814 = vunpack.c.h.b16 %v3433
    %v4815 = vunpack.c.l.b16 %v3434
    %v4816 = vunpack.c.h.b16 %v3434
    %v4817 = vunpack.c.l.b16 %v3435
    %v4818 = vunpack.c.h.b16 %v3435
    %v4819 = vunpack.c.l.b16 %v3436
    %v4820 = vunpack.c.h.b16 %v3436
    %v4821 = vunpack.c.l.b16 %v3437
    %v4822 = vunpack.c.h.b16 %v3437
    %v4823 = vunpack.c.l.b16 %v3438
    %v4824 = vunpack.c.h.b16 %v3438
    %v4825 = vunpack.c.l.b16 %v3439
    %v4826 = vunpack.c.h.b16 %v3439
    %v4827 = vunpack.c.l.b16 %v3440
    %v4828 = vunpack.c.h.b16 %v3440
    %v4829 = vunpack.c.l.b16 %v3441
    %v4830 = vunpack.c.h.b16 %v3441
    %v4831 = vunpack.c.l.b16 %v3442
    %v4832 = vunpack.c.h.b16 %v3442
    %v4833 = vunpack.c.l.b16 %v3443
    %v4834 = vunpack.c.h.b16 %v3443
    %v4835 = vunpack.c.l.b16 %v3444
    %v4836 = vunpack.c.h.b16 %v3444
    %v4837 = vunpack.c.l.b16 %v3445
    %v4838 = vunpack.c.h.b16 %v3445
    %v4839 = vunpack.c.l.b16 %v3446
    %v4840 = vunpack.c.h.b16 %v3446
    %v4841 = vunpack.c.l.b16 %v3447
    %v4842 = vunpack.c.h.b16 %v3447
    %v4843 = vunpack.c.l.b16 %v3448
    %v4844 = vunpack.c.h.b16 %v3448
    %v4845 = vunpack.c.l.b16 %v3449
    %v4846 = vunpack.c.h.b16 %v3449
    %v4847 = vunpack.c.l.b16 %v3450
    %v4848 = vunpack.c.h.b16 %v3450
    %v4849 = vunpack.c.l.b16 %v3451
    %v4850 = vunpack.c.h.b16 %v3451
    %v4851 = vunpack.c.l.b16 %v3452
    %v4852 = vunpack.c.h.b16 %v3452
    %v4853 = vunpack.c.l.b16 %v3453
    %v4854 = vunpack.c.h.b16 %v3453
    %v4855 = vunpack.c.l.b16 %v3454
    %v4856 = vunpack.c.h.b16 %v3454
    %v4857 = vunpack.c.l.b16 %v3455
    %v4858 = vunpack.c.h.b16 %v3455
    %v4859 = vunpack.c.l.b16 %v3456
    %v4860 = vunpack.c.h.b16 %v3456
    %v4861 = vunpack.c.l.b16 %v3457
    %v4862 = vunpack.c.h.b16 %v3457
    %v4863 = vunpack.c.l.b16 %v3458
    %v4864 = vunpack.c.h.b16 %v3458
    %v4865 = vunpack.c.l.b16 %v3459
    %v4866 = vunpack.c.h.b16 %v3459
    %v4867 = vunpack.c.l.b16 %v3460
    %v4868 = vunpack.c.h.b16 %v3460
    %v4869 = vunpack.c.l.b16 %v3461
    %v4870 = vunpack.c.h.b16 %v3461
    %v4871 = vunpack.c.l.b16 %v3462
    %v4872 = vunpack.c.h.b16 %v3462
    %v4873 = vunpack.c.l.b16 %v3463
    %v4874 = vunpack.c.h.b16 %v3463
    %v4875 = vunpack.c.l.b16 %v3464
    %v4876 = vunpack.c.h.b16 %v3464
    %v4877 = vunpack.c.l.b16 %v3465
    %v4878 = vunpack.c.h.b16 %v3465
    %v4879 = vunpack.c.l.b16 %v3466
    %v4880 = vunpack.c.h.b16 %v3466
    %v4881 = vunpack.c.l.b16 %v3467
    %v4882 = vunpack.c.h.b16 %v3467
    %v4883 = vunpack.c.l.b16 %v3468
    %v4884 = vunpack.c.h.b16 %v3468
    %v4885 = vunpack.c.l.b16 %v3469
    %v4886 = vunpack.c.h.b16 %v3469
    %v4887 = vunpack.c.l.b16 %v3470
    %v4888 = vunpack.c.h.b16 %v3470
    %v4889 = vunpack.c.l.b16 %v3471
    %v4890 = vunpack.c.h.b16 %v3471
    %v4891 = vunpack.c.l.b16 %v3472
    %v4892 = vunpack.c.h.b16 %v3472
    %v4893 = vunpack.c.l.b16 %v3473
    %v4894 = vunpack.c.h.b16 %v3473
    %v4895 = vunpack.c.l.b16 %v3474
    %v4896 = vunpack.c.h.b16 %v3474
    %v4897 = vunpack.c.l.b16 %v3475
    %v4898 = vunpack.c.h.b16 %v3475
    %v4899 = vunpack.c.l.b16 %v3476
    %v4900 = vunpack.c.h.b16 %v3476
    %v4901 = vunpack.c.l.b16 %v3477
    %v4902 = vunpack.c.h.b16 %v3477
    %v4903 = vunpack.c.l.b16 %v3478
    %v4904 = vunpack.c.h.b16 %v3478
    %v4905 = vunpack.c.l.b16 %v3479
    %v4906 = vunpack.c.h.b16 %v3479
    %v4907 = vunpack.c.l.b16 %v3480
    %v4908 = vunpack.c.h.b16 %v3480
    %v4909 = vunpack.c.l.b16 %v3481
    %v4910 = vunpack.c.h.b16 %v3481
    %v4911 = vunpack.c.l.b16 %v3482
    %v4912 = vunpack.c.h.b16 %v3482
    %v4913 = vunpack.c.l.b16 %v3483
    %v4914 = vunpack.c.h.b16 %v3483
    %v4915 = vunpack.c.l.b16 %v3484
    %v4916 = vunpack.c.h.b16 %v3484
    %v4917 = vunpack.c.l.b16 %v3485
    %v4918 = vunpack.c.h.b16 %v3485
    %v4919 = vunpack.c.l.b16 %v3486
    %v4920 = vunpack.c.h.b16 %v3486
    %v4921 = vunpack.c.l.b16 %v3487
    %v4922 = vunpack.c.h.b16 %v3487
    %v4923 = vunpack.c.l.b16 %v3488
    %v4924 = vunpack.c.h.b16 %v3488
    %v4925 = vunpack.c.l.b16 %v3489
    %v4926 = vunpack.c.h.b16 %v3489
    %v4927 = vunpack.c.l.b16 %v3490
    %v4928 = vunpack.c.h.b16 %v3490
    %v4929 = vunpack.c.l.b16 %v3491
    %v4930 = vunpack.c.h.b16 %v3491
    %v4931 = vunpack.c.l.b16 %v3492
    %v4932 = vunpack.c.h.b16 %v3492
    %v4933 = vunpack.c.l.b16 %v3493
    %v4934 = vunpack.c.h.b16 %v3493
    %v4935 = vunpack.c.l.b16 %v3494
    %v4936 = vunpack.c.h.b16 %v3494
    %v4937 = vunpack.c.l.b16 %v3495
    %v4938 = vunpack.c.h.b16 %v3495
    %v4939 = vunpack.c.l.b16 %v3496
    %v4940 = vunpack.c.h.b16 %v3496
    %v4941 = vunpack.c.l.b16 %v3497
    %v4942 = vunpack.c.h.b16 %v3497
    %v4943 = vunpack.c.l.b16 %v3498
    %v4944 = vunpack.c.h.b16 %v3498
    %v4945 = vunpack.c.l.b16 %v3499
    %v4946 = vunpack.c.h.b16 %v3499
    %v4947 = vunpack.c.l.b16 %v3500
    %v4948 = vunpack.c.h.b16 %v3500
    %v4949 = vunpack.c.l.b16 %v3501
    %v4950 = vunpack.c.h.b16 %v3501
    %v4951 = vunpack.c.l.b16 %v3502
    %v4952 = vunpack.c.h.b16 %v3502
    %v4953 = vunpack.c.l.b16 %v3503
    %v4954 = vunpack.c.h.b16 %v3503
    %v4955 = vunpack.c.l.b16 %v3504
    %v4956 = vunpack.c.h.b16 %v3504
    %v4957 = vunpack.c.l.b16 %v3505
    %v4958 = vunpack.c.h.b16 %v3505
    %v4959 = vunpack.c.l.b16 %v3506
    %v4960 = vunpack.c.h.b16 %v3506
    %v4961 = vunpack.c.l.b16 %v3507
    %v4962 = vunpack.c.h.b16 %v3507
    %v4963 = vunpack.c.l.b16 %v3508
    %v4964 = vunpack.c.h.b16 %v3508
    %v4965 = vunpack.c.l.b16 %v3509
    %v4966 = vunpack.c.h.b16 %v3509
    %v4967 = vunpack.c.l.b16 %v3510
    %v4968 = vunpack.c.h.b16 %v3510
    %v4969 = vunpack.c.l.b16 %v3511
    %v4970 = vunpack.c.h.b16 %v3511
    %v4971 = vunpack.c.l.b16 %v3512
    %v4972 = vunpack.c.h.b16 %v3512
    %v4973 = vunpack.c.l.b16 %v3513
    %v4974 = vunpack.c.h.b16 %v3513
    %v4975 = vunpack.c.l.b16 %v3514
    %v4976 = vunpack.c.h.b16 %v3514
    %v4977 = vunpack.c.l.b16 %v3515
    %v4978 = vunpack.c.h.b16 %v3515
    %v4979 = vunpack.c.l.b16 %v3516
    %v4980 = vunpack.c.h.b16 %v3516
    %v4981 = vunpack.c.l.b16 %v3517
    %v4982 = vunpack.c.h.b16 %v3517
    %v4983 = vunpack.c.l.b16 %v3518
    %v4984 = vunpack.c.h.b16 %v3518
    %v4985 = vunpack.c.l.b16 %v3519
    %v4986 = vunpack.c.h.b16 %v3519
    %v4987 = vunpack.c.l.b16 %v3520
    %v4988 = vunpack.c.h.b16 %v3520
    %v4989 = vunpack.c.l.b16 %v3521
    %v4990 = vunpack.c.h.b16 %v3521
    %v4991 = vunpack.c.l.b16 %v3522
    %v4992 = vunpack.c.h.b16 %v3522
    %v4993 = vunpack.c.l.b16 %v3523
    %v4994 = vunpack.c.h.b16 %v3523
    %v4995 = vunpack.c.l.b16 %v3524
    %v4996 = vunpack.c.h.b16 %v3524
    %v4997 = vunpack.c.l.b16 %v3525
    %v4998 = vunpack.c.h.b16 %v3525
    %v4999 = vunpack.c.l.b16 %v3526
    %v5000 = vunpack.c.h.b16 %v3526
    %v5001 = vunpack.c.l.b16 %v3527
    %v5002 = vunpack.c.h.b16 %v3527
    %v5003 = vunpack.c.l.b16 %v3528
    %v5004 = vunpack.c.h.b16 %v3528
    %v5005 = vunpack.c.l.b16 %v3529
    %v5006 = vunpack.c.h.b16 %v3529
    %v5007 = vunpack.c.l.b16 %v3530
    %v5008 = vunpack.c.h.b16 %v3530
    %v5009 = vunpack.c.l.b16 %v3531
    %v5010 = vunpack.c.h.b16 %v3531
    %v5011 = vunpack.c.l.b16 %v3532
    %v5012 = vunpack.c.h.b16 %v3532
    %v5013 = vunpack.c.l.b16 %v3533
    %v5014 = vunpack.c.h.b16 %v3533
    %v5015 = vunpack.c.l.b16 %v3534
    %v5016 = vunpack.c.h.b16 %v3534
    %v5017 = vunpack.c.l.b16 %v3535
    %v5018 = vunpack.c.h.b16 %v3535
    %v5019 = vunpack.c.l.b16 %v3536
    %v5020 = vunpack.c.h.b16 %v3536
    %v5021 = vunpack.c.l.b16 %v3537
    %v5022 = vunpack.c.h.b16 %v3537
    %v5023 = vunpack.c.l.b16 %v3538
    %v5024 = vunpack.c.h.b16 %v3538
    %v5025 = vunpack.c.l.b16 %v3539
    %v5026 = vunpack.c.h.b16 %v3539
    %v5027 = vunpack.c.l.b16 %v3540
    %v5028 = vunpack.c.h.b16 %v3540
    %v5029 = vunpack.c.l.b16 %v3541
    %v5030 = vunpack.c.h.b16 %v3541
    %v5031 = vunpack.c.l.b16 %v3542
    %v5032 = vunpack.c.h.b16 %v3542
    %v5033 = vunpack.c.l.b16 %v3543
    %v5034 = vunpack.c.h.b16 %v3543
    %v5035 = vunpack.c.l.b16 %v3544
    %v5036 = vunpack.c.h.b16 %v3544
    %v5037 = vunpack.c.l.b16 %v3545
    %v5038 = vunpack.c.h.b16 %v3545
    %v5039 = vunpack.c.l.b16 %v3546
    %v5040 = vunpack.c.h.b16 %v3546
    %v5041 = vunpack.c.l.b16 %v3547
    %v5042 = vunpack.c.h.b16 %v3547
    %v5043 = vunpack.c.l.b16 %v3548
    %v5044 = vunpack.c.h.b16 %v3548
    %v5045 = vunpack.c.l.b16 %v3549
    %v5046 = vunpack.c.h.b16 %v3549
    %v5047 = vunpack.c.l.b16 %v3550
    %v5048 = vunpack.c.h.b16 %v3550
    %v5049 = vunpack.c.l.b16 %v3551
    %v5050 = vunpack.c.h.b16 %v3551
    %v5051 = vunpack.c.l.b16 %v3552
    %v5052 = vunpack.c.h.b16 %v3552
    %v5053 = vunpack.c.l.b16 %v3553
    %v5054 = vunpack.c.h.b16 %v3553
    %v5055 = vunpack.c.l.b16 %v3554
    %v5056 = vunpack.c.h.b16 %v3554
    %v5057 = vunpack.c.l.b16 %v3555
    %v5058 = vunpack.c.h.b16 %v3555
    %v5059 = vunpack.c.l.b16 %v3556
    %v5060 = vunpack.c.h.b16 %v3556
    %v5061 = vunpack.c.l.b16 %v3557
    %v5062 = vunpack.c.h.b16 %v3557
    %v5063 = vunpack.c.l.b16 %v3558
    %v5064 = vunpack.c.h.b16 %v3558
    %v5065 = vunpack.c.l.b16 %v3559
    %v5066 = vunpack.c.h.b16 %v3559
    %v5067 = vunpack.c.l.b16 %v3560
    %v5068 = vunpack.c.h.b16 %v3560
    %v5069 = vunpack.c.l.b16 %v3561
    %v5070 = vunpack.c.h.b16 %v3561
    %v5071 = vunpack.c.l.b16 %v3562
    %v5072 = vunpack.c.h.b16 %v3562
    %v5073 = vunpack.c.l.b16 %v3563
    %v5074 = vunpack.c.h.b16 %v3563
    %v5075 = vunpack.c.l.b16 %v3564
    %v5076 = vunpack.c.h.b16 %v3564
    %v5077 = vunpack.c.l.b16 %v3565
    %v5078 = vunpack.c.h.b16 %v3565
    %v5079 = vunpack.c.l.b16 %v3566
    %v5080 = vunpack.c.h.b16 %v3566
    %v5081 = vunpack.c.l.b16 %v3567
    %v5082 = vunpack.c.h.b16 %v3567
    %v5083 = vunpack.c.l.b16 %v3568
    %v5084 = vunpack.c.h.b16 %v3568
    %v5085 = vunpack.c.l.b16 %v3569
    %v5086 = vunpack.c.h.b16 %v3569
    %v5087 = vunpack.c.l.b16 %v3570
    %v5088 = vunpack.c.h.b16 %v3570
    %v5089 = vunpack.c.l.b16 %v3571
    %v5090 = vunpack.c.h.b16 %v3571
    %v5091 = vunpack.c.l.b16 %v3572
    %v5092 = vunpack.c.h.b16 %v3572
    %v5093 = vunpack.c.l.b16 %v3573
    %v5094 = vunpack.c.h.b16 %v3573
    %v5095 = vunpack.c.l.b16 %v3574
    %v5096 = vunpack.c.h.b16 %v3574
    %v5097 = vunpack.c.l.b16 %v3575
    %v5098 = vunpack.c.h.b16 %v3575
    %v5099 = vunpack.c.l.b16 %v3576
    %v5100 = vunpack.c.h.b16 %v3576
    %v5101 = vunpack.c.l.b16 %v3577
    %v5102 = vunpack.c.h.b16 %v3577
    %v5103 = vunpack.c.l.b16 %v3578
    %v5104 = vunpack.c.h.b16 %v3578
    %v5105 = vunpack.c.l.b16 %v3579
    %v5106 = vunpack.c.h.b16 %v3579
    %v5107 = vunpack.c.l.b16 %v3580
    %v5108 = vunpack.c.h.b16 %v3580
    %v5109 = vunpack.c.l.b16 %v3581
    %v5110 = vunpack.c.h.b16 %v3581
    %v5111 = vunpack.c.l.b16 %v3582
    %v5112 = vunpack.c.h.b16 %v3582
    %v5113 = vunpack.c.l.b16 %v3583
    %v5114 = vunpack.c.h.b16 %v3583
    %v5115 = vunpack.c.l.b16 %v3584
    %v5116 = vunpack.c.h.b16 %v3584
    %v5117 = vunpack.c.l.b16 %v3585
    %v5118 = vunpack.c.h.b16 %v3585
    %v5119 = vunpack.c.l.b16 %v3586
    %v5120 = vunpack.c.h.b16 %v3586
    %v5121 = vunpack.c.l.b16 %v3587
    %v5122 = vunpack.c.h.b16 %v3587
    %v5123 = vunpack.c.l.b16 %v3588
    %v5124 = vunpack.c.h.b16 %v3588
    %v5125 = vunpack.c.l.b16 %v3589
    %v5126 = vunpack.c.h.b16 %v3589
    %v5127 = vunpack.c.l.b16 %v3590
    %v5128 = vunpack.c.h.b16 %v3590
    %v5129 = vunpack.c.l.b16 %v3591
    %v5130 = vunpack.c.h.b16 %v3591
    %v5131 = vunpack.c.l.b16 %v3592
    %v5132 = vunpack.c.h.b16 %v3592
    %v5133 = vunpack.c.l.b16 %v3593
    %v5134 = vunpack.c.h.b16 %v3593
    %v5135 = vunpack.c.l.b16 %v3594
    %v5136 = vunpack.c.h.b16 %v3594
    %v5137 = vunpack.c.l.b16 %v3595
    %v5138 = vunpack.c.h.b16 %v3595
    %v5139 = vunpack.c.l.b16 %v3596
    %v5140 = vunpack.c.h.b16 %v3596
    %v5141 = vunpack.c.l.b16 %v3597
    %v5142 = vunpack.c.h.b16 %v3597
    %v5143 = vunpack.c.l.b16 %v3598
    %v5144 = vunpack.c.h.b16 %v3598
    %v5145 = vunpack.c.l.b16 %v3599
    %v5146 = vunpack.c.h.b16 %v3599
    %v5147 = vunpack.c.l.b16 %v3600
    %v5148 = vunpack.c.h.b16 %v3600
    %v5149 = vunpack.c.l.b16 %v3601
    %v5150 = vunpack.c.h.b16 %v3601
    %v5151 = vunpack.c.l.b16 %v3602
    %v5152 = vunpack.c.h.b16 %v3602
    %v5153 = vunpack.c.l.b16 %v3603
    %v5154 = vunpack.c.h.b16 %v3603
    %v5155 = vunpack.c.l.b16 %v3604
    %v5156 = vunpack.c.h.b16 %v3604
    %v5157 = vunpack.c.l.b16 %v3605
    %v5158 = vunpack.c.h.b16 %v3605
    %v5159 = vunpack.c.l.b16 %v3606
    %v5160 = vunpack.c.h.b16 %v3606
    %v5161 = vunpack.c.l.b16 %v3607
    %v5162 = vunpack.c.h.b16 %v3607
    %v5163 = vunpack.c.l.b16 %v3608
    %v5164 = vunpack.c.h.b16 %v3608
    %v5165 = vunpack.c.l.b16 %v3609
    %v5166 = vunpack.c.h.b16 %v3609
    %v5167 = vunpack.c.l.b16 %v3610
    %v5168 = vunpack.c.h.b16 %v3610
    %v5169 = vpack.c.b16 %v4149, %v4145
    %v5170 = vpack.c.b16 %v4150, %v4146
    %v5171 = vpack.c.b16 %v4151, %v4147
    %v5172 = vpack.c.b16 %v4152, %v4148
    %v5173 = vpack.c.b16 %v4157, %v4153
    %v5174 = vpack.c.b16 %v4158, %v4154
    %v5175 = vpack.c.b16 %v4159, %v4155
    %v5176 = vpack.c.b16 %v4160, %v4156
    %v5177 = vpack.c.b16 %v4165, %v4161
    %v5178 = vpack.c.b16 %v4166, %v4162
    %v5179 = vpack.c.b16 %v4167, %v4163
    %v5180 = vpack.c.b16 %v4168, %v4164
    %v5181 = vpack.c.b16 %v4173, %v4169
    %v5182 = vpack.c.b16 %v4174, %v4170
    %v5183 = vpack.c.b16 %v4175, %v4171
    %v5184 = vpack.c.b16 %v4176, %v4172
    %v5185 = vpack.c.b16 %v4181, %v4177
    %v5186 = vpack.c.b16 %v4182, %v4178
    %v5187 = vpack.c.b16 %v4183, %v4179
    %v5188 = vpack.c.b16 %v4184, %v4180
    %v5189 = vpack.c.b16 %v4189, %v4185
    %v5190 = vpack.c.b16 %v4190, %v4186
    %v5191 = vpack.c.b16 %v4191, %v4187
    %v5192 = vpack.c.b16 %v4192, %v4188
    %v5193 = vpack.c.b16 %v4197, %v4193
    %v5194 = vpack.c.b16 %v4198, %v4194
    %v5195 = vpack.c.b16 %v4199, %v4195
    %v5196 = vpack.c.b16 %v4200, %v4196
    %v5197 = vpack.c.b16 %v4205, %v4201
    %v5198 = vpack.c.b16 %v4206, %v4202
    %v5199 = vpack.c.b16 %v4207, %v4203
    %v5200 = vpack.c.b16 %v4208, %v4204
    %v5201 = vpack.c.b16 %v4213, %v4209
    %v5202 = vpack.c.b16 %v4214, %v4210
    %v5203 = vpack.c.b16 %v4215, %v4211
    %v5204 = vpack.c.b16 %v4216, %v4212
    %v5205 = vpack.c.b16 %v4221, %v4217
    %v5206 = vpack.c.b16 %v4222, %v4218
    %v5207 = vpack.c.b16 %v4223, %v4219
    %v5208 = vpack.c.b16 %v4224, %v4220
    %v5209 = vpack.c.b16 %v4229, %v4225
    %v5210 = vpack.c.b16 %v4230, %v4226
    %v5211 = vpack.c.b16 %v4231, %v4227
    %v5212 = vpack.c.b16 %v4232, %v4228
    %v5213 = vpack.c.b16 %v4237, %v4233
    %v5214 = vpack.c.b16 %v4238, %v4234
    %v5215 = vpack.c.b16 %v4239, %v4235
    %v5216 = vpack.c.b16 %v4240, %v4236
    %v5217 = vpack.c.b16 %v4245, %v4241
    %v5218 = vpack.c.b16 %v4246, %v4242
    %v5219 = vpack.c.b16 %v4247, %v4243
    %v5220 = vpack.c.b16 %v4248, %v4244
    %v5221 = vpack.c.b16 %v4253, %v4249
    %v5222 = vpack.c.b16 %v4254, %v4250
    %v5223 = vpack.c.b16 %v4255, %v4251
    %v5224 = vpack.c.b16 %v4256, %v4252
    %v5225 = vpack.c.b16 %v4261, %v4257
    %v5226 = vpack.c.b16 %v4262, %v4258
    %v5227 = vpack.c.b16 %v4263, %v4259
    %v5228 = vpack.c.b16 %v4264, %v4260
    %v5229 = vpack.c.b16 %v4269, %v4265
    %v5230 = vpack.c.b16 %v4270, %v4266
    %v5231 = vpack.c.b16 %v4271, %v4267
    %v5232 = vpack.c.b16 %v4272, %v4268
    %v5233 = vpack.c.b16 %v4277, %v4273
    %v5234 = vpack.c.b16 %v4278, %v4274
    %v5235 = vpack.c.b16 %v4279, %v4275
    %v5236 = vpack.c.b16 %v4280, %v4276
    %v5237 = vpack.c.b16 %v4285, %v4281
    %v5238 = vpack.c.b16 %v4286, %v4282
    %v5239 = vpack.c.b16 %v4287, %v4283
    %v5240 = vpack.c.b16 %v4288, %v4284
    %v5241 = vpack.c.b16 %v4293, %v4289
    %v5242 = vpack.c.b16 %v4294, %v4290
    %v5243 = vpack.c.b16 %v4295, %v4291
    %v5244 = vpack.c.b16 %v4296, %v4292
    %v5245 = vpack.c.b16 %v4301, %v4297
    %v5246 = vpack.c.b16 %v4302, %v4298
    %v5247 = vpack.c.b16 %v4303, %v4299
    %v5248 = vpack.c.b16 %v4304, %v4300
    %v5249 = vpack.c.b16 %v4309, %v4305
    %v5250 = vpack.c.b16 %v4310, %v4306
    %v5251 = vpack.c.b16 %v4311, %v4307
    %v5252 = vpack.c.b16 %v4312, %v4308
    %v5253 = vpack.c.b16 %v4317, %v4313
    %v5254 = vpack.c.b16 %v4318, %v4314
    %v5255 = vpack.c.b16 %v4319, %v4315
    %v5256 = vpack.c.b16 %v4320, %v4316
    %v5257 = vpack.c.b16 %v4325, %v4321
    %v5258 = vpack.c.b16 %v4326, %v4322
    %v5259 = vpack.c.b16 %v4327, %v4323
    %v5260 = vpack.c.b16 %v4328, %v4324
    %v5261 = vpack.c.b16 %v4333, %v4329
    %v5262 = vpack.c.b16 %v4334, %v4330
    %v5263 = vpack.c.b16 %v4335, %v4331
    %v5264 = vpack.c.b16 %v4336, %v4332
    %v5265 = vpack.c.b16 %v4341, %v4337
    %v5266 = vpack.c.b16 %v4342, %v4338
    %v5267 = vpack.c.b16 %v4343, %v4339
    %v5268 = vpack.c.b16 %v4344, %v4340
    %v5269 = vpack.c.b16 %v4349, %v4345
    %v5270 = vpack.c.b16 %v4350, %v4346
    %v5271 = vpack.c.b16 %v4351, %v4347
    %v5272 = vpack.c.b16 %v4352, %v4348
    %v5273 = vpack.c.b16 %v4357, %v4353
    %v5274 = vpack.c.b16 %v4358, %v4354
    %v5275 = vpack.c.b16 %v4359, %v4355
    %v5276 = vpack.c.b16 %v4360, %v4356
    %v5277 = vpack.c.b16 %v4365, %v4361
    %v5278 = vpack.c.b16 %v4366, %v4362
    %v5279 = vpack.c.b16 %v4367, %v4363
    %v5280 = vpack.c.b16 %v4368, %v4364
    %v5281 = vpack.c.b16 %v4373, %v4369
    %v5282 = vpack.c.b16 %v4374, %v4370
    %v5283 = vpack.c.b16 %v4375, %v4371
    %v5284 = vpack.c.b16 %v4376, %v4372
    %v5285 = vpack.c.b16 %v4381, %v4377
    %v5286 = vpack.c.b16 %v4382, %v4378
    %v5287 = vpack.c.b16 %v4383, %v4379
    %v5288 = vpack.c.b16 %v4384, %v4380
    %v5289 = vpack.c.b16 %v4389, %v4385
    %v5290 = vpack.c.b16 %v4390, %v4386
    %v5291 = vpack.c.b16 %v4391, %v4387
    %v5292 = vpack.c.b16 %v4392, %v4388
    %v5293 = vpack.c.b16 %v4397, %v4393
    %v5294 = vpack.c.b16 %v4398, %v4394
    %v5295 = vpack.c.b16 %v4399, %v4395
    %v5296 = vpack.c.b16 %v4400, %v4396
    %v5297 = vpack.c.b16 %v4405, %v4401
    %v5298 = vpack.c.b16 %v4406, %v4402
    %v5299 = vpack.c.b16 %v4407, %v4403
    %v5300 = vpack.c.b16 %v4408, %v4404
    %v5301 = vpack.c.b16 %v4413, %v4409
    %v5302 = vpack.c.b16 %v4414, %v4410
    %v5303 = vpack.c.b16 %v4415, %v4411
    %v5304 = vpack.c.b16 %v4416, %v4412
    %v5305 = vpack.c.b16 %v4421, %v4417
    %v5306 = vpack.c.b16 %v4422, %v4418
    %v5307 = vpack.c.b16 %v4423, %v4419
    %v5308 = vpack.c.b16 %v4424, %v4420
    %v5309 = vpack.c.b16 %v4429, %v4425
    %v5310 = vpack.c.b16 %v4430, %v4426
    %v5311 = vpack.c.b16 %v4431, %v4427
    %v5312 = vpack.c.b16 %v4432, %v4428
    %v5313 = vpack.c.b16 %v4437, %v4433
    %v5314 = vpack.c.b16 %v4438, %v4434
    %v5315 = vpack.c.b16 %v4439, %v4435
    %v5316 = vpack.c.b16 %v4440, %v4436
    %v5317 = vpack.c.b16 %v4445, %v4441
    %v5318 = vpack.c.b16 %v4446, %v4442
    %v5319 = vpack.c.b16 %v4447, %v4443
    %v5320 = vpack.c.b16 %v4448, %v4444
    %v5321 = vpack.c.b16 %v4453, %v4449
    %v5322 = vpack.c.b16 %v4454, %v4450
    %v5323 = vpack.c.b16 %v4455, %v4451
    %v5324 = vpack.c.b16 %v4456, %v4452
    %v5325 = vpack.c.b16 %v4461, %v4457
    %v5326 = vpack.c.b16 %v4462, %v4458
    %v5327 = vpack.c.b16 %v4463, %v4459
    %v5328 = vpack.c.b16 %v4464, %v4460
    %v5329 = vpack.c.b16 %v4469, %v4465
    %v5330 = vpack.c.b16 %v4470, %v4466
    %v5331 = vpack.c.b16 %v4471, %v4467
    %v5332 = vpack.c.b16 %v4472, %v4468
    %v5333 = vpack.c.b16 %v4477, %v4473
    %v5334 = vpack.c.b16 %v4478, %v4474
    %v5335 = vpack.c.b16 %v4479, %v4475
    %v5336 = vpack.c.b16 %v4480, %v4476
    %v5337 = vpack.c.b16 %v4485, %v4481
    %v5338 = vpack.c.b16 %v4486, %v4482
    %v5339 = vpack.c.b16 %v4487, %v4483
    %v5340 = vpack.c.b16 %v4488, %v4484
    %v5341 = vpack.c.b16 %v4493, %v4489
    %v5342 = vpack.c.b16 %v4494, %v4490
    %v5343 = vpack.c.b16 %v4495, %v4491
    %v5344 = vpack.c.b16 %v4496, %v4492
    %v5345 = vpack.c.b16 %v4501, %v4497
    %v5346 = vpack.c.b16 %v4502, %v4498
    %v5347 = vpack.c.b16 %v4503, %v4499
    %v5348 = vpack.c.b16 %v4504, %v4500
    %v5349 = vpack.c.b16 %v4509, %v4505
    %v5350 = vpack.c.b16 %v4510, %v4506
    %v5351 = vpack.c.b16 %v4511, %v4507
    %v5352 = vpack.c.b16 %v4512, %v4508
    %v5353 = vpack.c.b16 %v4517, %v4513
    %v5354 = vpack.c.b16 %v4518, %v4514
    %v5355 = vpack.c.b16 %v4519, %v4515
    %v5356 = vpack.c.b16 %v4520, %v4516
    %v5357 = vpack.c.b16 %v4525, %v4521
    %v5358 = vpack.c.b16 %v4526, %v4522
    %v5359 = vpack.c.b16 %v4527, %v4523
    %v5360 = vpack.c.b16 %v4528, %v4524
    %v5361 = vpack.c.b16 %v4533, %v4529
    %v5362 = vpack.c.b16 %v4534, %v4530
    %v5363 = vpack.c.b16 %v4535, %v4531
    %v5364 = vpack.c.b16 %v4536, %v4532
    %v5365 = vpack.c.b16 %v4541, %v4537
    %v5366 = vpack.c.b16 %v4542, %v4538
    %v5367 = vpack.c.b16 %v4543, %v4539
    %v5368 = vpack.c.b16 %v4544, %v4540
    %v5369 = vpack.c.b16 %v4549, %v4545
    %v5370 = vpack.c.b16 %v4550, %v4546
    %v5371 = vpack.c.b16 %v4551, %v4547
    %v5372 = vpack.c.b16 %v4552, %v4548
    %v5373 = vpack.c.b16 %v4557, %v4553
    %v5374 = vpack.c.b16 %v4558, %v4554
    %v5375 = vpack.c.b16 %v4559, %v4555
    %v5376 = vpack.c.b16 %v4560, %v4556
    %v5377 = vpack.c.b16 %v4565, %v4561
    %v5378 = vpack.c.b16 %v4566, %v4562
    %v5379 = vpack.c.b16 %v4567, %v4563
    %v5380 = vpack.c.b16 %v4568, %v4564
    %v5381 = vpack.c.b16 %v4573, %v4569
    %v5382 = vpack.c.b16 %v4574, %v4570
    %v5383 = vpack.c.b16 %v4575, %v4571
    %v5384 = vpack.c.b16 %v4576, %v4572
    %v5385 = vpack.c.b16 %v4581, %v4577
    %v5386 = vpack.c.b16 %v4582, %v4578
    %v5387 = vpack.c.b16 %v4583, %v4579
    %v5388 = vpack.c.b16 %v4584, %v4580
    %v5389 = vpack.c.b16 %v4589, %v4585
    %v5390 = vpack.c.b16 %v4590, %v4586
    %v5391 = vpack.c.b16 %v4591, %v4587
    %v5392 = vpack.c.b16 %v4592, %v4588
    %v5393 = vpack.c.b16 %v4597, %v4593
    %v5394 = vpack.c.b16 %v4598, %v4594
    %v5395 = vpack.c.b16 %v4599, %v4595
    %v5396 = vpack.c.b16 %v4600, %v4596
    %v5397 = vpack.c.b16 %v4605, %v4601
    %v5398 = vpack.c.b16 %v4606, %v4602
    %v5399 = vpack.c.b16 %v4607, %v4603
    %v5400 = vpack.c.b16 %v4608, %v4604
    %v5401 = vpack.c.b16 %v4613, %v4609
    %v5402 = vpack.c.b16 %v4614, %v4610
    %v5403 = vpack.c.b16 %v4615, %v4611
    %v5404 = vpack.c.b16 %v4616, %v4612
    %v5405 = vpack.c.b16 %v4621, %v4617
    %v5406 = vpack.c.b16 %v4622, %v4618
    %v5407 = vpack.c.b16 %v4623, %v4619
    %v5408 = vpack.c.b16 %v4624, %v4620
    %v5409 = vpack.c.b16 %v4629, %v4625
    %v5410 = vpack.c.b16 %v4630, %v4626
    %v5411 = vpack.c.b16 %v4631, %v4627
    %v5412 = vpack.c.b16 %v4632, %v4628
    %v5413 = vpack.c.b16 %v4637, %v4633
    %v5414 = vpack.c.b16 %v4638, %v4634
    %v5415 = vpack.c.b16 %v4639, %v4635
    %v5416 = vpack.c.b16 %v4640, %v4636
    %v5417 = vpack.c.b16 %v4645, %v4641
    %v5418 = vpack.c.b16 %v4646, %v4642
    %v5419 = vpack.c.b16 %v4647, %v4643
    %v5420 = vpack.c.b16 %v4648, %v4644
    %v5421 = vpack.c.b16 %v4653, %v4649
    %v5422 = vpack.c.b16 %v4654, %v4650
    %v5423 = vpack.c.b16 %v4655, %v4651
    %v5424 = vpack.c.b16 %v4656, %v4652
    %v5425 = vpack.c.b16 %v4661, %v4657
    %v5426 = vpack.c.b16 %v4662, %v4658
    %v5427 = vpack.c.b16 %v4663, %v4659
    %v5428 = vpack.c.b16 %v4664, %v4660
    %v5429 = vpack.c.b16 %v4669, %v4665
    %v5430 = vpack.c.b16 %v4670, %v4666
    %v5431 = vpack.c.b16 %v4671, %v4667
    %v5432 = vpack.c.b16 %v4672, %v4668
    %v5433 = vpack.c.b16 %v4677, %v4673
    %v5434 = vpack.c.b16 %v4678, %v4674
    %v5435 = vpack.c.b16 %v4679, %v4675
    %v5436 = vpack.c.b16 %v4680, %v4676
    %v5437 = vpack.c.b16 %v4685, %v4681
    %v5438 = vpack.c.b16 %v4686, %v4682
    %v5439 = vpack.c.b16 %v4687, %v4683
    %v5440 = vpack.c.b16 %v4688, %v4684
    %v5441 = vpack.c.b16 %v4693, %v4689
    %v5442 = vpack.c.b16 %v4694, %v4690
    %v5443 = vpack.c.b16 %v4695, %v4691
    %v5444 = vpack.c.b16 %v4696, %v4692
    %v5445 = vpack.c.b16 %v4701, %v4697
    %v5446 = vpack.c.b16 %v4702, %v4698
    %v5447 = vpack.c.b16 %v4703, %v4699
    %v5448 = vpack.c.b16 %v4704, %v4700
    %v5449 = vpack.c.b16 %v4709, %v4705
    %v5450 = vpack.c.b16 %v4710, %v4706
    %v5451 = vpack.c.b16 %v4711, %v4707
    %v5452 = vpack.c.b16 %v4712, %v4708
    %v5453 = vpack.c.b16 %v4717, %v4713
    %v5454 = vpack.c.b16 %v4718, %v4714
    %v5455 = vpack.c.b16 %v4719, %v4715
    %v5456 = vpack.c.b16 %v4720, %v4716
    %v5457 = vpack.c.b16 %v4725, %v4721
    %v5458 = vpack.c.b16 %v4726, %v4722
    %v5459 = vpack.c.b16 %v4727, %v4723
    %v5460 = vpack.c.b16 %v4728, %v4724
    %v5461 = vpack.c.b16 %v4733, %v4729
    %v5462 = vpack.c.b16 %v4734, %v4730
    %v5463 = vpack.c.b16 %v4735, %v4731
    %v5464 = vpack.c.b16 %v4736, %v4732
    %v5465 = vpack.c.b16 %v4741, %v4737
    %v5466 = vpack.c.b16 %v4742, %v4738
    %v5467 = vpack.c.b16 %v4743, %v4739
    %v5468 = vpack.c.b16 %v4744, %v4740
    %v5469 = vpack.c.b16 %v4749, %v4745
    %v5470 = vpack.c.b16 %v4750, %v4746
    %v5471 = vpack.c.b16 %v4751, %v4747
    %v5472 = vpack.c.b16 %v4752, %v4748
    %v5473 = vpack.c.b16 %v4757, %v4753
    %v5474 = vpack.c.b16 %v4758, %v4754
    %v5475 = vpack.c.b16 %v4759, %v4755
    %v5476 = vpack.c.b16 %v4760, %v4756
    %v5477 = vpack.c.b16 %v4765, %v4761
    %v5478 = vpack.c.b16 %v4766, %v4762
    %v5479 = vpack.c.b16 %v4767, %v4763
    %v5480 = vpack.c.b16 %v4768, %v4764
    %v5481 = vpack.c.b16 %v4773, %v4769
    %v5482 = vpack.c.b16 %v4774, %v4770
    %v5483 = vpack.c.b16 %v4775, %v4771
    %v5484 = vpack.c.b16 %v4776, %v4772
    %v5485 = vpack.c.b16 %v4781, %v4777
    %v5486 = vpack.c.b16 %v4782, %v4778
    %v5487 = vpack.c.b16 %v4783, %v4779
    %v5488 = vpack.c.b16 %v4784, %v4780
    %v5489 = vpack.c.b16 %v4789, %v4785
    %v5490 = vpack.c.b16 %v4790, %v4786
    %v5491 = vpack.c.b16 %v4791, %v4787
    %v5492 = vpack.c.b16 %v4792, %v4788
    %v5493 = vpack.c.b16 %v4797, %v4793
    %v5494 = vpack.c.b16 %v4798, %v4794
    %v5495 = vpack.c.b16 %v4799, %v4795
    %v5496 = vpack.c.b16 %v4800, %v4796
    %v5497 = vpack.c.b16 %v4805, %v4801
    %v5498 = vpack.c.b16 %v4806, %v4802
    %v5499 = vpack.c.b16 %v4807, %v4803
    %v5500 = vpack.c.b16 %v4808, %v4804
    %v5501 = vpack.c.b16 %v4813, %v4809
    %v5502 = vpack.c.b16 %v4814, %v4810
    %v5503 = vpack.c.b16 %v4815, %v4811
    %v5504 = vpack.c.b16 %v4816, %v4812
    %v5505 = vpack.c.b16 %v4821, %v4817
    %v5506 = vpack.c.b16 %v4822, %v4818
    %v5507 = vpack.c.b16 %v4823, %v4819
    %v5508 = vpack.c.b16 %v4824, %v4820
    %v5509 = vpack.c.b16 %v4829, %v4825
    %v5510 = vpack.c.b16 %v4830, %v4826
    %v5511 = vpack.c.b16 %v4831, %v4827
    %v5512 = vpack.c.b16 %v4832, %v4828
    %v5513 = vpack.c.b16 %v4837, %v4833
    %v5514 = vpack.c.b16 %v4838, %v4834
    %v5515 = vpack.c.b16 %v4839, %v4835
    %v5516 = vpack.c.b16 %v4840, %v4836
    %v5517 = vpack.c.b16 %v4845, %v4841
    %v5518 = vpack.c.b16 %v4846, %v4842
    %v5519 = vpack.c.b16 %v4847, %v4843
    %v5520 = vpack.c.b16 %v4848, %v4844
    %v5521 = vpack.c.b16 %v4853, %v4849
    %v5522 = vpack.c.b16 %v4854, %v4850
    %v5523 = vpack.c.b16 %v4855, %v4851
    %v5524 = vpack.c.b16 %v4856, %v4852
    %v5525 = vpack.c.b16 %v4861, %v4857
    %v5526 = vpack.c.b16 %v4862, %v4858
    %v5527 = vpack.c.b16 %v4863, %v4859
    %v5528 = vpack.c.b16 %v4864, %v4860
    %v5529 = vpack.c.b16 %v4869, %v4865
    %v5530 = vpack.c.b16 %v4870, %v4866
    %v5531 = vpack.c.b16 %v4871, %v4867
    %v5532 = vpack.c.b16 %v4872, %v4868
    %v5533 = vpack.c.b16 %v4877, %v4873
    %v5534 = vpack.c.b16 %v4878, %v4874
    %v5535 = vpack.c.b16 %v4879, %v4875
    %v5536 = vpack.c.b16 %v4880, %v4876
    %v5537 = vpack.c.b16 %v4885, %v4881
    %v5538 = vpack.c.b16 %v4886, %v4882
    %v5539 = vpack.c.b16 %v4887, %v4883
    %v5540 = vpack.c.b16 %v4888, %v4884
    %v5541 = vpack.c.b16 %v4893, %v4889
    %v5542 = vpack.c.b16 %v4894, %v4890
    %v5543 = vpack.c.b16 %v4895, %v4891
    %v5544 = vpack.c.b16 %v4896, %v4892
    %v5545 = vpack.c.b16 %v4901, %v4897
    %v5546 = vpack.c.b16 %v4902, %v4898
    %v5547 = vpack.c.b16 %v4903, %v4899
    %v5548 = vpack.c.b16 %v4904, %v4900
    %v5549 = vpack.c.b16 %v4909, %v4905
    %v5550 = vpack.c.b16 %v4910, %v4906
    %v5551 = vpack.c.b16 %v4911, %v4907
    %v5552 = vpack.c.b16 %v4912, %v4908
    %v5553 = vpack.c.b16 %v4917, %v4913
    %v5554 = vpack.c.b16 %v4918, %v4914
    %v5555 = vpack.c.b16 %v4919, %v4915
    %v5556 = vpack.c.b16 %v4920, %v4916
    %v5557 = vpack.c.b16 %v4925, %v4921
    %v5558 = vpack.c.b16 %v4926, %v4922
    %v5559 = vpack.c.b16 %v4927, %v4923
    %v5560 = vpack.c.b16 %v4928, %v4924
    %v5561 = vpack.c.b16 %v4933, %v4929
    %v5562 = vpack.c.b16 %v4934, %v4930
    %v5563 = vpack.c.b16 %v4935, %v4931
    %v5564 = vpack.c.b16 %v4936, %v4932
    %v5565 = vpack.c.b16 %v4941, %v4937
    %v5566 = vpack.c.b16 %v4942, %v4938
    %v5567 = vpack.c.b16 %v4943, %v4939
    %v5568 = vpack.c.b16 %v4944, %v4940
    %v5569 = vpack.c.b16 %v4949, %v4945
    %v5570 = vpack.c.b16 %v4950, %v4946
    %v5571 = vpack.c.b16 %v4951, %v4947
    %v5572 = vpack.c.b16 %v4952, %v4948
    %v5573 = vpack.c.b16 %v4957, %v4953
    %v5574 = vpack.c.b16 %v4958, %v4954
    %v5575 = vpack.c.b16 %v4959, %v4955
    %v5576 = vpack.c.b16 %v4960, %v4956
    %v5577 = vpack.c.b16 %v4965, %v4961
    %v5578 = vpack.c.b16 %v4966, %v4962
    %v5579 = vpack.c.b16 %v4967, %v4963
    %v5580 = vpack.c.b16 %v4968, %v4964
    %v5581 = vpack.c.b16 %v4973, %v4969
    %v5582 = vpack.c.b16 %v4974, %v4970
    %v5583 = vpack.c.b16 %v4975, %v4971
    %v5584 = vpack.c.b16 %v4976, %v4972
    %v5585 = vpack.c.b16 %v4981, %v4977
    %v5586 = vpack.c.b16 %v4982, %v4978
    %v5587 = vpack.c.b16 %v4983, %v4979
    %v5588 = vpack.c.b16 %v4984, %v4980
    %v5589 = vpack.c.b16 %v4989, %v4985
    %v5590 = vpack.c.b16 %v4990, %v4986
    %v5591 = vpack.c.b16 %v4991, %v4987
    %v5592 = vpack.c.b16 %v4992, %v4988
    %v5593 = vpack.c.b16 %v4997, %v4993
    %v5594 = vpack.c.b16 %v4998, %v4994
    %v5595 = vpack.c.b16 %v4999, %v4995
    %v5596 = vpack.c.b16 %v5000, %v4996
    %v5597 = vpack.c.b16 %v5005, %v5001
    %v5598 = vpack.c.b16 %v5006, %v5002
    %v5599 = vpack.c.b16 %v5007, %v5003
    %v5600 = vpack.c.b16 %v5008, %v5004
    %v5601 = vpack.c.b16 %v5013, %v5009
    %v5602 = vpack.c.b16 %v5014, %v5010
    %v5603 = vpack.c.b16 %v5015, %v5011
    %v5604 = vpack.c.b16 %v5016, %v5012
    %v5605 = vpack.c.b16 %v5021, %v5017
    %v5606 = vpack.c.b16 %v5022, %v5018
    %v5607 = vpack.c.b16 %v5023, %v5019
    %v5608 = vpack.c.b16 %v5024, %v5020
    %v5609 = vpack.c.b16 %v5029, %v5025
    %v5610 = vpack.c.b16 %v5030, %v5026
    %v5611 = vpack.c.b16 %v5031, %v5027
    %v5612 = vpack.c.b16 %v5032, %v5028
    %v5613 = vpack.c.b16 %v5037, %v5033
    %v5614 = vpack.c.b16 %v5038, %v5034
    %v5615 = vpack.c.b16 %v5039, %v5035
    %v5616 = vpack.c.b16 %v5040, %v5036
    %v5617 = vpack.c.b16 %v5045, %v5041
    %v5618 = vpack.c.b16 %v5046, %v5042
    %v5619 = vpack.c.b16 %v5047, %v5043
    %v5620 = vpack.c.b16 %v5048, %v5044
    %v5621 = vpack.c.b16 %v5053, %v5049
    %v5622 = vpack.c.b16 %v5054, %v5050
    %v5623 = vpack.c.b16 %v5055, %v5051
    %v5624 = vpack.c.b16 %v5056, %v5052
    %v5625 = vpack.c.b16 %v5061, %v5057
    %v5626 = vpack.c.b16 %v5062, %v5058
    %v5627 = vpack.c.b16 %v5063, %v5059
    %v5628 = vpack.c.b16 %v5064, %v5060
    %v5629 = vpack.c.b16 %v5069, %v5065
    %v5630 = vpack.c.b16 %v5070, %v5066
    %v5631 = vpack.c.b16 %v5071, %v5067
    %v5632 = vpack.c.b16 %v5072, %v5068
    %v5633 = vpack.c.b16 %v5077, %v5073
    %v5634 = vpack.c.b16 %v5078, %v5074
    %v5635 = vpack.c.b16 %v5079, %v5075
    %v5636 = vpack.c.b16 %v5080, %v5076
    %v5637 = vpack.c.b16 %v5085, %v5081
    %v5638 = vpack.c.b16 %v5086, %v5082
    %v5639 = vpack.c.b16 %v5087, %v5083
    %v5640 = vpack.c.b16 %v5088, %v5084
    %v5641 = vpack.c.b16 %v5093, %v5089
    %v5642 = vpack.c.b16 %v5094, %v5090
    %v5643 = vpack.c.b16 %v5095, %v5091
    %v5644 = vpack.c.b16 %v5096, %v5092
    %v5645 = vpack.c.b16 %v5101, %v5097
    %v5646 = vpack.c.b16 %v5102, %v5098
    %v5647 = vpack.c.b16 %v5103, %v5099
    %v5648 = vpack.c.b16 %v5104, %v5100
    %v5649 = vpack.c.b16 %v5109, %v5105
    %v5650 = vpack.c.b16 %v5110, %v5106
    %v5651 = vpack.c.b16 %v5111, %v5107
    %v5652 = vpack.c.b16 %v5112, %v5108
    %v5653 = vpack.c.b16 %v5117, %v5113
    %v5654 = vpack.c.b16 %v5118, %v5114
    %v5655 = vpack.c.b16 %v5119, %v5115
    %v5656 = vpack.c.b16 %v5120, %v5116
    %v5657 = vpack.c.b16 %v5125, %v5121
    %v5658 = vpack.c.b16 %v5126, %v5122
    %v5659 = vpack.c.b16 %v5127, %v5123
    %v5660 = vpack.c.b16 %v5128, %v5124
    %v5661 = vpack.c.b16 %v5133, %v5129
    %v5662 = vpack.c.b16 %v5134, %v5130
    %v5663 = vpack.c.b16 %v5135, %v5131
    %v5664 = vpack.c.b16 %v5136, %v5132
    %v5665 = vpack.c.b16 %v5141, %v5137
    %v5666 = vpack.c.b16 %v5142, %v5138
    %v5667 = vpack.c.b16 %v5143, %v5139
    %v5668 = vpack.c.b16 %v5144, %v5140
    %v5669 = vpack.c.b16 %v5149, %v5145
    %v5670 = vpack.c.b16 %v5150, %v5146
    %v5671 = vpack.c.b16 %v5151, %v5147
    %v5672 = vpack.c.b16 %v5152, %v5148
    %v5673 = vpack.c.b16 %v5157, %v5153
    %v5674 = vpack.c.b16 %v5158, %v5154
    %v5675 = vpack.c.b16 %v5159, %v5155
    %v5676 = vpack.c.b16 %v5160, %v5156
    %v5677 = vpack.c.b16 %v5165, %v5161
    %v5678 = vpack.c.b16 %v5166, %v5162
    %v5679 = vpack.c.b16 %v5167, %v5163
    %v5680 = vpack.c.b16 %v5168, %v5164
    %6193 = vmatprep.subr.bf16.mxu0 %v5170
    %6194 = vmatpush1.bf16.msra.mxu0 %v5169
    %6195 = vmatprep.subr.bf16.mxu0 %v5174
    %6196 = vmatpush1.bf16.msra.mxu0 %v5173
    %6197 = vmatprep.subr.bf16.mxu0 %v5178
    %6198 = vmatpush1.bf16.msra.mxu0 %v5177
    %6199 = vmatprep.subr.bf16.mxu0 %v5182
    %6200 = vmatpush1.bf16.msra.mxu0 %v5181
    %6201 = vmatprep.subr.bf16.mxu0 %v5186
    %6202 = vmatpush1.bf16.msra.mxu0 %v5185
    %6203 = vmatprep.subr.bf16.mxu0 %v5190
    %6204 = vmatpush1.bf16.msra.mxu0 %v5189
    %6205 = vmatprep.subr.bf16.mxu0 %v5194
    %6206 = vmatpush1.bf16.msra.mxu0 %v5193
    %6207 = vmatprep.subr.bf16.mxu0 %v5198
    %6208 = vmatpush1.bf16.msra.mxu0 %v5197
    %6209 = vmatprep.subr.bf16.mxu0 %v5202
    %6210 = vmatpush1.bf16.msra.mxu0 %v5201
    %6211 = vmatprep.subr.bf16.mxu0 %v5206
    %6212 = vmatpush1.bf16.msra.mxu0 %v5205
    %6213 = vmatprep.subr.bf16.mxu0 %v5210
    %6214 = vmatpush1.bf16.msra.mxu0 %v5209
    %6215 = vmatprep.subr.bf16.mxu0 %v5214
    %6216 = vmatpush1.bf16.msra.mxu0 %v5213
    %6217 = vmatprep.subr.bf16.mxu0 %v5218
    %6218 = vmatpush1.bf16.msra.mxu0 %v5217
    %6219 = vmatprep.subr.bf16.mxu0 %v5222
    %6220 = vmatpush1.bf16.msra.mxu0 %v5221
    %6221 = vmatprep.subr.bf16.mxu0 %v5226
    %6222 = vmatpush1.bf16.msra.mxu0 %v5225
    %6223 = vmatprep.subr.bf16.mxu0 %v5230
    %6224 = vmatpush1.bf16.msra.mxu0 %v5229
    %6225 = vmatprep.mubr.bf16.mxu0 %v3084
    %6226 = vmatmul.mubr.bf16.gmra.mrb[0].mxu0 %v3083
    %v6227 = vpop.f32.mrb[0].mxu0
    %v6228 = vadd.f32 %v3616, %v6227
    %v6229 = vpop.f32.mrb[0].mxu0
    %v6230 = vadd.f32 %v3620, %v6229
    %v6231 = vpop.f32.mrb[0].mxu0
    %v6232 = vpop.f32.mrb[0].mxu0
    %6233 = vdwg.mxu0
    %6234 = vmatprep.subr.bf16.mxu0 %v5234
    %6235 = vmatpush1.bf16.msra.mxu0 %v5233
    %6236 = vmatprep.subr.bf16.mxu0 %v5238
    %6237 = vmatpush1.bf16.msra.mxu0 %v5237
    %6238 = vmatprep.subr.bf16.mxu0 %v5242
    %6239 = vmatpush1.bf16.msra.mxu0 %v5241
    %6240 = vmatprep.subr.bf16.mxu0 %v5246
    %6241 = vmatpush1.bf16.msra.mxu0 %v5245
    %6242 = vmatprep.subr.bf16.mxu0 %v5250
    %6243 = vmatpush1.bf16.msra.mxu0 %v5249
    %6244 = vmatprep.subr.bf16.mxu0 %v5254
    %6245 = vmatpush1.bf16.msra.mxu0 %v5253
    %6246 = vmatprep.subr.bf16.mxu0 %v5258
    %6247 = vmatpush1.bf16.msra.mxu0 %v5257
    %6248 = vmatprep.subr.bf16.mxu0 %v5262
    %6249 = vmatpush1.bf16.msra.mxu0 %v5261
    %6250 = vmatprep.subr.bf16.mxu0 %v5266
    %6251 = vmatpush1.bf16.msra.mxu0 %v5265
    %6252 = vmatprep.subr.bf16.mxu0 %v5270
    %6253 = vmatpush1.bf16.msra.mxu0 %v5269
    %6254 = vmatprep.subr.bf16.mxu0 %v5274
    %6255 = vmatpush1.bf16.msra.mxu0 %v5273
    %6256 = vmatprep.subr.bf16.mxu0 %v5278
    %6257 = vmatpush1.bf16.msra.mxu0 %v5277
    %6258 = vmatprep.subr.bf16.mxu0 %v5282
    %6259 = vmatpush1.bf16.msra.mxu0 %v5281
    %6260 = vmatprep.subr.bf16.mxu0 %v5286
    %6261 = vmatpush1.bf16.msra.mxu0 %v5285
    %6262 = vmatprep.subr.bf16.mxu0 %v5290
    %6263 = vmatpush1.bf16.msra.mxu0 %v5289
    %6264 = vmatprep.subr.bf16.mxu0 %v5294
    %6265 = vmatpush1.bf16.msra.mxu0 %v5293
    %6266 = vmatprep.mubr.bf16.mxu0 %v3086
    %6267 = vmatmul.mubr.bf16.gmra.mrb[0].mxu0 %v3085
    %v6268 = vpop.f32.mrb[0].mxu0
    %v6269 = vadd.f32 %v6228, %v6268
    %v6270 = vpop.f32.mrb[0].mxu0
    %v6271 = vadd.f32 %v6230, %v6270
    %v6272 = vpop.f32.mrb[0].mxu0
    %v6273 = vpop.f32.mrb[0].mxu0
    %6274 = vdwg.mxu0
    %6275 = vmatprep.subr.bf16.mxu0 %v5298
    %6276 = vmatpush1.bf16.msra.mxu0 %v5297
    %6277 = vmatprep.subr.bf16.mxu0 %v5302
    %6278 = vmatpush1.bf16.msra.mxu0 %v5301
    %6279 = vmatprep.subr.bf16.mxu0 %v5306
    %6280 = vmatpush1.bf16.msra.mxu0 %v5305
    %6281 = vmatprep.subr.bf16.mxu0 %v5310
    %6282 = vmatpush1.bf16.msra.mxu0 %v5309
    %6283 = vmatprep.subr.bf16.mxu0 %v5314
    %6284 = vmatpush1.bf16.msra.mxu0 %v5313
    %6285 = vmatprep.subr.bf16.mxu0 %v5318
    %6286 = vmatpush1.bf16.msra.mxu0 %v5317
    %6287 = vmatprep.subr.bf16.mxu0 %v5322
    %6288 = vmatpush1.bf16.msra.mxu0 %v5321
    %6289 = vmatprep.subr.bf16.mxu0 %v5326
    %6290 = vmatpush1.bf16.msra.mxu0 %v5325
    %6291 = vmatprep.subr.bf16.mxu0 %v5330
    %6292 = vmatpush1.bf16.msra.mxu0 %v5329
    %6293 = vmatprep.subr.bf16.mxu0 %v5334
    %6294 = vmatpush1.bf16.msra.mxu0 %v5333
    %6295 = vmatprep.subr.bf16.mxu0 %v5338
    %6296 = vmatpush1.bf16.msra.mxu0 %v5337
    %6297 = vmatprep.subr.bf16.mxu0 %v5342
    %6298 = vmatpush1.bf16.msra.mxu0 %v5341
    %6299 = vmatprep.subr.bf16.mxu0 %v5346
    %6300 = vmatpush1.bf16.msra.mxu0 %v5345
    %6301 = vmatprep.subr.bf16.mxu0 %v5350
    %6302 = vmatpush1.bf16.msra.mxu0 %v5349
    %6303 = vmatprep.subr.bf16.mxu0 %v5354
    %6304 = vmatpush1.bf16.msra.mxu0 %v5353
    %6305 = vmatprep.subr.bf16.mxu0 %v5358
    %6306 = vmatpush1.bf16.msra.mxu0 %v5357
    %6307 = vmatprep.mubr.bf16.mxu0 %v3088
    %6308 = vmatmul.mubr.bf16.gmra.mrb[0].mxu0 %v3087
    %v6309 = vpop.f32.mrb[0].mxu0
    %v6310 = vadd.f32 %v6269, %v6309
    %v6311 = vpop.f32.mrb[0].mxu0
    %v6312 = vadd.f32 %v6271, %v6311
    %v6313 = vpop.f32.mrb[0].mxu0
    %v6314 = vpop.f32.mrb[0].mxu0
    %6315 = vdwg.mxu0
    %6316 = vmatprep.subr.bf16.mxu0 %v5362
    %6317 = vmatpush1.bf16.msra.mxu0 %v5361
    %6318 = vmatprep.subr.bf16.mxu0 %v5366
    %6319 = vmatpush1.bf16.msra.mxu0 %v5365
    %6320 = vmatprep.subr.bf16.mxu0 %v5370
    %6321 = vmatpush1.bf16.msra.mxu0 %v5369
    %6322 = vmatprep.subr.bf16.mxu0 %v5374
    %6323 = vmatpush1.bf16.msra.mxu0 %v5373
    %6324 = vmatprep.subr.bf16.mxu0 %v5378
    %6325 = vmatpush1.bf16.msra.mxu0 %v5377
    %6326 = vmatprep.subr.bf16.mxu0 %v5382
    %6327 = vmatpush1.bf16.msra.mxu0 %v5381
    %6328 = vmatprep.subr.bf16.mxu0 %v5386
    %6329 = vmatpush1.bf16.msra.mxu0 %v5385
    %6330 = vmatprep.subr.bf16.mxu0 %v5390
    %6331 = vmatpush1.bf16.msra.mxu0 %v5389
    %6332 = vmatprep.subr.bf16.mxu0 %v5394
    %6333 = vmatpush1.bf16.msra.mxu0 %v5393
    %6334 = vmatprep.subr.bf16.mxu0 %v5398
    %6335 = vmatpush1.bf16.msra.mxu0 %v5397
    %6336 = vmatprep.subr.bf16.mxu0 %v5402
    %6337 = vmatpush1.bf16.msra.mxu0 %v5401
    %6338 = vmatprep.subr.bf16.mxu0 %v5406
    %6339 = vmatpush1.bf16.msra.mxu0 %v5405
    %6340 = vmatprep.subr.bf16.mxu0 %v5410
    %6341 = vmatpush1.bf16.msra.mxu0 %v5409
    %6342 = vmatprep.subr.bf16.mxu0 %v5414
    %6343 = vmatpush1.bf16.msra.mxu0 %v5413
    %6344 = vmatprep.subr.bf16.mxu0 %v5418
    %6345 = vmatpush1.bf16.msra.mxu0 %v5417
    %6346 = vmatprep.subr.bf16.mxu0 %v5422
    %6347 = vmatpush1.bf16.msra.mxu0 %v5421
    %6348 = vmatprep.mubr.bf16.mxu0 %v3090
    %6349 = vmatmul.mubr.bf16.gmra.mrb[0].mxu0 %v3089
    %v6350 = vpop.f32.mrb[0].mxu0
    %v6351 = vadd.f32 %v6310, %v6350
    %v6352 = vpop.f32.mrb[0].mxu0
    %v6353 = vadd.f32 %v6312, %v6352
    %v6354 = vpop.f32.mrb[0].mxu0
    %v6355 = vpop.f32.mrb[0].mxu0
    %6356 = vdwg.mxu0
    %6357 = vmatprep.subr.bf16.mxu0 %v5426
    %6358 = vmatpush1.bf16.msra.mxu0 %v5425
    %6359 = vmatprep.subr.bf16.mxu0 %v5430
    %6360 = vmatpush1.bf16.msra.mxu0 %v5429
    %6361 = vmatprep.subr.bf16.mxu0 %v5434
    %6362 = vmatpush1.bf16.msra.mxu0 %v5433
    %6363 = vmatprep.subr.bf16.mxu0 %v5438
    %6364 = vmatpush1.bf16.msra.mxu0 %v5437
    %6365 = vmatprep.subr.bf16.mxu0 %v5442
    %6366 = vmatpush1.bf16.msra.mxu0 %v5441
    %6367 = vmatprep.subr.bf16.mxu0 %v5446
    %6368 = vmatpush1.bf16.msra.mxu0 %v5445
    %6369 = vmatprep.subr.bf16.mxu0 %v5450
    %6370 = vmatpush1.bf16.msra.mxu0 %v5449
    %6371 = vmatprep.subr.bf16.mxu0 %v5454
    %6372 = vmatpush1.bf16.msra.mxu0 %v5453
    %6373 = vmatprep.subr.bf16.mxu0 %v5458
    %6374 = vmatpush1.bf16.msra.mxu0 %v5457
    %6375 = vmatprep.subr.bf16.mxu0 %v5462
    %6376 = vmatpush1.bf16.msra.mxu0 %v5461
    %6377 = vmatprep.subr.bf16.mxu0 %v5466
    %6378 = vmatpush1.bf16.msra.mxu0 %v5465
    %6379 = vmatprep.subr.bf16.mxu0 %v5470
    %6380 = vmatpush1.bf16.msra.mxu0 %v5469
    %6381 = vmatprep.subr.bf16.mxu0 %v5474
    %6382 = vmatpush1.bf16.msra.mxu0 %v5473
    %6383 = vmatprep.subr.bf16.mxu0 %v5478
    %6384 = vmatpush1.bf16.msra.mxu0 %v5477
    %6385 = vmatprep.subr.bf16.mxu0 %v5482
    %6386 = vmatpush1.bf16.msra.mxu0 %v5481
    %6387 = vmatprep.subr.bf16.mxu0 %v5486
    %6388 = vmatpush1.bf16.msra.mxu0 %v5485
    %6389 = vmatprep.mubr.bf16.mxu0 %v3092
    %6390 = vmatmul.mubr.bf16.gmra.mrb[0].mxu0 %v3091
    %v6391 = vpop.f32.mrb[0].mxu0
    %v6392 = vadd.f32 %v6351, %v6391
    %v6393 = vpop.f32.mrb[0].mxu0
    %v6394 = vadd.f32 %v6353, %v6393
    %v6395 = vpop.f32.mrb[0].mxu0
    %v6396 = vpop.f32.mrb[0].mxu0
    %6397 = vdwg.mxu0
    %6398 = vmatprep.subr.bf16.mxu0 %v5490
    %6399 = vmatpush1.bf16.msra.mxu0 %v5489
    %6400 = vmatprep.subr.bf16.mxu0 %v5494
    %6401 = vmatpush1.bf16.msra.mxu0 %v5493
    %6402 = vmatprep.subr.bf16.mxu0 %v5498
    %6403 = vmatpush1.bf16.msra.mxu0 %v5497
    %6404 = vmatprep.subr.bf16.mxu0 %v5502
    %6405 = vmatpush1.bf16.msra.mxu0 %v5501
    %6406 = vmatprep.subr.bf16.mxu0 %v5506
    %6407 = vmatpush1.bf16.msra.mxu0 %v5505
    %6408 = vmatprep.subr.bf16.mxu0 %v5510
    %6409 = vmatpush1.bf16.msra.mxu0 %v5509
    %6410 = vmatprep.subr.bf16.mxu0 %v5514
    %6411 = vmatpush1.bf16.msra.mxu0 %v5513
    %6412 = vmatprep.subr.bf16.mxu0 %v5518
    %6413 = vmatpush1.bf16.msra.mxu0 %v5517
    %6414 = vmatprep.subr.bf16.mxu0 %v5522
    %6415 = vmatpush1.bf16.msra.mxu0 %v5521
    %6416 = vmatprep.subr.bf16.mxu0 %v5526
    %6417 = vmatpush1.bf16.msra.mxu0 %v5525
    %6418 = vmatprep.subr.bf16.mxu0 %v5530
    %6419 = vmatpush1.bf16.msra.mxu0 %v5529
    %6420 = vmatprep.subr.bf16.mxu0 %v5534
    %6421 = vmatpush1.bf16.msra.mxu0 %v5533
    %6422 = vmatprep.subr.bf16.mxu0 %v5538
    %6423 = vmatpush1.bf16.msra.mxu0 %v5537
    %6424 = vmatprep.subr.bf16.mxu0 %v5542
    %6425 = vmatpush1.bf16.msra.mxu0 %v5541
    %6426 = vmatprep.subr.bf16.mxu0 %v5546
    %6427 = vmatpush1.bf16.msra.mxu0 %v5545
    %6428 = vmatprep.subr.bf16.mxu0 %v5550
    %6429 = vmatpush1.bf16.msra.mxu0 %v5549
    %6430 = vmatprep.mubr.bf16.mxu0 %v3094
    %6431 = vmatmul.mubr.bf16.gmra.mrb[0].mxu0 %v3093
    %v6432 = vpop.f32.mrb[0].mxu0
    %v6433 = vadd.f32 %v6392, %v6432
    %v6434 = vpop.f32.mrb[0].mxu0
    %v6435 = vadd.f32 %v6394, %v6434
    %v6436 = vpop.f32.mrb[0].mxu0
    %v6437 = vpop.f32.mrb[0].mxu0
    %6438 = vdwg.mxu0
    %6439 = vmatprep.subr.bf16.mxu0 %v5554
    %6440 = vmatpush1.bf16.msra.mxu0 %v5553
    %6441 = vmatprep.subr.bf16.mxu0 %v5558
    %6442 = vmatpush1.bf16.msra.mxu0 %v5557
    %6443 = vmatprep.subr.bf16.mxu0 %v5562
    %6444 = vmatpush1.bf16.msra.mxu0 %v5561
    %6445 = vmatprep.subr.bf16.mxu0 %v5566
    %6446 = vmatpush1.bf16.msra.mxu0 %v5565
    %6447 = vmatprep.subr.bf16.mxu0 %v5570
    %6448 = vmatpush1.bf16.msra.mxu0 %v5569
    %6449 = vmatprep.subr.bf16.mxu0 %v5574
    %6450 = vmatpush1.bf16.msra.mxu0 %v5573
    %6451 = vmatprep.subr.bf16.mxu0 %v5578
    %6452 = vmatpush1.bf16.msra.mxu0 %v5577
    %6453 = vmatprep.subr.bf16.mxu0 %v5582
    %6454 = vmatpush1.bf16.msra.mxu0 %v5581
    %6455 = vmatprep.subr.bf16.mxu0 %v5586
    %6456 = vmatpush1.bf16.msra.mxu0 %v5585
    %6457 = vmatprep.subr.bf16.mxu0 %v5590
    %6458 = vmatpush1.bf16.msra.mxu0 %v5589
    %6459 = vmatprep.subr.bf16.mxu0 %v5594
    %6460 = vmatpush1.bf16.msra.mxu0 %v5593
    %6461 = vmatprep.subr.bf16.mxu0 %v5598
    %6462 = vmatpush1.bf16.msra.mxu0 %v5597
    %6463 = vmatprep.subr.bf16.mxu0 %v5602
    %6464 = vmatpush1.bf16.msra.mxu0 %v5601
    %6465 = vmatprep.subr.bf16.mxu0 %v5606
    %6466 = vmatpush1.bf16.msra.mxu0 %v5605
    %6467 = vmatprep.subr.bf16.mxu0 %v5610
    %6468 = vmatpush1.bf16.msra.mxu0 %v5609
    %6469 = vmatprep.subr.bf16.mxu0 %v5614
    %6470 = vmatpush1.bf16.msra.mxu0 %v5613
    %6471 = vmatprep.mubr.bf16.mxu0 %v3096
    %6472 = vmatmul.mubr.bf16.gmra.mrb[0].mxu0 %v3095
    %v6473 = vpop.f32.mrb[0].mxu0
    %v6474 = vadd.f32 %v6433, %v6473
    %v6475 = vpop.f32.mrb[0].mxu0
    %v6476 = vadd.f32 %v6435, %v6475
    %v6477 = vpop.f32.mrb[0].mxu0
    %v6478 = vpop.f32.mrb[0].mxu0
    %6479 = vdwg.mxu0
    %6480 = vmatprep.subr.bf16.mxu0 %v5618
    %6481 = vmatpush1.bf16.msra.mxu0 %v5617
    %6482 = vmatprep.subr.bf16.mxu0 %v5622
    %6483 = vmatpush1.bf16.msra.mxu0 %v5621
    %6484 = vmatprep.subr.bf16.mxu0 %v5626
    %6485 = vmatpush1.bf16.msra.mxu0 %v5625
    %6486 = vmatprep.subr.bf16.mxu0 %v5630
    %6487 = vmatpush1.bf16.msra.mxu0 %v5629
    %6488 = vmatprep.subr.bf16.mxu0 %v5634
    %6489 = vmatpush1.bf16.msra.mxu0 %v5633
    %6490 = vmatprep.subr.bf16.mxu0 %v5638
    %6491 = vmatpush1.bf16.msra.mxu0 %v5637
    %6492 = vmatprep.subr.bf16.mxu0 %v5642
    %6493 = vmatpush1.bf16.msra.mxu0 %v5641
    %6494 = vmatprep.subr.bf16.mxu0 %v5646
    %6495 = vmatpush1.bf16.msra.mxu0 %v5645
    %6496 = vmatprep.subr.bf16.mxu0 %v5650
    %6497 = vmatpush1.bf16.msra.mxu0 %v5649
    %6498 = vmatprep.subr.bf16.mxu0 %v5654
    %6499 = vmatpush1.bf16.msra.mxu0 %v5653
    %6500 = vmatprep.subr.bf16.mxu0 %v5658
    %6501 = vmatpush1.bf16.msra.mxu0 %v5657
    %6502 = vmatprep.subr.bf16.mxu0 %v5662
    %6503 = vmatpush1.bf16.msra.mxu0 %v5661
    %6504 = vmatprep.subr.bf16.mxu0 %v5666
    %6505 = vmatpush1.bf16.msra.mxu0 %v5665
    %6506 = vmatprep.subr.bf16.mxu0 %v5670
    %6507 = vmatpush1.bf16.msra.mxu0 %v5669
    %6508 = vmatprep.subr.bf16.mxu0 %v5674
    %6509 = vmatpush1.bf16.msra.mxu0 %v5673
    %6510 = vmatprep.subr.bf16.mxu0 %v5678
    %6511 = vmatpush1.bf16.msra.mxu0 %v5677
    %6512 = vmatprep.mubr.bf16.mxu0 %v3098
    %6513 = vmatmul.mubr.bf16.gmra.mrb[0].mxu0 %v3097
    %v6514 = vpop.f32.mrb[0].mxu0
    %v6515 = vadd.f32 %v6474, %v6514
    %v6516 = vpop.f32.mrb[0].mxu0
    %v6517 = vadd.f32 %v6476, %v6516
    %v6518 = vpop.f32.mrb[0].mxu0
    %v6519 = vpop.f32.mrb[0].mxu0
    %6520 = vdwg.mxu0
    %6521 = vmatprep.subr.bf16.mxu0 %v5172
    %6522 = vmatpush1.bf16.msra.mxu0 %v5171
    %6523 = vmatprep.subr.bf16.mxu0 %v5176
    %6524 = vmatpush1.bf16.msra.mxu0 %v5175
    %6525 = vmatprep.subr.bf16.mxu0 %v5180
    %6526 = vmatpush1.bf16.msra.mxu0 %v5179
    %6527 = vmatprep.subr.bf16.mxu0 %v5184
    %6528 = vmatpush1.bf16.msra.mxu0 %v5183
    %6529 = vmatprep.subr.bf16.mxu0 %v5188
    %6530 = vmatpush1.bf16.msra.mxu0 %v5187
    %6531 = vmatprep.subr.bf16.mxu0 %v5192
    %6532 = vmatpush1.bf16.msra.mxu0 %v5191
    %6533 = vmatprep.subr.bf16.mxu0 %v5196
    %6534 = vmatpush1.bf16.msra.mxu0 %v5195
    %6535 = vmatprep.subr.bf16.mxu0 %v5200
    %6536 = vmatpush1.bf16.msra.mxu0 %v5199
    %6537 = vmatprep.subr.bf16.mxu0 %v5204
    %6538 = vmatpush1.bf16.msra.mxu0 %v5203
    %6539 = vmatprep.subr.bf16.mxu0 %v5208
    %6540 = vmatpush1.bf16.msra.mxu0 %v5207
    %6541 = vmatprep.subr.bf16.mxu0 %v5212
    %6542 = vmatpush1.bf16.msra.mxu0 %v5211
    %6543 = vmatprep.subr.bf16.mxu0 %v5216
    %6544 = vmatpush1.bf16.msra.mxu0 %v5215
    %6545 = vmatprep.subr.bf16.mxu0 %v5220
    %6546 = vmatpush1.bf16.msra.mxu0 %v5219
    %6547 = vmatprep.subr.bf16.mxu0 %v5224
    %6548 = vmatpush1.bf16.msra.mxu0 %v5223
    %6549 = vmatprep.subr.bf16.mxu0 %v5228
    %6550 = vmatpush1.bf16.msra.mxu0 %v5227
    %6551 = vmatprep.subr.bf16.mxu0 %v5232
    %6552 = vmatpush1.bf16.msra.mxu0 %v5231
    %6553 = vmatprep.mubr.bf16.mxu0 %v3084
    %6554 = vmatmul.mubr.bf16.gmra.mrb[0].mxu0 %v3083
    %v6555 = vpop.f32.mrb[0].mxu0
    %v6556 = vadd.f32 %v3624, %v6555
    %v6557 = vpop.f32.mrb[0].mxu0
    %v6558 = vadd.f32 %v3628, %v6557
    %v6559 = vpop.f32.mrb[0].mxu0
    %v6560 = vpop.f32.mrb[0].mxu0
    %6561 = vdwg.mxu0
    %6562 = vmatprep.subr.bf16.mxu0 %v5236
    %6563 = vmatpush1.bf16.msra.mxu0 %v5235
    %6564 = vmatprep.subr.bf16.mxu0 %v5240
    %6565 = vmatpush1.bf16.msra.mxu0 %v5239
    %6566 = vmatprep.subr.bf16.mxu0 %v5244
    %6567 = vmatpush1.bf16.msra.mxu0 %v5243
    %6568 = vmatprep.subr.bf16.mxu0 %v5248
    %6569 = vmatpush1.bf16.msra.mxu0 %v5247
    %6570 = vmatprep.subr.bf16.mxu0 %v5252
    %6571 = vmatpush1.bf16.msra.mxu0 %v5251
    %6572 = vmatprep.subr.bf16.mxu0 %v5256
    %6573 = vmatpush1.bf16.msra.mxu0 %v5255
    %6574 = vmatprep.subr.bf16.mxu0 %v5260
    %6575 = vmatpush1.bf16.msra.mxu0 %v5259
    %6576 = vmatprep.subr.bf16.mxu0 %v5264
    %6577 = vmatpush1.bf16.msra.mxu0 %v5263
    %6578 = vmatprep.subr.bf16.mxu0 %v5268
    %6579 = vmatpush1.bf16.msra.mxu0 %v5267
    %6580 = vmatprep.subr.bf16.mxu0 %v5272
    %6581 = vmatpush1.bf16.msra.mxu0 %v5271
    %6582 = vmatprep.subr.bf16.mxu0 %v5276
    %6583 = vmatpush1.bf16.msra.mxu0 %v5275
    %6584 = vmatprep.subr.bf16.mxu0 %v5280
    %6585 = vmatpush1.bf16.msra.mxu0 %v5279
    %6586 = vmatprep.subr.bf16.mxu0 %v5284
    %6587 = vmatpush1.bf16.msra.mxu0 %v5283
    %6588 = vmatprep.subr.bf16.mxu0 %v5288
    %6589 = vmatpush1.bf16.msra.mxu0 %v5287
    %6590 = vmatprep.subr.bf16.mxu0 %v5292
    %6591 = vmatpush1.bf16.msra.mxu0 %v5291
    %6592 = vmatprep.subr.bf16.mxu0 %v5296
    %6593 = vmatpush1.bf16.msra.mxu0 %v5295
    %6594 = vmatprep.mubr.bf16.mxu0 %v3086
    %6595 = vmatmul.mubr.bf16.gmra.mrb[0].mxu0 %v3085
    %v6596 = vpop.f32.mrb[0].mxu0
    %v6597 = vadd.f32 %v6556, %v6596
    %v6598 = vpop.f32.mrb[0].mxu0
    %v6599 = vadd.f32 %v6558, %v6598
    %v6600 = vpop.f32.mrb[0].mxu0
    %v6601 = vpop.f32.mrb[0].mxu0
    %6602 = vdwg.mxu0
    %6603 = vmatprep.subr.bf16.mxu0 %v5300
    %6604 = vmatpush1.bf16.msra.mxu0 %v5299
    %6605 = vmatprep.subr.bf16.mxu0 %v5304
    %6606 = vmatpush1.bf16.msra.mxu0 %v5303
    %6607 = vmatprep.subr.bf16.mxu0 %v5308
    %6608 = vmatpush1.bf16.msra.mxu0 %v5307
    %6609 = vmatprep.subr.bf16.mxu0 %v5312
    %6610 = vmatpush1.bf16.msra.mxu0 %v5311
    %6611 = vmatprep.subr.bf16.mxu0 %v5316
    %6612 = vmatpush1.bf16.msra.mxu0 %v5315
    %6613 = vmatprep.subr.bf16.mxu0 %v5320
    %6614 = vmatpush1.bf16.msra.mxu0 %v5319
    %6615 = vmatprep.subr.bf16.mxu0 %v5324
    %6616 = vmatpush1.bf16.msra.mxu0 %v5323
    %6617 = vmatprep.subr.bf16.mxu0 %v5328
    %6618 = vmatpush1.bf16.msra.mxu0 %v5327
    %6619 = vmatprep.subr.bf16.mxu0 %v5332
    %6620 = vmatpush1.bf16.msra.mxu0 %v5331
    %6621 = vmatprep.subr.bf16.mxu0 %v5336
    %6622 = vmatpush1.bf16.msra.mxu0 %v5335
    %6623 = vmatprep.subr.bf16.mxu0 %v5340
    %6624 = vmatpush1.bf16.msra.mxu0 %v5339
    %6625 = vmatprep.subr.bf16.mxu0 %v5344
    %6626 = vmatpush1.bf16.msra.mxu0 %v5343
    %6627 = vmatprep.subr.bf16.mxu0 %v5348
    %6628 = vmatpush1.bf16.msra.mxu0 %v5347
    %6629 = vmatprep.subr.bf16.mxu0 %v5352
    %6630 = vmatpush1.bf16.msra.mxu0 %v5351
    %6631 = vmatprep.subr.bf16.mxu0 %v5356
    %6632 = vmatpush1.bf16.msra.mxu0 %v5355
    %6633 = vmatprep.subr.bf16.mxu0 %v5360
    %6634 = vmatpush1.bf16.msra.mxu0 %v5359
    %6635 = vmatprep.mubr.bf16.mxu0 %v3088
    %6636 = vmatmul.mubr.bf16.gmra.mrb[0].mxu0 %v3087
    %v6637 = vpop.f32.mrb[0].mxu0
    %v6638 = vadd.f32 %v6597, %v6637
    %v6639 = vpop.f32.mrb[0].mxu0
    %v6640 = vadd.f32 %v6599, %v6639
    %v6641 = vpop.f32.mrb[0].mxu0
    %v6642 = vpop.f32.mrb[0].mxu0
    %6643 = vdwg.mxu0
    %6644 = vmatprep.subr.bf16.mxu0 %v5364
    %6645 = vmatpush1.bf16.msra.mxu0 %v5363
    %6646 = vmatprep.subr.bf16.mxu0 %v5368
    %6647 = vmatpush1.bf16.msra.mxu0 %v5367
    %6648 = vmatprep.subr.bf16.mxu0 %v5372
    %6649 = vmatpush1.bf16.msra.mxu0 %v5371
    %6650 = vmatprep.subr.bf16.mxu0 %v5376
    %6651 = vmatpush1.bf16.msra.mxu0 %v5375
    %6652 = vmatprep.subr.bf16.mxu0 %v5380
    %6653 = vmatpush1.bf16.msra.mxu0 %v5379
    %6654 = vmatprep.subr.bf16.mxu0 %v5384
    %6655 = vmatpush1.bf16.msra.mxu0 %v5383
    %6656 = vmatprep.subr.bf16.mxu0 %v5388
    %6657 = vmatpush1.bf16.msra.mxu0 %v5387
    %6658 = vmatprep.subr.bf16.mxu0 %v5392
    %6659 = vmatpush1.bf16.msra.mxu0 %v5391
    %6660 = vmatprep.subr.bf16.mxu0 %v5396
    %6661 = vmatpush1.bf16.msra.mxu0 %v5395
    %6662 = vmatprep.subr.bf16.mxu0 %v5400
    %6663 = vmatpush1.bf16.msra.mxu0 %v5399
    %6664 = vmatprep.subr.bf16.mxu0 %v5404
    %6665 = vmatpush1.bf16.msra.mxu0 %v5403
    %6666 = vmatprep.subr.bf16.mxu0 %v5408
    %6667 = vmatpush1.bf16.msra.mxu0 %v5407
    %6668 = vmatprep.subr.bf16.mxu0 %v5412
    %6669 = vmatpush1.bf16.msra.mxu0 %v5411
    %6670 = vmatprep.subr.bf16.mxu0 %v5416
    %6671 = vmatpush1.bf16.msra.mxu0 %v5415
    %6672 = vmatprep.subr.bf16.mxu0 %v5420
    %6673 = vmatpush1.bf16.msra.mxu0 %v5419
    %6674 = vmatprep.subr.bf16.mxu0 %v5424
    %6675 = vmatpush1.bf16.msra.mxu0 %v5423
    %6676 = vmatprep.mubr.bf16.mxu0 %v3090
    %6677 = vmatmul.mubr.bf16.gmra.mrb[0].mxu0 %v3089
    %v6678 = vpop.f32.mrb[0].mxu0
    %v6679 = vadd.f32 %v6638, %v6678
    %v6680 = vpop.f32.mrb[0].mxu0
    %v6681 = vadd.f32 %v6640, %v6680
    %v6682 = vpop.f32.mrb[0].mxu0
    %v6683 = vpop.f32.mrb[0].mxu0
    %6684 = vdwg.mxu0
    %6685 = vmatprep.subr.bf16.mxu0 %v5428
    %6686 = vmatpush1.bf16.msra.mxu0 %v5427
    %6687 = vmatprep.subr.bf16.mxu0 %v5432
    %6688 = vmatpush1.bf16.msra.mxu0 %v5431
    %6689 = vmatprep.subr.bf16.mxu0 %v5436
    %6690 = vmatpush1.bf16.msra.mxu0 %v5435
    %6691 = vmatprep.subr.bf16.mxu0 %v5440
    %6692 = vmatpush1.bf16.msra.mxu0 %v5439
    %6693 = vmatprep.subr.bf16.mxu0 %v5444
    %6694 = vmatpush1.bf16.msra.mxu0 %v5443
    %6695 = vmatprep.subr.bf16.mxu0 %v5448
    %6696 = vmatpush1.bf16.msra.mxu0 %v5447
    %6697 = vmatprep.subr.bf16.mxu0 %v5452
    %6698 = vmatpush1.bf16.msra.mxu0 %v5451
    %6699 = vmatprep.subr.bf16.mxu0 %v5456
    %6700 = vmatpush1.bf16.msra.mxu0 %v5455
    %6701 = vmatprep.subr.bf16.mxu0 %v5460
    %6702 = vmatpush1.bf16.msra.mxu0 %v5459
    %6703 = vmatprep.subr.bf16.mxu0 %v5464
    %6704 = vmatpush1.bf16.msra.mxu0 %v5463
    %6705 = vmatprep.subr.bf16.mxu0 %v5468
    %6706 = vmatpush1.bf16.msra.mxu0 %v5467
    %6707 = vmatprep.subr.bf16.mxu0 %v5472
    %6708 = vmatpush1.bf16.msra.mxu0 %v5471
    %6709 = vmatprep.subr.bf16.mxu0 %v5476
    %6710 = vmatpush1.bf16.msra.mxu0 %v5475
    %6711 = vmatprep.subr.bf16.mxu0 %v5480
    %6712 = vmatpush1.bf16.msra.mxu0 %v5479
    %6713 = vmatprep.subr.bf16.mxu0 %v5484
    %6714 = vmatpush1.bf16.msra.mxu0 %v5483
    %6715 = vmatprep.subr.bf16.mxu0 %v5488
    %6716 = vmatpush1.bf16.msra.mxu0 %v5487
    %6717 = vmatprep.mubr.bf16.mxu0 %v3092
    %6718 = vmatmul.mubr.bf16.gmra.mrb[0].mxu0 %v3091
    %v6719 = vpop.f32.mrb[0].mxu0
    %v6720 = vadd.f32 %v6679, %v6719
    %v6721 = vpop.f32.mrb[0].mxu0
    %v6722 = vadd.f32 %v6681, %v6721
    %v6723 = vpop.f32.mrb[0].mxu0
    %v6724 = vpop.f32.mrb[0].mxu0
    %6725 = vdwg.mxu0
    %6726 = vmatprep.subr.bf16.mxu0 %v5492
    %6727 = vmatpush1.bf16.msra.mxu0 %v5491
    %6728 = vmatprep.subr.bf16.mxu0 %v5496
    %6729 = vmatpush1.bf16.msra.mxu0 %v5495
    %6730 = vmatprep.subr.bf16.mxu0 %v5500
    %6731 = vmatpush1.bf16.msra.mxu0 %v5499
    %6732 = vmatprep.subr.bf16.mxu0 %v5504
    %6733 = vmatpush1.bf16.msra.mxu0 %v5503
    %6734 = vmatprep.subr.bf16.mxu0 %v5508
    %6735 = vmatpush1.bf16.msra.mxu0 %v5507
    %6736 = vmatprep.subr.bf16.mxu0 %v5512
    %6737 = vmatpush1.bf16.msra.mxu0 %v5511
    %6738 = vmatprep.subr.bf16.mxu0 %v5516
    %6739 = vmatpush1.bf16.msra.mxu0 %v5515
    %6740 = vmatprep.subr.bf16.mxu0 %v5520
    %6741 = vmatpush1.bf16.msra.mxu0 %v5519
    %6742 = vmatprep.subr.bf16.mxu0 %v5524
    %6743 = vmatpush1.bf16.msra.mxu0 %v5523
    %6744 = vmatprep.subr.bf16.mxu0 %v5528
    %6745 = vmatpush1.bf16.msra.mxu0 %v5527
    %6746 = vmatprep.subr.bf16.mxu0 %v5532
    %6747 = vmatpush1.bf16.msra.mxu0 %v5531
    %6748 = vmatprep.subr.bf16.mxu0 %v5536
    %6749 = vmatpush1.bf16.msra.mxu0 %v5535
    %6750 = vmatprep.subr.bf16.mxu0 %v5540
    %6751 = vmatpush1.bf16.msra.mxu0 %v5539
    %6752 = vmatprep.subr.bf16.mxu0 %v5544
    %6753 = vmatpush1.bf16.msra.mxu0 %v5543
    %6754 = vmatprep.subr.bf16.mxu0 %v5548
    %6755 = vmatpush1.bf16.msra.mxu0 %v5547
    %6756 = vmatprep.subr.bf16.mxu0 %v5552
    %6757 = vmatpush1.bf16.msra.mxu0 %v5551
    %6758 = vmatprep.mubr.bf16.mxu0 %v3094
    %6759 = vmatmul.mubr.bf16.gmra.mrb[0].mxu0 %v3093
    %v6760 = vpop.f32.mrb[0].mxu0
    %v6761 = vadd.f32 %v6720, %v6760
    %v6762 = vpop.f32.mrb[0].mxu0
    %v6763 = vadd.f32 %v6722, %v6762
    %v6764 = vpop.f32.mrb[0].mxu0
    %v6765 = vpop.f32.mrb[0].mxu0
    %6766 = vdwg.mxu0
    %6767 = vmatprep.subr.bf16.mxu0 %v5556
    %6768 = vmatpush1.bf16.msra.mxu0 %v5555
    %6769 = vmatprep.subr.bf16.mxu0 %v5560
    %6770 = vmatpush1.bf16.msra.mxu0 %v5559
    %6771 = vmatprep.subr.bf16.mxu0 %v5564
    %6772 = vmatpush1.bf16.msra.mxu0 %v5563
    %6773 = vmatprep.subr.bf16.mxu0 %v5568
    %6774 = vmatpush1.bf16.msra.mxu0 %v5567
    %6775 = vmatprep.subr.bf16.mxu0 %v5572
    %6776 = vmatpush1.bf16.msra.mxu0 %v5571
    %6777 = vmatprep.subr.bf16.mxu0 %v5576
    %6778 = vmatpush1.bf16.msra.mxu0 %v5575
    %6779 = vmatprep.subr.bf16.mxu0 %v5580
    %6780 = vmatpush1.bf16.msra.mxu0 %v5579
    %6781 = vmatprep.subr.bf16.mxu0 %v5584
    %6782 = vmatpush1.bf16.msra.mxu0 %v5583
    %6783 = vmatprep.subr.bf16.mxu0 %v5588
    %6784 = vmatpush1.bf16.msra.mxu0 %v5587
    %6785 = vmatprep.subr.bf16.mxu0 %v5592
    %6786 = vmatpush1.bf16.msra.mxu0 %v5591
    %6787 = vmatprep.subr.bf16.mxu0 %v5596
    %6788 = vmatpush1.bf16.msra.mxu0 %v5595
    %6789 = vmatprep.subr.bf16.mxu0 %v5600
    %6790 = vmatpush1.bf16.msra.mxu0 %v5599
    %6791 = vmatprep.subr.bf16.mxu0 %v5604
    %6792 = vmatpush1.bf16.msra.mxu0 %v5603
    %6793 = vmatprep.subr.bf16.mxu0 %v5608
    %6794 = vmatpush1.bf16.msra.mxu0 %v5607
    %6795 = vmatprep.subr.bf16.mxu0 %v5612
    %6796 = vmatpush1.bf16.msra.mxu0 %v5611
    %6797 = vmatprep.subr.bf16.mxu0 %v5616
    %6798 = vmatpush1.bf16.msra.mxu0 %v5615
    %6799 = vmatprep.mubr.bf16.mxu0 %v3096
    %6800 = vmatmul.mubr.bf16.gmra.mrb[0].mxu0 %v3095
    %v6801 = vpop.f32.mrb[0].mxu0
    %v6802 = vadd.f32 %v6761, %v6801
    %v6803 = vpop.f32.mrb[0].mxu0
    %v6804 = vadd.f32 %v6763, %v6803
    %v6805 = vpop.f32.mrb[0].mxu0
    %v6806 = vpop.f32.mrb[0].mxu0
    %6807 = vdwg.mxu0
    %6808 = vmatprep.subr.bf16.mxu0 %v5620
    %6809 = vmatpush1.bf16.msra.mxu0 %v5619
    %6810 = vmatprep.subr.bf16.mxu0 %v5624
    %6811 = vmatpush1.bf16.msra.mxu0 %v5623
    %6812 = vmatprep.subr.bf16.mxu0 %v5628
    %6813 = vmatpush1.bf16.msra.mxu0 %v5627
    %6814 = vmatprep.subr.bf16.mxu0 %v5632
    %6815 = vmatpush1.bf16.msra.mxu0 %v5631
    %6816 = vmatprep.subr.bf16.mxu0 %v5636
    %6817 = vmatpush1.bf16.msra.mxu0 %v5635
    %6818 = vmatprep.subr.bf16.mxu0 %v5640
    %6819 = vmatpush1.bf16.msra.mxu0 %v5639
    %6820 = vmatprep.subr.bf16.mxu0 %v5644
    %6821 = vmatpush1.bf16.msra.mxu0 %v5643
    %6822 = vmatprep.subr.bf16.mxu0 %v5648
    %6823 = vmatpush1.bf16.msra.mxu0 %v5647
    %6824 = vmatprep.subr.bf16.mxu0 %v5652
    %6825 = vmatpush1.bf16.msra.mxu0 %v5651
    %6826 = vmatprep.subr.bf16.mxu0 %v5656
    %6827 = vmatpush1.bf16.msra.mxu0 %v5655
    %6828 = vmatprep.subr.bf16.mxu0 %v5660
    %6829 = vmatpush1.bf16.msra.mxu0 %v5659
    %6830 = vmatprep.subr.bf16.mxu0 %v5664
    %6831 = vmatpush1.bf16.msra.mxu0 %v5663
    %6832 = vmatprep.subr.bf16.mxu0 %v5668
    %6833 = vmatpush1.bf16.msra.mxu0 %v5667
    %6834 = vmatprep.subr.bf16.mxu0 %v5672
    %6835 = vmatpush1.bf16.msra.mxu0 %v5671
    %6836 = vmatprep.subr.bf16.mxu0 %v5676
    %6837 = vmatpush1.bf16.msra.mxu0 %v5675
    %6838 = vmatprep.subr.bf16.mxu0 %v5680
    %6839 = vmatpush1.bf16.msra.mxu0 %v5679
    %6840 = vmatprep.mubr.bf16.mxu0 %v3098
    %6841 = vmatmul.mubr.bf16.gmra.mrb[0].mxu0 %v3097
    %v6842 = vpop.f32.mrb[0].mxu0
    %v6843 = vadd.f32 %v6802, %v6842
    %v6844 = vpop.f32.mrb[0].mxu0
    %v6845 = vadd.f32 %v6804, %v6844
    %v6846 = vpop.f32.mrb[0].mxu0
    %v6847 = vpop.f32.mrb[0].mxu0
    %6848 = vdwg.mxu0
    %v6849 = vmax.f32 %v6515, 0.0
    %v6850 = vmax.f32 %v6517, 0.0
    %v6851 = vmax.f32 %v6843, 0.0
    %v6852 = vmax.f32 %v6845, 0.0
    %v6853 = vpack.c.bf16 %v6849, %v6849
    %v6854 = vpack.c.bf16 %v6850, %v6850
    %v6855 = vpack.c.bf16 %v6851, %v6851
    %v6856 = vpack.c.bf16 %v6852, %v6852
    %v6857 = vld [vmem:[#allocation14] sm:$0xff]
    %v6858 = vld [vmem:[#allocation14 + $0x8] sm:$0xff]
    %v6859 = vld [vmem:[#allocation14 + $0x10] sm:$0xff]
    %v6860 = vld [vmem:[#allocation14 + $0x18] sm:$0xff]
    %v6861 = vld [vmem:[#allocation14 + $0x20] sm:$0xff]
    %v6862 = vld [vmem:[#allocation14 + $0x28] sm:$0xff]
    %v6863 = vld [vmem:[#allocation14 + $0x30] sm:$0xff]
    %v6864 = vld [vmem:[#allocation14 + $0x38] sm:$0xff]
    %v6865 = vld [vmem:[#allocation14 + $0x40] sm:$0xff]
    %v6866 = vld [vmem:[#allocation14 + $0x48] sm:$0xff]
    %v6867 = vld [vmem:[#allocation14 + $0x50] sm:$0xff]
    %v6868 = vld [vmem:[#allocation14 + $0x58] sm:$0xff]
    %v6869 = vld [vmem:[#allocation14 + $0x60] sm:$0xff]
    %v6870 = vld [vmem:[#allocation14 + $0x68] sm:$0xff]
    %v6871 = vld [vmem:[#allocation14 + $0x70] sm:$0xff]
    %v6872 = vld [vmem:[#allocation14 + $0x78] sm:$0xff]
    %v6873 = vld [vmem:[#allocation14 + $0x80] sm:$0xff]
    %v6874 = vld [vmem:[#allocation14 + $0x88] sm:$0xff]
    %v6875 = vld [vmem:[#allocation14 + $0x90] sm:$0xff]
    %v6876 = vld [vmem:[#allocation14 + $0x98] sm:$0xff]
    %v6877 = vld [vmem:[#allocation14 + $0xa0] sm:$0xff]
    %v6878 = vld [vmem:[#allocation14 + $0xa8] sm:$0xff]
    %v6879 = vld [vmem:[#allocation14 + $0xb0] sm:$0xff]
    %v6880 = vld [vmem:[#allocation14 + $0xb8] sm:$0xff]
    %v6881 = vld [vmem:[#allocation14 + $0xc0] sm:$0xff]
    %v6882 = vld [vmem:[#allocation14 + $0xc8] sm:$0xff]
    %v6883 = vld [vmem:[#allocation14 + $0xd0] sm:$0xff]
    %v6884 = vld [vmem:[#allocation14 + $0xd8] sm:$0xff]
    %v6885 = vld [vmem:[#allocation14 + $0xe0] sm:$0xff]
    %v6886 = vld [vmem:[#allocation14 + $0xe8] sm:$0xff]
    %v6887 = vld [vmem:[#allocation14 + $0xf0] sm:$0xff]
    %v6888 = vld [vmem:[#allocation14 + $0xf8] sm:$0xff]
    %v6889 = vld [vmem:[#allocation14 + $0x100] sm:$0xff]
    %v6890 = vld [vmem:[#allocation14 + $0x108] sm:$0xff]
    %v6891 = vld [vmem:[#allocation14 + $0x110] sm:$0xff]
    %v6892 = vld [vmem:[#allocation14 + $0x118] sm:$0xff]
    %v6893 = vld [vmem:[#allocation14 + $0x120] sm:$0xff]
    %v6894 = vld [vmem:[#allocation14 + $0x128] sm:$0xff]
    %v6895 = vld [vmem:[#allocation14 + $0x130] sm:$0xff]
    %v6896 = vld [vmem:[#allocation14 + $0x138] sm:$0xff]
    %v6897 = vld [vmem:[#allocation14 + $0x140] sm:$0xff]
    %v6898 = vld [vmem:[#allocation14 + $0x148] sm:$0xff]
    %v6899 = vld [vmem:[#allocation14 + $0x150] sm:$0xff]
    %v6900 = vld [vmem:[#allocation14 + $0x158] sm:$0xff]
    %v6901 = vld [vmem:[#allocation14 + $0x160] sm:$0xff]
    %v6902 = vld [vmem:[#allocation14 + $0x168] sm:$0xff]
    %v6903 = vld [vmem:[#allocation14 + $0x170] sm:$0xff]
    %v6904 = vld [vmem:[#allocation14 + $0x178] sm:$0xff]
    %v6905 = vld [vmem:[#allocation14 + $0x180] sm:$0xff]
    %v6906 = vld [vmem:[#allocation14 + $0x188] sm:$0xff]
    %v6907 = vld [vmem:[#allocation14 + $0x190] sm:$0xff]
    %v6908 = vld [vmem:[#allocation14 + $0x198] sm:$0xff]
    %v6909 = vld [vmem:[#allocation14 + $0x1a0] sm:$0xff]
    %v6910 = vld [vmem:[#allocation14 + $0x1a8] sm:$0xff]
    %v6911 = vld [vmem:[#allocation14 + $0x1b0] sm:$0xff]
    %v6912 = vld [vmem:[#allocation14 + $0x1b8] sm:$0xff]
    %v6913 = vld [vmem:[#allocation14 + $0x1c0] sm:$0xff]
    %v6914 = vld [vmem:[#allocation14 + $0x1c8] sm:$0xff]
    %v6915 = vld [vmem:[#allocation14 + $0x1d0] sm:$0xff]
    %v6916 = vld [vmem:[#allocation14 + $0x1d8] sm:$0xff]
    %v6917 = vld [vmem:[#allocation14 + $0x1e0] sm:$0xff]
    %v6918 = vld [vmem:[#allocation14 + $0x1e8] sm:$0xff]
    %v6919 = vld [vmem:[#allocation14 + $0x1f0] sm:$0xff]
    %v6920 = vld [vmem:[#allocation14 + $0x1f8] sm:$0xff]
    %v6921 = vld [vmem:[#allocation14 + $0x200] sm:$0xff]
    %v6922 = vld [vmem:[#allocation14 + $0x208] sm:$0xff]
    %v6923 = vld [vmem:[#allocation14 + $0x210] sm:$0xff]
    %v6924 = vld [vmem:[#allocation14 + $0x218] sm:$0xff]
    %v6925 = vld [vmem:[#allocation14 + $0x220] sm:$0xff]
    %v6926 = vld [vmem:[#allocation14 + $0x228] sm:$0xff]
    %v6927 = vld [vmem:[#allocation14 + $0x230] sm:$0xff]
    %v6928 = vld [vmem:[#allocation14 + $0x238] sm:$0xff]
    %v6929 = vld [vmem:[#allocation14 + $0x240] sm:$0xff]
    %v6930 = vld [vmem:[#allocation14 + $0x248] sm:$0xff]
    %v6931 = vld [vmem:[#allocation14 + $0x250] sm:$0xff]
    %v6932 = vld [vmem:[#allocation14 + $0x258] sm:$0xff]
    %v6933 = vld [vmem:[#allocation14 + $0x260] sm:$0xff]
    %v6934 = vld [vmem:[#allocation14 + $0x268] sm:$0xff]
    %v6935 = vld [vmem:[#allocation14 + $0x270] sm:$0xff]
    %v6936 = vld [vmem:[#allocation14 + $0x278] sm:$0xff]
    %v6937 = vld [vmem:[#allocation14 + $0x280] sm:$0xff]
    %v6938 = vld [vmem:[#allocation14 + $0x288] sm:$0xff]
    %v6939 = vld [vmem:[#allocation14 + $0x290] sm:$0xff]
    %v6940 = vld [vmem:[#allocation14 + $0x298] sm:$0xff]
    %v6941 = vld [vmem:[#allocation14 + $0x2a0] sm:$0xff]
    %v6942 = vld [vmem:[#allocation14 + $0x2a8] sm:$0xff]
    %v6943 = vld [vmem:[#allocation14 + $0x2b0] sm:$0xff]
    %v6944 = vld [vmem:[#allocation14 + $0x2b8] sm:$0xff]
    %v6945 = vld [vmem:[#allocation14 + $0x2c0] sm:$0xff]
    %v6946 = vld [vmem:[#allocation14 + $0x2c8] sm:$0xff]
    %v6947 = vld [vmem:[#allocation14 + $0x2d0] sm:$0xff]
    %v6948 = vld [vmem:[#allocation14 + $0x2d8] sm:$0xff]
    %v6949 = vld [vmem:[#allocation14 + $0x2e0] sm:$0xff]
    %v6950 = vld [vmem:[#allocation14 + $0x2e8] sm:$0xff]
    %v6951 = vld [vmem:[#allocation14 + $0x2f0] sm:$0xff]
    %v6952 = vld [vmem:[#allocation14 + $0x2f8] sm:$0xff]
    %v6953 = vld [vmem:[#allocation14 + $0x300] sm:$0xff]
    %v6954 = vld [vmem:[#allocation14 + $0x308] sm:$0xff]
    %v6955 = vld [vmem:[#allocation14 + $0x310] sm:$0xff]
    %v6956 = vld [vmem:[#allocation14 + $0x318] sm:$0xff]
    %v6957 = vld [vmem:[#allocation14 + $0x320] sm:$0xff]
    %v6958 = vld [vmem:[#allocation14 + $0x328] sm:$0xff]
    %v6959 = vld [vmem:[#allocation14 + $0x330] sm:$0xff]
    %v6960 = vld [vmem:[#allocation14 + $0x338] sm:$0xff]
    %v6961 = vld [vmem:[#allocation14 + $0x340] sm:$0xff]
    %v6962 = vld [vmem:[#allocation14 + $0x348] sm:$0xff]
    %v6963 = vld [vmem:[#allocation14 + $0x350] sm:$0xff]
    %v6964 = vld [vmem:[#allocation14 + $0x358] sm:$0xff]
    %v6965 = vld [vmem:[#allocation14 + $0x360] sm:$0xff]
    %v6966 = vld [vmem:[#allocation14 + $0x368] sm:$0xff]
    %v6967 = vld [vmem:[#allocation14 + $0x370] sm:$0xff]
    %v6968 = vld [vmem:[#allocation14 + $0x378] sm:$0xff]
    %v6969 = vld [vmem:[#allocation14 + $0x380] sm:$0xff]
    %v6970 = vld [vmem:[#allocation14 + $0x388] sm:$0xff]
    %v6971 = vld [vmem:[#allocation14 + $0x390] sm:$0xff]
    %v6972 = vld [vmem:[#allocation14 + $0x398] sm:$0xff]
    %v6973 = vld [vmem:[#allocation14 + $0x3a0] sm:$0xff]
    %v6974 = vld [vmem:[#allocation14 + $0x3a8] sm:$0xff]
    %v6975 = vld [vmem:[#allocation14 + $0x3b0] sm:$0xff]
    %v6976 = vld [vmem:[#allocation14 + $0x3b8] sm:$0xff]
    %v6977 = vld [vmem:[#allocation14 + $0x3c0] sm:$0xff]
    %v6978 = vld [vmem:[#allocation14 + $0x3c8] sm:$0xff]
    %v6979 = vld [vmem:[#allocation14 + $0x3d0] sm:$0xff]
    %v6980 = vld [vmem:[#allocation14 + $0x3d8] sm:$0xff]
    %v6981 = vld [vmem:[#allocation14 + $0x3e0] sm:$0xff]
    %v6982 = vld [vmem:[#allocation14 + $0x3e8] sm:$0xff]
    %v6983 = vld [vmem:[#allocation14 + $0x3f0] sm:$0xff]
    %v6984 = vld [vmem:[#allocation14 + $0x3f8] sm:$0xff]
    %v6985 = vld [vmem:[#allocation16] sm:$0xf]
    %v6987 = vlaneseq
    %v6988 = vshrl.u32 %v6987, 7
    %v6989 = vsub.s32 0, %v6988
    %v6990 = vrot.slane %v6985, %v6989
    %v6991 = vlaneseq
    %v6992 = vshrl.u32 %v6991, 7
    %v6993 = vsub.s32 1, %v6992
    %v6994 = vrot.slane %v6985, %v6993
    %v6995 = vlaneseq
    %v6996 = vshrl.u32 %v6995, 7
    %v6997 = vsub.s32 2, %v6996
    %v6998 = vrot.slane %v6985, %v6997
    %v6999 = vlaneseq
    %v7000 = vshrl.u32 %v6999, 7
    %v7001 = vsub.s32 3, %v7000
    %v7002 = vrot.slane %v6985, %v7001
    %v7135 = vunpack.c.l.b16 %v6857
    %v7136 = vunpack.c.h.b16 %v6857
    %v7137 = vunpack.c.l.b16 %v6858
    %v7138 = vunpack.c.h.b16 %v6858
    %v7139 = vunpack.c.l.b16 %v6859
    %v7140 = vunpack.c.h.b16 %v6859
    %v7141 = vunpack.c.l.b16 %v6860
    %v7142 = vunpack.c.h.b16 %v6860
    %v7143 = vunpack.c.l.b16 %v6861
    %v7144 = vunpack.c.h.b16 %v6861
    %v7145 = vunpack.c.l.b16 %v6862
    %v7146 = vunpack.c.h.b16 %v6862
    %v7147 = vunpack.c.l.b16 %v6863
    %v7148 = vunpack.c.h.b16 %v6863
    %v7149 = vunpack.c.l.b16 %v6864
    %v7150 = vunpack.c.h.b16 %v6864
    %v7151 = vunpack.c.l.b16 %v6865
    %v7152 = vunpack.c.h.b16 %v6865
    %v7153 = vunpack.c.l.b16 %v6866
    %v7154 = vunpack.c.h.b16 %v6866
    %v7155 = vunpack.c.l.b16 %v6867
    %v7156 = vunpack.c.h.b16 %v6867
    %v7157 = vunpack.c.l.b16 %v6868
    %v7158 = vunpack.c.h.b16 %v6868
    %v7159 = vunpack.c.l.b16 %v6869
    %v7160 = vunpack.c.h.b16 %v6869
    %v7161 = vunpack.c.l.b16 %v6870
    %v7162 = vunpack.c.h.b16 %v6870
    %v7163 = vunpack.c.l.b16 %v6871
    %v7164 = vunpack.c.h.b16 %v6871
    %v7165 = vunpack.c.l.b16 %v6872
    %v7166 = vunpack.c.h.b16 %v6872
    %v7167 = vunpack.c.l.b16 %v6873
    %v7168 = vunpack.c.h.b16 %v6873
    %v7169 = vunpack.c.l.b16 %v6874
    %v7170 = vunpack.c.h.b16 %v6874
    %v7171 = vunpack.c.l.b16 %v6875
    %v7172 = vunpack.c.h.b16 %v6875
    %v7173 = vunpack.c.l.b16 %v6876
    %v7174 = vunpack.c.h.b16 %v6876
    %v7175 = vunpack.c.l.b16 %v6877
    %v7176 = vunpack.c.h.b16 %v6877
    %v7177 = vunpack.c.l.b16 %v6878
    %v7178 = vunpack.c.h.b16 %v6878
    %v7179 = vunpack.c.l.b16 %v6879
    %v7180 = vunpack.c.h.b16 %v6879
    %v7181 = vunpack.c.l.b16 %v6880
    %v7182 = vunpack.c.h.b16 %v6880
    %v7183 = vunpack.c.l.b16 %v6881
    %v7184 = vunpack.c.h.b16 %v6881
    %v7185 = vunpack.c.l.b16 %v6882
    %v7186 = vunpack.c.h.b16 %v6882
    %v7187 = vunpack.c.l.b16 %v6883
    %v7188 = vunpack.c.h.b16 %v6883
    %v7189 = vunpack.c.l.b16 %v6884
    %v7190 = vunpack.c.h.b16 %v6884
    %v7191 = vunpack.c.l.b16 %v6885
    %v7192 = vunpack.c.h.b16 %v6885
    %v7193 = vunpack.c.l.b16 %v6886
    %v7194 = vunpack.c.h.b16 %v6886
    %v7195 = vunpack.c.l.b16 %v6887
    %v7196 = vunpack.c.h.b16 %v6887
    %v7197 = vunpack.c.l.b16 %v6888
    %v7198 = vunpack.c.h.b16 %v6888
    %v7199 = vunpack.c.l.b16 %v6889
    %v7200 = vunpack.c.h.b16 %v6889
    %v7201 = vunpack.c.l.b16 %v6890
    %v7202 = vunpack.c.h.b16 %v6890
    %v7203 = vunpack.c.l.b16 %v6891
    %v7204 = vunpack.c.h.b16 %v6891
    %v7205 = vunpack.c.l.b16 %v6892
    %v7206 = vunpack.c.h.b16 %v6892
    %v7207 = vunpack.c.l.b16 %v6893
    %v7208 = vunpack.c.h.b16 %v6893
    %v7209 = vunpack.c.l.b16 %v6894
    %v7210 = vunpack.c.h.b16 %v6894
    %v7211 = vunpack.c.l.b16 %v6895
    %v7212 = vunpack.c.h.b16 %v6895
    %v7213 = vunpack.c.l.b16 %v6896
    %v7214 = vunpack.c.h.b16 %v6896
    %v7215 = vunpack.c.l.b16 %v6897
    %v7216 = vunpack.c.h.b16 %v6897
    %v7217 = vunpack.c.l.b16 %v6898
    %v7218 = vunpack.c.h.b16 %v6898
    %v7219 = vunpack.c.l.b16 %v6899
    %v7220 = vunpack.c.h.b16 %v6899
    %v7221 = vunpack.c.l.b16 %v6900
    %v7222 = vunpack.c.h.b16 %v6900
    %v7223 = vunpack.c.l.b16 %v6901
    %v7224 = vunpack.c.h.b16 %v6901
    %v7225 = vunpack.c.l.b16 %v6902
    %v7226 = vunpack.c.h.b16 %v6902
    %v7227 = vunpack.c.l.b16 %v6903
    %v7228 = vunpack.c.h.b16 %v6903
    %v7229 = vunpack.c.l.b16 %v6904
    %v7230 = vunpack.c.h.b16 %v6904
    %v7231 = vunpack.c.l.b16 %v6905
    %v7232 = vunpack.c.h.b16 %v6905
    %v7233 = vunpack.c.l.b16 %v6906
    %v7234 = vunpack.c.h.b16 %v6906
    %v7235 = vunpack.c.l.b16 %v6907
    %v7236 = vunpack.c.h.b16 %v6907
    %v7237 = vunpack.c.l.b16 %v6908
    %v7238 = vunpack.c.h.b16 %v6908
    %v7239 = vunpack.c.l.b16 %v6909
    %v7240 = vunpack.c.h.b16 %v6909
    %v7241 = vunpack.c.l.b16 %v6910
    %v7242 = vunpack.c.h.b16 %v6910
    %v7243 = vunpack.c.l.b16 %v6911
    %v7244 = vunpack.c.h.b16 %v6911
    %v7245 = vunpack.c.l.b16 %v6912
    %v7246 = vunpack.c.h.b16 %v6912
    %v7247 = vunpack.c.l.b16 %v6913
    %v7248 = vunpack.c.h.b16 %v6913
    %v7249 = vunpack.c.l.b16 %v6914
    %v7250 = vunpack.c.h.b16 %v6914
    %v7251 = vunpack.c.l.b16 %v6915
    %v7252 = vunpack.c.h.b16 %v6915
    %v7253 = vunpack.c.l.b16 %v6916
    %v7254 = vunpack.c.h.b16 %v6916
    %v7255 = vunpack.c.l.b16 %v6917
    %v7256 = vunpack.c.h.b16 %v6917
    %v7257 = vunpack.c.l.b16 %v6918
    %v7258 = vunpack.c.h.b16 %v6918
    %v7259 = vunpack.c.l.b16 %v6919
    %v7260 = vunpack.c.h.b16 %v6919
    %v7261 = vunpack.c.l.b16 %v6920
    %v7262 = vunpack.c.h.b16 %v6920
    %v7263 = vunpack.c.l.b16 %v6921
    %v7264 = vunpack.c.h.b16 %v6921
    %v7265 = vunpack.c.l.b16 %v6922
    %v7266 = vunpack.c.h.b16 %v6922
    %v7267 = vunpack.c.l.b16 %v6923
    %v7268 = vunpack.c.h.b16 %v6923
    %v7269 = vunpack.c.l.b16 %v6924
    %v7270 = vunpack.c.h.b16 %v6924
    %v7271 = vunpack.c.l.b16 %v6925
    %v7272 = vunpack.c.h.b16 %v6925
    %v7273 = vunpack.c.l.b16 %v6926
    %v7274 = vunpack.c.h.b16 %v6926
    %v7275 = vunpack.c.l.b16 %v6927
    %v7276 = vunpack.c.h.b16 %v6927
    %v7277 = vunpack.c.l.b16 %v6928
    %v7278 = vunpack.c.h.b16 %v6928
    %v7279 = vunpack.c.l.b16 %v6929
    %v7280 = vunpack.c.h.b16 %v6929
    %v7281 = vunpack.c.l.b16 %v6930
    %v7282 = vunpack.c.h.b16 %v6930
    %v7283 = vunpack.c.l.b16 %v6931
    %v7284 = vunpack.c.h.b16 %v6931
    %v7285 = vunpack.c.l.b16 %v6932
    %v7286 = vunpack.c.h.b16 %v6932
    %v7287 = vunpack.c.l.b16 %v6933
    %v7288 = vunpack.c.h.b16 %v6933
    %v7289 = vunpack.c.l.b16 %v6934
    %v7290 = vunpack.c.h.b16 %v6934
    %v7291 = vunpack.c.l.b16 %v6935
    %v7292 = vunpack.c.h.b16 %v6935
    %v7293 = vunpack.c.l.b16 %v6936
    %v7294 = vunpack.c.h.b16 %v6936
    %v7295 = vunpack.c.l.b16 %v6937
    %v7296 = vunpack.c.h.b16 %v6937
    %v7297 = vunpack.c.l.b16 %v6938
    %v7298 = vunpack.c.h.b16 %v6938
    %v7299 = vunpack.c.l.b16 %v6939
    %v7300 = vunpack.c.h.b16 %v6939
    %v7301 = vunpack.c.l.b16 %v6940
    %v7302 = vunpack.c.h.b16 %v6940
    %v7303 = vunpack.c.l.b16 %v6941
    %v7304 = vunpack.c.h.b16 %v6941
    %v7305 = vunpack.c.l.b16 %v6942
    %v7306 = vunpack.c.h.b16 %v6942
    %v7307 = vunpack.c.l.b16 %v6943
    %v7308 = vunpack.c.h.b16 %v6943
    %v7309 = vunpack.c.l.b16 %v6944
    %v7310 = vunpack.c.h.b16 %v6944
    %v7311 = vunpack.c.l.b16 %v6945
    %v7312 = vunpack.c.h.b16 %v6945
    %v7313 = vunpack.c.l.b16 %v6946
    %v7314 = vunpack.c.h.b16 %v6946
    %v7315 = vunpack.c.l.b16 %v6947
    %v7316 = vunpack.c.h.b16 %v6947
    %v7317 = vunpack.c.l.b16 %v6948
    %v7318 = vunpack.c.h.b16 %v6948
    %v7319 = vunpack.c.l.b16 %v6949
    %v7320 = vunpack.c.h.b16 %v6949
    %v7321 = vunpack.c.l.b16 %v6950
    %v7322 = vunpack.c.h.b16 %v6950
    %v7323 = vunpack.c.l.b16 %v6951
    %v7324 = vunpack.c.h.b16 %v6951
    %v7325 = vunpack.c.l.b16 %v6952
    %v7326 = vunpack.c.h.b16 %v6952
    %v7327 = vunpack.c.l.b16 %v6953
    %v7328 = vunpack.c.h.b16 %v6953
    %v7329 = vunpack.c.l.b16 %v6954
    %v7330 = vunpack.c.h.b16 %v6954
    %v7331 = vunpack.c.l.b16 %v6955
    %v7332 = vunpack.c.h.b16 %v6955
    %v7333 = vunpack.c.l.b16 %v6956
    %v7334 = vunpack.c.h.b16 %v6956
    %v7335 = vunpack.c.l.b16 %v6957
    %v7336 = vunpack.c.h.b16 %v6957
    %v7337 = vunpack.c.l.b16 %v6958
    %v7338 = vunpack.c.h.b16 %v6958
    %v7339 = vunpack.c.l.b16 %v6959
    %v7340 = vunpack.c.h.b16 %v6959
    %v7341 = vunpack.c.l.b16 %v6960
    %v7342 = vunpack.c.h.b16 %v6960
    %v7343 = vunpack.c.l.b16 %v6961
    %v7344 = vunpack.c.h.b16 %v6961
    %v7345 = vunpack.c.l.b16 %v6962
    %v7346 = vunpack.c.h.b16 %v6962
    %v7347 = vunpack.c.l.b16 %v6963
    %v7348 = vunpack.c.h.b16 %v6963
    %v7349 = vunpack.c.l.b16 %v6964
    %v7350 = vunpack.c.h.b16 %v6964
    %v7351 = vunpack.c.l.b16 %v6965
    %v7352 = vunpack.c.h.b16 %v6965
    %v7353 = vunpack.c.l.b16 %v6966
    %v7354 = vunpack.c.h.b16 %v6966
    %v7355 = vunpack.c.l.b16 %v6967
    %v7356 = vunpack.c.h.b16 %v6967
    %v7357 = vunpack.c.l.b16 %v6968
    %v7358 = vunpack.c.h.b16 %v6968
    %v7359 = vunpack.c.l.b16 %v6969
    %v7360 = vunpack.c.h.b16 %v6969
    %v7361 = vunpack.c.l.b16 %v6970
    %v7362 = vunpack.c.h.b16 %v6970
    %v7363 = vunpack.c.l.b16 %v6971
    %v7364 = vunpack.c.h.b16 %v6971
    %v7365 = vunpack.c.l.b16 %v6972
    %v7366 = vunpack.c.h.b16 %v6972
    %v7367 = vunpack.c.l.b16 %v6973
    %v7368 = vunpack.c.h.b16 %v6973
    %v7369 = vunpack.c.l.b16 %v6974
    %v7370 = vunpack.c.h.b16 %v6974
    %v7371 = vunpack.c.l.b16 %v6975
    %v7372 = vunpack.c.h.b16 %v6975
    %v7373 = vunpack.c.l.b16 %v6976
    %v7374 = vunpack.c.h.b16 %v6976
    %v7375 = vunpack.c.l.b16 %v6977
    %v7376 = vunpack.c.h.b16 %v6977
    %v7377 = vunpack.c.l.b16 %v6978
    %v7378 = vunpack.c.h.b16 %v6978
    %v7379 = vunpack.c.l.b16 %v6979
    %v7380 = vunpack.c.h.b16 %v6979
    %v7381 = vunpack.c.l.b16 %v6980
    %v7382 = vunpack.c.h.b16 %v6980
    %v7383 = vunpack.c.l.b16 %v6981
    %v7384 = vunpack.c.h.b16 %v6981
    %v7385 = vunpack.c.l.b16 %v6982
    %v7386 = vunpack.c.h.b16 %v6982
    %v7387 = vunpack.c.l.b16 %v6983
    %v7388 = vunpack.c.h.b16 %v6983
    %v7389 = vunpack.c.l.b16 %v6984
    %v7390 = vunpack.c.h.b16 %v6984
    %v7391 = vpack.c.b16 %v7139, %v7135
    %v7392 = vpack.c.b16 %v7140, %v7136
    %v7393 = vpack.c.b16 %v7141, %v7137
    %v7394 = vpack.c.b16 %v7142, %v7138
    %v7395 = vpack.c.b16 %v7147, %v7143
    %v7396 = vpack.c.b16 %v7148, %v7144
    %v7397 = vpack.c.b16 %v7149, %v7145
    %v7398 = vpack.c.b16 %v7150, %v7146
    %v7399 = vpack.c.b16 %v7155, %v7151
    %v7400 = vpack.c.b16 %v7156, %v7152
    %v7401 = vpack.c.b16 %v7157, %v7153
    %v7402 = vpack.c.b16 %v7158, %v7154
    %v7403 = vpack.c.b16 %v7163, %v7159
    %v7404 = vpack.c.b16 %v7164, %v7160
    %v7405 = vpack.c.b16 %v7165, %v7161
    %v7406 = vpack.c.b16 %v7166, %v7162
    %v7407 = vpack.c.b16 %v7171, %v7167
    %v7408 = vpack.c.b16 %v7172, %v7168
    %v7409 = vpack.c.b16 %v7173, %v7169
    %v7410 = vpack.c.b16 %v7174, %v7170
    %v7411 = vpack.c.b16 %v7179, %v7175
    %v7412 = vpack.c.b16 %v7180, %v7176
    %v7413 = vpack.c.b16 %v7181, %v7177
    %v7414 = vpack.c.b16 %v7182, %v7178
    %v7415 = vpack.c.b16 %v7187, %v7183
    %v7416 = vpack.c.b16 %v7188, %v7184
    %v7417 = vpack.c.b16 %v7189, %v7185
    %v7418 = vpack.c.b16 %v7190, %v7186
    %v7419 = vpack.c.b16 %v7195, %v7191
    %v7420 = vpack.c.b16 %v7196, %v7192
    %v7421 = vpack.c.b16 %v7197, %v7193
    %v7422 = vpack.c.b16 %v7198, %v7194
    %v7423 = vpack.c.b16 %v7203, %v7199
    %v7424 = vpack.c.b16 %v7204, %v7200
    %v7425 = vpack.c.b16 %v7205, %v7201
    %v7426 = vpack.c.b16 %v7206, %v7202
    %v7427 = vpack.c.b16 %v7211, %v7207
    %v7428 = vpack.c.b16 %v7212, %v7208
    %v7429 = vpack.c.b16 %v7213, %v7209
    %v7430 = vpack.c.b16 %v7214, %v7210
    %v7431 = vpack.c.b16 %v7219, %v7215
    %v7432 = vpack.c.b16 %v7220, %v7216
    %v7433 = vpack.c.b16 %v7221, %v7217
    %v7434 = vpack.c.b16 %v7222, %v7218
    %v7435 = vpack.c.b16 %v7227, %v7223
    %v7436 = vpack.c.b16 %v7228, %v7224
    %v7437 = vpack.c.b16 %v7229, %v7225
    %v7438 = vpack.c.b16 %v7230, %v7226
    %v7439 = vpack.c.b16 %v7235, %v7231
    %v7440 = vpack.c.b16 %v7236, %v7232
    %v7441 = vpack.c.b16 %v7237, %v7233
    %v7442 = vpack.c.b16 %v7238, %v7234
    %v7443 = vpack.c.b16 %v7243, %v7239
    %v7444 = vpack.c.b16 %v7244, %v7240
    %v7445 = vpack.c.b16 %v7245, %v7241
    %v7446 = vpack.c.b16 %v7246, %v7242
    %v7447 = vpack.c.b16 %v7251, %v7247
    %v7448 = vpack.c.b16 %v7252, %v7248
    %v7449 = vpack.c.b16 %v7253, %v7249
    %v7450 = vpack.c.b16 %v7254, %v7250
    %v7451 = vpack.c.b16 %v7259, %v7255
    %v7452 = vpack.c.b16 %v7260, %v7256
    %v7453 = vpack.c.b16 %v7261, %v7257
    %v7454 = vpack.c.b16 %v7262, %v7258
    %v7455 = vpack.c.b16 %v7267, %v7263
    %v7456 = vpack.c.b16 %v7268, %v7264
    %v7457 = vpack.c.b16 %v7269, %v7265
    %v7458 = vpack.c.b16 %v7270, %v7266
    %v7459 = vpack.c.b16 %v7275, %v7271
    %v7460 = vpack.c.b16 %v7276, %v7272
    %v7461 = vpack.c.b16 %v7277, %v7273
    %v7462 = vpack.c.b16 %v7278, %v7274
    %v7463 = vpack.c.b16 %v7283, %v7279
    %v7464 = vpack.c.b16 %v7284, %v7280
    %v7465 = vpack.c.b16 %v7285, %v7281
    %v7466 = vpack.c.b16 %v7286, %v7282
    %v7467 = vpack.c.b16 %v7291, %v7287
    %v7468 = vpack.c.b16 %v7292, %v7288
    %v7469 = vpack.c.b16 %v7293, %v7289
    %v7470 = vpack.c.b16 %v7294, %v7290
    %v7471 = vpack.c.b16 %v7299, %v7295
    %v7472 = vpack.c.b16 %v7300, %v7296
    %v7473 = vpack.c.b16 %v7301, %v7297
    %v7474 = vpack.c.b16 %v7302, %v7298
    %v7475 = vpack.c.b16 %v7307, %v7303
    %v7476 = vpack.c.b16 %v7308, %v7304
    %v7477 = vpack.c.b16 %v7309, %v7305
    %v7478 = vpack.c.b16 %v7310, %v7306
    %v7479 = vpack.c.b16 %v7315, %v7311
    %v7480 = vpack.c.b16 %v7316, %v7312
    %v7481 = vpack.c.b16 %v7317, %v7313
    %v7482 = vpack.c.b16 %v7318, %v7314
    %v7483 = vpack.c.b16 %v7323, %v7319
    %v7484 = vpack.c.b16 %v7324, %v7320
    %v7485 = vpack.c.b16 %v7325, %v7321
    %v7486 = vpack.c.b16 %v7326, %v7322
    %v7487 = vpack.c.b16 %v7331, %v7327
    %v7488 = vpack.c.b16 %v7332, %v7328
    %v7489 = vpack.c.b16 %v7333, %v7329
    %v7490 = vpack.c.b16 %v7334, %v7330
    %v7491 = vpack.c.b16 %v7339, %v7335
    %v7492 = vpack.c.b16 %v7340, %v7336
    %v7493 = vpack.c.b16 %v7341, %v7337
    %v7494 = vpack.c.b16 %v7342, %v7338
    %v7495 = vpack.c.b16 %v7347, %v7343
    %v7496 = vpack.c.b16 %v7348, %v7344
    %v7497 = vpack.c.b16 %v7349, %v7345
    %v7498 = vpack.c.b16 %v7350, %v7346
    %v7499 = vpack.c.b16 %v7355, %v7351
    %v7500 = vpack.c.b16 %v7356, %v7352
    %v7501 = vpack.c.b16 %v7357, %v7353
    %v7502 = vpack.c.b16 %v7358, %v7354
    %v7503 = vpack.c.b16 %v7363, %v7359
    %v7504 = vpack.c.b16 %v7364, %v7360
    %v7505 = vpack.c.b16 %v7365, %v7361
    %v7506 = vpack.c.b16 %v7366, %v7362
    %v7507 = vpack.c.b16 %v7371, %v7367
    %v7508 = vpack.c.b16 %v7372, %v7368
    %v7509 = vpack.c.b16 %v7373, %v7369
    %v7510 = vpack.c.b16 %v7374, %v7370
    %v7511 = vpack.c.b16 %v7379, %v7375
    %v7512 = vpack.c.b16 %v7380, %v7376
    %v7513 = vpack.c.b16 %v7381, %v7377
    %v7514 = vpack.c.b16 %v7382, %v7378
    %v7515 = vpack.c.b16 %v7387, %v7383
    %v7516 = vpack.c.b16 %v7388, %v7384
    %v7517 = vpack.c.b16 %v7389, %v7385
    %v7518 = vpack.c.b16 %v7390, %v7386
    %7647 = vmatprep.subr.bf16.mxu0 %v7392
    %7648 = vmatpush1.bf16.msra.mxu0 %v7391
    %7649 = vmatprep.subr.bf16.mxu0 %v7396
    %7650 = vmatpush1.bf16.msra.mxu0 %v7395
    %7651 = vmatprep.subr.bf16.mxu0 %v7400
    %7652 = vmatpush1.bf16.msra.mxu0 %v7399
    %7653 = vmatprep.subr.bf16.mxu0 %v7404
    %7654 = vmatpush1.bf16.msra.mxu0 %v7403
    %7655 = vmatprep.subr.bf16.mxu0 %v7408
    %7656 = vmatpush1.bf16.msra.mxu0 %v7407
    %7657 = vmatprep.subr.bf16.mxu0 %v7412
    %7658 = vmatpush1.bf16.msra.mxu0 %v7411
    %7659 = vmatprep.subr.bf16.mxu0 %v7416
    %7660 = vmatpush1.bf16.msra.mxu0 %v7415
    %7661 = vmatprep.subr.bf16.mxu0 %v7420
    %7662 = vmatpush1.bf16.msra.mxu0 %v7419
    %7663 = vmatprep.subr.bf16.mxu0 %v7424
    %7664 = vmatpush1.bf16.msra.mxu0 %v7423
    %7665 = vmatprep.subr.bf16.mxu0 %v7428
    %7666 = vmatpush1.bf16.msra.mxu0 %v7427
    %7667 = vmatprep.subr.bf16.mxu0 %v7432
    %7668 = vmatpush1.bf16.msra.mxu0 %v7431
    %7669 = vmatprep.subr.bf16.mxu0 %v7436
    %7670 = vmatpush1.bf16.msra.mxu0 %v7435
    %7671 = vmatprep.subr.bf16.mxu0 %v7440
    %7672 = vmatpush1.bf16.msra.mxu0 %v7439
    %7673 = vmatprep.subr.bf16.mxu0 %v7444
    %7674 = vmatpush1.bf16.msra.mxu0 %v7443
    %7675 = vmatprep.subr.bf16.mxu0 %v7448
    %7676 = vmatpush1.bf16.msra.mxu0 %v7447
    %7677 = vmatprep.subr.bf16.mxu0 %v7452
    %7678 = vmatpush1.bf16.msra.mxu0 %v7451
    %7679 = vmatprep.mubr.bf16.mxu0 %v6854
    %7680 = vmatmul.mubr.bf16.gmra.mrb[0].mxu0 %v6853
    %v7681 = vpop.f32.mrb[0].mxu0
    %v7682 = vadd.f32 %v6990, %v7681
    %v7683 = vpop.f32.mrb[0].mxu0
    %v7684 = vadd.f32 %v6994, %v7683
    %v7685 = vpop.f32.mrb[0].mxu0
    %v7686 = vpop.f32.mrb[0].mxu0
    %7687 = vdwg.mxu0
    %7688 = vmatprep.subr.bf16.mxu0 %v7456
    %7689 = vmatpush1.bf16.msra.mxu0 %v7455
    %7690 = vmatprep.subr.bf16.mxu0 %v7460
    %7691 = vmatpush1.bf16.msra.mxu0 %v7459
    %7692 = vmatprep.subr.bf16.mxu0 %v7464
    %7693 = vmatpush1.bf16.msra.mxu0 %v7463
    %7694 = vmatprep.subr.bf16.mxu0 %v7468
    %7695 = vmatpush1.bf16.msra.mxu0 %v7467
    %7696 = vmatprep.subr.bf16.mxu0 %v7472
    %7697 = vmatpush1.bf16.msra.mxu0 %v7471
    %7698 = vmatprep.subr.bf16.mxu0 %v7476
    %7699 = vmatpush1.bf16.msra.mxu0 %v7475
    %7700 = vmatprep.subr.bf16.mxu0 %v7480
    %7701 = vmatpush1.bf16.msra.mxu0 %v7479
    %7702 = vmatprep.subr.bf16.mxu0 %v7484
    %7703 = vmatpush1.bf16.msra.mxu0 %v7483
    %7704 = vmatprep.subr.bf16.mxu0 %v7488
    %7705 = vmatpush1.bf16.msra.mxu0 %v7487
    %7706 = vmatprep.subr.bf16.mxu0 %v7492
    %7707 = vmatpush1.bf16.msra.mxu0 %v7491
    %7708 = vmatprep.subr.bf16.mxu0 %v7496
    %7709 = vmatpush1.bf16.msra.mxu0 %v7495
    %7710 = vmatprep.subr.bf16.mxu0 %v7500
    %7711 = vmatpush1.bf16.msra.mxu0 %v7499
    %7712 = vmatprep.subr.bf16.mxu0 %v7504
    %7713 = vmatpush1.bf16.msra.mxu0 %v7503
    %7714 = vmatprep.subr.bf16.mxu0 %v7508
    %7715 = vmatpush1.bf16.msra.mxu0 %v7507
    %7716 = vmatprep.subr.bf16.mxu0 %v7512
    %7717 = vmatpush1.bf16.msra.mxu0 %v7511
    %7718 = vmatprep.subr.bf16.mxu0 %v7516
    %7719 = vmatpush1.bf16.msra.mxu0 %v7515
    %7720 = vmatprep.mubr.bf16.mxu0 %v6856
    %7721 = vmatmul.mubr.bf16.gmra.mrb[0].mxu0 %v6855
    %v7722 = vpop.f32.mrb[0].mxu0
    %v7723 = vadd.f32 %v7682, %v7722
    %v7724 = vpop.f32.mrb[0].mxu0
    %v7725 = vadd.f32 %v7684, %v7724
    %v7726 = vpop.f32.mrb[0].mxu0
    %v7727 = vpop.f32.mrb[0].mxu0
    %7728 = vdwg.mxu0
    %7729 = vmatprep.subr.bf16.mxu0 %v7394
    %7730 = vmatpush1.bf16.msra.mxu0 %v7393
    %7731 = vmatprep.subr.bf16.mxu0 %v7398
    %7732 = vmatpush1.bf16.msra.mxu0 %v7397
    %7733 = vmatprep.subr.bf16.mxu0 %v7402
    %7734 = vmatpush1.bf16.msra.mxu0 %v7401
    %7735 = vmatprep.subr.bf16.mxu0 %v7406
    %7736 = vmatpush1.bf16.msra.mxu0 %v7405
    %7737 = vmatprep.subr.bf16.mxu0 %v7410
    %7738 = vmatpush1.bf16.msra.mxu0 %v7409
    %7739 = vmatprep.subr.bf16.mxu0 %v7414
    %7740 = vmatpush1.bf16.msra.mxu0 %v7413
    %7741 = vmatprep.subr.bf16.mxu0 %v7418
    %7742 = vmatpush1.bf16.msra.mxu0 %v7417
    %7743 = vmatprep.subr.bf16.mxu0 %v7422
    %7744 = vmatpush1.bf16.msra.mxu0 %v7421
    %7745 = vmatprep.subr.bf16.mxu0 %v7426
    %7746 = vmatpush1.bf16.msra.mxu0 %v7425
    %7747 = vmatprep.subr.bf16.mxu0 %v7430
    %7748 = vmatpush1.bf16.msra.mxu0 %v7429
    %7749 = vmatprep.subr.bf16.mxu0 %v7434
    %7750 = vmatpush1.bf16.msra.mxu0 %v7433
    %7751 = vmatprep.subr.bf16.mxu0 %v7438
    %7752 = vmatpush1.bf16.msra.mxu0 %v7437
    %7753 = vmatprep.subr.bf16.mxu0 %v7442
    %7754 = vmatpush1.bf16.msra.mxu0 %v7441
    %7755 = vmatprep.subr.bf16.mxu0 %v7446
    %7756 = vmatpush1.bf16.msra.mxu0 %v7445
    %7757 = vmatprep.subr.bf16.mxu0 %v7450
    %7758 = vmatpush1.bf16.msra.mxu0 %v7449
    %7759 = vmatprep.subr.bf16.mxu0 %v7454
    %7760 = vmatpush1.bf16.msra.mxu0 %v7453
    %7761 = vmatprep.mubr.bf16.mxu0 %v6854
    %7762 = vmatmul.mubr.bf16.gmra.mrb[0].mxu0 %v6853
    %v7763 = vpop.f32.mrb[0].mxu0
    %v7764 = vadd.f32 %v6998, %v7763
    %v7765 = vpop.f32.mrb[0].mxu0
    %v7766 = vadd.f32 %v7002, %v7765
    %v7767 = vpop.f32.mrb[0].mxu0
    %v7768 = vpop.f32.mrb[0].mxu0
    %7769 = vdwg.mxu0
    %7770 = vmatprep.subr.bf16.mxu0 %v7458
    %7771 = vmatpush1.bf16.msra.mxu0 %v7457
    %7772 = vmatprep.subr.bf16.mxu0 %v7462
    %7773 = vmatpush1.bf16.msra.mxu0 %v7461
    %7774 = vmatprep.subr.bf16.mxu0 %v7466
    %7775 = vmatpush1.bf16.msra.mxu0 %v7465
    %7776 = vmatprep.subr.bf16.mxu0 %v7470
    %7777 = vmatpush1.bf16.msra.mxu0 %v7469
    %7778 = vmatprep.subr.bf16.mxu0 %v7474
    %7779 = vmatpush1.bf16.msra.mxu0 %v7473
    %7780 = vmatprep.subr.bf16.mxu0 %v7478
    %7781 = vmatpush1.bf16.msra.mxu0 %v7477
    %7782 = vmatprep.subr.bf16.mxu0 %v7482
    %7783 = vmatpush1.bf16.msra.mxu0 %v7481
    %7784 = vmatprep.subr.bf16.mxu0 %v7486
    %7785 = vmatpush1.bf16.msra.mxu0 %v7485
    %7786 = vmatprep.subr.bf16.mxu0 %v7490
    %7787 = vmatpush1.bf16.msra.mxu0 %v7489
    %7788 = vmatprep.subr.bf16.mxu0 %v7494
    %7789 = vmatpush1.bf16.msra.mxu0 %v7493
    %7790 = vmatprep.subr.bf16.mxu0 %v7498
    %7791 = vmatpush1.bf16.msra.mxu0 %v7497
    %7792 = vmatprep.subr.bf16.mxu0 %v7502
    %7793 = vmatpush1.bf16.msra.mxu0 %v7501
    %7794 = vmatprep.subr.bf16.mxu0 %v7506
    %7795 = vmatpush1.bf16.msra.mxu0 %v7505
    %7796 = vmatprep.subr.bf16.mxu0 %v7510
    %7797 = vmatpush1.bf16.msra.mxu0 %v7509
    %7798 = vmatprep.subr.bf16.mxu0 %v7514
    %7799 = vmatpush1.bf16.msra.mxu0 %v7513
    %7800 = vmatprep.subr.bf16.mxu0 %v7518
    %7801 = vmatpush1.bf16.msra.mxu0 %v7517
    %7802 = vmatprep.mubr.bf16.mxu0 %v6856
    %7803 = vmatmul.mubr.bf16.gmra.mrb[0].mxu0 %v6855
    %v7804 = vpop.f32.mrb[0].mxu0
    %v7805 = vadd.f32 %v7764, %v7804
    %v7806 = vpop.f32.mrb[0].mxu0
    %v7807 = vadd.f32 %v7766, %v7806
    %v7808 = vpop.f32.mrb[0].mxu0
    %v7809 = vpop.f32.mrb[0].mxu0
    %7810 = vdwg.mxu0
    %v7811 = vmax.f32 %v7723, 0.0
    %v7812 = vmax.f32 %v7725, 0.0
    %v7813 = vmax.f32 %v7805, 0.0
    %v7814 = vmax.f32 %v7807, 0.0
    %v7819 = vcombine.low %v7811, %v7812
    %v7820 = vcombine.high %v7811, %v7812
    %v7821 = vcombine.low %v7813, %v7814
    %v7822 = vcombine.high %v7813, %v7814
    %v7824 = vunpack.c.l.s4 1983009808
    %v7825 = vunpack.c.0.s8 %v7824
    %v7826 = vlaneseq
    %v7827 = vshrl.u32 %v7826, 7
    %v7828 = vsub.s32 %v7825, %v7827
    %v7829 = vrot.slane %v7819, %v7828
    %v7831 = vunpack.c.l.s4 1983009808
    %v7832 = vunpack.c.0.s8 %v7831
    %v7833 = vlaneseq
    %v7834 = vshrl.u32 %v7833, 7
    %v7835 = vsub.s32 %v7832, %v7834
    %v7836 = vrot.slane %v7820, %v7835
    %v7838 = vunpack.c.l.s4 1983009808
    %v7839 = vunpack.c.0.s8 %v7838
    %v7840 = vlaneseq
    %v7841 = vshrl.u32 %v7840, 7
    %v7842 = vsub.s32 %v7839, %v7841
    %v7843 = vrot.slane %v7821, %v7842
    %v7845 = vunpack.c.l.s4 1983009808
    %v7846 = vunpack.c.0.s8 %v7845
    %v7847 = vlaneseq
    %v7848 = vshrl.u32 %v7847, 7
    %v7849 = vsub.s32 %v7846, %v7848
    %v7850 = vrot.slane %v7822, %v7849
    %v7851 = vcombine.low %v7829, %v7843
    %v7852 = vcombine.high %v7829, %v7843
    %v7853 = vcombine.low %v7836, %v7850
    %v7854 = vcombine.high %v7836, %v7850
    %7859 = vst [vmem:[#allocation17] sm:$0xff] %v7851
    %7860 = vst [vmem:[#allocation17 + $0x8] sm:$0xff] %v7852
    %7861 = vst [vmem:[#allocation17 + $0x10] sm:$0xff] %v7853
    %7862 = vst [vmem:[#allocation17 + $0x18] sm:$0xff] %v7854
    // Predicated region
    $region74: #{decoder_net_forward.1} parent=1 // pred_check
      _
    $region75: #{decoder_net_forward.1} parent=1 // pred_check_branch
      %7864 = sbr.rel (0) target = $region77
    $region76: #{decoder_net_forward.1} parent=1 // pred_region
      %s7866 = ssub.s32 512, 128
      %7867 = vsyncadd [#allocation4], %s7866
      %s7868 = sshll.u32 [#allocation17], 4
      %s7869 = int_to_ptr.vmem [resolvable:$true] %s7868
      %7874 = dma.vmem_to_hbm [thread:$0]  %s7869, 128, %s9, [#allocation4], 128, 128, 8
    $region77: #{decoder_net_forward.1} parent=1 // pred_fallthru
      _
    // Predicated region
    $region78: #{decoder_net_forward.1} parent=1 // pred_check
      _
    $region79: #{decoder_net_forward.1} parent=1 // pred_check_branch
      %7876 = sbr.rel (0) target = $region81
    $region80: #{decoder_net_forward.1} parent=1 // pred_region
      %7877 = dma.done [#allocation4], 512
    $region81: #{decoder_net_forward.1} parent=1 // pred_fallthru
      _
    %7878 = vsyncpa [#allocation3], 1
    %7879 = vsyncpa [#allocation6], 1
    %7880 = vsyncpa [#allocation9], 1
    %7881 = vsyncpa [#allocation12], 1
    %7882 = vsyncpa [#allocation15], 1
    %7883 = vsyncpa [#allocation4], 1

</llo_original>
